<compile_context>
chip_gen: v7x
topology: tpu7x:2x2x1
jax: 0.10.0
libtpu: 0.0.40
codegen_flags: <defaults>
</compile_context>

<pallas_src>
import numpy as np

import jax
import jax.numpy as jnp
from jax import lax
from jax.experimental import pallas as pl
from jax.experimental.pallas import tpu as pltpu

_NEG_SLOPE = 0.001            # nn.LeakyReLU(0.001) in the reference module
_ROW_ALIGN = 16               # bf16 sublane packing -> keep row slices aligned
_VMEM_LIMIT = 32 * 1024 * 1024


def _round_up(x, m):
    return (x + m - 1) // m * m


def _conv_out(n, k, s, p):
    return (n + 2 * p - k) // s + 1


# ----------------------------------------------------------------------------
# Host-side constants: 0/1 gather matrices (shape-dependent only)
# ----------------------------------------------------------------------------
def _gather_matrix_np(ih, iw, kh, kw, sh, sw, pad, m1_rows, m2_align=_ROW_ALIGN):
    """G (kh*kw*M2p, m1_rows): row (j*M2p + m2) is a one-hot picking the input
    row feeding output position m2 at kernel offset j (all-zero for padding
    positions and for the M2->M2p alignment rows)."""
    assert m1_rows >= ih * iw
    oh = _conv_out(ih, kh, sh, pad)
    ow = _conv_out(iw, kw, sw, pad)
    m2 = oh * ow
    m2p = _round_up(m2, m2_align)
    khkw = kh * kw
    g = np.zeros((khkw, m2p, m1_rows), np.float32)
    for ky in range(kh):
        for kx in range(kw):
            j = ky * kw + kx
            for oy in range(oh):
                iy = oy * sh + ky - pad
                if iy < 0 or iy >= ih:
                    continue
                for ox in range(ow):
                    ix = ox * sw + kx - pad
                    if 0 <= ix < iw:
                        g[j, oy * ow + ox, iy * iw + ix] = 1.0
    return g.reshape(khkw * m2p, m1_rows), (oh, ow), m2, m2p


# ----------------------------------------------------------------------------
# Wrapper-side im2col (first layer only -- tiny input)
# ----------------------------------------------------------------------------
def _im2col(x_nhwc, kh, kw, sh, sw, pad):
    xp = jnp.pad(x_nhwc, ((0, 0), (pad, pad), (pad, pad), (0, 0)))
    B, Hp, Wp, C = xp.shape
    OH = (Hp - kh) // sh + 1
    OW = (Wp - kw) // sw + 1
    cols = []
    for ky in range(kh):
        for kx in range(kw):
            cols.append(xp[:, ky:ky + sh * OH:sh, kx:kx + sw * OW:sw, :])
    patches = jnp.stack(cols, axis=3)             # (B, OH, OW, kh*kw, C)
    return patches.reshape(B, OH * OW, kh * kw * C), (OH, OW)


# ----------------------------------------------------------------------------
# Fused Pallas kernel (whole network, one grid step per batch sample)
# ----------------------------------------------------------------------------
def _make_fused_kernel(specs):
    """specs: tuple of dicts {khkw, m2, m2p, act, role}; role in
    {'main','src','cls'}; applied sequentially after the first conv."""
    n = len(specs)

    def kernel(*refs):
        p1_ref, w1_ref, b1_ref = refs[0], refs[1], refs[2]
        osrc_ref = refs[3 + 3 * n]
        ocls_ref = refs[3 + 3 * n + 1]

        # ---- first conv: (M1, K1) @ (K1, C1) on the MXU ----
        h = jnp.dot(p1_ref[0], w1_ref[...], preferred_element_type=jnp.float32)
        h = h + b1_ref[...]
        h = jnp.where(h >= 0.0, h, h * _NEG_SLOPE)
        h = h.astype(jnp.bfloat16)                 # stays resident on-chip

        # ---- remaining convs + heads: gather-matmul + per-offset weights ----
        for i, spec in enumerate(specs):
            g_ref, w_ref, b_ref = refs[3 + 3 * i], refs[4 + 3 * i], refs[5 + 3 * i]
            m2, m2p, khkw = spec["m2"], spec["m2p"], spec["khkw"]
            cout = w_ref.shape[2]
            # On-chip "im2col": constant 0/1 matrix gathers (and zero-pads) the
            # VMEM-resident activation rows into patch rows -- exact for bf16.
            p = jnp.dot(g_ref[...], h, preferred_element_type=jnp.float32)
            p = p.astype(jnp.bfloat16)
            acc = jnp.zeros((m2p, cout), jnp.float32)
            for j in range(khkw):                  # static, unrolled offsets
                acc = acc + jnp.dot(p[j * m2p:(j + 1) * m2p, :], w_ref[j],
                                    preferred_element_type=jnp.float32)
            acc = acc + b_ref[...]
            if spec["act"]:
                acc = jnp.where(acc >= 0.0, acc, acc * _NEG_SLOPE)
            if spec["role"] == "main":
                h = acc.astype(jnp.bfloat16)       # chained, never leaves VMEM
            elif spec["role"] == "src":
                osrc_ref[0] = acc[:m2, :]
            else:  # 'cls'
                ocls_ref[0] = acc[:m2, :]

    return kernel


def _full_spec(shape):
    zero = (0,) * len(shape)
    return pl.BlockSpec(tuple(shape), lambda b, _z=zero: _z)


def _batch_spec(shape):
    tail = (0,) * (len(shape) - 1)
    return pl.BlockSpec((1,) + tuple(shape[1:]), lambda b, _t=tail: (b,) + _t)


# ----------------------------------------------------------------------------
# Discriminator: replicate __init__ shape logic, build fused forward
# ----------------------------------------------------------------------------
def build_discriminator(key, input_size, input_channels=1,
                        base_num_features=8, c_dim=4, repeat_num=3):
    assert len(input_size) == 2, "2-D discriminator"
    ks = [4, 4]
    stride = [2, 2]
    cur_size = [(s + 1) // 2 for s in input_size]
    ks = [ks[i] if cur_size[i] != 1 else 2 for i in range(2)]
    stride = [stride[i] if cur_size[i] != 1 else 2 for i in range(2)]

    layer_cfgs = [(input_channels, base_num_features, tuple(ks), tuple(stride), 1)]
    cur = base_num_features
    for _ in range(1, repeat_num):
        cur_size = [(s + 1) // 2 for s in cur_size]
        ks = [ks[i] if cur_size[i] != 1 else 2 for i in range(2)]
        stride = [stride[i] if cur_size[i] != 1 else 2 for i in range(2)]
        layer_cfgs.append((cur, cur * 2, tuple(ks), tuple(stride), 1))
        cur = cur * 2

    cls_ks = [int(s / (2 ** repeat_num)) for s in input_size]
    cls_ks = [k if k != 0 else 1 for k in cls_ks]

    def _conv_params(k, cout, cin, kh, kw):
        kw_key, kb_key = jax.random.split(k)
        w = 0.1 * jax.random.normal(kw_key, (cout, cin, kh, kw), jnp.float32)
        b = 0.01 * jax.random.normal(kb_key, (cout,), jnp.float32)
        return w, b

    keys = jax.random.split(key, len(layer_cfgs) + 2)
    main_params = []
    for i, (cin, cout, k_, s_, p_) in enumerate(layer_cfgs):
        main_params.append(_conv_params(keys[i], cout, cin, k_[0], k_[1]))
    d_src = _conv_params(keys[-2], 1, cur, 3, 3)
    d_cls = _conv_params(keys[-1], c_dim, cur, cls_ks[0], cls_ks[1])
    params = {"main": main_params, "d_src": d_src, "d_cls": d_cls}
    return params, layer_cfgs, cls_ks


def make_discriminator_forward(layer_cfgs, cls_ks, input_size, c_dim):
    # spatial sizes through the main stack
    sizes = [tuple(input_size)]
    for (_, _, ks, st, p) in layer_cfgs:
        h, w = sizes[-1]
        sizes.append((_conv_out(h, ks[0], st[0], p), _conv_out(w, ks[1], st[1], p)))

    # gather matrices + static specs for layers 2..R and both heads
    entries = []
    prev_rows = sizes[1][0] * sizes[1][1]          # rows of the layer-1 output
    for li in range(1, len(layer_cfgs)):
        cin, cout, ks, st, p = layer_cfgs[li]
        ih, iw = sizes[li]
        g, _, m2, m2p = _gather_matrix_np(ih, iw, ks[0], ks[1], st[0], st[1],
                                          p, prev_rows)
        entries.append(dict(g=jnp.asarray(g, jnp.bfloat16), khkw=ks[0] * ks[1],
                            m2=m2, m2p=m2p, act=True, role="main",
                            ks=ks, cin=cin, cout=cout))
        prev_rows = m2p

    hh, hw = sizes[-1]
    hid_c = layer_cfgs[-1][1]
    g, (ohs, ows), m2s, m2ps = _gather_matrix_np(hh, hw, 3, 3, 1, 1, 1, prev_rows)
    entries.append(dict(g=jnp.asarray(g, jnp.bfloat16), khkw=9, m2=m2s, m2p=m2ps,
                        act=False, role="src", ks=(3, 3), cin=hid_c, cout=1))
    g, (ohc, owc), m2c, m2pc = _gather_matrix_np(hh, hw, cls_ks[0], cls_ks[1],
                                                 1, 1, 0, prev_rows)
    entries.append(dict(g=jnp.asarray(g, jnp.bfloat16),
                        khkw=cls_ks[0] * cls_ks[1], m2=m2c, m2p=m2pc,
                        act=False, role="cls", ks=tuple(cls_ks),
                        cin=hid_c, cout=c_dim))
    assert m2c == 1, "d_cls must reduce to 1x1 spatially (module does .view)"

    specs = tuple(dict(khkw=e["khkw"], m2=e["m2"], m2p=e["m2p"],
                       act=e["act"], role=e["role"]) for e in entries)
    kernel = _make_fused_kernel(specs)
    cfg0 = layer_cfgs[0]

    def forward(params, x_nchw):
        B = x_nchw.shape[0]
        cin0, cout0, ks0, st0, p0 = cfg0
        x = jnp.transpose(x_nchw, (0, 2, 3, 1)).astype(jnp.bfloat16)   # NHWC
        p1, _ = _im2col(x, ks0[0], ks0[1], st0[0], st0[1], p0)         # (B,M1,K1)

        w1, b1 = params["main"][0]
        w1f = jnp.transpose(w1, (2, 3, 1, 0)).reshape(ks0[0] * ks0[1] * cin0,
                                                      cout0).astype(jnp.bfloat16)
        b1f = b1.reshape(1, cout0).astype(jnp.float32)

        inputs = [p1, w1f, b1f]
        in_specs = [_batch_spec(p1.shape), _full_spec(w1f.shape),
                    _full_spec(b1f.shape)]

        layer_params = list(params["main"][1:]) + [params["d_src"],
                                                   params["d_cls"]]
        for e, (w, bias) in zip(entries, layer_params):
            kh, kw = e["ks"]
            wre = jnp.transpose(w, (2, 3, 1, 0)).reshape(
                kh * kw, e["cin"], e["cout"]).astype(jnp.bfloat16)
            bre = bias.reshape(1, e["cout"]).astype(jnp.float32)
            inputs += [e["g"], wre, bre]
            in_specs += [_full_spec(e["g"].shape), _full_spec(wre.shape),
                         _full_spec(bre.shape)]

        out_shapes = (jax.ShapeDtypeStruct((B, m2s, 1), jnp.float32),
                      jax.ShapeDtypeStruct((B, m2c, c_dim), jnp.float32))
        out_specs = (_batch_spec((B, m2s, 1)), _batch_spec((B, m2c, c_dim)))

        out_src, out_cls = pl.pallas_call(
            kernel,
            out_shape=out_shapes,
            grid=(B,),
            in_specs=in_specs,
            out_specs=out_specs,
            compiler_params=pltpu.CompilerParams(
                dimension_semantics=("parallel",),
                vmem_limit_bytes=_VMEM_LIMIT),
        )(*inputs)

        out_src = out_src.reshape(B, ohs, ows, 1).transpose(0, 3, 1, 2)  # NCHW
        out_cls = out_cls.reshape(B, m2c * c_dim)
        return out_src, out_cls

    return forward


# ----------------------------------------------------------------------------
# Pure-JAX references (correctness check only)
# ----------------------------------------------------------------------------
def _conv_ref(x_nhwc, w_oihw, bias, stride, padding, quantize):
    if quantize:   # mirror the kernel's bf16 matmul inputs (f32 accumulation)
        x_nhwc = x_nhwc.astype(jnp.bfloat16).astype(jnp.float32)
        w_oihw = w_oihw.astype(jnp.bfloat16).astype(jnp.float32)
    w_hwio = jnp.transpose(w_oihw, (2, 3, 1, 0))
    out = lax.conv_general_dilated(
        x_nhwc, w_hwio, window_strides=stride,
        padding=[(padding, padding), (padding, padding)],
        dimension_numbers=("NHWC", "HWIO", "NHWC"),
        precision=lax.Precision.HIGHEST)
    return out + bias.reshape(1, 1, 1, -1)


def discriminator_forward_ref(params, layer_cfgs, x_nchw, quantize):
    h = jnp.transpose(x_nchw, (0, 2, 3, 1))
    for (w, b), (_, _, _, st, pad) in zip(params["main"], layer_cfgs):
        h = _conv_ref(h, w, b, st, pad, quantize)
        h = jnp.where(h >= 0.0, h, _NEG_SLOPE * h)
    w_src, b_src = params["d_src"]
    out_src = _conv_ref(h, w_src, b_src, (1, 1), 1, quantize)
    w_cls, b_cls = params["d_cls"]
    out_cls = _conv_ref(h, w_cls, b_cls, (1, 1), 0, quantize)
    return (jnp.transpose(out_src, (0, 3, 1, 2)),
            out_cls.reshape(out_cls.shape[0], -1))


# ----------------------------------------------------------------------------
if __name__ == "__main__":
    key = jax.random.PRNGKey(0)
    k_params, k_x = jax.random.split(key)

    # small config consistent with the module: input 32x32, base 8 features,
    # repeat_num=3, c_dim=4  ->  hidden (B, 32, 4, 4)
    input_size = [32, 32]
    B, C_in, C_DIM = 2, 1, 4
    params, layer_cfgs, cls_ks = build_discriminator(
        k_params, input_size, input_channels=C_in,
        base_num_features=8, c_dim=C_DIM, repeat_num=3)

    x = jax.random.normal(k_x, (B, C_in, input_size[0], input_size[1]),
                          jnp.float32)

    fwd = jax.jit(make_discriminator_forward(layer_cfgs, cls_ks, input_size,
                                             c_dim=C_DIM))
    out_src, out_cls = fwd(params, x)
    jax.block_until_ready((out_src, out_cls))

    assert out_src.shape == (B, 1, 4, 4), out_src.shape
    assert out_cls.shape == (B, C_DIM), out_cls.shape

    # Tight check vs a reference using the same bf16 input/weight quantization
    # (validates gather ordering, matmuls, bias, LeakyReLU exactly).
    ref_src, ref_cls = discriminator_forward_ref(params, layer_cfgs, x, True)
    assert jnp.allclose(out_src, ref_src, rtol=5e-3, atol=5e-3), (
        float(jnp.max(jnp.abs(out_src - ref_src))))
    assert jnp.allclose(out_cls, ref_cls, rtol=5e-3, atol=5e-3), (
        float(jnp.max(jnp.abs(out_cls - ref_cls))))

    # Loose sanity check vs the full-f32 reference (bf16 quantization error
    # only; catches any gross structural mistake).
    f32_src, f32_cls = discriminator_forward_ref(params, layer_cfgs, x, False)
    assert jnp.allclose(out_src, f32_src, rtol=1e-1, atol=1e-1)
    assert jnp.allclose(out_cls, f32_cls, rtol=1e-1, atol=1e-1)

    print("KERNEL_OK")
</pallas_src>

<mosaic_0001>
module attributes {stable_mosaic.version = 11 : i64} {
  func.func @kernel(%arg0: i32, %arg1: memref<1x256x16xbf16, #tpu.memory_space<vmem>>, %arg2: memref<16x8xbf16, #tpu.memory_space<vmem>>, %arg3: memref<1x8xf32, #tpu.memory_space<vmem>>, %arg4: memref<1024x256xbf16, #tpu.memory_space<vmem>>, %arg5: memref<16x8x16xbf16, #tpu.memory_space<vmem>>, %arg6: memref<1x16xf32, #tpu.memory_space<vmem>>, %arg7: memref<256x64xbf16, #tpu.memory_space<vmem>>, %arg8: memref<16x16x32xbf16, #tpu.memory_space<vmem>>, %arg9: memref<1x32xf32, #tpu.memory_space<vmem>>, %arg10: memref<144x16xbf16, #tpu.memory_space<vmem>>, %arg11: memref<9x32x1xbf16, #tpu.memory_space<vmem>>, %arg12: memref<1x1xf32, #tpu.memory_space<vmem>>, %arg13: memref<256x16xbf16, #tpu.memory_space<vmem>>, %arg14: memref<16x32x4xbf16, #tpu.memory_space<vmem>>, %arg15: memref<1x4xf32, #tpu.memory_space<vmem>>, %arg16: memref<1x16x1xf32, #tpu.memory_space<vmem>>, %arg17: memref<1x1x4xf32, #tpu.memory_space<vmem>>) attributes {dimension_semantics = [#tpu.dimension_semantics<parallel>], iteration_bounds = array<i64: 2>, scalar_prefetch = 0 : i64, scratch_operands = 0 : i64, tpu.core_type = #tpu.core_type<tc>, window_params = [{transform_indices = @transform_0, window_bounds = array<i64: 1, 256, 16>}, {pipeline_mode = #tpu.pipeline_mode<synchronous>, transform_indices = @transform_1, window_bounds = array<i64: 16, 8>}, {pipeline_mode = #tpu.pipeline_mode<synchronous>, transform_indices = @transform_2, window_bounds = array<i64: 1, 8>}, {pipeline_mode = #tpu.pipeline_mode<synchronous>, transform_indices = @transform_3, window_bounds = array<i64: 1024, 256>}, {pipeline_mode = #tpu.pipeline_mode<synchronous>, transform_indices = @transform_4, window_bounds = array<i64: 16, 8, 16>}, {pipeline_mode = #tpu.pipeline_mode<synchronous>, transform_indices = @transform_5, window_bounds = array<i64: 1, 16>}, {pipeline_mode = #tpu.pipeline_mode<synchronous>, transform_indices = @transform_6, window_bounds = array<i64: 256, 64>}, {pipeline_mode = #tpu.pipeline_mode<synchronous>, transform_indices = @transform_7, window_bounds = array<i64: 16, 16, 32>}, {pipeline_mode = #tpu.pipeline_mode<synchronous>, transform_indices = @transform_8, window_bounds = array<i64: 1, 32>}, {pipeline_mode = #tpu.pipeline_mode<synchronous>, transform_indices = @transform_9, window_bounds = array<i64: 144, 16>}, {pipeline_mode = #tpu.pipeline_mode<synchronous>, transform_indices = @transform_10, window_bounds = array<i64: 9, 32, 1>}, {pipeline_mode = #tpu.pipeline_mode<synchronous>, transform_indices = @transform_11, window_bounds = array<i64: 1, 1>}, {pipeline_mode = #tpu.pipeline_mode<synchronous>, transform_indices = @transform_12, window_bounds = array<i64: 256, 16>}, {pipeline_mode = #tpu.pipeline_mode<synchronous>, transform_indices = @transform_13, window_bounds = array<i64: 16, 32, 4>}, {pipeline_mode = #tpu.pipeline_mode<synchronous>, transform_indices = @transform_14, window_bounds = array<i64: 1, 4>}, {transform_indices = @transform_15, window_bounds = array<i64: 1, 16, 1>}, {transform_indices = @transform_16, window_bounds = array<i64: 1, 1, 4>}]} {
    %c0 = arith.constant 0 : index
    %c0_0 = arith.constant 0 : index
    %c0_1 = arith.constant 0 : index
    %0 = vector.load %arg1[%c0, %c0_0, %c0_1] : memref<1x256x16xbf16, #tpu.memory_space<vmem>>, vector<1x256x16xbf16>
    %1 = vector.shape_cast %0 : vector<1x256x16xbf16> to vector<256x16xbf16>
    %c0_2 = arith.constant 0 : index
    %c0_3 = arith.constant 0 : index
    %2 = vector.load %arg2[%c0_2, %c0_3] : memref<16x8xbf16, #tpu.memory_space<vmem>>, vector<16x8xbf16>
    %cst = arith.constant dense<0.000000e+00> : vector<256x8xf32>
    %3 = tpu.matmul %1, %2, %cst {dimension_numbers = #tpu.dot_dimension_numbers<[1], [0], [0], [1], [0, 0, 1, 1], [], []>} : vector<256x16xbf16>, vector<16x8xbf16>, vector<256x8xf32> -> vector<256x8xf32>
    %c0_4 = arith.constant 0 : index
    %c0_5 = arith.constant 0 : index
    %4 = vector.load %arg3[%c0_4, %c0_5] : memref<1x8xf32, #tpu.memory_space<vmem>>, vector<1x8xf32>
    %5 = vector.broadcast %4 : vector<1x8xf32> to vector<256x8xf32>
    %6 = arith.addf %3, %5 : vector<256x8xf32>
    %cst_6 = arith.constant 0.000000e+00 : f32
    %7 = vector.broadcast %cst_6 : f32 to vector<256x8xf32>
    %8 = arith.cmpf oge, %6, %7 : vector<256x8xf32>
    %cst_7 = arith.constant 1.000000e-03 : f32
    %9 = vector.broadcast %cst_7 : f32 to vector<256x8xf32>
    %10 = arith.mulf %6, %9 : vector<256x8xf32>
    %11 = arith.select %8, %6, %10 : vector<256x8xi1>, vector<256x8xf32>
    %12 = arith.truncf %11 : vector<256x8xf32> to vector<256x8xbf16>
    %c0_8 = arith.constant 0 : index
    %c0_9 = arith.constant 0 : index
    %13 = vector.load %arg4[%c0_8, %c0_9] : memref<1024x256xbf16, #tpu.memory_space<vmem>>, vector<1024x256xbf16>
    %cst_10 = arith.constant dense<0.000000e+00> : vector<1024x8xf32>
    %14 = tpu.matmul %13, %12, %cst_10 {dimension_numbers = #tpu.dot_dimension_numbers<[1], [0], [0], [1], [0, 0, 1, 1], [], []>} : vector<1024x256xbf16>, vector<256x8xbf16>, vector<1024x8xf32> -> vector<1024x8xf32>
    %15 = arith.truncf %14 : vector<1024x8xf32> to vector<1024x8xbf16>
    %cst_11 = arith.constant 0.000000e+00 : f32
    %16 = vector.broadcast %cst_11 : f32 to vector<64x16xf32>
    %17 = vector.extract_strided_slice %15 {offsets = [0, 0], sizes = [64, 8], strides = [1, 1]} : vector<1024x8xbf16> to vector<64x8xbf16>
    %c0_12 = arith.constant 0 : index
    %c0_13 = arith.constant 0 : index
    %c0_14 = arith.constant 0 : index
    %18 = vector.load %arg5[%c0_12, %c0_13, %c0_14] : memref<16x8x16xbf16, #tpu.memory_space<vmem>>, vector<1x8x16xbf16>
    %19 = vector.shape_cast %18 : vector<1x8x16xbf16> to vector<8x16xbf16>
    %cst_15 = arith.constant dense<0.000000e+00> : vector<64x16xf32>
    %20 = tpu.matmul %17, %19, %cst_15 {dimension_numbers = #tpu.dot_dimension_numbers<[1], [0], [0], [1], [0, 0, 1, 1], [], []>} : vector<64x8xbf16>, vector<8x16xbf16>, vector<64x16xf32> -> vector<64x16xf32>
    %21 = arith.addf %16, %20 : vector<64x16xf32>
    %22 = vector.extract_strided_slice %15 {offsets = [64, 0], sizes = [64, 8], strides = [1, 1]} : vector<1024x8xbf16> to vector<64x8xbf16>
    %c1 = arith.constant 1 : index
    %c0_16 = arith.constant 0 : index
    %c0_17 = arith.constant 0 : index
    %23 = vector.load %arg5[%c1, %c0_16, %c0_17] : memref<16x8x16xbf16, #tpu.memory_space<vmem>>, vector<1x8x16xbf16>
    %24 = vector.shape_cast %23 : vector<1x8x16xbf16> to vector<8x16xbf16>
    %cst_18 = arith.constant dense<0.000000e+00> : vector<64x16xf32>
    %25 = tpu.matmul %22, %24, %cst_18 {dimension_numbers = #tpu.dot_dimension_numbers<[1], [0], [0], [1], [0, 0, 1, 1], [], []>} : vector<64x8xbf16>, vector<8x16xbf16>, vector<64x16xf32> -> vector<64x16xf32>
    %26 = arith.addf %21, %25 : vector<64x16xf32>
    %27 = vector.extract_strided_slice %15 {offsets = [128, 0], sizes = [64, 8], strides = [1, 1]} : vector<1024x8xbf16> to vector<64x8xbf16>
    %c2 = arith.constant 2 : index
    %c0_19 = arith.constant 0 : index
    %c0_20 = arith.constant 0 : index
    %28 = vector.load %arg5[%c2, %c0_19, %c0_20] : memref<16x8x16xbf16, #tpu.memory_space<vmem>>, vector<1x8x16xbf16>
    %29 = vector.shape_cast %28 : vector<1x8x16xbf16> to vector<8x16xbf16>
    %cst_21 = arith.constant dense<0.000000e+00> : vector<64x16xf32>
    %30 = tpu.matmul %27, %29, %cst_21 {dimension_numbers = #tpu.dot_dimension_numbers<[1], [0], [0], [1], [0, 0, 1, 1], [], []>} : vector<64x8xbf16>, vector<8x16xbf16>, vector<64x16xf32> -> vector<64x16xf32>
    %31 = arith.addf %26, %30 : vector<64x16xf32>
    %32 = vector.extract_strided_slice %15 {offsets = [192, 0], sizes = [64, 8], strides = [1, 1]} : vector<1024x8xbf16> to vector<64x8xbf16>
    %c3 = arith.constant 3 : index
    %c0_22 = arith.constant 0 : index
    %c0_23 = arith.constant 0 : index
    %33 = vector.load %arg5[%c3, %c0_22, %c0_23] : memref<16x8x16xbf16, #tpu.memory_space<vmem>>, vector<1x8x16xbf16>
    %34 = vector.shape_cast %33 : vector<1x8x16xbf16> to vector<8x16xbf16>
    %cst_24 = arith.constant dense<0.000000e+00> : vector<64x16xf32>
    %35 = tpu.matmul %32, %34, %cst_24 {dimension_numbers = #tpu.dot_dimension_numbers<[1], [0], [0], [1], [0, 0, 1, 1], [], []>} : vector<64x8xbf16>, vector<8x16xbf16>, vector<64x16xf32> -> vector<64x16xf32>
    %36 = arith.addf %31, %35 : vector<64x16xf32>
    %37 = vector.extract_strided_slice %15 {offsets = [256, 0], sizes = [64, 8], strides = [1, 1]} : vector<1024x8xbf16> to vector<64x8xbf16>
    %c4 = arith.constant 4 : index
    %c0_25 = arith.constant 0 : index
    %c0_26 = arith.constant 0 : index
    %38 = vector.load %arg5[%c4, %c0_25, %c0_26] : memref<16x8x16xbf16, #tpu.memory_space<vmem>>, vector<1x8x16xbf16>
    %39 = vector.shape_cast %38 : vector<1x8x16xbf16> to vector<8x16xbf16>
    %cst_27 = arith.constant dense<0.000000e+00> : vector<64x16xf32>
    %40 = tpu.matmul %37, %39, %cst_27 {dimension_numbers = #tpu.dot_dimension_numbers<[1], [0], [0], [1], [0, 0, 1, 1], [], []>} : vector<64x8xbf16>, vector<8x16xbf16>, vector<64x16xf32> -> vector<64x16xf32>
    %41 = arith.addf %36, %40 : vector<64x16xf32>
    %42 = vector.extract_strided_slice %15 {offsets = [320, 0], sizes = [64, 8], strides = [1, 1]} : vector<1024x8xbf16> to vector<64x8xbf16>
    %c5 = arith.constant 5 : index
    %c0_28 = arith.constant 0 : index
    %c0_29 = arith.constant 0 : index
    %43 = vector.load %arg5[%c5, %c0_28, %c0_29] : memref<16x8x16xbf16, #tpu.memory_space<vmem>>, vector<1x8x16xbf16>
    %44 = vector.shape_cast %43 : vector<1x8x16xbf16> to vector<8x16xbf16>
    %cst_30 = arith.constant dense<0.000000e+00> : vector<64x16xf32>
    %45 = tpu.matmul %42, %44, %cst_30 {dimension_numbers = #tpu.dot_dimension_numbers<[1], [0], [0], [1], [0, 0, 1, 1], [], []>} : vector<64x8xbf16>, vector<8x16xbf16>, vector<64x16xf32> -> vector<64x16xf32>
    %46 = arith.addf %41, %45 : vector<64x16xf32>
    %47 = vector.extract_strided_slice %15 {offsets = [384, 0], sizes = [64, 8], strides = [1, 1]} : vector<1024x8xbf16> to vector<64x8xbf16>
    %c6 = arith.constant 6 : index
    %c0_31 = arith.constant 0 : index
    %c0_32 = arith.constant 0 : index
    %48 = vector.load %arg5[%c6, %c0_31, %c0_32] : memref<16x8x16xbf16, #tpu.memory_space<vmem>>, vector<1x8x16xbf16>
    %49 = vector.shape_cast %48 : vector<1x8x16xbf16> to vector<8x16xbf16>
    %cst_33 = arith.constant dense<0.000000e+00> : vector<64x16xf32>
    %50 = tpu.matmul %47, %49, %cst_33 {dimension_numbers = #tpu.dot_dimension_numbers<[1], [0], [0], [1], [0, 0, 1, 1], [], []>} : vector<64x8xbf16>, vector<8x16xbf16>, vector<64x16xf32> -> vector<64x16xf32>
    %51 = arith.addf %46, %50 : vector<64x16xf32>
    %52 = vector.extract_strided_slice %15 {offsets = [448, 0], sizes = [64, 8], strides = [1, 1]} : vector<1024x8xbf16> to vector<64x8xbf16>
    %c7 = arith.constant 7 : index
    %c0_34 = arith.constant 0 : index
    %c0_35 = arith.constant 0 : index
    %53 = vector.load %arg5[%c7, %c0_34, %c0_35] : memref<16x8x16xbf16, #tpu.memory_space<vmem>>, vector<1x8x16xbf16>
    %54 = vector.shape_cast %53 : vector<1x8x16xbf16> to vector<8x16xbf16>
    %cst_36 = arith.constant dense<0.000000e+00> : vector<64x16xf32>
    %55 = tpu.matmul %52, %54, %cst_36 {dimension_numbers = #tpu.dot_dimension_numbers<[1], [0], [0], [1], [0, 0, 1, 1], [], []>} : vector<64x8xbf16>, vector<8x16xbf16>, vector<64x16xf32> -> vector<64x16xf32>
    %56 = arith.addf %51, %55 : vector<64x16xf32>
    %57 = vector.extract_strided_slice %15 {offsets = [512, 0], sizes = [64, 8], strides = [1, 1]} : vector<1024x8xbf16> to vector<64x8xbf16>
    %c8 = arith.constant 8 : index
    %c0_37 = arith.constant 0 : index
    %c0_38 = arith.constant 0 : index
    %58 = vector.load %arg5[%c8, %c0_37, %c0_38] : memref<16x8x16xbf16, #tpu.memory_space<vmem>>, vector<1x8x16xbf16>
    %59 = vector.shape_cast %58 : vector<1x8x16xbf16> to vector<8x16xbf16>
    %cst_39 = arith.constant dense<0.000000e+00> : vector<64x16xf32>
    %60 = tpu.matmul %57, %59, %cst_39 {dimension_numbers = #tpu.dot_dimension_numbers<[1], [0], [0], [1], [0, 0, 1, 1], [], []>} : vector<64x8xbf16>, vector<8x16xbf16>, vector<64x16xf32> -> vector<64x16xf32>
    %61 = arith.addf %56, %60 : vector<64x16xf32>
    %62 = vector.extract_strided_slice %15 {offsets = [576, 0], sizes = [64, 8], strides = [1, 1]} : vector<1024x8xbf16> to vector<64x8xbf16>
    %c9 = arith.constant 9 : index
    %c0_40 = arith.constant 0 : index
    %c0_41 = arith.constant 0 : index
    %63 = vector.load %arg5[%c9, %c0_40, %c0_41] : memref<16x8x16xbf16, #tpu.memory_space<vmem>>, vector<1x8x16xbf16>
    %64 = vector.shape_cast %63 : vector<1x8x16xbf16> to vector<8x16xbf16>
    %cst_42 = arith.constant dense<0.000000e+00> : vector<64x16xf32>
    %65 = tpu.matmul %62, %64, %cst_42 {dimension_numbers = #tpu.dot_dimension_numbers<[1], [0], [0], [1], [0, 0, 1, 1], [], []>} : vector<64x8xbf16>, vector<8x16xbf16>, vector<64x16xf32> -> vector<64x16xf32>
    %66 = arith.addf %61, %65 : vector<64x16xf32>
    %67 = vector.extract_strided_slice %15 {offsets = [640, 0], sizes = [64, 8], strides = [1, 1]} : vector<1024x8xbf16> to vector<64x8xbf16>
    %c10 = arith.constant 10 : index
    %c0_43 = arith.constant 0 : index
    %c0_44 = arith.constant 0 : index
    %68 = vector.load %arg5[%c10, %c0_43, %c0_44] : memref<16x8x16xbf16, #tpu.memory_space<vmem>>, vector<1x8x16xbf16>
    %69 = vector.shape_cast %68 : vector<1x8x16xbf16> to vector<8x16xbf16>
    %cst_45 = arith.constant dense<0.000000e+00> : vector<64x16xf32>
    %70 = tpu.matmul %67, %69, %cst_45 {dimension_numbers = #tpu.dot_dimension_numbers<[1], [0], [0], [1], [0, 0, 1, 1], [], []>} : vector<64x8xbf16>, vector<8x16xbf16>, vector<64x16xf32> -> vector<64x16xf32>
    %71 = arith.addf %66, %70 : vector<64x16xf32>
    %72 = vector.extract_strided_slice %15 {offsets = [704, 0], sizes = [64, 8], strides = [1, 1]} : vector<1024x8xbf16> to vector<64x8xbf16>
    %c11 = arith.constant 11 : index
    %c0_46 = arith.constant 0 : index
    %c0_47 = arith.constant 0 : index
    %73 = vector.load %arg5[%c11, %c0_46, %c0_47] : memref<16x8x16xbf16, #tpu.memory_space<vmem>>, vector<1x8x16xbf16>
    %74 = vector.shape_cast %73 : vector<1x8x16xbf16> to vector<8x16xbf16>
    %cst_48 = arith.constant dense<0.000000e+00> : vector<64x16xf32>
    %75 = tpu.matmul %72, %74, %cst_48 {dimension_numbers = #tpu.dot_dimension_numbers<[1], [0], [0], [1], [0, 0, 1, 1], [], []>} : vector<64x8xbf16>, vector<8x16xbf16>, vector<64x16xf32> -> vector<64x16xf32>
    %76 = arith.addf %71, %75 : vector<64x16xf32>
    %77 = vector.extract_strided_slice %15 {offsets = [768, 0], sizes = [64, 8], strides = [1, 1]} : vector<1024x8xbf16> to vector<64x8xbf16>
    %c12 = arith.constant 12 : index
    %c0_49 = arith.constant 0 : index
    %c0_50 = arith.constant 0 : index
    %78 = vector.load %arg5[%c12, %c0_49, %c0_50] : memref<16x8x16xbf16, #tpu.memory_space<vmem>>, vector<1x8x16xbf16>
    %79 = vector.shape_cast %78 : vector<1x8x16xbf16> to vector<8x16xbf16>
    %cst_51 = arith.constant dense<0.000000e+00> : vector<64x16xf32>
    %80 = tpu.matmul %77, %79, %cst_51 {dimension_numbers = #tpu.dot_dimension_numbers<[1], [0], [0], [1], [0, 0, 1, 1], [], []>} : vector<64x8xbf16>, vector<8x16xbf16>, vector<64x16xf32> -> vector<64x16xf32>
    %81 = arith.addf %76, %80 : vector<64x16xf32>
    %82 = vector.extract_strided_slice %15 {offsets = [832, 0], sizes = [64, 8], strides = [1, 1]} : vector<1024x8xbf16> to vector<64x8xbf16>
    %c13 = arith.constant 13 : index
    %c0_52 = arith.constant 0 : index
    %c0_53 = arith.constant 0 : index
    %83 = vector.load %arg5[%c13, %c0_52, %c0_53] : memref<16x8x16xbf16, #tpu.memory_space<vmem>>, vector<1x8x16xbf16>
    %84 = vector.shape_cast %83 : vector<1x8x16xbf16> to vector<8x16xbf16>
    %cst_54 = arith.constant dense<0.000000e+00> : vector<64x16xf32>
    %85 = tpu.matmul %82, %84, %cst_54 {dimension_numbers = #tpu.dot_dimension_numbers<[1], [0], [0], [1], [0, 0, 1, 1], [], []>} : vector<64x8xbf16>, vector<8x16xbf16>, vector<64x16xf32> -> vector<64x16xf32>
    %86 = arith.addf %81, %85 : vector<64x16xf32>
    %87 = vector.extract_strided_slice %15 {offsets = [896, 0], sizes = [64, 8], strides = [1, 1]} : vector<1024x8xbf16> to vector<64x8xbf16>
    %c14 = arith.constant 14 : index
    %c0_55 = arith.constant 0 : index
    %c0_56 = arith.constant 0 : index
    %88 = vector.load %arg5[%c14, %c0_55, %c0_56] : memref<16x8x16xbf16, #tpu.memory_space<vmem>>, vector<1x8x16xbf16>
    %89 = vector.shape_cast %88 : vector<1x8x16xbf16> to vector<8x16xbf16>
    %cst_57 = arith.constant dense<0.000000e+00> : vector<64x16xf32>
    %90 = tpu.matmul %87, %89, %cst_57 {dimension_numbers = #tpu.dot_dimension_numbers<[1], [0], [0], [1], [0, 0, 1, 1], [], []>} : vector<64x8xbf16>, vector<8x16xbf16>, vector<64x16xf32> -> vector<64x16xf32>
    %91 = arith.addf %86, %90 : vector<64x16xf32>
    %92 = vector.extract_strided_slice %15 {offsets = [960, 0], sizes = [64, 8], strides = [1, 1]} : vector<1024x8xbf16> to vector<64x8xbf16>
    %c15 = arith.constant 15 : index
    %c0_58 = arith.constant 0 : index
    %c0_59 = arith.constant 0 : index
    %93 = vector.load %arg5[%c15, %c0_58, %c0_59] : memref<16x8x16xbf16, #tpu.memory_space<vmem>>, vector<1x8x16xbf16>
    %94 = vector.shape_cast %93 : vector<1x8x16xbf16> to vector<8x16xbf16>
    %cst_60 = arith.constant dense<0.000000e+00> : vector<64x16xf32>
    %95 = tpu.matmul %92, %94, %cst_60 {dimension_numbers = #tpu.dot_dimension_numbers<[1], [0], [0], [1], [0, 0, 1, 1], [], []>} : vector<64x8xbf16>, vector<8x16xbf16>, vector<64x16xf32> -> vector<64x16xf32>
    %96 = arith.addf %91, %95 : vector<64x16xf32>
    %c0_61 = arith.constant 0 : index
    %c0_62 = arith.constant 0 : index
    %97 = vector.load %arg6[%c0_61, %c0_62] : memref<1x16xf32, #tpu.memory_space<vmem>>, vector<1x16xf32>
    %98 = vector.broadcast %97 : vector<1x16xf32> to vector<64x16xf32>
    %99 = arith.addf %96, %98 : vector<64x16xf32>
    %cst_63 = arith.constant 0.000000e+00 : f32
    %100 = vector.broadcast %cst_63 : f32 to vector<64x16xf32>
    %101 = arith.cmpf oge, %99, %100 : vector<64x16xf32>
    %cst_64 = arith.constant 1.000000e-03 : f32
    %102 = vector.broadcast %cst_64 : f32 to vector<64x16xf32>
    %103 = arith.mulf %99, %102 : vector<64x16xf32>
    %104 = arith.select %101, %99, %103 : vector<64x16xi1>, vector<64x16xf32>
    %105 = arith.truncf %104 : vector<64x16xf32> to vector<64x16xbf16>
    %c0_65 = arith.constant 0 : index
    %c0_66 = arith.constant 0 : index
    %106 = vector.load %arg7[%c0_65, %c0_66] : memref<256x64xbf16, #tpu.memory_space<vmem>>, vector<256x64xbf16>
    %cst_67 = arith.constant dense<0.000000e+00> : vector<256x16xf32>
    %107 = tpu.matmul %106, %105, %cst_67 {dimension_numbers = #tpu.dot_dimension_numbers<[1], [0], [0], [1], [0, 0, 1, 1], [], []>} : vector<256x64xbf16>, vector<64x16xbf16>, vector<256x16xf32> -> vector<256x16xf32>
    %108 = arith.truncf %107 : vector<256x16xf32> to vector<256x16xbf16>
    %cst_68 = arith.constant 0.000000e+00 : f32
    %109 = vector.broadcast %cst_68 : f32 to vector<16x32xf32>
    %110 = vector.extract_strided_slice %108 {offsets = [0, 0], sizes = [16, 16], strides = [1, 1]} : vector<256x16xbf16> to vector<16x16xbf16>
    %c0_69 = arith.constant 0 : index
    %c0_70 = arith.constant 0 : index
    %c0_71 = arith.constant 0 : index
    %111 = vector.load %arg8[%c0_69, %c0_70, %c0_71] : memref<16x16x32xbf16, #tpu.memory_space<vmem>>, vector<1x16x32xbf16>
    %112 = vector.shape_cast %111 : vector<1x16x32xbf16> to vector<16x32xbf16>
    %cst_72 = arith.constant dense<0.000000e+00> : vector<16x32xf32>
    %113 = tpu.matmul %110, %112, %cst_72 {dimension_numbers = #tpu.dot_dimension_numbers<[1], [0], [0], [1], [0, 0, 1, 1], [], []>} : vector<16x16xbf16>, vector<16x32xbf16>, vector<16x32xf32> -> vector<16x32xf32>
    %114 = arith.addf %109, %113 : vector<16x32xf32>
    %115 = vector.extract_strided_slice %108 {offsets = [16, 0], sizes = [16, 16], strides = [1, 1]} : vector<256x16xbf16> to vector<16x16xbf16>
    %c1_73 = arith.constant 1 : index
    %c0_74 = arith.constant 0 : index
    %c0_75 = arith.constant 0 : index
    %116 = vector.load %arg8[%c1_73, %c0_74, %c0_75] : memref<16x16x32xbf16, #tpu.memory_space<vmem>>, vector<1x16x32xbf16>
    %117 = vector.shape_cast %116 : vector<1x16x32xbf16> to vector<16x32xbf16>
    %cst_76 = arith.constant dense<0.000000e+00> : vector<16x32xf32>
    %118 = tpu.matmul %115, %117, %cst_76 {dimension_numbers = #tpu.dot_dimension_numbers<[1], [0], [0], [1], [0, 0, 1, 1], [], []>} : vector<16x16xbf16>, vector<16x32xbf16>, vector<16x32xf32> -> vector<16x32xf32>
    %119 = arith.addf %114, %118 : vector<16x32xf32>
    %120 = vector.extract_strided_slice %108 {offsets = [32, 0], sizes = [16, 16], strides = [1, 1]} : vector<256x16xbf16> to vector<16x16xbf16>
    %c2_77 = arith.constant 2 : index
    %c0_78 = arith.constant 0 : index
    %c0_79 = arith.constant 0 : index
    %121 = vector.load %arg8[%c2_77, %c0_78, %c0_79] : memref<16x16x32xbf16, #tpu.memory_space<vmem>>, vector<1x16x32xbf16>
    %122 = vector.shape_cast %121 : vector<1x16x32xbf16> to vector<16x32xbf16>
    %cst_80 = arith.constant dense<0.000000e+00> : vector<16x32xf32>
    %123 = tpu.matmul %120, %122, %cst_80 {dimension_numbers = #tpu.dot_dimension_numbers<[1], [0], [0], [1], [0, 0, 1, 1], [], []>} : vector<16x16xbf16>, vector<16x32xbf16>, vector<16x32xf32> -> vector<16x32xf32>
    %124 = arith.addf %119, %123 : vector<16x32xf32>
    %125 = vector.extract_strided_slice %108 {offsets = [48, 0], sizes = [16, 16], strides = [1, 1]} : vector<256x16xbf16> to vector<16x16xbf16>
    %c3_81 = arith.constant 3 : index
    %c0_82 = arith.constant 0 : index
    %c0_83 = arith.constant 0 : index
    %126 = vector.load %arg8[%c3_81, %c0_82, %c0_83] : memref<16x16x32xbf16, #tpu.memory_space<vmem>>, vector<1x16x32xbf16>
    %127 = vector.shape_cast %126 : vector<1x16x32xbf16> to vector<16x32xbf16>
    %cst_84 = arith.constant dense<0.000000e+00> : vector<16x32xf32>
    %128 = tpu.matmul %125, %127, %cst_84 {dimension_numbers = #tpu.dot_dimension_numbers<[1], [0], [0], [1], [0, 0, 1, 1], [], []>} : vector<16x16xbf16>, vector<16x32xbf16>, vector<16x32xf32> -> vector<16x32xf32>
    %129 = arith.addf %124, %128 : vector<16x32xf32>
    %130 = vector.extract_strided_slice %108 {offsets = [64, 0], sizes = [16, 16], strides = [1, 1]} : vector<256x16xbf16> to vector<16x16xbf16>
    %c4_85 = arith.constant 4 : index
    %c0_86 = arith.constant 0 : index
    %c0_87 = arith.constant 0 : index
    %131 = vector.load %arg8[%c4_85, %c0_86, %c0_87] : memref<16x16x32xbf16, #tpu.memory_space<vmem>>, vector<1x16x32xbf16>
    %132 = vector.shape_cast %131 : vector<1x16x32xbf16> to vector<16x32xbf16>
    %cst_88 = arith.constant dense<0.000000e+00> : vector<16x32xf32>
    %133 = tpu.matmul %130, %132, %cst_88 {dimension_numbers = #tpu.dot_dimension_numbers<[1], [0], [0], [1], [0, 0, 1, 1], [], []>} : vector<16x16xbf16>, vector<16x32xbf16>, vector<16x32xf32> -> vector<16x32xf32>
    %134 = arith.addf %129, %133 : vector<16x32xf32>
    %135 = vector.extract_strided_slice %108 {offsets = [80, 0], sizes = [16, 16], strides = [1, 1]} : vector<256x16xbf16> to vector<16x16xbf16>
    %c5_89 = arith.constant 5 : index
    %c0_90 = arith.constant 0 : index
    %c0_91 = arith.constant 0 : index
    %136 = vector.load %arg8[%c5_89, %c0_90, %c0_91] : memref<16x16x32xbf16, #tpu.memory_space<vmem>>, vector<1x16x32xbf16>
    %137 = vector.shape_cast %136 : vector<1x16x32xbf16> to vector<16x32xbf16>
    %cst_92 = arith.constant dense<0.000000e+00> : vector<16x32xf32>
    %138 = tpu.matmul %135, %137, %cst_92 {dimension_numbers = #tpu.dot_dimension_numbers<[1], [0], [0], [1], [0, 0, 1, 1], [], []>} : vector<16x16xbf16>, vector<16x32xbf16>, vector<16x32xf32> -> vector<16x32xf32>
    %139 = arith.addf %134, %138 : vector<16x32xf32>
    %140 = vector.extract_strided_slice %108 {offsets = [96, 0], sizes = [16, 16], strides = [1, 1]} : vector<256x16xbf16> to vector<16x16xbf16>
    %c6_93 = arith.constant 6 : index
    %c0_94 = arith.constant 0 : index
    %c0_95 = arith.constant 0 : index
    %141 = vector.load %arg8[%c6_93, %c0_94, %c0_95] : memref<16x16x32xbf16, #tpu.memory_space<vmem>>, vector<1x16x32xbf16>
    %142 = vector.shape_cast %141 : vector<1x16x32xbf16> to vector<16x32xbf16>
    %cst_96 = arith.constant dense<0.000000e+00> : vector<16x32xf32>
    %143 = tpu.matmul %140, %142, %cst_96 {dimension_numbers = #tpu.dot_dimension_numbers<[1], [0], [0], [1], [0, 0, 1, 1], [], []>} : vector<16x16xbf16>, vector<16x32xbf16>, vector<16x32xf32> -> vector<16x32xf32>
    %144 = arith.addf %139, %143 : vector<16x32xf32>
    %145 = vector.extract_strided_slice %108 {offsets = [112, 0], sizes = [16, 16], strides = [1, 1]} : vector<256x16xbf16> to vector<16x16xbf16>
    %c7_97 = arith.constant 7 : index
    %c0_98 = arith.constant 0 : index
    %c0_99 = arith.constant 0 : index
    %146 = vector.load %arg8[%c7_97, %c0_98, %c0_99] : memref<16x16x32xbf16, #tpu.memory_space<vmem>>, vector<1x16x32xbf16>
    %147 = vector.shape_cast %146 : vector<1x16x32xbf16> to vector<16x32xbf16>
    %cst_100 = arith.constant dense<0.000000e+00> : vector<16x32xf32>
    %148 = tpu.matmul %145, %147, %cst_100 {dimension_numbers = #tpu.dot_dimension_numbers<[1], [0], [0], [1], [0, 0, 1, 1], [], []>} : vector<16x16xbf16>, vector<16x32xbf16>, vector<16x32xf32> -> vector<16x32xf32>
    %149 = arith.addf %144, %148 : vector<16x32xf32>
    %150 = vector.extract_strided_slice %108 {offsets = [128, 0], sizes = [16, 16], strides = [1, 1]} : vector<256x16xbf16> to vector<16x16xbf16>
    %c8_101 = arith.constant 8 : index
    %c0_102 = arith.constant 0 : index
    %c0_103 = arith.constant 0 : index
    %151 = vector.load %arg8[%c8_101, %c0_102, %c0_103] : memref<16x16x32xbf16, #tpu.memory_space<vmem>>, vector<1x16x32xbf16>
    %152 = vector.shape_cast %151 : vector<1x16x32xbf16> to vector<16x32xbf16>
    %cst_104 = arith.constant dense<0.000000e+00> : vector<16x32xf32>
    %153 = tpu.matmul %150, %152, %cst_104 {dimension_numbers = #tpu.dot_dimension_numbers<[1], [0], [0], [1], [0, 0, 1, 1], [], []>} : vector<16x16xbf16>, vector<16x32xbf16>, vector<16x32xf32> -> vector<16x32xf32>
    %154 = arith.addf %149, %153 : vector<16x32xf32>
    %155 = vector.extract_strided_slice %108 {offsets = [144, 0], sizes = [16, 16], strides = [1, 1]} : vector<256x16xbf16> to vector<16x16xbf16>
    %c9_105 = arith.constant 9 : index
    %c0_106 = arith.constant 0 : index
    %c0_107 = arith.constant 0 : index
    %156 = vector.load %arg8[%c9_105, %c0_106, %c0_107] : memref<16x16x32xbf16, #tpu.memory_space<vmem>>, vector<1x16x32xbf16>
    %157 = vector.shape_cast %156 : vector<1x16x32xbf16> to vector<16x32xbf16>
    %cst_108 = arith.constant dense<0.000000e+00> : vector<16x32xf32>
    %158 = tpu.matmul %155, %157, %cst_108 {dimension_numbers = #tpu.dot_dimension_numbers<[1], [0], [0], [1], [0, 0, 1, 1], [], []>} : vector<16x16xbf16>, vector<16x32xbf16>, vector<16x32xf32> -> vector<16x32xf32>
    %159 = arith.addf %154, %158 : vector<16x32xf32>
    %160 = vector.extract_strided_slice %108 {offsets = [160, 0], sizes = [16, 16], strides = [1, 1]} : vector<256x16xbf16> to vector<16x16xbf16>
    %c10_109 = arith.constant 10 : index
    %c0_110 = arith.constant 0 : index
    %c0_111 = arith.constant 0 : index
    %161 = vector.load %arg8[%c10_109, %c0_110, %c0_111] : memref<16x16x32xbf16, #tpu.memory_space<vmem>>, vector<1x16x32xbf16>
    %162 = vector.shape_cast %161 : vector<1x16x32xbf16> to vector<16x32xbf16>
    %cst_112 = arith.constant dense<0.000000e+00> : vector<16x32xf32>
    %163 = tpu.matmul %160, %162, %cst_112 {dimension_numbers = #tpu.dot_dimension_numbers<[1], [0], [0], [1], [0, 0, 1, 1], [], []>} : vector<16x16xbf16>, vector<16x32xbf16>, vector<16x32xf32> -> vector<16x32xf32>
    %164 = arith.addf %159, %163 : vector<16x32xf32>
    %165 = vector.extract_strided_slice %108 {offsets = [176, 0], sizes = [16, 16], strides = [1, 1]} : vector<256x16xbf16> to vector<16x16xbf16>
    %c11_113 = arith.constant 11 : index
    %c0_114 = arith.constant 0 : index
    %c0_115 = arith.constant 0 : index
    %166 = vector.load %arg8[%c11_113, %c0_114, %c0_115] : memref<16x16x32xbf16, #tpu.memory_space<vmem>>, vector<1x16x32xbf16>
    %167 = vector.shape_cast %166 : vector<1x16x32xbf16> to vector<16x32xbf16>
    %cst_116 = arith.constant dense<0.000000e+00> : vector<16x32xf32>
    %168 = tpu.matmul %165, %167, %cst_116 {dimension_numbers = #tpu.dot_dimension_numbers<[1], [0], [0], [1], [0, 0, 1, 1], [], []>} : vector<16x16xbf16>, vector<16x32xbf16>, vector<16x32xf32> -> vector<16x32xf32>
    %169 = arith.addf %164, %168 : vector<16x32xf32>
    %170 = vector.extract_strided_slice %108 {offsets = [192, 0], sizes = [16, 16], strides = [1, 1]} : vector<256x16xbf16> to vector<16x16xbf16>
    %c12_117 = arith.constant 12 : index
    %c0_118 = arith.constant 0 : index
    %c0_119 = arith.constant 0 : index
    %171 = vector.load %arg8[%c12_117, %c0_118, %c0_119] : memref<16x16x32xbf16, #tpu.memory_space<vmem>>, vector<1x16x32xbf16>
    %172 = vector.shape_cast %171 : vector<1x16x32xbf16> to vector<16x32xbf16>
    %cst_120 = arith.constant dense<0.000000e+00> : vector<16x32xf32>
    %173 = tpu.matmul %170, %172, %cst_120 {dimension_numbers = #tpu.dot_dimension_numbers<[1], [0], [0], [1], [0, 0, 1, 1], [], []>} : vector<16x16xbf16>, vector<16x32xbf16>, vector<16x32xf32> -> vector<16x32xf32>
    %174 = arith.addf %169, %173 : vector<16x32xf32>
    %175 = vector.extract_strided_slice %108 {offsets = [208, 0], sizes = [16, 16], strides = [1, 1]} : vector<256x16xbf16> to vector<16x16xbf16>
    %c13_121 = arith.constant 13 : index
    %c0_122 = arith.constant 0 : index
    %c0_123 = arith.constant 0 : index
    %176 = vector.load %arg8[%c13_121, %c0_122, %c0_123] : memref<16x16x32xbf16, #tpu.memory_space<vmem>>, vector<1x16x32xbf16>
    %177 = vector.shape_cast %176 : vector<1x16x32xbf16> to vector<16x32xbf16>
    %cst_124 = arith.constant dense<0.000000e+00> : vector<16x32xf32>
    %178 = tpu.matmul %175, %177, %cst_124 {dimension_numbers = #tpu.dot_dimension_numbers<[1], [0], [0], [1], [0, 0, 1, 1], [], []>} : vector<16x16xbf16>, vector<16x32xbf16>, vector<16x32xf32> -> vector<16x32xf32>
    %179 = arith.addf %174, %178 : vector<16x32xf32>
    %180 = vector.extract_strided_slice %108 {offsets = [224, 0], sizes = [16, 16], strides = [1, 1]} : vector<256x16xbf16> to vector<16x16xbf16>
    %c14_125 = arith.constant 14 : index
    %c0_126 = arith.constant 0 : index
    %c0_127 = arith.constant 0 : index
    %181 = vector.load %arg8[%c14_125, %c0_126, %c0_127] : memref<16x16x32xbf16, #tpu.memory_space<vmem>>, vector<1x16x32xbf16>
    %182 = vector.shape_cast %181 : vector<1x16x32xbf16> to vector<16x32xbf16>
    %cst_128 = arith.constant dense<0.000000e+00> : vector<16x32xf32>
    %183 = tpu.matmul %180, %182, %cst_128 {dimension_numbers = #tpu.dot_dimension_numbers<[1], [0], [0], [1], [0, 0, 1, 1], [], []>} : vector<16x16xbf16>, vector<16x32xbf16>, vector<16x32xf32> -> vector<16x32xf32>
    %184 = arith.addf %179, %183 : vector<16x32xf32>
    %185 = vector.extract_strided_slice %108 {offsets = [240, 0], sizes = [16, 16], strides = [1, 1]} : vector<256x16xbf16> to vector<16x16xbf16>
    %c15_129 = arith.constant 15 : index
    %c0_130 = arith.constant 0 : index
    %c0_131 = arith.constant 0 : index
    %186 = vector.load %arg8[%c15_129, %c0_130, %c0_131] : memref<16x16x32xbf16, #tpu.memory_space<vmem>>, vector<1x16x32xbf16>
    %187 = vector.shape_cast %186 : vector<1x16x32xbf16> to vector<16x32xbf16>
    %cst_132 = arith.constant dense<0.000000e+00> : vector<16x32xf32>
    %188 = tpu.matmul %185, %187, %cst_132 {dimension_numbers = #tpu.dot_dimension_numbers<[1], [0], [0], [1], [0, 0, 1, 1], [], []>} : vector<16x16xbf16>, vector<16x32xbf16>, vector<16x32xf32> -> vector<16x32xf32>
    %189 = arith.addf %184, %188 : vector<16x32xf32>
    %c0_133 = arith.constant 0 : index
    %c0_134 = arith.constant 0 : index
    %190 = vector.load %arg9[%c0_133, %c0_134] : memref<1x32xf32, #tpu.memory_space<vmem>>, vector<1x32xf32>
    %191 = vector.broadcast %190 : vector<1x32xf32> to vector<16x32xf32>
    %192 = arith.addf %189, %191 : vector<16x32xf32>
    %cst_135 = arith.constant 0.000000e+00 : f32
    %193 = vector.broadcast %cst_135 : f32 to vector<16x32xf32>
    %194 = arith.cmpf oge, %192, %193 : vector<16x32xf32>
    %cst_136 = arith.constant 1.000000e-03 : f32
    %195 = vector.broadcast %cst_136 : f32 to vector<16x32xf32>
    %196 = arith.mulf %192, %195 : vector<16x32xf32>
    %197 = arith.select %194, %192, %196 : vector<16x32xi1>, vector<16x32xf32>
    %198 = arith.truncf %197 : vector<16x32xf32> to vector<16x32xbf16>
    %c0_137 = arith.constant 0 : index
    %c0_138 = arith.constant 0 : index
    %199 = vector.load %arg10[%c0_137, %c0_138] : memref<144x16xbf16, #tpu.memory_space<vmem>>, vector<144x16xbf16>
    %cst_139 = arith.constant dense<0.000000e+00> : vector<144x32xf32>
    %200 = tpu.matmul %199, %198, %cst_139 {dimension_numbers = #tpu.dot_dimension_numbers<[1], [0], [0], [1], [0, 0, 1, 1], [], []>} : vector<144x16xbf16>, vector<16x32xbf16>, vector<144x32xf32> -> vector<144x32xf32>
    %201 = arith.truncf %200 : vector<144x32xf32> to vector<144x32xbf16>
    %cst_140 = arith.constant 0.000000e+00 : f32
    %202 = vector.broadcast %cst_140 : f32 to vector<16x1xf32>
    %203 = vector.extract_strided_slice %201 {offsets = [0, 0], sizes = [16, 32], strides = [1, 1]} : vector<144x32xbf16> to vector<16x32xbf16>
    %c0_141 = arith.constant 0 : index
    %c0_142 = arith.constant 0 : index
    %c0_143 = arith.constant 0 : index
    %204 = vector.load %arg11[%c0_141, %c0_142, %c0_143] : memref<9x32x1xbf16, #tpu.memory_space<vmem>>, vector<1x32x1xbf16>
    %205 = vector.shape_cast %204 : vector<1x32x1xbf16> to vector<32x1xbf16>
    %cst_144 = arith.constant dense<0.000000e+00> : vector<16x1xf32>
    %206 = tpu.matmul %203, %205, %cst_144 {dimension_numbers = #tpu.dot_dimension_numbers<[1], [0], [0], [1], [0, 0, 1, 1], [], []>} : vector<16x32xbf16>, vector<32x1xbf16>, vector<16x1xf32> -> vector<16x1xf32>
    %207 = arith.addf %202, %206 : vector<16x1xf32>
    %208 = vector.extract_strided_slice %201 {offsets = [16, 0], sizes = [16, 32], strides = [1, 1]} : vector<144x32xbf16> to vector<16x32xbf16>
    %c1_145 = arith.constant 1 : index
    %c0_146 = arith.constant 0 : index
    %c0_147 = arith.constant 0 : index
    %209 = vector.load %arg11[%c1_145, %c0_146, %c0_147] : memref<9x32x1xbf16, #tpu.memory_space<vmem>>, vector<1x32x1xbf16>
    %210 = vector.shape_cast %209 : vector<1x32x1xbf16> to vector<32x1xbf16>
    %cst_148 = arith.constant dense<0.000000e+00> : vector<16x1xf32>
    %211 = tpu.matmul %208, %210, %cst_148 {dimension_numbers = #tpu.dot_dimension_numbers<[1], [0], [0], [1], [0, 0, 1, 1], [], []>} : vector<16x32xbf16>, vector<32x1xbf16>, vector<16x1xf32> -> vector<16x1xf32>
    %212 = arith.addf %207, %211 : vector<16x1xf32>
    %213 = vector.extract_strided_slice %201 {offsets = [32, 0], sizes = [16, 32], strides = [1, 1]} : vector<144x32xbf16> to vector<16x32xbf16>
    %c2_149 = arith.constant 2 : index
    %c0_150 = arith.constant 0 : index
    %c0_151 = arith.constant 0 : index
    %214 = vector.load %arg11[%c2_149, %c0_150, %c0_151] : memref<9x32x1xbf16, #tpu.memory_space<vmem>>, vector<1x32x1xbf16>
    %215 = vector.shape_cast %214 : vector<1x32x1xbf16> to vector<32x1xbf16>
    %cst_152 = arith.constant dense<0.000000e+00> : vector<16x1xf32>
    %216 = tpu.matmul %213, %215, %cst_152 {dimension_numbers = #tpu.dot_dimension_numbers<[1], [0], [0], [1], [0, 0, 1, 1], [], []>} : vector<16x32xbf16>, vector<32x1xbf16>, vector<16x1xf32> -> vector<16x1xf32>
    %217 = arith.addf %212, %216 : vector<16x1xf32>
    %218 = vector.extract_strided_slice %201 {offsets = [48, 0], sizes = [16, 32], strides = [1, 1]} : vector<144x32xbf16> to vector<16x32xbf16>
    %c3_153 = arith.constant 3 : index
    %c0_154 = arith.constant 0 : index
    %c0_155 = arith.constant 0 : index
    %219 = vector.load %arg11[%c3_153, %c0_154, %c0_155] : memref<9x32x1xbf16, #tpu.memory_space<vmem>>, vector<1x32x1xbf16>
    %220 = vector.shape_cast %219 : vector<1x32x1xbf16> to vector<32x1xbf16>
    %cst_156 = arith.constant dense<0.000000e+00> : vector<16x1xf32>
    %221 = tpu.matmul %218, %220, %cst_156 {dimension_numbers = #tpu.dot_dimension_numbers<[1], [0], [0], [1], [0, 0, 1, 1], [], []>} : vector<16x32xbf16>, vector<32x1xbf16>, vector<16x1xf32> -> vector<16x1xf32>
    %222 = arith.addf %217, %221 : vector<16x1xf32>
    %223 = vector.extract_strided_slice %201 {offsets = [64, 0], sizes = [16, 32], strides = [1, 1]} : vector<144x32xbf16> to vector<16x32xbf16>
    %c4_157 = arith.constant 4 : index
    %c0_158 = arith.constant 0 : index
    %c0_159 = arith.constant 0 : index
    %224 = vector.load %arg11[%c4_157, %c0_158, %c0_159] : memref<9x32x1xbf16, #tpu.memory_space<vmem>>, vector<1x32x1xbf16>
    %225 = vector.shape_cast %224 : vector<1x32x1xbf16> to vector<32x1xbf16>
    %cst_160 = arith.constant dense<0.000000e+00> : vector<16x1xf32>
    %226 = tpu.matmul %223, %225, %cst_160 {dimension_numbers = #tpu.dot_dimension_numbers<[1], [0], [0], [1], [0, 0, 1, 1], [], []>} : vector<16x32xbf16>, vector<32x1xbf16>, vector<16x1xf32> -> vector<16x1xf32>
    %227 = arith.addf %222, %226 : vector<16x1xf32>
    %228 = vector.extract_strided_slice %201 {offsets = [80, 0], sizes = [16, 32], strides = [1, 1]} : vector<144x32xbf16> to vector<16x32xbf16>
    %c5_161 = arith.constant 5 : index
    %c0_162 = arith.constant 0 : index
    %c0_163 = arith.constant 0 : index
    %229 = vector.load %arg11[%c5_161, %c0_162, %c0_163] : memref<9x32x1xbf16, #tpu.memory_space<vmem>>, vector<1x32x1xbf16>
    %230 = vector.shape_cast %229 : vector<1x32x1xbf16> to vector<32x1xbf16>
    %cst_164 = arith.constant dense<0.000000e+00> : vector<16x1xf32>
    %231 = tpu.matmul %228, %230, %cst_164 {dimension_numbers = #tpu.dot_dimension_numbers<[1], [0], [0], [1], [0, 0, 1, 1], [], []>} : vector<16x32xbf16>, vector<32x1xbf16>, vector<16x1xf32> -> vector<16x1xf32>
    %232 = arith.addf %227, %231 : vector<16x1xf32>
    %233 = vector.extract_strided_slice %201 {offsets = [96, 0], sizes = [16, 32], strides = [1, 1]} : vector<144x32xbf16> to vector<16x32xbf16>
    %c6_165 = arith.constant 6 : index
    %c0_166 = arith.constant 0 : index
    %c0_167 = arith.constant 0 : index
    %234 = vector.load %arg11[%c6_165, %c0_166, %c0_167] : memref<9x32x1xbf16, #tpu.memory_space<vmem>>, vector<1x32x1xbf16>
    %235 = vector.shape_cast %234 : vector<1x32x1xbf16> to vector<32x1xbf16>
    %cst_168 = arith.constant dense<0.000000e+00> : vector<16x1xf32>
    %236 = tpu.matmul %233, %235, %cst_168 {dimension_numbers = #tpu.dot_dimension_numbers<[1], [0], [0], [1], [0, 0, 1, 1], [], []>} : vector<16x32xbf16>, vector<32x1xbf16>, vector<16x1xf32> -> vector<16x1xf32>
    %237 = arith.addf %232, %236 : vector<16x1xf32>
    %238 = vector.extract_strided_slice %201 {offsets = [112, 0], sizes = [16, 32], strides = [1, 1]} : vector<144x32xbf16> to vector<16x32xbf16>
    %c7_169 = arith.constant 7 : index
    %c0_170 = arith.constant 0 : index
    %c0_171 = arith.constant 0 : index
    %239 = vector.load %arg11[%c7_169, %c0_170, %c0_171] : memref<9x32x1xbf16, #tpu.memory_space<vmem>>, vector<1x32x1xbf16>
    %240 = vector.shape_cast %239 : vector<1x32x1xbf16> to vector<32x1xbf16>
    %cst_172 = arith.constant dense<0.000000e+00> : vector<16x1xf32>
    %241 = tpu.matmul %238, %240, %cst_172 {dimension_numbers = #tpu.dot_dimension_numbers<[1], [0], [0], [1], [0, 0, 1, 1], [], []>} : vector<16x32xbf16>, vector<32x1xbf16>, vector<16x1xf32> -> vector<16x1xf32>
    %242 = arith.addf %237, %241 : vector<16x1xf32>
    %243 = vector.extract_strided_slice %201 {offsets = [128, 0], sizes = [16, 32], strides = [1, 1]} : vector<144x32xbf16> to vector<16x32xbf16>
    %c8_173 = arith.constant 8 : index
    %c0_174 = arith.constant 0 : index
    %c0_175 = arith.constant 0 : index
    %244 = vector.load %arg11[%c8_173, %c0_174, %c0_175] : memref<9x32x1xbf16, #tpu.memory_space<vmem>>, vector<1x32x1xbf16>
    %245 = vector.shape_cast %244 : vector<1x32x1xbf16> to vector<32x1xbf16>
    %cst_176 = arith.constant dense<0.000000e+00> : vector<16x1xf32>
    %246 = tpu.matmul %243, %245, %cst_176 {dimension_numbers = #tpu.dot_dimension_numbers<[1], [0], [0], [1], [0, 0, 1, 1], [], []>} : vector<16x32xbf16>, vector<32x1xbf16>, vector<16x1xf32> -> vector<16x1xf32>
    %247 = arith.addf %242, %246 : vector<16x1xf32>
    %c0_177 = arith.constant 0 : index
    %c0_178 = arith.constant 0 : index
    %248 = vector.load %arg12[%c0_177, %c0_178] : memref<1x1xf32, #tpu.memory_space<vmem>>, vector<1x1xf32>
    %249 = vector.broadcast %248 : vector<1x1xf32> to vector<16x1xf32>
    %250 = arith.addf %247, %249 : vector<16x1xf32>
    %c0_179 = arith.constant 0 : index
    %c0_180 = arith.constant 0 : index
    %c0_181 = arith.constant 0 : index
    %251 = vector.load %arg16[%c0_179, %c0_180, %c0_181] : memref<1x16x1xf32, #tpu.memory_space<vmem>>, vector<1x16x1xf32>
    %252 = vector.shape_cast %251 : vector<1x16x1xf32> to vector<16x1xf32>
    %253 = vector.shape_cast %250 : vector<16x1xf32> to vector<1x16x1xf32>
    tpu.vector_store %arg16[%c0_179, %c0_180, %c0_181], %253 {strides = array<i32>} : memref<1x16x1xf32, #tpu.memory_space<vmem>>, vector<1x16x1xf32>,
    %c0_182 = arith.constant 0 : index
    %c0_183 = arith.constant 0 : index
    %254 = vector.load %arg13[%c0_182, %c0_183] : memref<256x16xbf16, #tpu.memory_space<vmem>>, vector<256x16xbf16>
    %cst_184 = arith.constant dense<0.000000e+00> : vector<256x32xf32>
    %255 = tpu.matmul %254, %198, %cst_184 {dimension_numbers = #tpu.dot_dimension_numbers<[1], [0], [0], [1], [0, 0, 1, 1], [], []>} : vector<256x16xbf16>, vector<16x32xbf16>, vector<256x32xf32> -> vector<256x32xf32>
    %256 = arith.truncf %255 : vector<256x32xf32> to vector<256x32xbf16>
    %cst_185 = arith.constant 0.000000e+00 : f32
    %257 = vector.broadcast %cst_185 : f32 to vector<16x4xf32>
    %258 = vector.extract_strided_slice %256 {offsets = [0, 0], sizes = [16, 32], strides = [1, 1]} : vector<256x32xbf16> to vector<16x32xbf16>
    %c0_186 = arith.constant 0 : index
    %c0_187 = arith.constant 0 : index
    %c0_188 = arith.constant 0 : index
    %259 = vector.load %arg14[%c0_186, %c0_187, %c0_188] : memref<16x32x4xbf16, #tpu.memory_space<vmem>>, vector<1x32x4xbf16>
    %260 = vector.shape_cast %259 : vector<1x32x4xbf16> to vector<32x4xbf16>
    %cst_189 = arith.constant dense<0.000000e+00> : vector<16x4xf32>
    %261 = tpu.matmul %258, %260, %cst_189 {dimension_numbers = #tpu.dot_dimension_numbers<[1], [0], [0], [1], [0, 0, 1, 1], [], []>} : vector<16x32xbf16>, vector<32x4xbf16>, vector<16x4xf32> -> vector<16x4xf32>
    %262 = arith.addf %257, %261 : vector<16x4xf32>
    %263 = vector.extract_strided_slice %256 {offsets = [16, 0], sizes = [16, 32], strides = [1, 1]} : vector<256x32xbf16> to vector<16x32xbf16>
    %c1_190 = arith.constant 1 : index
    %c0_191 = arith.constant 0 : index
    %c0_192 = arith.constant 0 : index
    %264 = vector.load %arg14[%c1_190, %c0_191, %c0_192] : memref<16x32x4xbf16, #tpu.memory_space<vmem>>, vector<1x32x4xbf16>
    %265 = vector.shape_cast %264 : vector<1x32x4xbf16> to vector<32x4xbf16>
    %cst_193 = arith.constant dense<0.000000e+00> : vector<16x4xf32>
    %266 = tpu.matmul %263, %265, %cst_193 {dimension_numbers = #tpu.dot_dimension_numbers<[1], [0], [0], [1], [0, 0, 1, 1], [], []>} : vector<16x32xbf16>, vector<32x4xbf16>, vector<16x4xf32> -> vector<16x4xf32>
    %267 = arith.addf %262, %266 : vector<16x4xf32>
    %268 = vector.extract_strided_slice %256 {offsets = [32, 0], sizes = [16, 32], strides = [1, 1]} : vector<256x32xbf16> to vector<16x32xbf16>
    %c2_194 = arith.constant 2 : index
    %c0_195 = arith.constant 0 : index
    %c0_196 = arith.constant 0 : index
    %269 = vector.load %arg14[%c2_194, %c0_195, %c0_196] : memref<16x32x4xbf16, #tpu.memory_space<vmem>>, vector<1x32x4xbf16>
    %270 = vector.shape_cast %269 : vector<1x32x4xbf16> to vector<32x4xbf16>
    %cst_197 = arith.constant dense<0.000000e+00> : vector<16x4xf32>
    %271 = tpu.matmul %268, %270, %cst_197 {dimension_numbers = #tpu.dot_dimension_numbers<[1], [0], [0], [1], [0, 0, 1, 1], [], []>} : vector<16x32xbf16>, vector<32x4xbf16>, vector<16x4xf32> -> vector<16x4xf32>
    %272 = arith.addf %267, %271 : vector<16x4xf32>
    %273 = vector.extract_strided_slice %256 {offsets = [48, 0], sizes = [16, 32], strides = [1, 1]} : vector<256x32xbf16> to vector<16x32xbf16>
    %c3_198 = arith.constant 3 : index
    %c0_199 = arith.constant 0 : index
    %c0_200 = arith.constant 0 : index
    %274 = vector.load %arg14[%c3_198, %c0_199, %c0_200] : memref<16x32x4xbf16, #tpu.memory_space<vmem>>, vector<1x32x4xbf16>
    %275 = vector.shape_cast %274 : vector<1x32x4xbf16> to vector<32x4xbf16>
    %cst_201 = arith.constant dense<0.000000e+00> : vector<16x4xf32>
    %276 = tpu.matmul %273, %275, %cst_201 {dimension_numbers = #tpu.dot_dimension_numbers<[1], [0], [0], [1], [0, 0, 1, 1], [], []>} : vector<16x32xbf16>, vector<32x4xbf16>, vector<16x4xf32> -> vector<16x4xf32>
    %277 = arith.addf %272, %276 : vector<16x4xf32>
    %278 = vector.extract_strided_slice %256 {offsets = [64, 0], sizes = [16, 32], strides = [1, 1]} : vector<256x32xbf16> to vector<16x32xbf16>
    %c4_202 = arith.constant 4 : index
    %c0_203 = arith.constant 0 : index
    %c0_204 = arith.constant 0 : index
    %279 = vector.load %arg14[%c4_202, %c0_203, %c0_204] : memref<16x32x4xbf16, #tpu.memory_space<vmem>>, vector<1x32x4xbf16>
    %280 = vector.shape_cast %279 : vector<1x32x4xbf16> to vector<32x4xbf16>
    %cst_205 = arith.constant dense<0.000000e+00> : vector<16x4xf32>
    %281 = tpu.matmul %278, %280, %cst_205 {dimension_numbers = #tpu.dot_dimension_numbers<[1], [0], [0], [1], [0, 0, 1, 1], [], []>} : vector<16x32xbf16>, vector<32x4xbf16>, vector<16x4xf32> -> vector<16x4xf32>
    %282 = arith.addf %277, %281 : vector<16x4xf32>
    %283 = vector.extract_strided_slice %256 {offsets = [80, 0], sizes = [16, 32], strides = [1, 1]} : vector<256x32xbf16> to vector<16x32xbf16>
    %c5_206 = arith.constant 5 : index
    %c0_207 = arith.constant 0 : index
    %c0_208 = arith.constant 0 : index
    %284 = vector.load %arg14[%c5_206, %c0_207, %c0_208] : memref<16x32x4xbf16, #tpu.memory_space<vmem>>, vector<1x32x4xbf16>
    %285 = vector.shape_cast %284 : vector<1x32x4xbf16> to vector<32x4xbf16>
    %cst_209 = arith.constant dense<0.000000e+00> : vector<16x4xf32>
    %286 = tpu.matmul %283, %285, %cst_209 {dimension_numbers = #tpu.dot_dimension_numbers<[1], [0], [0], [1], [0, 0, 1, 1], [], []>} : vector<16x32xbf16>, vector<32x4xbf16>, vector<16x4xf32> -> vector<16x4xf32>
    %287 = arith.addf %282, %286 : vector<16x4xf32>
    %288 = vector.extract_strided_slice %256 {offsets = [96, 0], sizes = [16, 32], strides = [1, 1]} : vector<256x32xbf16> to vector<16x32xbf16>
    %c6_210 = arith.constant 6 : index
    %c0_211 = arith.constant 0 : index
    %c0_212 = arith.constant 0 : index
    %289 = vector.load %arg14[%c6_210, %c0_211, %c0_212] : memref<16x32x4xbf16, #tpu.memory_space<vmem>>, vector<1x32x4xbf16>
    %290 = vector.shape_cast %289 : vector<1x32x4xbf16> to vector<32x4xbf16>
    %cst_213 = arith.constant dense<0.000000e+00> : vector<16x4xf32>
    %291 = tpu.matmul %288, %290, %cst_213 {dimension_numbers = #tpu.dot_dimension_numbers<[1], [0], [0], [1], [0, 0, 1, 1], [], []>} : vector<16x32xbf16>, vector<32x4xbf16>, vector<16x4xf32> -> vector<16x4xf32>
    %292 = arith.addf %287, %291 : vector<16x4xf32>
    %293 = vector.extract_strided_slice %256 {offsets = [112, 0], sizes = [16, 32], strides = [1, 1]} : vector<256x32xbf16> to vector<16x32xbf16>
    %c7_214 = arith.constant 7 : index
    %c0_215 = arith.constant 0 : index
    %c0_216 = arith.constant 0 : index
    %294 = vector.load %arg14[%c7_214, %c0_215, %c0_216] : memref<16x32x4xbf16, #tpu.memory_space<vmem>>, vector<1x32x4xbf16>
    %295 = vector.shape_cast %294 : vector<1x32x4xbf16> to vector<32x4xbf16>
    %cst_217 = arith.constant dense<0.000000e+00> : vector<16x4xf32>
    %296 = tpu.matmul %293, %295, %cst_217 {dimension_numbers = #tpu.dot_dimension_numbers<[1], [0], [0], [1], [0, 0, 1, 1], [], []>} : vector<16x32xbf16>, vector<32x4xbf16>, vector<16x4xf32> -> vector<16x4xf32>
    %297 = arith.addf %292, %296 : vector<16x4xf32>
    %298 = vector.extract_strided_slice %256 {offsets = [128, 0], sizes = [16, 32], strides = [1, 1]} : vector<256x32xbf16> to vector<16x32xbf16>
    %c8_218 = arith.constant 8 : index
    %c0_219 = arith.constant 0 : index
    %c0_220 = arith.constant 0 : index
    %299 = vector.load %arg14[%c8_218, %c0_219, %c0_220] : memref<16x32x4xbf16, #tpu.memory_space<vmem>>, vector<1x32x4xbf16>
    %300 = vector.shape_cast %299 : vector<1x32x4xbf16> to vector<32x4xbf16>
    %cst_221 = arith.constant dense<0.000000e+00> : vector<16x4xf32>
    %301 = tpu.matmul %298, %300, %cst_221 {dimension_numbers = #tpu.dot_dimension_numbers<[1], [0], [0], [1], [0, 0, 1, 1], [], []>} : vector<16x32xbf16>, vector<32x4xbf16>, vector<16x4xf32> -> vector<16x4xf32>
    %302 = arith.addf %297, %301 : vector<16x4xf32>
    %303 = vector.extract_strided_slice %256 {offsets = [144, 0], sizes = [16, 32], strides = [1, 1]} : vector<256x32xbf16> to vector<16x32xbf16>
    %c9_222 = arith.constant 9 : index
    %c0_223 = arith.constant 0 : index
    %c0_224 = arith.constant 0 : index
    %304 = vector.load %arg14[%c9_222, %c0_223, %c0_224] : memref<16x32x4xbf16, #tpu.memory_space<vmem>>, vector<1x32x4xbf16>
    %305 = vector.shape_cast %304 : vector<1x32x4xbf16> to vector<32x4xbf16>
    %cst_225 = arith.constant dense<0.000000e+00> : vector<16x4xf32>
    %306 = tpu.matmul %303, %305, %cst_225 {dimension_numbers = #tpu.dot_dimension_numbers<[1], [0], [0], [1], [0, 0, 1, 1], [], []>} : vector<16x32xbf16>, vector<32x4xbf16>, vector<16x4xf32> -> vector<16x4xf32>
    %307 = arith.addf %302, %306 : vector<16x4xf32>
    %308 = vector.extract_strided_slice %256 {offsets = [160, 0], sizes = [16, 32], strides = [1, 1]} : vector<256x32xbf16> to vector<16x32xbf16>
    %c10_226 = arith.constant 10 : index
    %c0_227 = arith.constant 0 : index
    %c0_228 = arith.constant 0 : index
    %309 = vector.load %arg14[%c10_226, %c0_227, %c0_228] : memref<16x32x4xbf16, #tpu.memory_space<vmem>>, vector<1x32x4xbf16>
    %310 = vector.shape_cast %309 : vector<1x32x4xbf16> to vector<32x4xbf16>
    %cst_229 = arith.constant dense<0.000000e+00> : vector<16x4xf32>
    %311 = tpu.matmul %308, %310, %cst_229 {dimension_numbers = #tpu.dot_dimension_numbers<[1], [0], [0], [1], [0, 0, 1, 1], [], []>} : vector<16x32xbf16>, vector<32x4xbf16>, vector<16x4xf32> -> vector<16x4xf32>
    %312 = arith.addf %307, %311 : vector<16x4xf32>
    %313 = vector.extract_strided_slice %256 {offsets = [176, 0], sizes = [16, 32], strides = [1, 1]} : vector<256x32xbf16> to vector<16x32xbf16>
    %c11_230 = arith.constant 11 : index
    %c0_231 = arith.constant 0 : index
    %c0_232 = arith.constant 0 : index
    %314 = vector.load %arg14[%c11_230, %c0_231, %c0_232] : memref<16x32x4xbf16, #tpu.memory_space<vmem>>, vector<1x32x4xbf16>
    %315 = vector.shape_cast %314 : vector<1x32x4xbf16> to vector<32x4xbf16>
    %cst_233 = arith.constant dense<0.000000e+00> : vector<16x4xf32>
    %316 = tpu.matmul %313, %315, %cst_233 {dimension_numbers = #tpu.dot_dimension_numbers<[1], [0], [0], [1], [0, 0, 1, 1], [], []>} : vector<16x32xbf16>, vector<32x4xbf16>, vector<16x4xf32> -> vector<16x4xf32>
    %317 = arith.addf %312, %316 : vector<16x4xf32>
    %318 = vector.extract_strided_slice %256 {offsets = [192, 0], sizes = [16, 32], strides = [1, 1]} : vector<256x32xbf16> to vector<16x32xbf16>
    %c12_234 = arith.constant 12 : index
    %c0_235 = arith.constant 0 : index
    %c0_236 = arith.constant 0 : index
    %319 = vector.load %arg14[%c12_234, %c0_235, %c0_236] : memref<16x32x4xbf16, #tpu.memory_space<vmem>>, vector<1x32x4xbf16>
    %320 = vector.shape_cast %319 : vector<1x32x4xbf16> to vector<32x4xbf16>
    %cst_237 = arith.constant dense<0.000000e+00> : vector<16x4xf32>
    %321 = tpu.matmul %318, %320, %cst_237 {dimension_numbers = #tpu.dot_dimension_numbers<[1], [0], [0], [1], [0, 0, 1, 1], [], []>} : vector<16x32xbf16>, vector<32x4xbf16>, vector<16x4xf32> -> vector<16x4xf32>
    %322 = arith.addf %317, %321 : vector<16x4xf32>
    %323 = vector.extract_strided_slice %256 {offsets = [208, 0], sizes = [16, 32], strides = [1, 1]} : vector<256x32xbf16> to vector<16x32xbf16>
    %c13_238 = arith.constant 13 : index
    %c0_239 = arith.constant 0 : index
    %c0_240 = arith.constant 0 : index
    %324 = vector.load %arg14[%c13_238, %c0_239, %c0_240] : memref<16x32x4xbf16, #tpu.memory_space<vmem>>, vector<1x32x4xbf16>
    %325 = vector.shape_cast %324 : vector<1x32x4xbf16> to vector<32x4xbf16>
    %cst_241 = arith.constant dense<0.000000e+00> : vector<16x4xf32>
    %326 = tpu.matmul %323, %325, %cst_241 {dimension_numbers = #tpu.dot_dimension_numbers<[1], [0], [0], [1], [0, 0, 1, 1], [], []>} : vector<16x32xbf16>, vector<32x4xbf16>, vector<16x4xf32> -> vector<16x4xf32>
    %327 = arith.addf %322, %326 : vector<16x4xf32>
    %328 = vector.extract_strided_slice %256 {offsets = [224, 0], sizes = [16, 32], strides = [1, 1]} : vector<256x32xbf16> to vector<16x32xbf16>
    %c14_242 = arith.constant 14 : index
    %c0_243 = arith.constant 0 : index
    %c0_244 = arith.constant 0 : index
    %329 = vector.load %arg14[%c14_242, %c0_243, %c0_244] : memref<16x32x4xbf16, #tpu.memory_space<vmem>>, vector<1x32x4xbf16>
    %330 = vector.shape_cast %329 : vector<1x32x4xbf16> to vector<32x4xbf16>
    %cst_245 = arith.constant dense<0.000000e+00> : vector<16x4xf32>
    %331 = tpu.matmul %328, %330, %cst_245 {dimension_numbers = #tpu.dot_dimension_numbers<[1], [0], [0], [1], [0, 0, 1, 1], [], []>} : vector<16x32xbf16>, vector<32x4xbf16>, vector<16x4xf32> -> vector<16x4xf32>
    %332 = arith.addf %327, %331 : vector<16x4xf32>
    %333 = vector.extract_strided_slice %256 {offsets = [240, 0], sizes = [16, 32], strides = [1, 1]} : vector<256x32xbf16> to vector<16x32xbf16>
    %c15_246 = arith.constant 15 : index
    %c0_247 = arith.constant 0 : index
    %c0_248 = arith.constant 0 : index
    %334 = vector.load %arg14[%c15_246, %c0_247, %c0_248] : memref<16x32x4xbf16, #tpu.memory_space<vmem>>, vector<1x32x4xbf16>
    %335 = vector.shape_cast %334 : vector<1x32x4xbf16> to vector<32x4xbf16>
    %cst_249 = arith.constant dense<0.000000e+00> : vector<16x4xf32>
    %336 = tpu.matmul %333, %335, %cst_249 {dimension_numbers = #tpu.dot_dimension_numbers<[1], [0], [0], [1], [0, 0, 1, 1], [], []>} : vector<16x32xbf16>, vector<32x4xbf16>, vector<16x4xf32> -> vector<16x4xf32>
    %337 = arith.addf %332, %336 : vector<16x4xf32>
    %c0_250 = arith.constant 0 : index
    %c0_251 = arith.constant 0 : index
    %338 = vector.load %arg15[%c0_250, %c0_251] : memref<1x4xf32, #tpu.memory_space<vmem>>, vector<1x4xf32>
    %339 = vector.broadcast %338 : vector<1x4xf32> to vector<16x4xf32>
    %340 = arith.addf %337, %339 : vector<16x4xf32>
    %341 = vector.extract_strided_slice %340 {offsets = [0, 0], sizes = [1, 4], strides = [1, 1]} : vector<16x4xf32> to vector<1x4xf32>
    %c0_252 = arith.constant 0 : index
    %c0_253 = arith.constant 0 : index
    %c0_254 = arith.constant 0 : index
    %342 = vector.load %arg17[%c0_252, %c0_253, %c0_254] : memref<1x1x4xf32, #tpu.memory_space<vmem>>, vector<1x1x4xf32>
    %343 = vector.shape_cast %342 : vector<1x1x4xf32> to vector<1x4xf32>
    %344 = vector.shape_cast %341 : vector<1x4xf32> to vector<1x1x4xf32>
    tpu.vector_store %arg17[%c0_252, %c0_253, %c0_254], %344 {strides = array<i32>} : memref<1x1x4xf32, #tpu.memory_space<vmem>>, vector<1x1x4xf32>,
    return
  }
  func.func @transform_0(%arg0: i32) -> (i32, i32, i32) {
    %c0_i32 = arith.constant 0 : i32
    %c0_i32_0 = arith.constant 0 : i32
    %c0_i32_1 = arith.constant 0 : i32
    return %arg0, %c0_i32, %c0_i32_0 : i32, i32, i32
  }
  func.func @transform_1(%arg0: i32) -> (i32, i32) {
    %c0_i32 = arith.constant 0 : i32
    %c0_i32_0 = arith.constant 0 : i32
    %c0_i32_1 = arith.constant 0 : i32
    return %c0_i32, %c0_i32_0 : i32, i32
  }
  func.func @transform_2(%arg0: i32) -> (i32, i32) {
    %c0_i32 = arith.constant 0 : i32
    %c0_i32_0 = arith.constant 0 : i32
    %c0_i32_1 = arith.constant 0 : i32
    return %c0_i32, %c0_i32_0 : i32, i32
  }
  func.func @transform_3(%arg0: i32) -> (i32, i32) {
    %c0_i32 = arith.constant 0 : i32
    %c0_i32_0 = arith.constant 0 : i32
    %c0_i32_1 = arith.constant 0 : i32
    return %c0_i32, %c0_i32_0 : i32, i32
  }
  func.func @transform_4(%arg0: i32) -> (i32, i32, i32) {
    %c0_i32 = arith.constant 0 : i32
    %c0_i32_0 = arith.constant 0 : i32
    %c0_i32_1 = arith.constant 0 : i32
    %c0_i32_2 = arith.constant 0 : i32
    return %c0_i32, %c0_i32_0, %c0_i32_1 : i32, i32, i32
  }
  func.func @transform_5(%arg0: i32) -> (i32, i32) {
    %c0_i32 = arith.constant 0 : i32
    %c0_i32_0 = arith.constant 0 : i32
    %c0_i32_1 = arith.constant 0 : i32
    return %c0_i32, %c0_i32_0 : i32, i32
  }
  func.func @transform_6(%arg0: i32) -> (i32, i32) {
    %c0_i32 = arith.constant 0 : i32
    %c0_i32_0 = arith.constant 0 : i32
    %c0_i32_1 = arith.constant 0 : i32
    return %c0_i32, %c0_i32_0 : i32, i32
  }
  func.func @transform_7(%arg0: i32) -> (i32, i32, i32) {
    %c0_i32 = arith.constant 0 : i32
    %c0_i32_0 = arith.constant 0 : i32
    %c0_i32_1 = arith.constant 0 : i32
    %c0_i32_2 = arith.constant 0 : i32
    return %c0_i32, %c0_i32_0, %c0_i32_1 : i32, i32, i32
  }
  func.func @transform_8(%arg0: i32) -> (i32, i32) {
    %c0_i32 = arith.constant 0 : i32
    %c0_i32_0 = arith.constant 0 : i32
    %c0_i32_1 = arith.constant 0 : i32
    return %c0_i32, %c0_i32_0 : i32, i32
  }
  func.func @transform_9(%arg0: i32) -> (i32, i32) {
    %c0_i32 = arith.constant 0 : i32
    %c0_i32_0 = arith.constant 0 : i32
    %c0_i32_1 = arith.constant 0 : i32
    return %c0_i32, %c0_i32_0 : i32, i32
  }
  func.func @transform_10(%arg0: i32) -> (i32, i32, i32) {
    %c0_i32 = arith.constant 0 : i32
    %c0_i32_0 = arith.constant 0 : i32
    %c0_i32_1 = arith.constant 0 : i32
    %c0_i32_2 = arith.constant 0 : i32
    return %c0_i32, %c0_i32_0, %c0_i32_1 : i32, i32, i32
  }
  func.func @transform_11(%arg0: i32) -> (i32, i32) {
    %c0_i32 = arith.constant 0 : i32
    %c0_i32_0 = arith.constant 0 : i32
    %c0_i32_1 = arith.constant 0 : i32
    return %c0_i32, %c0_i32_0 : i32, i32
  }
  func.func @transform_12(%arg0: i32) -> (i32, i32) {
    %c0_i32 = arith.constant 0 : i32
    %c0_i32_0 = arith.constant 0 : i32
    %c0_i32_1 = arith.constant 0 : i32
    return %c0_i32, %c0_i32_0 : i32, i32
  }
  func.func @transform_13(%arg0: i32) -> (i32, i32, i32) {
    %c0_i32 = arith.constant 0 : i32
    %c0_i32_0 = arith.constant 0 : i32
    %c0_i32_1 = arith.constant 0 : i32
    %c0_i32_2 = arith.constant 0 : i32
    return %c0_i32, %c0_i32_0, %c0_i32_1 : i32, i32, i32
  }
  func.func @transform_14(%arg0: i32) -> (i32, i32) {
    %c0_i32 = arith.constant 0 : i32
    %c0_i32_0 = arith.constant 0 : i32
    %c0_i32_1 = arith.constant 0 : i32
    return %c0_i32, %c0_i32_0 : i32, i32
  }
  func.func @transform_15(%arg0: i32) -> (i32, i32, i32) {
    %c0_i32 = arith.constant 0 : i32
    %c0_i32_0 = arith.constant 0 : i32
    %c0_i32_1 = arith.constant 0 : i32
    return %arg0, %c0_i32, %c0_i32_0 : i32, i32, i32
  }
  func.func @transform_16(%arg0: i32) -> (i32, i32, i32) {
    %c0_i32 = arith.constant 0 : i32
    %c0_i32_0 = arith.constant 0 : i32
    %c0_i32_1 = arith.constant 0 : i32
    return %arg0, %c0_i32, %c0_i32_0 : i32, i32, i32
  }
}

</mosaic_0001>

<llo_original>
// kernel: forward.1
$region0: #{forward.1}
  #allocation0 [shape = 'u32[]', space=smem, size = 0x4, offset = 0x4, fixed_abs, tag = 'smem constant byte address 0x4 - core index']
  #allocation1 [shape = 'u32[144,128]{1,0:T(1,128)}', space=vmem, size = 0x12000, scoped, tag = 'internal scratch']
  #allocation2 [shape = 'f32[1,1]{1,0:T(1,128)S(1)}', space=vmem, size = 0x200, scoped, tag = 'scoped memory for forward.1']
  %s0 = inlined_call_operand.vmem [shape: bf16[2,256,16], index: 0, kind: input, shape index: {}]
  %s1 = inlined_call_operand.vmem [shape: bf16[16,8], index: 1, kind: input, shape index: {}]
  %s2 = inlined_call_operand.vmem [shape: f32[1,8], index: 2, kind: input, shape index: {}]
  %s3 = inlined_call_operand.vmem [shape: bf16[1024,256], index: 3, kind: input, shape index: {}]
  %s4 = inlined_call_operand.vmem [shape: bf16[16,8,16], index: 4, kind: input, shape index: {}]
  %s5 = inlined_call_operand.vmem [shape: f32[1,16], index: 5, kind: input, shape index: {}]
  %s6 = inlined_call_operand.vmem [shape: bf16[256,64], index: 6, kind: input, shape index: {}]
  %s7 = inlined_call_operand.vmem [shape: bf16[16,16,32], index: 7, kind: input, shape index: {}]
  %s8 = inlined_call_operand.vmem [shape: f32[1,32], index: 8, kind: input, shape index: {}]
  %s9 = inlined_call_operand.vmem [shape: bf16[144,16], index: 9, kind: input, shape index: {}]
  %s10 = inlined_call_operand.vmem [shape: bf16[9,32,1], index: 10, kind: input, shape index: {}]
  %s11 = inlined_call_operand.<no memory space> [shape: f32[1,1], index: 11, kind: input, shape index: {}]
  %s12 = inlined_call_operand.vmem [shape: bf16[256,16], index: 12, kind: input, shape index: {}]
  %s13 = inlined_call_operand.vmem [shape: bf16[16,32,4], index: 13, kind: input, shape index: {}]
  %s14 = inlined_call_operand.vmem [shape: f32[1,4], index: 14, kind: input, shape index: {}]
  %s15 = inlined_call_operand.vmem [shape: f32[2,16,1], index: 15, kind: output, shape index: {0}]
  %s16 = inlined_call_operand.hbm [shape: f32[2,1,4], index: 16, kind: output, shape index: {1}]
  %17 = xla_tuple %s15, %s16
  %s18 = sld [smem:[#allocation0]]
  $region101: #{forward.1} parent=0
    _
  %s20 = ssub.s32 1, %s18
  %s21 = scalar_select 0, %s20, %s18
  %v22 = vstv %s11
  %23 = vst [vmem:[#allocation2] sm:$0x1] %v22
  $region1: #{forward.1} parent=0
    #allocation3 [shape = 'u8[1024]{0}', space=vmem, size = 0x400, scoped, tag = 'output window, operand 1']
    #allocation4 [shape = 's32[2]{0}', space=sflag, size = 0x8, scoped, tag = 'scoped memory for forward.1']
    %24 = vsyncpa [#allocation4], 0
    %s25 = scalar_lea.sflag [#allocation4], 1
    %26 = vsyncpa %s25, 0
    loop: start=0, step=1, limit=4
    $region2: #{forward.1} parent=1 // loop_pre_header
      _
    $region3: #{forward.1} parent=1 // loop_header
      %s28 = sphi 0, %s32
      %p29 = scmp.ge.s32.totalorder %s28, 4
      %s38 = sphi 0, %s40
      %s41 = sphi 0, %s38
      %s42 = sphi 0, %s41
      %s58 = sphi 0, %s42
      %s62 = sphi 0, %s62
      %s64 = sphi 0, %s62
      %s65 = sphi 0, %s64
      %s79 = sphi 0, %s65
      %s83 = sphi 0, %s83
      %s85 = sphi 0, %s83
      %s86 = sphi 0, %s85
      %s100 = sphi 0, %s86
      %s104 = sphi 0, %s104
      %s106 = sphi 0, %s104
      %s107 = sphi 0, %s106
      %s121 = sphi 0, %s107
      %s125 = sphi 0, %s125
      %s127 = sphi 0, %s125
      %s128 = sphi 0, %s127
      %s142 = sphi 0, %s128
      %s146 = sphi 0, %s146
      %s148 = sphi 0, %s146
      %s149 = sphi 0, %s148
      %s163 = sphi 0, %s149
      %s167 = sphi 0, %s167
      %s169 = sphi 0, %s167
      %s170 = sphi 0, %s169
      %s184 = sphi 0, %s170
      %s188 = sphi 0, %s188
      %s190 = sphi 0, %s188
      %s191 = sphi 0, %s190
      %s205 = sphi 0, %s191
      %s209 = sphi 0, %s209
      %s211 = sphi 0, %s209
      %s212 = sphi 0, %s211
      %s226 = sphi 0, %s212
      %s230 = sphi 0, %s230
      %s232 = sphi 0, %s230
      %s233 = sphi 0, %s232
      %s247 = sphi 0, %s233
      %s251 = sphi 0, %s251
      %s253 = sphi 0, %s251
      %s254 = sphi 0, %s253
      %s268 = sphi 0, %s254
      %s272 = sphi 0, %s272
      %s274 = sphi 0, %s272
      %s275 = sphi 0, %s274
      %s289 = sphi 0, %s275
      %s293 = sphi 0, %s293
      %s295 = sphi 0, %s293
      %s296 = sphi 0, %s295
      %s310 = sphi 0, %s296
      %s314 = sphi 0, %s314
      %s316 = sphi 0, %s314
      %s317 = sphi 0, %s316
      %s331 = sphi 0, %s317
      %s335 = sphi 0, %s335
      %s337 = sphi 0, %s335
      %s338 = sphi 0, %s337
      %s352 = sphi 0, %s338
      %s358 = sphi 0, %s360
      %s361 = sphi 0, %s358
      %s362 = sphi 0, %s361
      %s378 = sphi 0, %s362
      %s384 = sphi 0, %s386
      %s387 = sphi 0, %s384
      %s388 = sphi 0, %s387
      %s404 = sphi 0, %s388
    $region4: #{forward.1} parent=1 // loop_header_branch
      %31 = sbr.rel (%p29) target = $region8
    $region5: #{forward.1} parent=1 // loop_body
      %s33 = ssub.s32 %s28, 1
      %s34 = ssub.s32 %s28, 2
      %s35 = sadd.s32 %s28, 1
      %s36 = ssub.s32 %s28, %s35
      %p37 = scmp.eq.s32.totalorder %s36, 0
      %s39 = sadd.s32 %s38, 1
      %s40 = scalar_select %p37, %s38, %s39
      %p43 = pneg %p37
      %p44 = scmp.eq.s32.totalorder %s28, 1
      %p45 = por %p43, %p44
      %p46 = scmp.ne.s32.totalorder %s38, %s41
      %p47 = scmp.eq.s32.totalorder %s28, 0
      %p48 = por %p46, %p47
      %p49 = scmp.ne.s32.totalorder %s38, %s41
      %p50 = scmp.eq.s32.totalorder %s33, 1
      %p51 = por %p49, %p50
      %p52 = scmp.ne.s32.totalorder %s41, %s42
      %p53 = scmp.eq.s32.totalorder %s33, 0
      %p54 = por %p52, %p53
      %p55 = scmp.ne.s32.totalorder %s41, %s42
      %p56 = scmp.eq.s32.totalorder %s34, 1
      %p57 = por %p55, %p56
      %p59 = scmp.ne.s32.totalorder %s42, %s58
      %p60 = scmp.eq.s32.totalorder %s34, 0
      %p61 = por %p59, %p60
      %s63 = sadd.s32 %s62, 1
      %p66 = scmp.eq.s32.totalorder %s28, 1
      %p67 = scmp.ne.s32.totalorder %s62, %s64
      %p68 = scmp.eq.s32.totalorder %s28, 0
      %p69 = por %p67, %p68
      %p70 = scmp.ne.s32.totalorder %s62, %s64
      %p71 = scmp.eq.s32.totalorder %s33, 1
      %p72 = por %p70, %p71
      %p73 = scmp.ne.s32.totalorder %s64, %s65
      %p74 = scmp.eq.s32.totalorder %s33, 0
      %p75 = por %p73, %p74
      %p76 = scmp.ne.s32.totalorder %s64, %s65
      %p77 = scmp.eq.s32.totalorder %s34, 1
      %p78 = por %p76, %p77
      %p80 = scmp.ne.s32.totalorder %s65, %s79
      %p81 = scmp.eq.s32.totalorder %s34, 0
      %p82 = por %p80, %p81
      %s84 = sadd.s32 %s83, 1
      %p87 = scmp.eq.s32.totalorder %s28, 1
      %p88 = scmp.ne.s32.totalorder %s83, %s85
      %p89 = scmp.eq.s32.totalorder %s28, 0
      %p90 = por %p88, %p89
      %p91 = scmp.ne.s32.totalorder %s83, %s85
      %p92 = scmp.eq.s32.totalorder %s33, 1
      %p93 = por %p91, %p92
      %p94 = scmp.ne.s32.totalorder %s85, %s86
      %p95 = scmp.eq.s32.totalorder %s33, 0
      %p96 = por %p94, %p95
      %p97 = scmp.ne.s32.totalorder %s85, %s86
      %p98 = scmp.eq.s32.totalorder %s34, 1
      %p99 = por %p97, %p98
      %p101 = scmp.ne.s32.totalorder %s86, %s100
      %p102 = scmp.eq.s32.totalorder %s34, 0
      %p103 = por %p101, %p102
      %s105 = sadd.s32 %s104, 1
      %p108 = scmp.eq.s32.totalorder %s28, 1
      %p109 = scmp.ne.s32.totalorder %s104, %s106
      %p110 = scmp.eq.s32.totalorder %s28, 0
      %p111 = por %p109, %p110
      %p112 = scmp.ne.s32.totalorder %s104, %s106
      %p113 = scmp.eq.s32.totalorder %s33, 1
      %p114 = por %p112, %p113
      %p115 = scmp.ne.s32.totalorder %s106, %s107
      %p116 = scmp.eq.s32.totalorder %s33, 0
      %p117 = por %p115, %p116
      %p118 = scmp.ne.s32.totalorder %s106, %s107
      %p119 = scmp.eq.s32.totalorder %s34, 1
      %p120 = por %p118, %p119
      %p122 = scmp.ne.s32.totalorder %s107, %s121
      %p123 = scmp.eq.s32.totalorder %s34, 0
      %p124 = por %p122, %p123
      %s126 = sadd.s32 %s125, 1
      %p129 = scmp.eq.s32.totalorder %s28, 1
      %p130 = scmp.ne.s32.totalorder %s125, %s127
      %p131 = scmp.eq.s32.totalorder %s28, 0
      %p132 = por %p130, %p131
      %p133 = scmp.ne.s32.totalorder %s125, %s127
      %p134 = scmp.eq.s32.totalorder %s33, 1
      %p135 = por %p133, %p134
      %p136 = scmp.ne.s32.totalorder %s127, %s128
      %p137 = scmp.eq.s32.totalorder %s33, 0
      %p138 = por %p136, %p137
      %p139 = scmp.ne.s32.totalorder %s127, %s128
      %p140 = scmp.eq.s32.totalorder %s34, 1
      %p141 = por %p139, %p140
      %p143 = scmp.ne.s32.totalorder %s128, %s142
      %p144 = scmp.eq.s32.totalorder %s34, 0
      %p145 = por %p143, %p144
      %s147 = sadd.s32 %s146, 1
      %p150 = scmp.eq.s32.totalorder %s28, 1
      %p151 = scmp.ne.s32.totalorder %s146, %s148
      %p152 = scmp.eq.s32.totalorder %s28, 0
      %p153 = por %p151, %p152
      %p154 = scmp.ne.s32.totalorder %s146, %s148
      %p155 = scmp.eq.s32.totalorder %s33, 1
      %p156 = por %p154, %p155
      %p157 = scmp.ne.s32.totalorder %s148, %s149
      %p158 = scmp.eq.s32.totalorder %s33, 0
      %p159 = por %p157, %p158
      %p160 = scmp.ne.s32.totalorder %s148, %s149
      %p161 = scmp.eq.s32.totalorder %s34, 1
      %p162 = por %p160, %p161
      %p164 = scmp.ne.s32.totalorder %s149, %s163
      %p165 = scmp.eq.s32.totalorder %s34, 0
      %p166 = por %p164, %p165
      %s168 = sadd.s32 %s167, 1
      %p171 = scmp.eq.s32.totalorder %s28, 1
      %p172 = scmp.ne.s32.totalorder %s167, %s169
      %p173 = scmp.eq.s32.totalorder %s28, 0
      %p174 = por %p172, %p173
      %p175 = scmp.ne.s32.totalorder %s167, %s169
      %p176 = scmp.eq.s32.totalorder %s33, 1
      %p177 = por %p175, %p176
      %p178 = scmp.ne.s32.totalorder %s169, %s170
      %p179 = scmp.eq.s32.totalorder %s33, 0
      %p180 = por %p178, %p179
      %p181 = scmp.ne.s32.totalorder %s169, %s170
      %p182 = scmp.eq.s32.totalorder %s34, 1
      %p183 = por %p181, %p182
      %p185 = scmp.ne.s32.totalorder %s170, %s184
      %p186 = scmp.eq.s32.totalorder %s34, 0
      %p187 = por %p185, %p186
      %s189 = sadd.s32 %s188, 1
      %p192 = scmp.eq.s32.totalorder %s28, 1
      %p193 = scmp.ne.s32.totalorder %s188, %s190
      %p194 = scmp.eq.s32.totalorder %s28, 0
      %p195 = por %p193, %p194
      %p196 = scmp.ne.s32.totalorder %s188, %s190
      %p197 = scmp.eq.s32.totalorder %s33, 1
      %p198 = por %p196, %p197
      %p199 = scmp.ne.s32.totalorder %s190, %s191
      %p200 = scmp.eq.s32.totalorder %s33, 0
      %p201 = por %p199, %p200
      %p202 = scmp.ne.s32.totalorder %s190, %s191
      %p203 = scmp.eq.s32.totalorder %s34, 1
      %p204 = por %p202, %p203
      %p206 = scmp.ne.s32.totalorder %s191, %s205
      %p207 = scmp.eq.s32.totalorder %s34, 0
      %p208 = por %p206, %p207
      %s210 = sadd.s32 %s209, 1
      %p213 = scmp.eq.s32.totalorder %s28, 1
      %p214 = scmp.ne.s32.totalorder %s209, %s211
      %p215 = scmp.eq.s32.totalorder %s28, 0
      %p216 = por %p214, %p215
      %p217 = scmp.ne.s32.totalorder %s209, %s211
      %p218 = scmp.eq.s32.totalorder %s33, 1
      %p219 = por %p217, %p218
      %p220 = scmp.ne.s32.totalorder %s211, %s212
      %p221 = scmp.eq.s32.totalorder %s33, 0
      %p222 = por %p220, %p221
      %p223 = scmp.ne.s32.totalorder %s211, %s212
      %p224 = scmp.eq.s32.totalorder %s34, 1
      %p225 = por %p223, %p224
      %p227 = scmp.ne.s32.totalorder %s212, %s226
      %p228 = scmp.eq.s32.totalorder %s34, 0
      %p229 = por %p227, %p228
      %s231 = sadd.s32 %s230, 1
      %p234 = scmp.eq.s32.totalorder %s28, 1
      %p235 = scmp.ne.s32.totalorder %s230, %s232
      %p236 = scmp.eq.s32.totalorder %s28, 0
      %p237 = por %p235, %p236
      %p238 = scmp.ne.s32.totalorder %s230, %s232
      %p239 = scmp.eq.s32.totalorder %s33, 1
      %p240 = por %p238, %p239
      %p241 = scmp.ne.s32.totalorder %s232, %s233
      %p242 = scmp.eq.s32.totalorder %s33, 0
      %p243 = por %p241, %p242
      %p244 = scmp.ne.s32.totalorder %s232, %s233
      %p245 = scmp.eq.s32.totalorder %s34, 1
      %p246 = por %p244, %p245
      %p248 = scmp.ne.s32.totalorder %s233, %s247
      %p249 = scmp.eq.s32.totalorder %s34, 0
      %p250 = por %p248, %p249
      %s252 = sadd.s32 %s251, 1
      %p255 = scmp.eq.s32.totalorder %s28, 1
      %p256 = scmp.ne.s32.totalorder %s251, %s253
      %p257 = scmp.eq.s32.totalorder %s28, 0
      %p258 = por %p256, %p257
      %p259 = scmp.ne.s32.totalorder %s251, %s253
      %p260 = scmp.eq.s32.totalorder %s33, 1
      %p261 = por %p259, %p260
      %p262 = scmp.ne.s32.totalorder %s253, %s254
      %p263 = scmp.eq.s32.totalorder %s33, 0
      %p264 = por %p262, %p263
      %p265 = scmp.ne.s32.totalorder %s253, %s254
      %p266 = scmp.eq.s32.totalorder %s34, 1
      %p267 = por %p265, %p266
      %p269 = scmp.ne.s32.totalorder %s254, %s268
      %p270 = scmp.eq.s32.totalorder %s34, 0
      %p271 = por %p269, %p270
      %s273 = sadd.s32 %s272, 1
      %p276 = scmp.eq.s32.totalorder %s28, 1
      %p277 = scmp.ne.s32.totalorder %s272, %s274
      %p278 = scmp.eq.s32.totalorder %s28, 0
      %p279 = por %p277, %p278
      %p280 = scmp.ne.s32.totalorder %s272, %s274
      %p281 = scmp.eq.s32.totalorder %s33, 1
      %p282 = por %p280, %p281
      %p283 = scmp.ne.s32.totalorder %s274, %s275
      %p284 = scmp.eq.s32.totalorder %s33, 0
      %p285 = por %p283, %p284
      %p286 = scmp.ne.s32.totalorder %s274, %s275
      %p287 = scmp.eq.s32.totalorder %s34, 1
      %p288 = por %p286, %p287
      %p290 = scmp.ne.s32.totalorder %s275, %s289
      %p291 = scmp.eq.s32.totalorder %s34, 0
      %p292 = por %p290, %p291
      %s294 = sadd.s32 %s293, 1
      %p297 = scmp.eq.s32.totalorder %s28, 1
      %p298 = scmp.ne.s32.totalorder %s293, %s295
      %p299 = scmp.eq.s32.totalorder %s28, 0
      %p300 = por %p298, %p299
      %p301 = scmp.ne.s32.totalorder %s293, %s295
      %p302 = scmp.eq.s32.totalorder %s33, 1
      %p303 = por %p301, %p302
      %p304 = scmp.ne.s32.totalorder %s295, %s296
      %p305 = scmp.eq.s32.totalorder %s33, 0
      %p306 = por %p304, %p305
      %p307 = scmp.ne.s32.totalorder %s295, %s296
      %p308 = scmp.eq.s32.totalorder %s34, 1
      %p309 = por %p307, %p308
      %p311 = scmp.ne.s32.totalorder %s296, %s310
      %p312 = scmp.eq.s32.totalorder %s34, 0
      %p313 = por %p311, %p312
      %s315 = sadd.s32 %s314, 1
      %p318 = scmp.eq.s32.totalorder %s28, 1
      %p319 = scmp.ne.s32.totalorder %s314, %s316
      %p320 = scmp.eq.s32.totalorder %s28, 0
      %p321 = por %p319, %p320
      %p322 = scmp.ne.s32.totalorder %s314, %s316
      %p323 = scmp.eq.s32.totalorder %s33, 1
      %p324 = por %p322, %p323
      %p325 = scmp.ne.s32.totalorder %s316, %s317
      %p326 = scmp.eq.s32.totalorder %s33, 0
      %p327 = por %p325, %p326
      %p328 = scmp.ne.s32.totalorder %s316, %s317
      %p329 = scmp.eq.s32.totalorder %s34, 1
      %p330 = por %p328, %p329
      %p332 = scmp.ne.s32.totalorder %s317, %s331
      %p333 = scmp.eq.s32.totalorder %s34, 0
      %p334 = por %p332, %p333
      %s336 = sadd.s32 %s335, 1
      %p339 = scmp.eq.s32.totalorder %s28, 1
      %p340 = scmp.ne.s32.totalorder %s335, %s337
      %p341 = scmp.eq.s32.totalorder %s28, 0
      %p342 = por %p340, %p341
      %p343 = scmp.ne.s32.totalorder %s335, %s337
      %p344 = scmp.eq.s32.totalorder %s33, 1
      %p345 = por %p343, %p344
      %p346 = scmp.ne.s32.totalorder %s337, %s338
      %p347 = scmp.eq.s32.totalorder %s33, 0
      %p348 = por %p346, %p347
      %p349 = scmp.ne.s32.totalorder %s337, %s338
      %p350 = scmp.eq.s32.totalorder %s34, 1
      %p351 = por %p349, %p350
      %p353 = scmp.ne.s32.totalorder %s338, %s352
      %p354 = scmp.eq.s32.totalorder %s34, 0
      %p355 = por %p353, %p354
      %s356 = ssub.s32 %s28, %s35
      %p357 = scmp.eq.s32.totalorder %s356, 0
      %s359 = sadd.s32 %s358, 1
      %s360 = scalar_select %p357, %s358, %s359
      %p363 = pneg %p357
      %p364 = scmp.eq.s32.totalorder %s28, 1
      %p365 = por %p363, %p364
      %p366 = scmp.ne.s32.totalorder %s358, %s361
      %p367 = scmp.eq.s32.totalorder %s28, 0
      %p368 = por %p366, %p367
      %p369 = scmp.ne.s32.totalorder %s358, %s361
      %p370 = scmp.eq.s32.totalorder %s33, 1
      %p371 = por %p369, %p370
      %p372 = scmp.ne.s32.totalorder %s361, %s362
      %p373 = scmp.eq.s32.totalorder %s33, 0
      %p374 = por %p372, %p373
      %p375 = scmp.ne.s32.totalorder %s361, %s362
      %p376 = scmp.eq.s32.totalorder %s34, 1
      %p377 = por %p375, %p376
      %p379 = scmp.ne.s32.totalorder %s362, %s378
      %p380 = scmp.eq.s32.totalorder %s34, 0
      %p381 = por %p379, %p380
      %s382 = ssub.s32 %s28, %s35
      %p383 = scmp.eq.s32.totalorder %s382, 0
      %s385 = sadd.s32 %s384, 1
      %s386 = scalar_select %p383, %s384, %s385
      %p389 = pneg %p383
      %p390 = scmp.eq.s32.totalorder %s28, 1
      %p391 = por %p389, %p390
      %p392 = scmp.ne.s32.totalorder %s384, %s387
      %p393 = scmp.eq.s32.totalorder %s28, 0
      %p394 = por %p392, %p393
      %p395 = scmp.ne.s32.totalorder %s384, %s387
      %p396 = scmp.eq.s32.totalorder %s33, 1
      %p397 = por %p395, %p396
      %p398 = scmp.ne.s32.totalorder %s387, %s388
      %p399 = scmp.eq.s32.totalorder %s33, 0
      %p400 = por %p398, %p399
      %p401 = scmp.ne.s32.totalorder %s387, %s388
      %p402 = scmp.eq.s32.totalorder %s34, 1
      %p403 = por %p401, %p402
      %p405 = scmp.ne.s32.totalorder %s388, %s404
      %p406 = scmp.eq.s32.totalorder %s34, 0
      %p407 = por %p405, %p406
      %p408 = scmp.le.s32.totalorder 1, %s28
      %p409 = scmp.lt.s32.totalorder %s28, 3
      %p410 = pnand %p408, %p409
      %p411 = pneg %p410
      // Predicated region
      $region9: #{forward.1} parent=5 // pred_check
        _
      $region10: #{forward.1} parent=5 // pred_check_branch
        %413 = sbr.rel (%p410) target = $region12
      $region11: #{forward.1} parent=5 // pred_region
        %s414 = ssub.s32 %s28, 1
        // Predicated region
        $region13: #{forward.1} parent=11 // pred_check
          %p415 = pneg %p75
        $region14: #{forward.1} parent=11 // pred_check_branch
          %417 = sbr.rel (%p415) target = $region16
        $region15: #{forward.1} parent=11 // pred_region
          _
        $region16: #{forward.1} parent=11 // pred_fallthru
          _
        // Predicated region
        $region17: #{forward.1} parent=11 // pred_check
          %p418 = pneg %p96
        $region18: #{forward.1} parent=11 // pred_check_branch
          %420 = sbr.rel (%p418) target = $region20
        $region19: #{forward.1} parent=11 // pred_region
          _
        $region20: #{forward.1} parent=11 // pred_fallthru
          _
        // Predicated region
        $region21: #{forward.1} parent=11 // pred_check
          %p421 = pneg %p117
        $region22: #{forward.1} parent=11 // pred_check_branch
          %423 = sbr.rel (%p421) target = $region24
        $region23: #{forward.1} parent=11 // pred_region
          _
        $region24: #{forward.1} parent=11 // pred_fallthru
          _
        // Predicated region
        $region25: #{forward.1} parent=11 // pred_check
          %p424 = pneg %p138
        $region26: #{forward.1} parent=11 // pred_check_branch
          %426 = sbr.rel (%p424) target = $region28
        $region27: #{forward.1} parent=11 // pred_region
          _
        $region28: #{forward.1} parent=11 // pred_fallthru
          _
        // Predicated region
        $region29: #{forward.1} parent=11 // pred_check
          %p427 = pneg %p159
        $region30: #{forward.1} parent=11 // pred_check_branch
          %429 = sbr.rel (%p427) target = $region32
        $region31: #{forward.1} parent=11 // pred_region
          _
        $region32: #{forward.1} parent=11 // pred_fallthru
          _
        // Predicated region
        $region33: #{forward.1} parent=11 // pred_check
          %p430 = pneg %p180
        $region34: #{forward.1} parent=11 // pred_check_branch
          %432 = sbr.rel (%p430) target = $region36
        $region35: #{forward.1} parent=11 // pred_region
          _
        $region36: #{forward.1} parent=11 // pred_fallthru
          _
        // Predicated region
        $region37: #{forward.1} parent=11 // pred_check
          %p433 = pneg %p201
        $region38: #{forward.1} parent=11 // pred_check_branch
          %435 = sbr.rel (%p433) target = $region40
        $region39: #{forward.1} parent=11 // pred_region
          _
        $region40: #{forward.1} parent=11 // pred_fallthru
          _
        // Predicated region
        $region41: #{forward.1} parent=11 // pred_check
          %p436 = pneg %p222
        $region42: #{forward.1} parent=11 // pred_check_branch
          %438 = sbr.rel (%p436) target = $region44
        $region43: #{forward.1} parent=11 // pred_region
          _
        $region44: #{forward.1} parent=11 // pred_fallthru
          _
        // Predicated region
        $region45: #{forward.1} parent=11 // pred_check
          %p439 = pneg %p243
        $region46: #{forward.1} parent=11 // pred_check_branch
          %441 = sbr.rel (%p439) target = $region48
        $region47: #{forward.1} parent=11 // pred_region
          _
        $region48: #{forward.1} parent=11 // pred_fallthru
          _
        // Predicated region
        $region49: #{forward.1} parent=11 // pred_check
          %p442 = pneg %p264
        $region50: #{forward.1} parent=11 // pred_check_branch
          %444 = sbr.rel (%p442) target = $region52
        $region51: #{forward.1} parent=11 // pred_region
          _
        $region52: #{forward.1} parent=11 // pred_fallthru
          _
        // Predicated region
        $region53: #{forward.1} parent=11 // pred_check
          %p445 = pneg %p285
        $region54: #{forward.1} parent=11 // pred_check_branch
          %447 = sbr.rel (%p445) target = $region56
        $region55: #{forward.1} parent=11 // pred_region
          _
        $region56: #{forward.1} parent=11 // pred_fallthru
          _
        // Predicated region
        $region57: #{forward.1} parent=11 // pred_check
          %p448 = pneg %p306
        $region58: #{forward.1} parent=11 // pred_check_branch
          %450 = sbr.rel (%p448) target = $region60
        $region59: #{forward.1} parent=11 // pred_region
          _
        $region60: #{forward.1} parent=11 // pred_fallthru
          _
        // Predicated region
        $region61: #{forward.1} parent=11 // pred_check
          %p451 = pneg %p327
        $region62: #{forward.1} parent=11 // pred_check_branch
          %453 = sbr.rel (%p451) target = $region64
        $region63: #{forward.1} parent=11 // pred_region
          _
        $region64: #{forward.1} parent=11 // pred_fallthru
          _
        // Predicated region
        $region65: #{forward.1} parent=11 // pred_check
          %p454 = pneg %p348
        $region66: #{forward.1} parent=11 // pred_check_branch
          %456 = sbr.rel (%p454) target = $region68
        $region67: #{forward.1} parent=11 // pred_region
          _
        $region68: #{forward.1} parent=11 // pred_fallthru
          _
      $region12: #{forward.1} parent=5 // pred_fallthru
        _
      %p457 = scmp.lt.s32.totalorder %s28, 2
      // Predicated region
      $region69: #{forward.1} parent=5 // pred_check
        %p458 = pneg %p457
      $region70: #{forward.1} parent=5 // pred_check_branch
        %460 = sbr.rel (%p458) target = $region72
      $region71: #{forward.1} parent=5 // pred_region
        // Predicated region
        $region73: #{forward.1} parent=71 // pred_check
          %p461 = pneg %p48
        $region74: #{forward.1} parent=71 // pred_check_branch
          %463 = sbr.rel (%p461) target = $region76
        $region75: #{forward.1} parent=71 // pred_region
          %p464 = scmp.lt.s32.totalorder %s28, 1
          %s465 = scalar_select %p464, %s28, 1
          %s466 = smul.addr %s465, 32
          %s467 = smul.addr %s466, 4
          %s468 = scalar_lea.vmem %s0, %s467
        $region76: #{forward.1} parent=71 // pred_fallthru
          _
      $region72: #{forward.1} parent=5 // pred_fallthru
        _
      %p469 = scmp.le.s32.totalorder 1, %s28
      %p470 = scmp.lt.s32.totalorder %s28, 3
      %p471 = pnand %p469, %p470
      %p472 = pneg %p471
      // Predicated region
      $region77: #{forward.1} parent=5 // pred_check
        _
      $region78: #{forward.1} parent=5 // pred_check_branch
        %474 = sbr.rel (%p471) target = $region80
      $region79: #{forward.1} parent=5 // pred_region
        %s475 = ssub.s32 %s28, 1
        %p476 = scmp.lt.s32.totalorder %s33, 1
        %s477 = scalar_select %p476, %s33, 1
        %s478 = smul.addr %s477, 32
        %s479 = smul.addr %s478, 4
        %s480 = scalar_lea.vmem %s0, %s479
        %p481 = pneg %p54
        %p482 = pneg %p51
        %p483 = pneg %p75
        %p484 = pneg %p72
        %p485 = pneg %p96
        %p486 = pneg %p93
        %p487 = pneg %p117
        %p488 = pneg %p114
        %p489 = pneg %p138
        %p490 = pneg %p135
        %p491 = pneg %p159
        %p492 = pneg %p156
        %p493 = pneg %p180
        %p494 = pneg %p177
        %p495 = pneg %p201
        %p496 = pneg %p198
        %p497 = pneg %p222
        %p498 = pneg %p219
        %p499 = pneg %p243
        %p500 = pneg %p240
        %p501 = pneg %p264
        %p502 = pneg %p261
        %p503 = pneg %p285
        %p504 = pneg %p282
        %p505 = pneg %p306
        %p506 = pneg %p303
        %p507 = pneg %p327
        %p508 = pneg %p324
        %p509 = pneg %p348
        %p510 = pneg %p345
        %p511 = pneg %p374
        %p512 = pneg %p371
        %p513 = scmp.lt.s32.totalorder %s33, 1
        %s514 = scalar_select %p513, %s33, 1
        %s515 = smul.addr %s514, 2
        %s516 = smul.addr %s515, 8
        %s517 = scalar_lea.vmem %s15, %s516
        %p518 = pneg %p400
        %p519 = pneg %p397
        %s520 = sand.u32 %s387, 1
        %s521 = scalar_lea.sflag [#allocation4], %s520
        %s522 = sand.u32 %s387, 1
        %s523 = scalar_lea.vmem [#allocation3], %s522
        %p524 = scmp.lt.s32.totalorder %s33, 1
        %s525 = scalar_select %p524, %s33, 1
        %s526 = smul.addr %s525, 32
        %s527 = smul.addr %s526, 4
        %s528 = scalar_lea.vmem %s0, %s527
        %p529 = scmp.lt.s32.totalorder %s33, 1
        %s530 = scalar_select %p529, %s33, 1
        %s531 = smul.addr %s530, 2
        %s532 = smul.addr %s531, 8
        %s533 = scalar_lea.vmem %s15, %s532
        %v535 = vld [vmem:[%s528] sm:$0xf]
        %v536 = vld [vmem:[%s528 + $0x4] sm:$0xf]
        %v537 = vld [vmem:[%s528 + $0x8] sm:$0xf]
        %v538 = vld [vmem:[%s528 + $0xc] sm:$0xf]
        %v539 = vld [vmem:[%s528 + $0x10] sm:$0xf]
        %v540 = vld [vmem:[%s528 + $0x14] sm:$0xf]
        %v541 = vld [vmem:[%s528 + $0x18] sm:$0xf]
        %v542 = vld [vmem:[%s528 + $0x1c] sm:$0xf]
        %v543 = vld [vmem:[%s528 + $0x20] sm:$0xf]
        %v544 = vld [vmem:[%s528 + $0x24] sm:$0xf]
        %v545 = vld [vmem:[%s528 + $0x28] sm:$0xf]
        %v546 = vld [vmem:[%s528 + $0x2c] sm:$0xf]
        %v547 = vld [vmem:[%s528 + $0x30] sm:$0xf]
        %v548 = vld [vmem:[%s528 + $0x34] sm:$0xf]
        %v549 = vld [vmem:[%s528 + $0x38] sm:$0xf]
        %v550 = vld [vmem:[%s528 + $0x3c] sm:$0xf]
        %v551 = vld [vmem:[%s528 + $0x40] sm:$0xf]
        %v552 = vld [vmem:[%s528 + $0x44] sm:$0xf]
        %v553 = vld [vmem:[%s528 + $0x48] sm:$0xf]
        %v554 = vld [vmem:[%s528 + $0x4c] sm:$0xf]
        %v555 = vld [vmem:[%s528 + $0x50] sm:$0xf]
        %v556 = vld [vmem:[%s528 + $0x54] sm:$0xf]
        %v557 = vld [vmem:[%s528 + $0x58] sm:$0xf]
        %v558 = vld [vmem:[%s528 + $0x5c] sm:$0xf]
        %v559 = vld [vmem:[%s528 + $0x60] sm:$0xf]
        %v560 = vld [vmem:[%s528 + $0x64] sm:$0xf]
        %v561 = vld [vmem:[%s528 + $0x68] sm:$0xf]
        %v562 = vld [vmem:[%s528 + $0x6c] sm:$0xf]
        %v563 = vld [vmem:[%s528 + $0x70] sm:$0xf]
        %v564 = vld [vmem:[%s528 + $0x74] sm:$0xf]
        %v565 = vld [vmem:[%s528 + $0x78] sm:$0xf]
        %v566 = vld [vmem:[%s528 + $0x7c] sm:$0xf]
        %v567 = vld [vmem:[%s1] sm:$0xf]
        %v568 = vld [vmem:[%s1 + $0x4] sm:$0xf]
        %v569 = vld [vmem:[%s2] sm:$0x1]
        %v571 = vlaneseq
        %v572 = vshrl.u32 %v571, 7
        %v573 = vsub.s32 0, %v572
        %v574 = vrot.slane %v569, %v573
        %v608 = vunpack.c.l.b16 %v535
        %v609 = vunpack.c.l.b16 %v536
        %v610 = vunpack.c.l.b16 %v537
        %v611 = vunpack.c.l.b16 %v538
        %v612 = vunpack.c.l.b16 %v539
        %v613 = vunpack.c.l.b16 %v540
        %v614 = vunpack.c.l.b16 %v541
        %v615 = vunpack.c.l.b16 %v542
        %v616 = vunpack.c.l.b16 %v543
        %v617 = vunpack.c.l.b16 %v544
        %v618 = vunpack.c.l.b16 %v545
        %v619 = vunpack.c.l.b16 %v546
        %v620 = vunpack.c.l.b16 %v547
        %v621 = vunpack.c.l.b16 %v548
        %v622 = vunpack.c.l.b16 %v549
        %v623 = vunpack.c.l.b16 %v550
        %v624 = vunpack.c.l.b16 %v551
        %v625 = vunpack.c.l.b16 %v552
        %v626 = vunpack.c.l.b16 %v553
        %v627 = vunpack.c.l.b16 %v554
        %v628 = vunpack.c.l.b16 %v555
        %v629 = vunpack.c.l.b16 %v556
        %v630 = vunpack.c.l.b16 %v557
        %v631 = vunpack.c.l.b16 %v558
        %v632 = vunpack.c.l.b16 %v559
        %v633 = vunpack.c.l.b16 %v560
        %v634 = vunpack.c.l.b16 %v561
        %v635 = vunpack.c.l.b16 %v562
        %v636 = vunpack.c.l.b16 %v563
        %v637 = vunpack.c.l.b16 %v564
        %v638 = vunpack.c.l.b16 %v565
        %v639 = vunpack.c.l.b16 %v566
        %v640 = vpack.c.b16 %v609, %v608
        %v641 = vpack.c.b16 %v611, %v610
        %v642 = vpack.c.b16 %v613, %v612
        %v643 = vpack.c.b16 %v615, %v614
        %v644 = vpack.c.b16 %v617, %v616
        %v645 = vpack.c.b16 %v619, %v618
        %v646 = vpack.c.b16 %v621, %v620
        %v647 = vpack.c.b16 %v623, %v622
        %v648 = vpack.c.b16 %v625, %v624
        %v649 = vpack.c.b16 %v627, %v626
        %v650 = vpack.c.b16 %v629, %v628
        %v651 = vpack.c.b16 %v631, %v630
        %v652 = vpack.c.b16 %v633, %v632
        %v653 = vpack.c.b16 %v635, %v634
        %v654 = vpack.c.b16 %v637, %v636
        %v655 = vpack.c.b16 %v639, %v638
        %v658 = vunpack.c.l.b16 %v567
        %v659 = vunpack.c.l.b16 %v568
        %v660 = vpack.c.b16 %v659, %v658
        %vm662 = vcmask 130048
        %v664 = vsel %vm662, %v640, 0
        %v667 = vsel %vm662, %v641, 0
        %v670 = vsel %vm662, %v642, 0
        %v673 = vsel %vm662, %v643, 0
        %v676 = vsel %vm662, %v644, 0
        %v679 = vsel %vm662, %v645, 0
        %v682 = vsel %vm662, %v646, 0
        %v685 = vsel %vm662, %v647, 0
        %v688 = vsel %vm662, %v648, 0
        %v691 = vsel %vm662, %v649, 0
        %v694 = vsel %vm662, %v650, 0
        %v697 = vsel %vm662, %v651, 0
        %v700 = vsel %vm662, %v652, 0
        %v703 = vsel %vm662, %v653, 0
        %v706 = vsel %vm662, %v654, 0
        %v709 = vsel %vm662, %v655, 0
        %711 = vmatprep.subr.bf16.mxu0 0
        %712 = vmatpush1.bf16.msra.mxu0 %v660
        %713 = vmatprep.subr.bf16.mxu0 0
        %714 = vmatpush1.bf16.msra.mxu0 0
        %715 = vmatprep.subr.bf16.mxu0 0
        %716 = vmatpush1.bf16.msra.mxu0 0
        %717 = vmatprep.subr.bf16.mxu0 0
        %718 = vmatpush1.bf16.msra.mxu0 0
        %719 = vmatprep.subr.bf16.mxu0 0
        %720 = vmatpush1.bf16.msra.mxu0 0
        %721 = vmatprep.subr.bf16.mxu0 0
        %722 = vmatpush1.bf16.msra.mxu0 0
        %723 = vmatprep.subr.bf16.mxu0 0
        %724 = vmatpush1.bf16.msra.mxu0 0
        %725 = vmatprep.subr.bf16.mxu0 0
        %726 = vmatpush1.bf16.msra.mxu0 0
        %727 = vmatprep.subr.bf16.mxu0 0
        %728 = vmatpush1.bf16.msra.mxu0 0
        %729 = vmatprep.subr.bf16.mxu0 0
        %730 = vmatpush1.bf16.msra.mxu0 0
        %731 = vmatprep.subr.bf16.mxu0 0
        %732 = vmatpush1.bf16.msra.mxu0 0
        %733 = vmatprep.subr.bf16.mxu0 0
        %734 = vmatpush1.bf16.msra.mxu0 0
        %735 = vmatprep.subr.bf16.mxu0 0
        %736 = vmatpush1.bf16.msra.mxu0 0
        %737 = vmatprep.subr.bf16.mxu0 0
        %738 = vmatpush1.bf16.msra.mxu0 0
        %739 = vmatprep.subr.bf16.mxu0 0
        %740 = vmatpush1.bf16.msra.mxu0 0
        %741 = vmatprep.subr.bf16.mxu0 0
        %742 = vmatpush1.bf16.msra.mxu0 0
        %743 = vmatprep.mubr.bf16.mxu0 0
        %744 = vmatmul.mubr.bf16.gmra.mrb[0].mxu0 %v664
        %v745 = vpop.f32.mrb[0].mxu0
        %v746 = vadd.f32 %v574, %v745
        %v747 = vpop.f32.mrb[0].mxu0
        %v748 = vpop.f32.mrb[0].mxu0
        %v749 = vadd.f32 %v574, %v748
        %v750 = vpop.f32.mrb[0].mxu0
        %751 = vmatprep.mubr.bf16.mxu0 0
        %752 = vmatmul.mubr.bf16.gmra.mrb[0].mxu0 %v667
        %v753 = vpop.f32.mrb[0].mxu0
        %v754 = vadd.f32 %v574, %v753
        %v755 = vpop.f32.mrb[0].mxu0
        %v756 = vpop.f32.mrb[0].mxu0
        %v757 = vadd.f32 %v574, %v756
        %v758 = vpop.f32.mrb[0].mxu0
        %759 = vmatprep.mubr.bf16.mxu0 0
        %760 = vmatmul.mubr.bf16.gmra.mrb[0].mxu0 %v670
        %v761 = vpop.f32.mrb[0].mxu0
        %v762 = vadd.f32 %v574, %v761
        %v763 = vpop.f32.mrb[0].mxu0
        %v764 = vpop.f32.mrb[0].mxu0
        %v765 = vadd.f32 %v574, %v764
        %v766 = vpop.f32.mrb[0].mxu0
        %767 = vmatprep.mubr.bf16.mxu0 0
        %768 = vmatmul.mubr.bf16.gmra.mrb[0].mxu0 %v673
        %v769 = vpop.f32.mrb[0].mxu0
        %v770 = vadd.f32 %v574, %v769
        %v771 = vpop.f32.mrb[0].mxu0
        %v772 = vpop.f32.mrb[0].mxu0
        %v773 = vadd.f32 %v574, %v772
        %v774 = vpop.f32.mrb[0].mxu0
        %775 = vmatprep.mubr.bf16.mxu0 0
        %776 = vmatmul.mubr.bf16.gmra.mrb[0].mxu0 %v676
        %v777 = vpop.f32.mrb[0].mxu0
        %v778 = vadd.f32 %v574, %v777
        %v779 = vpop.f32.mrb[0].mxu0
        %v780 = vpop.f32.mrb[0].mxu0
        %v781 = vadd.f32 %v574, %v780
        %v782 = vpop.f32.mrb[0].mxu0
        %783 = vmatprep.mubr.bf16.mxu0 0
        %784 = vmatmul.mubr.bf16.gmra.mrb[0].mxu0 %v679
        %v785 = vpop.f32.mrb[0].mxu0
        %v786 = vadd.f32 %v574, %v785
        %v787 = vpop.f32.mrb[0].mxu0
        %v788 = vpop.f32.mrb[0].mxu0
        %v789 = vadd.f32 %v574, %v788
        %v790 = vpop.f32.mrb[0].mxu0
        %791 = vmatprep.mubr.bf16.mxu0 0
        %792 = vmatmul.mubr.bf16.gmra.mrb[0].mxu0 %v682
        %v793 = vpop.f32.mrb[0].mxu0
        %v794 = vadd.f32 %v574, %v793
        %v795 = vpop.f32.mrb[0].mxu0
        %v796 = vpop.f32.mrb[0].mxu0
        %v797 = vadd.f32 %v574, %v796
        %v798 = vpop.f32.mrb[0].mxu0
        %799 = vmatprep.mubr.bf16.mxu0 0
        %800 = vmatmul.mubr.bf16.gmra.mrb[0].mxu0 %v685
        %v801 = vpop.f32.mrb[0].mxu0
        %v802 = vadd.f32 %v574, %v801
        %v803 = vpop.f32.mrb[0].mxu0
        %v804 = vpop.f32.mrb[0].mxu0
        %v805 = vadd.f32 %v574, %v804
        %v806 = vpop.f32.mrb[0].mxu0
        %807 = vmatprep.mubr.bf16.mxu0 0
        %808 = vmatmul.mubr.bf16.gmra.mrb[0].mxu0 %v688
        %v809 = vpop.f32.mrb[0].mxu0
        %v810 = vadd.f32 %v574, %v809
        %v811 = vpop.f32.mrb[0].mxu0
        %v812 = vpop.f32.mrb[0].mxu0
        %v813 = vadd.f32 %v574, %v812
        %v814 = vpop.f32.mrb[0].mxu0
        %815 = vmatprep.mubr.bf16.mxu0 0
        %816 = vmatmul.mubr.bf16.gmra.mrb[0].mxu0 %v691
        %v817 = vpop.f32.mrb[0].mxu0
        %v818 = vadd.f32 %v574, %v817
        %v819 = vpop.f32.mrb[0].mxu0
        %v820 = vpop.f32.mrb[0].mxu0
        %v821 = vadd.f32 %v574, %v820
        %v822 = vpop.f32.mrb[0].mxu0
        %823 = vmatprep.mubr.bf16.mxu0 0
        %824 = vmatmul.mubr.bf16.gmra.mrb[0].mxu0 %v694
        %v825 = vpop.f32.mrb[0].mxu0
        %v826 = vadd.f32 %v574, %v825
        %v827 = vpop.f32.mrb[0].mxu0
        %v828 = vpop.f32.mrb[0].mxu0
        %v829 = vadd.f32 %v574, %v828
        %v830 = vpop.f32.mrb[0].mxu0
        %831 = vmatprep.mubr.bf16.mxu0 0
        %832 = vmatmul.mubr.bf16.gmra.mrb[0].mxu0 %v697
        %v833 = vpop.f32.mrb[0].mxu0
        %v834 = vadd.f32 %v574, %v833
        %v835 = vpop.f32.mrb[0].mxu0
        %v836 = vpop.f32.mrb[0].mxu0
        %v837 = vadd.f32 %v574, %v836
        %v838 = vpop.f32.mrb[0].mxu0
        %839 = vmatprep.mubr.bf16.mxu0 0
        %840 = vmatmul.mubr.bf16.gmra.mrb[0].mxu0 %v700
        %v841 = vpop.f32.mrb[0].mxu0
        %v842 = vadd.f32 %v574, %v841
        %v843 = vpop.f32.mrb[0].mxu0
        %v844 = vpop.f32.mrb[0].mxu0
        %v845 = vadd.f32 %v574, %v844
        %v846 = vpop.f32.mrb[0].mxu0
        %847 = vmatprep.mubr.bf16.mxu0 0
        %848 = vmatmul.mubr.bf16.gmra.mrb[0].mxu0 %v703
        %v849 = vpop.f32.mrb[0].mxu0
        %v850 = vadd.f32 %v574, %v849
        %v851 = vpop.f32.mrb[0].mxu0
        %v852 = vpop.f32.mrb[0].mxu0
        %v853 = vadd.f32 %v574, %v852
        %v854 = vpop.f32.mrb[0].mxu0
        %855 = vmatprep.mubr.bf16.mxu0 0
        %856 = vmatmul.mubr.bf16.gmra.mrb[0].mxu0 %v706
        %v857 = vpop.f32.mrb[0].mxu0
        %v858 = vadd.f32 %v574, %v857
        %v859 = vpop.f32.mrb[0].mxu0
        %v860 = vpop.f32.mrb[0].mxu0
        %v861 = vadd.f32 %v574, %v860
        %v862 = vpop.f32.mrb[0].mxu0
        %863 = vmatprep.mubr.bf16.mxu0 0
        %864 = vmatmul.mubr.bf16.gmra.mrb[0].mxu0 %v709
        %v865 = vpop.f32.mrb[0].mxu0
        %v866 = vadd.f32 %v574, %v865
        %v867 = vpop.f32.mrb[0].mxu0
        %v868 = vpop.f32.mrb[0].mxu0
        %v869 = vadd.f32 %v574, %v868
        %v870 = vpop.f32.mrb[0].mxu0
        %871 = vdwg.mxu0
        %vm872 = vcmp.ge.f32.partialorder %v746, 0.0
        %vm873 = vcmp.ge.f32.partialorder %v749, 0.0
        %vm874 = vcmp.ge.f32.partialorder %v754, 0.0
        %vm875 = vcmp.ge.f32.partialorder %v757, 0.0
        %vm876 = vcmp.ge.f32.partialorder %v762, 0.0
        %vm877 = vcmp.ge.f32.partialorder %v765, 0.0
        %vm878 = vcmp.ge.f32.partialorder %v770, 0.0
        %vm879 = vcmp.ge.f32.partialorder %v773, 0.0
        %vm880 = vcmp.ge.f32.partialorder %v778, 0.0
        %vm881 = vcmp.ge.f32.partialorder %v781, 0.0
        %vm882 = vcmp.ge.f32.partialorder %v786, 0.0
        %vm883 = vcmp.ge.f32.partialorder %v789, 0.0
        %vm884 = vcmp.ge.f32.partialorder %v794, 0.0
        %vm885 = vcmp.ge.f32.partialorder %v797, 0.0
        %vm886 = vcmp.ge.f32.partialorder %v802, 0.0
        %vm887 = vcmp.ge.f32.partialorder %v805, 0.0
        %vm888 = vcmp.ge.f32.partialorder %v810, 0.0
        %vm889 = vcmp.ge.f32.partialorder %v813, 0.0
        %vm890 = vcmp.ge.f32.partialorder %v818, 0.0
        %vm891 = vcmp.ge.f32.partialorder %v821, 0.0
        %vm892 = vcmp.ge.f32.partialorder %v826, 0.0
        %vm893 = vcmp.ge.f32.partialorder %v829, 0.0
        %vm894 = vcmp.ge.f32.partialorder %v834, 0.0
        %vm895 = vcmp.ge.f32.partialorder %v837, 0.0
        %vm896 = vcmp.ge.f32.partialorder %v842, 0.0
        %vm897 = vcmp.ge.f32.partialorder %v845, 0.0
        %vm898 = vcmp.ge.f32.partialorder %v850, 0.0
        %vm899 = vcmp.ge.f32.partialorder %v853, 0.0
        %vm900 = vcmp.ge.f32.partialorder %v858, 0.0
        %vm901 = vcmp.ge.f32.partialorder %v861, 0.0
        %vm902 = vcmp.ge.f32.partialorder %v866, 0.0
        %vm903 = vcmp.ge.f32.partialorder %v869, 0.0
        %v904 = vmul.f32 %v746, 0.001
        %v905 = vmul.f32 %v749, 0.001
        %v906 = vmul.f32 %v754, 0.001
        %v907 = vmul.f32 %v757, 0.001
        %v908 = vmul.f32 %v762, 0.001
        %v909 = vmul.f32 %v765, 0.001
        %v910 = vmul.f32 %v770, 0.001
        %v911 = vmul.f32 %v773, 0.001
        %v912 = vmul.f32 %v778, 0.001
        %v913 = vmul.f32 %v781, 0.001
        %v914 = vmul.f32 %v786, 0.001
        %v915 = vmul.f32 %v789, 0.001
        %v916 = vmul.f32 %v794, 0.001
        %v917 = vmul.f32 %v797, 0.001
        %v918 = vmul.f32 %v802, 0.001
        %v919 = vmul.f32 %v805, 0.001
        %v920 = vmul.f32 %v810, 0.001
        %v921 = vmul.f32 %v813, 0.001
        %v922 = vmul.f32 %v818, 0.001
        %v923 = vmul.f32 %v821, 0.001
        %v924 = vmul.f32 %v826, 0.001
        %v925 = vmul.f32 %v829, 0.001
        %v926 = vmul.f32 %v834, 0.001
        %v927 = vmul.f32 %v837, 0.001
        %v928 = vmul.f32 %v842, 0.001
        %v929 = vmul.f32 %v845, 0.001
        %v930 = vmul.f32 %v850, 0.001
        %v931 = vmul.f32 %v853, 0.001
        %v932 = vmul.f32 %v858, 0.001
        %v933 = vmul.f32 %v861, 0.001
        %v934 = vmul.f32 %v866, 0.001
        %v935 = vmul.f32 %v869, 0.001
        %v936 = vsel %vm872, %v746, %v904
        %v937 = vsel %vm873, %v749, %v905
        %v938 = vsel %vm874, %v754, %v906
        %v939 = vsel %vm875, %v757, %v907
        %v940 = vsel %vm876, %v762, %v908
        %v941 = vsel %vm877, %v765, %v909
        %v942 = vsel %vm878, %v770, %v910
        %v943 = vsel %vm879, %v773, %v911
        %v944 = vsel %vm880, %v778, %v912
        %v945 = vsel %vm881, %v781, %v913
        %v946 = vsel %vm882, %v786, %v914
        %v947 = vsel %vm883, %v789, %v915
        %v948 = vsel %vm884, %v794, %v916
        %v949 = vsel %vm885, %v797, %v917
        %v950 = vsel %vm886, %v802, %v918
        %v951 = vsel %vm887, %v805, %v919
        %v952 = vsel %vm888, %v810, %v920
        %v953 = vsel %vm889, %v813, %v921
        %v954 = vsel %vm890, %v818, %v922
        %v955 = vsel %vm891, %v821, %v923
        %v956 = vsel %vm892, %v826, %v924
        %v957 = vsel %vm893, %v829, %v925
        %v958 = vsel %vm894, %v834, %v926
        %v959 = vsel %vm895, %v837, %v927
        %v960 = vsel %vm896, %v842, %v928
        %v961 = vsel %vm897, %v845, %v929
        %v962 = vsel %vm898, %v850, %v930
        %v963 = vsel %vm899, %v853, %v931
        %v964 = vsel %vm900, %v858, %v932
        %v965 = vsel %vm901, %v861, %v933
        %v966 = vsel %vm902, %v866, %v934
        %v967 = vsel %vm903, %v869, %v935
        %v968 = vpack.c.bf16 %v937, %v936
        %v969 = vpack.c.bf16 %v939, %v938
        %v970 = vpack.c.bf16 %v941, %v940
        %v971 = vpack.c.bf16 %v943, %v942
        %v972 = vpack.c.bf16 %v945, %v944
        %v973 = vpack.c.bf16 %v947, %v946
        %v974 = vpack.c.bf16 %v949, %v948
        %v975 = vpack.c.bf16 %v951, %v950
        %v976 = vpack.c.bf16 %v953, %v952
        %v977 = vpack.c.bf16 %v955, %v954
        %v978 = vpack.c.bf16 %v957, %v956
        %v979 = vpack.c.bf16 %v959, %v958
        %v980 = vpack.c.bf16 %v961, %v960
        %v981 = vpack.c.bf16 %v963, %v962
        %v982 = vpack.c.bf16 %v965, %v964
        %v983 = vpack.c.bf16 %v967, %v966
        %v984 = vld [vmem:[%s3] sm:$0xff]
        %v985 = vld [vmem:[%s3 + $0x8] sm:$0xff]
        %v986 = vld [vmem:[%s3 + $0x10] sm:$0xff]
        %v987 = vld [vmem:[%s3 + $0x18] sm:$0xff]
        %v988 = vld [vmem:[%s3 + $0x20] sm:$0xff]
        %v989 = vld [vmem:[%s3 + $0x28] sm:$0xff]
        %v990 = vld [vmem:[%s3 + $0x30] sm:$0xff]
        %v991 = vld [vmem:[%s3 + $0x38] sm:$0xff]
        %v992 = vld [vmem:[%s3 + $0x40] sm:$0xff]
        %v993 = vld [vmem:[%s3 + $0x48] sm:$0xff]
        %v994 = vld [vmem:[%s3 + $0x50] sm:$0xff]
        %v995 = vld [vmem:[%s3 + $0x58] sm:$0xff]
        %v996 = vld [vmem:[%s3 + $0x60] sm:$0xff]
        %v997 = vld [vmem:[%s3 + $0x68] sm:$0xff]
        %v998 = vld [vmem:[%s3 + $0x70] sm:$0xff]
        %v999 = vld [vmem:[%s3 + $0x78] sm:$0xff]
        %v1000 = vld [vmem:[%s3 + $0x80] sm:$0xff]
        %v1001 = vld [vmem:[%s3 + $0x88] sm:$0xff]
        %v1002 = vld [vmem:[%s3 + $0x90] sm:$0xff]
        %v1003 = vld [vmem:[%s3 + $0x98] sm:$0xff]
        %v1004 = vld [vmem:[%s3 + $0xa0] sm:$0xff]
        %v1005 = vld [vmem:[%s3 + $0xa8] sm:$0xff]
        %v1006 = vld [vmem:[%s3 + $0xb0] sm:$0xff]
        %v1007 = vld [vmem:[%s3 + $0xb8] sm:$0xff]
        %v1008 = vld [vmem:[%s3 + $0xc0] sm:$0xff]
        %v1009 = vld [vmem:[%s3 + $0xc8] sm:$0xff]
        %v1010 = vld [vmem:[%s3 + $0xd0] sm:$0xff]
        %v1011 = vld [vmem:[%s3 + $0xd8] sm:$0xff]
        %v1012 = vld [vmem:[%s3 + $0xe0] sm:$0xff]
        %v1013 = vld [vmem:[%s3 + $0xe8] sm:$0xff]
        %v1014 = vld [vmem:[%s3 + $0xf0] sm:$0xff]
        %v1015 = vld [vmem:[%s3 + $0xf8] sm:$0xff]
        %v1016 = vld [vmem:[%s3 + $0x100] sm:$0xff]
        %v1017 = vld [vmem:[%s3 + $0x108] sm:$0xff]
        %v1018 = vld [vmem:[%s3 + $0x110] sm:$0xff]
        %v1019 = vld [vmem:[%s3 + $0x118] sm:$0xff]
        %v1020 = vld [vmem:[%s3 + $0x120] sm:$0xff]
        %v1021 = vld [vmem:[%s3 + $0x128] sm:$0xff]
        %v1022 = vld [vmem:[%s3 + $0x130] sm:$0xff]
        %v1023 = vld [vmem:[%s3 + $0x138] sm:$0xff]
        %v1024 = vld [vmem:[%s3 + $0x140] sm:$0xff]
        %v1025 = vld [vmem:[%s3 + $0x148] sm:$0xff]
        %v1026 = vld [vmem:[%s3 + $0x150] sm:$0xff]
        %v1027 = vld [vmem:[%s3 + $0x158] sm:$0xff]
        %v1028 = vld [vmem:[%s3 + $0x160] sm:$0xff]
        %v1029 = vld [vmem:[%s3 + $0x168] sm:$0xff]
        %v1030 = vld [vmem:[%s3 + $0x170] sm:$0xff]
        %v1031 = vld [vmem:[%s3 + $0x178] sm:$0xff]
        %v1032 = vld [vmem:[%s3 + $0x180] sm:$0xff]
        %v1033 = vld [vmem:[%s3 + $0x188] sm:$0xff]
        %v1034 = vld [vmem:[%s3 + $0x190] sm:$0xff]
        %v1035 = vld [vmem:[%s3 + $0x198] sm:$0xff]
        %v1036 = vld [vmem:[%s3 + $0x1a0] sm:$0xff]
        %v1037 = vld [vmem:[%s3 + $0x1a8] sm:$0xff]
        %v1038 = vld [vmem:[%s3 + $0x1b0] sm:$0xff]
        %v1039 = vld [vmem:[%s3 + $0x1b8] sm:$0xff]
        %v1040 = vld [vmem:[%s3 + $0x1c0] sm:$0xff]
        %v1041 = vld [vmem:[%s3 + $0x1c8] sm:$0xff]
        %v1042 = vld [vmem:[%s3 + $0x1d0] sm:$0xff]
        %v1043 = vld [vmem:[%s3 + $0x1d8] sm:$0xff]
        %v1044 = vld [vmem:[%s3 + $0x1e0] sm:$0xff]
        %v1045 = vld [vmem:[%s3 + $0x1e8] sm:$0xff]
        %v1046 = vld [vmem:[%s3 + $0x1f0] sm:$0xff]
        %v1047 = vld [vmem:[%s3 + $0x1f8] sm:$0xff]
        %v1048 = vld [vmem:[%s3 + $0x200] sm:$0xff]
        %v1049 = vld [vmem:[%s3 + $0x208] sm:$0xff]
        %v1050 = vld [vmem:[%s3 + $0x210] sm:$0xff]
        %v1051 = vld [vmem:[%s3 + $0x218] sm:$0xff]
        %v1052 = vld [vmem:[%s3 + $0x220] sm:$0xff]
        %v1053 = vld [vmem:[%s3 + $0x228] sm:$0xff]
        %v1054 = vld [vmem:[%s3 + $0x230] sm:$0xff]
        %v1055 = vld [vmem:[%s3 + $0x238] sm:$0xff]
        %v1056 = vld [vmem:[%s3 + $0x240] sm:$0xff]
        %v1057 = vld [vmem:[%s3 + $0x248] sm:$0xff]
        %v1058 = vld [vmem:[%s3 + $0x250] sm:$0xff]
        %v1059 = vld [vmem:[%s3 + $0x258] sm:$0xff]
        %v1060 = vld [vmem:[%s3 + $0x260] sm:$0xff]
        %v1061 = vld [vmem:[%s3 + $0x268] sm:$0xff]
        %v1062 = vld [vmem:[%s3 + $0x270] sm:$0xff]
        %v1063 = vld [vmem:[%s3 + $0x278] sm:$0xff]
        %v1064 = vld [vmem:[%s3 + $0x280] sm:$0xff]
        %v1065 = vld [vmem:[%s3 + $0x288] sm:$0xff]
        %v1066 = vld [vmem:[%s3 + $0x290] sm:$0xff]
        %v1067 = vld [vmem:[%s3 + $0x298] sm:$0xff]
        %v1068 = vld [vmem:[%s3 + $0x2a0] sm:$0xff]
        %v1069 = vld [vmem:[%s3 + $0x2a8] sm:$0xff]
        %v1070 = vld [vmem:[%s3 + $0x2b0] sm:$0xff]
        %v1071 = vld [vmem:[%s3 + $0x2b8] sm:$0xff]
        %v1072 = vld [vmem:[%s3 + $0x2c0] sm:$0xff]
        %v1073 = vld [vmem:[%s3 + $0x2c8] sm:$0xff]
        %v1074 = vld [vmem:[%s3 + $0x2d0] sm:$0xff]
        %v1075 = vld [vmem:[%s3 + $0x2d8] sm:$0xff]
        %v1076 = vld [vmem:[%s3 + $0x2e0] sm:$0xff]
        %v1077 = vld [vmem:[%s3 + $0x2e8] sm:$0xff]
        %v1078 = vld [vmem:[%s3 + $0x2f0] sm:$0xff]
        %v1079 = vld [vmem:[%s3 + $0x2f8] sm:$0xff]
        %v1080 = vld [vmem:[%s3 + $0x300] sm:$0xff]
        %v1081 = vld [vmem:[%s3 + $0x308] sm:$0xff]
        %v1082 = vld [vmem:[%s3 + $0x310] sm:$0xff]
        %v1083 = vld [vmem:[%s3 + $0x318] sm:$0xff]
        %v1084 = vld [vmem:[%s3 + $0x320] sm:$0xff]
        %v1085 = vld [vmem:[%s3 + $0x328] sm:$0xff]
        %v1086 = vld [vmem:[%s3 + $0x330] sm:$0xff]
        %v1087 = vld [vmem:[%s3 + $0x338] sm:$0xff]
        %v1088 = vld [vmem:[%s3 + $0x340] sm:$0xff]
        %v1089 = vld [vmem:[%s3 + $0x348] sm:$0xff]
        %v1090 = vld [vmem:[%s3 + $0x350] sm:$0xff]
        %v1091 = vld [vmem:[%s3 + $0x358] sm:$0xff]
        %v1092 = vld [vmem:[%s3 + $0x360] sm:$0xff]
        %v1093 = vld [vmem:[%s3 + $0x368] sm:$0xff]
        %v1094 = vld [vmem:[%s3 + $0x370] sm:$0xff]
        %v1095 = vld [vmem:[%s3 + $0x378] sm:$0xff]
        %v1096 = vld [vmem:[%s3 + $0x380] sm:$0xff]
        %v1097 = vld [vmem:[%s3 + $0x388] sm:$0xff]
        %v1098 = vld [vmem:[%s3 + $0x390] sm:$0xff]
        %v1099 = vld [vmem:[%s3 + $0x398] sm:$0xff]
        %v1100 = vld [vmem:[%s3 + $0x3a0] sm:$0xff]
        %v1101 = vld [vmem:[%s3 + $0x3a8] sm:$0xff]
        %v1102 = vld [vmem:[%s3 + $0x3b0] sm:$0xff]
        %v1103 = vld [vmem:[%s3 + $0x3b8] sm:$0xff]
        %v1104 = vld [vmem:[%s3 + $0x3c0] sm:$0xff]
        %v1105 = vld [vmem:[%s3 + $0x3c8] sm:$0xff]
        %v1106 = vld [vmem:[%s3 + $0x3d0] sm:$0xff]
        %v1107 = vld [vmem:[%s3 + $0x3d8] sm:$0xff]
        %v1108 = vld [vmem:[%s3 + $0x3e0] sm:$0xff]
        %v1109 = vld [vmem:[%s3 + $0x3e8] sm:$0xff]
        %v1110 = vld [vmem:[%s3 + $0x3f0] sm:$0xff]
        %v1111 = vld [vmem:[%s3 + $0x3f8] sm:$0xff]
        %v1240 = vunpack.c.l.b16 %v984
        %v1241 = vunpack.c.h.b16 %v984
        %v1242 = vunpack.c.l.b16 %v985
        %v1243 = vunpack.c.h.b16 %v985
        %v1244 = vunpack.c.l.b16 %v986
        %v1245 = vunpack.c.h.b16 %v986
        %v1246 = vunpack.c.l.b16 %v987
        %v1247 = vunpack.c.h.b16 %v987
        %v1248 = vunpack.c.l.b16 %v988
        %v1249 = vunpack.c.h.b16 %v988
        %v1250 = vunpack.c.l.b16 %v989
        %v1251 = vunpack.c.h.b16 %v989
        %v1252 = vunpack.c.l.b16 %v990
        %v1253 = vunpack.c.h.b16 %v990
        %v1254 = vunpack.c.l.b16 %v991
        %v1255 = vunpack.c.h.b16 %v991
        %v1256 = vunpack.c.l.b16 %v992
        %v1257 = vunpack.c.h.b16 %v992
        %v1258 = vunpack.c.l.b16 %v993
        %v1259 = vunpack.c.h.b16 %v993
        %v1260 = vunpack.c.l.b16 %v994
        %v1261 = vunpack.c.h.b16 %v994
        %v1262 = vunpack.c.l.b16 %v995
        %v1263 = vunpack.c.h.b16 %v995
        %v1264 = vunpack.c.l.b16 %v996
        %v1265 = vunpack.c.h.b16 %v996
        %v1266 = vunpack.c.l.b16 %v997
        %v1267 = vunpack.c.h.b16 %v997
        %v1268 = vunpack.c.l.b16 %v998
        %v1269 = vunpack.c.h.b16 %v998
        %v1270 = vunpack.c.l.b16 %v999
        %v1271 = vunpack.c.h.b16 %v999
        %v1272 = vunpack.c.l.b16 %v1000
        %v1273 = vunpack.c.h.b16 %v1000
        %v1274 = vunpack.c.l.b16 %v1001
        %v1275 = vunpack.c.h.b16 %v1001
        %v1276 = vunpack.c.l.b16 %v1002
        %v1277 = vunpack.c.h.b16 %v1002
        %v1278 = vunpack.c.l.b16 %v1003
        %v1279 = vunpack.c.h.b16 %v1003
        %v1280 = vunpack.c.l.b16 %v1004
        %v1281 = vunpack.c.h.b16 %v1004
        %v1282 = vunpack.c.l.b16 %v1005
        %v1283 = vunpack.c.h.b16 %v1005
        %v1284 = vunpack.c.l.b16 %v1006
        %v1285 = vunpack.c.h.b16 %v1006
        %v1286 = vunpack.c.l.b16 %v1007
        %v1287 = vunpack.c.h.b16 %v1007
        %v1288 = vunpack.c.l.b16 %v1008
        %v1289 = vunpack.c.h.b16 %v1008
        %v1290 = vunpack.c.l.b16 %v1009
        %v1291 = vunpack.c.h.b16 %v1009
        %v1292 = vunpack.c.l.b16 %v1010
        %v1293 = vunpack.c.h.b16 %v1010
        %v1294 = vunpack.c.l.b16 %v1011
        %v1295 = vunpack.c.h.b16 %v1011
        %v1296 = vunpack.c.l.b16 %v1012
        %v1297 = vunpack.c.h.b16 %v1012
        %v1298 = vunpack.c.l.b16 %v1013
        %v1299 = vunpack.c.h.b16 %v1013
        %v1300 = vunpack.c.l.b16 %v1014
        %v1301 = vunpack.c.h.b16 %v1014
        %v1302 = vunpack.c.l.b16 %v1015
        %v1303 = vunpack.c.h.b16 %v1015
        %v1304 = vunpack.c.l.b16 %v1016
        %v1305 = vunpack.c.h.b16 %v1016
        %v1306 = vunpack.c.l.b16 %v1017
        %v1307 = vunpack.c.h.b16 %v1017
        %v1308 = vunpack.c.l.b16 %v1018
        %v1309 = vunpack.c.h.b16 %v1018
        %v1310 = vunpack.c.l.b16 %v1019
        %v1311 = vunpack.c.h.b16 %v1019
        %v1312 = vunpack.c.l.b16 %v1020
        %v1313 = vunpack.c.h.b16 %v1020
        %v1314 = vunpack.c.l.b16 %v1021
        %v1315 = vunpack.c.h.b16 %v1021
        %v1316 = vunpack.c.l.b16 %v1022
        %v1317 = vunpack.c.h.b16 %v1022
        %v1318 = vunpack.c.l.b16 %v1023
        %v1319 = vunpack.c.h.b16 %v1023
        %v1320 = vunpack.c.l.b16 %v1024
        %v1321 = vunpack.c.h.b16 %v1024
        %v1322 = vunpack.c.l.b16 %v1025
        %v1323 = vunpack.c.h.b16 %v1025
        %v1324 = vunpack.c.l.b16 %v1026
        %v1325 = vunpack.c.h.b16 %v1026
        %v1326 = vunpack.c.l.b16 %v1027
        %v1327 = vunpack.c.h.b16 %v1027
        %v1328 = vunpack.c.l.b16 %v1028
        %v1329 = vunpack.c.h.b16 %v1028
        %v1330 = vunpack.c.l.b16 %v1029
        %v1331 = vunpack.c.h.b16 %v1029
        %v1332 = vunpack.c.l.b16 %v1030
        %v1333 = vunpack.c.h.b16 %v1030
        %v1334 = vunpack.c.l.b16 %v1031
        %v1335 = vunpack.c.h.b16 %v1031
        %v1336 = vunpack.c.l.b16 %v1032
        %v1337 = vunpack.c.h.b16 %v1032
        %v1338 = vunpack.c.l.b16 %v1033
        %v1339 = vunpack.c.h.b16 %v1033
        %v1340 = vunpack.c.l.b16 %v1034
        %v1341 = vunpack.c.h.b16 %v1034
        %v1342 = vunpack.c.l.b16 %v1035
        %v1343 = vunpack.c.h.b16 %v1035
        %v1344 = vunpack.c.l.b16 %v1036
        %v1345 = vunpack.c.h.b16 %v1036
        %v1346 = vunpack.c.l.b16 %v1037
        %v1347 = vunpack.c.h.b16 %v1037
        %v1348 = vunpack.c.l.b16 %v1038
        %v1349 = vunpack.c.h.b16 %v1038
        %v1350 = vunpack.c.l.b16 %v1039
        %v1351 = vunpack.c.h.b16 %v1039
        %v1352 = vunpack.c.l.b16 %v1040
        %v1353 = vunpack.c.h.b16 %v1040
        %v1354 = vunpack.c.l.b16 %v1041
        %v1355 = vunpack.c.h.b16 %v1041
        %v1356 = vunpack.c.l.b16 %v1042
        %v1357 = vunpack.c.h.b16 %v1042
        %v1358 = vunpack.c.l.b16 %v1043
        %v1359 = vunpack.c.h.b16 %v1043
        %v1360 = vunpack.c.l.b16 %v1044
        %v1361 = vunpack.c.h.b16 %v1044
        %v1362 = vunpack.c.l.b16 %v1045
        %v1363 = vunpack.c.h.b16 %v1045
        %v1364 = vunpack.c.l.b16 %v1046
        %v1365 = vunpack.c.h.b16 %v1046
        %v1366 = vunpack.c.l.b16 %v1047
        %v1367 = vunpack.c.h.b16 %v1047
        %v1368 = vunpack.c.l.b16 %v1048
        %v1369 = vunpack.c.h.b16 %v1048
        %v1370 = vunpack.c.l.b16 %v1049
        %v1371 = vunpack.c.h.b16 %v1049
        %v1372 = vunpack.c.l.b16 %v1050
        %v1373 = vunpack.c.h.b16 %v1050
        %v1374 = vunpack.c.l.b16 %v1051
        %v1375 = vunpack.c.h.b16 %v1051
        %v1376 = vunpack.c.l.b16 %v1052
        %v1377 = vunpack.c.h.b16 %v1052
        %v1378 = vunpack.c.l.b16 %v1053
        %v1379 = vunpack.c.h.b16 %v1053
        %v1380 = vunpack.c.l.b16 %v1054
        %v1381 = vunpack.c.h.b16 %v1054
        %v1382 = vunpack.c.l.b16 %v1055
        %v1383 = vunpack.c.h.b16 %v1055
        %v1384 = vunpack.c.l.b16 %v1056
        %v1385 = vunpack.c.h.b16 %v1056
        %v1386 = vunpack.c.l.b16 %v1057
        %v1387 = vunpack.c.h.b16 %v1057
        %v1388 = vunpack.c.l.b16 %v1058
        %v1389 = vunpack.c.h.b16 %v1058
        %v1390 = vunpack.c.l.b16 %v1059
        %v1391 = vunpack.c.h.b16 %v1059
        %v1392 = vunpack.c.l.b16 %v1060
        %v1393 = vunpack.c.h.b16 %v1060
        %v1394 = vunpack.c.l.b16 %v1061
        %v1395 = vunpack.c.h.b16 %v1061
        %v1396 = vunpack.c.l.b16 %v1062
        %v1397 = vunpack.c.h.b16 %v1062
        %v1398 = vunpack.c.l.b16 %v1063
        %v1399 = vunpack.c.h.b16 %v1063
        %v1400 = vunpack.c.l.b16 %v1064
        %v1401 = vunpack.c.h.b16 %v1064
        %v1402 = vunpack.c.l.b16 %v1065
        %v1403 = vunpack.c.h.b16 %v1065
        %v1404 = vunpack.c.l.b16 %v1066
        %v1405 = vunpack.c.h.b16 %v1066
        %v1406 = vunpack.c.l.b16 %v1067
        %v1407 = vunpack.c.h.b16 %v1067
        %v1408 = vunpack.c.l.b16 %v1068
        %v1409 = vunpack.c.h.b16 %v1068
        %v1410 = vunpack.c.l.b16 %v1069
        %v1411 = vunpack.c.h.b16 %v1069
        %v1412 = vunpack.c.l.b16 %v1070
        %v1413 = vunpack.c.h.b16 %v1070
        %v1414 = vunpack.c.l.b16 %v1071
        %v1415 = vunpack.c.h.b16 %v1071
        %v1416 = vunpack.c.l.b16 %v1072
        %v1417 = vunpack.c.h.b16 %v1072
        %v1418 = vunpack.c.l.b16 %v1073
        %v1419 = vunpack.c.h.b16 %v1073
        %v1420 = vunpack.c.l.b16 %v1074
        %v1421 = vunpack.c.h.b16 %v1074
        %v1422 = vunpack.c.l.b16 %v1075
        %v1423 = vunpack.c.h.b16 %v1075
        %v1424 = vunpack.c.l.b16 %v1076
        %v1425 = vunpack.c.h.b16 %v1076
        %v1426 = vunpack.c.l.b16 %v1077
        %v1427 = vunpack.c.h.b16 %v1077
        %v1428 = vunpack.c.l.b16 %v1078
        %v1429 = vunpack.c.h.b16 %v1078
        %v1430 = vunpack.c.l.b16 %v1079
        %v1431 = vunpack.c.h.b16 %v1079
        %v1432 = vunpack.c.l.b16 %v1080
        %v1433 = vunpack.c.h.b16 %v1080
        %v1434 = vunpack.c.l.b16 %v1081
        %v1435 = vunpack.c.h.b16 %v1081
        %v1436 = vunpack.c.l.b16 %v1082
        %v1437 = vunpack.c.h.b16 %v1082
        %v1438 = vunpack.c.l.b16 %v1083
        %v1439 = vunpack.c.h.b16 %v1083
        %v1440 = vunpack.c.l.b16 %v1084
        %v1441 = vunpack.c.h.b16 %v1084
        %v1442 = vunpack.c.l.b16 %v1085
        %v1443 = vunpack.c.h.b16 %v1085
        %v1444 = vunpack.c.l.b16 %v1086
        %v1445 = vunpack.c.h.b16 %v1086
        %v1446 = vunpack.c.l.b16 %v1087
        %v1447 = vunpack.c.h.b16 %v1087
        %v1448 = vunpack.c.l.b16 %v1088
        %v1449 = vunpack.c.h.b16 %v1088
        %v1450 = vunpack.c.l.b16 %v1089
        %v1451 = vunpack.c.h.b16 %v1089
        %v1452 = vunpack.c.l.b16 %v1090
        %v1453 = vunpack.c.h.b16 %v1090
        %v1454 = vunpack.c.l.b16 %v1091
        %v1455 = vunpack.c.h.b16 %v1091
        %v1456 = vunpack.c.l.b16 %v1092
        %v1457 = vunpack.c.h.b16 %v1092
        %v1458 = vunpack.c.l.b16 %v1093
        %v1459 = vunpack.c.h.b16 %v1093
        %v1460 = vunpack.c.l.b16 %v1094
        %v1461 = vunpack.c.h.b16 %v1094
        %v1462 = vunpack.c.l.b16 %v1095
        %v1463 = vunpack.c.h.b16 %v1095
        %v1464 = vunpack.c.l.b16 %v1096
        %v1465 = vunpack.c.h.b16 %v1096
        %v1466 = vunpack.c.l.b16 %v1097
        %v1467 = vunpack.c.h.b16 %v1097
        %v1468 = vunpack.c.l.b16 %v1098
        %v1469 = vunpack.c.h.b16 %v1098
        %v1470 = vunpack.c.l.b16 %v1099
        %v1471 = vunpack.c.h.b16 %v1099
        %v1472 = vunpack.c.l.b16 %v1100
        %v1473 = vunpack.c.h.b16 %v1100
        %v1474 = vunpack.c.l.b16 %v1101
        %v1475 = vunpack.c.h.b16 %v1101
        %v1476 = vunpack.c.l.b16 %v1102
        %v1477 = vunpack.c.h.b16 %v1102
        %v1478 = vunpack.c.l.b16 %v1103
        %v1479 = vunpack.c.h.b16 %v1103
        %v1480 = vunpack.c.l.b16 %v1104
        %v1481 = vunpack.c.h.b16 %v1104
        %v1482 = vunpack.c.l.b16 %v1105
        %v1483 = vunpack.c.h.b16 %v1105
        %v1484 = vunpack.c.l.b16 %v1106
        %v1485 = vunpack.c.h.b16 %v1106
        %v1486 = vunpack.c.l.b16 %v1107
        %v1487 = vunpack.c.h.b16 %v1107
        %v1488 = vunpack.c.l.b16 %v1108
        %v1489 = vunpack.c.h.b16 %v1108
        %v1490 = vunpack.c.l.b16 %v1109
        %v1491 = vunpack.c.h.b16 %v1109
        %v1492 = vunpack.c.l.b16 %v1110
        %v1493 = vunpack.c.h.b16 %v1110
        %v1494 = vunpack.c.l.b16 %v1111
        %v1495 = vunpack.c.h.b16 %v1111
        %v1496 = vpack.c.b16 %v1242, %v1240
        %v1497 = vpack.c.b16 %v1243, %v1241
        %v1498 = vpack.c.b16 %v1246, %v1244
        %v1499 = vpack.c.b16 %v1247, %v1245
        %v1500 = vpack.c.b16 %v1250, %v1248
        %v1501 = vpack.c.b16 %v1251, %v1249
        %v1502 = vpack.c.b16 %v1254, %v1252
        %v1503 = vpack.c.b16 %v1255, %v1253
        %v1504 = vpack.c.b16 %v1258, %v1256
        %v1505 = vpack.c.b16 %v1259, %v1257
        %v1506 = vpack.c.b16 %v1262, %v1260
        %v1507 = vpack.c.b16 %v1263, %v1261
        %v1508 = vpack.c.b16 %v1266, %v1264
        %v1509 = vpack.c.b16 %v1267, %v1265
        %v1510 = vpack.c.b16 %v1270, %v1268
        %v1511 = vpack.c.b16 %v1271, %v1269
        %v1512 = vpack.c.b16 %v1274, %v1272
        %v1513 = vpack.c.b16 %v1275, %v1273
        %v1514 = vpack.c.b16 %v1278, %v1276
        %v1515 = vpack.c.b16 %v1279, %v1277
        %v1516 = vpack.c.b16 %v1282, %v1280
        %v1517 = vpack.c.b16 %v1283, %v1281
        %v1518 = vpack.c.b16 %v1286, %v1284
        %v1519 = vpack.c.b16 %v1287, %v1285
        %v1520 = vpack.c.b16 %v1290, %v1288
        %v1521 = vpack.c.b16 %v1291, %v1289
        %v1522 = vpack.c.b16 %v1294, %v1292
        %v1523 = vpack.c.b16 %v1295, %v1293
        %v1524 = vpack.c.b16 %v1298, %v1296
        %v1525 = vpack.c.b16 %v1299, %v1297
        %v1526 = vpack.c.b16 %v1302, %v1300
        %v1527 = vpack.c.b16 %v1303, %v1301
        %v1528 = vpack.c.b16 %v1306, %v1304
        %v1529 = vpack.c.b16 %v1307, %v1305
        %v1530 = vpack.c.b16 %v1310, %v1308
        %v1531 = vpack.c.b16 %v1311, %v1309
        %v1532 = vpack.c.b16 %v1314, %v1312
        %v1533 = vpack.c.b16 %v1315, %v1313
        %v1534 = vpack.c.b16 %v1318, %v1316
        %v1535 = vpack.c.b16 %v1319, %v1317
        %v1536 = vpack.c.b16 %v1322, %v1320
        %v1537 = vpack.c.b16 %v1323, %v1321
        %v1538 = vpack.c.b16 %v1326, %v1324
        %v1539 = vpack.c.b16 %v1327, %v1325
        %v1540 = vpack.c.b16 %v1330, %v1328
        %v1541 = vpack.c.b16 %v1331, %v1329
        %v1542 = vpack.c.b16 %v1334, %v1332
        %v1543 = vpack.c.b16 %v1335, %v1333
        %v1544 = vpack.c.b16 %v1338, %v1336
        %v1545 = vpack.c.b16 %v1339, %v1337
        %v1546 = vpack.c.b16 %v1342, %v1340
        %v1547 = vpack.c.b16 %v1343, %v1341
        %v1548 = vpack.c.b16 %v1346, %v1344
        %v1549 = vpack.c.b16 %v1347, %v1345
        %v1550 = vpack.c.b16 %v1350, %v1348
        %v1551 = vpack.c.b16 %v1351, %v1349
        %v1552 = vpack.c.b16 %v1354, %v1352
        %v1553 = vpack.c.b16 %v1355, %v1353
        %v1554 = vpack.c.b16 %v1358, %v1356
        %v1555 = vpack.c.b16 %v1359, %v1357
        %v1556 = vpack.c.b16 %v1362, %v1360
        %v1557 = vpack.c.b16 %v1363, %v1361
        %v1558 = vpack.c.b16 %v1366, %v1364
        %v1559 = vpack.c.b16 %v1367, %v1365
        %v1560 = vpack.c.b16 %v1370, %v1368
        %v1561 = vpack.c.b16 %v1371, %v1369
        %v1562 = vpack.c.b16 %v1374, %v1372
        %v1563 = vpack.c.b16 %v1375, %v1373
        %v1564 = vpack.c.b16 %v1378, %v1376
        %v1565 = vpack.c.b16 %v1379, %v1377
        %v1566 = vpack.c.b16 %v1382, %v1380
        %v1567 = vpack.c.b16 %v1383, %v1381
        %v1568 = vpack.c.b16 %v1386, %v1384
        %v1569 = vpack.c.b16 %v1387, %v1385
        %v1570 = vpack.c.b16 %v1390, %v1388
        %v1571 = vpack.c.b16 %v1391, %v1389
        %v1572 = vpack.c.b16 %v1394, %v1392
        %v1573 = vpack.c.b16 %v1395, %v1393
        %v1574 = vpack.c.b16 %v1398, %v1396
        %v1575 = vpack.c.b16 %v1399, %v1397
        %v1576 = vpack.c.b16 %v1402, %v1400
        %v1577 = vpack.c.b16 %v1403, %v1401
        %v1578 = vpack.c.b16 %v1406, %v1404
        %v1579 = vpack.c.b16 %v1407, %v1405
        %v1580 = vpack.c.b16 %v1410, %v1408
        %v1581 = vpack.c.b16 %v1411, %v1409
        %v1582 = vpack.c.b16 %v1414, %v1412
        %v1583 = vpack.c.b16 %v1415, %v1413
        %v1584 = vpack.c.b16 %v1418, %v1416
        %v1585 = vpack.c.b16 %v1419, %v1417
        %v1586 = vpack.c.b16 %v1422, %v1420
        %v1587 = vpack.c.b16 %v1423, %v1421
        %v1588 = vpack.c.b16 %v1426, %v1424
        %v1589 = vpack.c.b16 %v1427, %v1425
        %v1590 = vpack.c.b16 %v1430, %v1428
        %v1591 = vpack.c.b16 %v1431, %v1429
        %v1592 = vpack.c.b16 %v1434, %v1432
        %v1593 = vpack.c.b16 %v1435, %v1433
        %v1594 = vpack.c.b16 %v1438, %v1436
        %v1595 = vpack.c.b16 %v1439, %v1437
        %v1596 = vpack.c.b16 %v1442, %v1440
        %v1597 = vpack.c.b16 %v1443, %v1441
        %v1598 = vpack.c.b16 %v1446, %v1444
        %v1599 = vpack.c.b16 %v1447, %v1445
        %v1600 = vpack.c.b16 %v1450, %v1448
        %v1601 = vpack.c.b16 %v1451, %v1449
        %v1602 = vpack.c.b16 %v1454, %v1452
        %v1603 = vpack.c.b16 %v1455, %v1453
        %v1604 = vpack.c.b16 %v1458, %v1456
        %v1605 = vpack.c.b16 %v1459, %v1457
        %v1606 = vpack.c.b16 %v1462, %v1460
        %v1607 = vpack.c.b16 %v1463, %v1461
        %v1608 = vpack.c.b16 %v1466, %v1464
        %v1609 = vpack.c.b16 %v1467, %v1465
        %v1610 = vpack.c.b16 %v1470, %v1468
        %v1611 = vpack.c.b16 %v1471, %v1469
        %v1612 = vpack.c.b16 %v1474, %v1472
        %v1613 = vpack.c.b16 %v1475, %v1473
        %v1614 = vpack.c.b16 %v1478, %v1476
        %v1615 = vpack.c.b16 %v1479, %v1477
        %v1616 = vpack.c.b16 %v1482, %v1480
        %v1617 = vpack.c.b16 %v1483, %v1481
        %v1618 = vpack.c.b16 %v1486, %v1484
        %v1619 = vpack.c.b16 %v1487, %v1485
        %v1620 = vpack.c.b16 %v1490, %v1488
        %v1621 = vpack.c.b16 %v1491, %v1489
        %v1622 = vpack.c.b16 %v1494, %v1492
        %v1623 = vpack.c.b16 %v1495, %v1493
        %1752 = vmatprep.subr.bf16.mxu0 0
        %1753 = vmatpush1.bf16.msra.mxu0 %v968
        %1754 = vmatprep.subr.bf16.mxu0 0
        %1755 = vmatpush1.bf16.msra.mxu0 %v969
        %1756 = vmatprep.subr.bf16.mxu0 0
        %1757 = vmatpush1.bf16.msra.mxu0 %v970
        %1758 = vmatprep.subr.bf16.mxu0 0
        %1759 = vmatpush1.bf16.msra.mxu0 %v971
        %1760 = vmatprep.subr.bf16.mxu0 0
        %1761 = vmatpush1.bf16.msra.mxu0 %v972
        %1762 = vmatprep.subr.bf16.mxu0 0
        %1763 = vmatpush1.bf16.msra.mxu0 %v973
        %1764 = vmatprep.subr.bf16.mxu0 0
        %1765 = vmatpush1.bf16.msra.mxu0 %v974
        %1766 = vmatprep.subr.bf16.mxu0 0
        %1767 = vmatpush1.bf16.msra.mxu0 %v975
        %1768 = vmatprep.subr.bf16.mxu0 0
        %1769 = vmatpush1.bf16.msra.mxu0 %v976
        %1770 = vmatprep.subr.bf16.mxu0 0
        %1771 = vmatpush1.bf16.msra.mxu0 %v977
        %1772 = vmatprep.subr.bf16.mxu0 0
        %1773 = vmatpush1.bf16.msra.mxu0 %v978
        %1774 = vmatprep.subr.bf16.mxu0 0
        %1775 = vmatpush1.bf16.msra.mxu0 %v979
        %1776 = vmatprep.subr.bf16.mxu0 0
        %1777 = vmatpush1.bf16.msra.mxu0 %v980
        %1778 = vmatprep.subr.bf16.mxu0 0
        %1779 = vmatpush1.bf16.msra.mxu0 %v981
        %1780 = vmatprep.subr.bf16.mxu0 0
        %1781 = vmatpush1.bf16.msra.mxu0 %v982
        %1782 = vmatprep.subr.bf16.mxu0 0
        %1783 = vmatpush1.bf16.msra.mxu0 %v983
        %1784 = vmatprep.mubr.bf16.mxu0 %v1497
        %1785 = vmatmul.mubr.bf16.gmra.mrb[0].mxu0 %v1496
        %v1786 = vpop.f32.mrb[0].mxu0
        %v1787 = vadd.f32 0.0, %v1786
        %v1788 = vpop.f32.mrb[0].mxu0
        %v1789 = vpop.f32.mrb[0].mxu0
        %v1790 = vadd.f32 0.0, %v1789
        %v1791 = vpop.f32.mrb[0].mxu0
        %1792 = vmatprep.mubr.bf16.mxu0 %v1499
        %1793 = vmatmul.mubr.bf16.gmra.mrb[0].mxu0 %v1498
        %v1794 = vpop.f32.mrb[0].mxu0
        %v1795 = vadd.f32 0.0, %v1794
        %v1796 = vpop.f32.mrb[0].mxu0
        %v1797 = vpop.f32.mrb[0].mxu0
        %v1798 = vadd.f32 0.0, %v1797
        %v1799 = vpop.f32.mrb[0].mxu0
        %1800 = vmatprep.mubr.bf16.mxu0 %v1501
        %1801 = vmatmul.mubr.bf16.gmra.mrb[0].mxu0 %v1500
        %v1802 = vpop.f32.mrb[0].mxu0
        %v1803 = vadd.f32 0.0, %v1802
        %v1804 = vpop.f32.mrb[0].mxu0
        %v1805 = vpop.f32.mrb[0].mxu0
        %v1806 = vadd.f32 0.0, %v1805
        %v1807 = vpop.f32.mrb[0].mxu0
        %1808 = vmatprep.mubr.bf16.mxu0 %v1503
        %1809 = vmatmul.mubr.bf16.gmra.mrb[0].mxu0 %v1502
        %v1810 = vpop.f32.mrb[0].mxu0
        %v1811 = vadd.f32 0.0, %v1810
        %v1812 = vpop.f32.mrb[0].mxu0
        %v1813 = vpop.f32.mrb[0].mxu0
        %v1814 = vadd.f32 0.0, %v1813
        %v1815 = vpop.f32.mrb[0].mxu0
        %1816 = vmatprep.mubr.bf16.mxu0 %v1505
        %1817 = vmatmul.mubr.bf16.gmra.mrb[0].mxu0 %v1504
        %v1818 = vpop.f32.mrb[0].mxu0
        %v1819 = vadd.f32 0.0, %v1818
        %v1820 = vpop.f32.mrb[0].mxu0
        %v1821 = vpop.f32.mrb[0].mxu0
        %v1822 = vadd.f32 0.0, %v1821
        %v1823 = vpop.f32.mrb[0].mxu0
        %1824 = vmatprep.mubr.bf16.mxu0 %v1507
        %1825 = vmatmul.mubr.bf16.gmra.mrb[0].mxu0 %v1506
        %v1826 = vpop.f32.mrb[0].mxu0
        %v1827 = vadd.f32 0.0, %v1826
        %v1828 = vpop.f32.mrb[0].mxu0
        %v1829 = vpop.f32.mrb[0].mxu0
        %v1830 = vadd.f32 0.0, %v1829
        %v1831 = vpop.f32.mrb[0].mxu0
        %1832 = vmatprep.mubr.bf16.mxu0 %v1509
        %1833 = vmatmul.mubr.bf16.gmra.mrb[0].mxu0 %v1508
        %v1834 = vpop.f32.mrb[0].mxu0
        %v1835 = vadd.f32 0.0, %v1834
        %v1836 = vpop.f32.mrb[0].mxu0
        %v1837 = vpop.f32.mrb[0].mxu0
        %v1838 = vadd.f32 0.0, %v1837
        %v1839 = vpop.f32.mrb[0].mxu0
        %1840 = vmatprep.mubr.bf16.mxu0 %v1511
        %1841 = vmatmul.mubr.bf16.gmra.mrb[0].mxu0 %v1510
        %v1842 = vpop.f32.mrb[0].mxu0
        %v1843 = vadd.f32 0.0, %v1842
        %v1844 = vpop.f32.mrb[0].mxu0
        %v1845 = vpop.f32.mrb[0].mxu0
        %v1846 = vadd.f32 0.0, %v1845
        %v1847 = vpop.f32.mrb[0].mxu0
        %1848 = vmatprep.mubr.bf16.mxu0 %v1513
        %1849 = vmatmul.mubr.bf16.gmra.mrb[0].mxu0 %v1512
        %v1850 = vpop.f32.mrb[0].mxu0
        %v1851 = vadd.f32 0.0, %v1850
        %v1852 = vpop.f32.mrb[0].mxu0
        %v1853 = vpop.f32.mrb[0].mxu0
        %v1854 = vadd.f32 0.0, %v1853
        %v1855 = vpop.f32.mrb[0].mxu0
        %1856 = vmatprep.mubr.bf16.mxu0 %v1515
        %1857 = vmatmul.mubr.bf16.gmra.mrb[0].mxu0 %v1514
        %v1858 = vpop.f32.mrb[0].mxu0
        %v1859 = vadd.f32 0.0, %v1858
        %v1860 = vpop.f32.mrb[0].mxu0
        %v1861 = vpop.f32.mrb[0].mxu0
        %v1862 = vadd.f32 0.0, %v1861
        %v1863 = vpop.f32.mrb[0].mxu0
        %1864 = vmatprep.mubr.bf16.mxu0 %v1517
        %1865 = vmatmul.mubr.bf16.gmra.mrb[0].mxu0 %v1516
        %v1866 = vpop.f32.mrb[0].mxu0
        %v1867 = vadd.f32 0.0, %v1866
        %v1868 = vpop.f32.mrb[0].mxu0
        %v1869 = vpop.f32.mrb[0].mxu0
        %v1870 = vadd.f32 0.0, %v1869
        %v1871 = vpop.f32.mrb[0].mxu0
        %1872 = vmatprep.mubr.bf16.mxu0 %v1519
        %1873 = vmatmul.mubr.bf16.gmra.mrb[0].mxu0 %v1518
        %v1874 = vpop.f32.mrb[0].mxu0
        %v1875 = vadd.f32 0.0, %v1874
        %v1876 = vpop.f32.mrb[0].mxu0
        %v1877 = vpop.f32.mrb[0].mxu0
        %v1878 = vadd.f32 0.0, %v1877
        %v1879 = vpop.f32.mrb[0].mxu0
        %1880 = vmatprep.mubr.bf16.mxu0 %v1521
        %1881 = vmatmul.mubr.bf16.gmra.mrb[0].mxu0 %v1520
        %v1882 = vpop.f32.mrb[0].mxu0
        %v1883 = vadd.f32 0.0, %v1882
        %v1884 = vpop.f32.mrb[0].mxu0
        %v1885 = vpop.f32.mrb[0].mxu0
        %v1886 = vadd.f32 0.0, %v1885
        %v1887 = vpop.f32.mrb[0].mxu0
        %1888 = vmatprep.mubr.bf16.mxu0 %v1523
        %1889 = vmatmul.mubr.bf16.gmra.mrb[0].mxu0 %v1522
        %v1890 = vpop.f32.mrb[0].mxu0
        %v1891 = vadd.f32 0.0, %v1890
        %v1892 = vpop.f32.mrb[0].mxu0
        %v1893 = vpop.f32.mrb[0].mxu0
        %v1894 = vadd.f32 0.0, %v1893
        %v1895 = vpop.f32.mrb[0].mxu0
        %1896 = vmatprep.mubr.bf16.mxu0 %v1525
        %1897 = vmatmul.mubr.bf16.gmra.mrb[0].mxu0 %v1524
        %v1898 = vpop.f32.mrb[0].mxu0
        %v1899 = vadd.f32 0.0, %v1898
        %v1900 = vpop.f32.mrb[0].mxu0
        %v1901 = vpop.f32.mrb[0].mxu0
        %v1902 = vadd.f32 0.0, %v1901
        %v1903 = vpop.f32.mrb[0].mxu0
        %1904 = vmatprep.mubr.bf16.mxu0 %v1527
        %1905 = vmatmul.mubr.bf16.gmra.mrb[0].mxu0 %v1526
        %v1906 = vpop.f32.mrb[0].mxu0
        %v1907 = vadd.f32 0.0, %v1906
        %v1908 = vpop.f32.mrb[0].mxu0
        %v1909 = vpop.f32.mrb[0].mxu0
        %v1910 = vadd.f32 0.0, %v1909
        %v1911 = vpop.f32.mrb[0].mxu0
        %1912 = vmatprep.mubr.bf16.mxu0 %v1529
        %1913 = vmatmul.mubr.bf16.gmra.mrb[0].mxu0 %v1528
        %v1914 = vpop.f32.mrb[0].mxu0
        %v1915 = vadd.f32 0.0, %v1914
        %v1916 = vpop.f32.mrb[0].mxu0
        %v1917 = vpop.f32.mrb[0].mxu0
        %v1918 = vadd.f32 0.0, %v1917
        %v1919 = vpop.f32.mrb[0].mxu0
        %1920 = vmatprep.mubr.bf16.mxu0 %v1531
        %1921 = vmatmul.mubr.bf16.gmra.mrb[0].mxu0 %v1530
        %v1922 = vpop.f32.mrb[0].mxu0
        %v1923 = vadd.f32 0.0, %v1922
        %v1924 = vpop.f32.mrb[0].mxu0
        %v1925 = vpop.f32.mrb[0].mxu0
        %v1926 = vadd.f32 0.0, %v1925
        %v1927 = vpop.f32.mrb[0].mxu0
        %1928 = vmatprep.mubr.bf16.mxu0 %v1533
        %1929 = vmatmul.mubr.bf16.gmra.mrb[0].mxu0 %v1532
        %v1930 = vpop.f32.mrb[0].mxu0
        %v1931 = vadd.f32 0.0, %v1930
        %v1932 = vpop.f32.mrb[0].mxu0
        %v1933 = vpop.f32.mrb[0].mxu0
        %v1934 = vadd.f32 0.0, %v1933
        %v1935 = vpop.f32.mrb[0].mxu0
        %1936 = vmatprep.mubr.bf16.mxu0 %v1535
        %1937 = vmatmul.mubr.bf16.gmra.mrb[0].mxu0 %v1534
        %v1938 = vpop.f32.mrb[0].mxu0
        %v1939 = vadd.f32 0.0, %v1938
        %v1940 = vpop.f32.mrb[0].mxu0
        %v1941 = vpop.f32.mrb[0].mxu0
        %v1942 = vadd.f32 0.0, %v1941
        %v1943 = vpop.f32.mrb[0].mxu0
        %1944 = vmatprep.mubr.bf16.mxu0 %v1537
        %1945 = vmatmul.mubr.bf16.gmra.mrb[0].mxu0 %v1536
        %v1946 = vpop.f32.mrb[0].mxu0
        %v1947 = vadd.f32 0.0, %v1946
        %v1948 = vpop.f32.mrb[0].mxu0
        %v1949 = vpop.f32.mrb[0].mxu0
        %v1950 = vadd.f32 0.0, %v1949
        %v1951 = vpop.f32.mrb[0].mxu0
        %1952 = vmatprep.mubr.bf16.mxu0 %v1539
        %1953 = vmatmul.mubr.bf16.gmra.mrb[0].mxu0 %v1538
        %v1954 = vpop.f32.mrb[0].mxu0
        %v1955 = vadd.f32 0.0, %v1954
        %v1956 = vpop.f32.mrb[0].mxu0
        %v1957 = vpop.f32.mrb[0].mxu0
        %v1958 = vadd.f32 0.0, %v1957
        %v1959 = vpop.f32.mrb[0].mxu0
        %1960 = vmatprep.mubr.bf16.mxu0 %v1541
        %1961 = vmatmul.mubr.bf16.gmra.mrb[0].mxu0 %v1540
        %v1962 = vpop.f32.mrb[0].mxu0
        %v1963 = vadd.f32 0.0, %v1962
        %v1964 = vpop.f32.mrb[0].mxu0
        %v1965 = vpop.f32.mrb[0].mxu0
        %v1966 = vadd.f32 0.0, %v1965
        %v1967 = vpop.f32.mrb[0].mxu0
        %1968 = vmatprep.mubr.bf16.mxu0 %v1543
        %1969 = vmatmul.mubr.bf16.gmra.mrb[0].mxu0 %v1542
        %v1970 = vpop.f32.mrb[0].mxu0
        %v1971 = vadd.f32 0.0, %v1970
        %v1972 = vpop.f32.mrb[0].mxu0
        %v1973 = vpop.f32.mrb[0].mxu0
        %v1974 = vadd.f32 0.0, %v1973
        %v1975 = vpop.f32.mrb[0].mxu0
        %1976 = vmatprep.mubr.bf16.mxu0 %v1545
        %1977 = vmatmul.mubr.bf16.gmra.mrb[0].mxu0 %v1544
        %v1978 = vpop.f32.mrb[0].mxu0
        %v1979 = vadd.f32 0.0, %v1978
        %v1980 = vpop.f32.mrb[0].mxu0
        %v1981 = vpop.f32.mrb[0].mxu0
        %v1982 = vadd.f32 0.0, %v1981
        %v1983 = vpop.f32.mrb[0].mxu0
        %1984 = vmatprep.mubr.bf16.mxu0 %v1547
        %1985 = vmatmul.mubr.bf16.gmra.mrb[0].mxu0 %v1546
        %v1986 = vpop.f32.mrb[0].mxu0
        %v1987 = vadd.f32 0.0, %v1986
        %v1988 = vpop.f32.mrb[0].mxu0
        %v1989 = vpop.f32.mrb[0].mxu0
        %v1990 = vadd.f32 0.0, %v1989
        %v1991 = vpop.f32.mrb[0].mxu0
        %1992 = vmatprep.mubr.bf16.mxu0 %v1549
        %1993 = vmatmul.mubr.bf16.gmra.mrb[0].mxu0 %v1548
        %v1994 = vpop.f32.mrb[0].mxu0
        %v1995 = vadd.f32 0.0, %v1994
        %v1996 = vpop.f32.mrb[0].mxu0
        %v1997 = vpop.f32.mrb[0].mxu0
        %v1998 = vadd.f32 0.0, %v1997
        %v1999 = vpop.f32.mrb[0].mxu0
        %2000 = vmatprep.mubr.bf16.mxu0 %v1551
        %2001 = vmatmul.mubr.bf16.gmra.mrb[0].mxu0 %v1550
        %v2002 = vpop.f32.mrb[0].mxu0
        %v2003 = vadd.f32 0.0, %v2002
        %v2004 = vpop.f32.mrb[0].mxu0
        %v2005 = vpop.f32.mrb[0].mxu0
        %v2006 = vadd.f32 0.0, %v2005
        %v2007 = vpop.f32.mrb[0].mxu0
        %2008 = vmatprep.mubr.bf16.mxu0 %v1553
        %2009 = vmatmul.mubr.bf16.gmra.mrb[0].mxu0 %v1552
        %v2010 = vpop.f32.mrb[0].mxu0
        %v2011 = vadd.f32 0.0, %v2010
        %v2012 = vpop.f32.mrb[0].mxu0
        %v2013 = vpop.f32.mrb[0].mxu0
        %v2014 = vadd.f32 0.0, %v2013
        %v2015 = vpop.f32.mrb[0].mxu0
        %2016 = vmatprep.mubr.bf16.mxu0 %v1555
        %2017 = vmatmul.mubr.bf16.gmra.mrb[0].mxu0 %v1554
        %v2018 = vpop.f32.mrb[0].mxu0
        %v2019 = vadd.f32 0.0, %v2018
        %v2020 = vpop.f32.mrb[0].mxu0
        %v2021 = vpop.f32.mrb[0].mxu0
        %v2022 = vadd.f32 0.0, %v2021
        %v2023 = vpop.f32.mrb[0].mxu0
        %2024 = vmatprep.mubr.bf16.mxu0 %v1557
        %2025 = vmatmul.mubr.bf16.gmra.mrb[0].mxu0 %v1556
        %v2026 = vpop.f32.mrb[0].mxu0
        %v2027 = vadd.f32 0.0, %v2026
        %v2028 = vpop.f32.mrb[0].mxu0
        %v2029 = vpop.f32.mrb[0].mxu0
        %v2030 = vadd.f32 0.0, %v2029
        %v2031 = vpop.f32.mrb[0].mxu0
        %2032 = vmatprep.mubr.bf16.mxu0 %v1559
        %2033 = vmatmul.mubr.bf16.gmra.mrb[0].mxu0 %v1558
        %v2034 = vpop.f32.mrb[0].mxu0
        %v2035 = vadd.f32 0.0, %v2034
        %v2036 = vpop.f32.mrb[0].mxu0
        %v2037 = vpop.f32.mrb[0].mxu0
        %v2038 = vadd.f32 0.0, %v2037
        %v2039 = vpop.f32.mrb[0].mxu0
        %2040 = vmatprep.mubr.bf16.mxu0 %v1561
        %2041 = vmatmul.mubr.bf16.gmra.mrb[0].mxu0 %v1560
        %v2042 = vpop.f32.mrb[0].mxu0
        %v2043 = vadd.f32 0.0, %v2042
        %v2044 = vpop.f32.mrb[0].mxu0
        %v2045 = vpop.f32.mrb[0].mxu0
        %v2046 = vadd.f32 0.0, %v2045
        %v2047 = vpop.f32.mrb[0].mxu0
        %2048 = vmatprep.mubr.bf16.mxu0 %v1563
        %2049 = vmatmul.mubr.bf16.gmra.mrb[0].mxu0 %v1562
        %v2050 = vpop.f32.mrb[0].mxu0
        %v2051 = vadd.f32 0.0, %v2050
        %v2052 = vpop.f32.mrb[0].mxu0
        %v2053 = vpop.f32.mrb[0].mxu0
        %v2054 = vadd.f32 0.0, %v2053
        %v2055 = vpop.f32.mrb[0].mxu0
        %2056 = vmatprep.mubr.bf16.mxu0 %v1565
        %2057 = vmatmul.mubr.bf16.gmra.mrb[0].mxu0 %v1564
        %v2058 = vpop.f32.mrb[0].mxu0
        %v2059 = vadd.f32 0.0, %v2058
        %v2060 = vpop.f32.mrb[0].mxu0
        %v2061 = vpop.f32.mrb[0].mxu0
        %v2062 = vadd.f32 0.0, %v2061
        %v2063 = vpop.f32.mrb[0].mxu0
        %2064 = vmatprep.mubr.bf16.mxu0 %v1567
        %2065 = vmatmul.mubr.bf16.gmra.mrb[0].mxu0 %v1566
        %v2066 = vpop.f32.mrb[0].mxu0
        %v2067 = vadd.f32 0.0, %v2066
        %v2068 = vpop.f32.mrb[0].mxu0
        %v2069 = vpop.f32.mrb[0].mxu0
        %v2070 = vadd.f32 0.0, %v2069
        %v2071 = vpop.f32.mrb[0].mxu0
        %2072 = vmatprep.mubr.bf16.mxu0 %v1569
        %2073 = vmatmul.mubr.bf16.gmra.mrb[0].mxu0 %v1568
        %v2074 = vpop.f32.mrb[0].mxu0
        %v2075 = vadd.f32 0.0, %v2074
        %v2076 = vpop.f32.mrb[0].mxu0
        %v2077 = vpop.f32.mrb[0].mxu0
        %v2078 = vadd.f32 0.0, %v2077
        %v2079 = vpop.f32.mrb[0].mxu0
        %2080 = vmatprep.mubr.bf16.mxu0 %v1571
        %2081 = vmatmul.mubr.bf16.gmra.mrb[0].mxu0 %v1570
        %v2082 = vpop.f32.mrb[0].mxu0
        %v2083 = vadd.f32 0.0, %v2082
        %v2084 = vpop.f32.mrb[0].mxu0
        %v2085 = vpop.f32.mrb[0].mxu0
        %v2086 = vadd.f32 0.0, %v2085
        %v2087 = vpop.f32.mrb[0].mxu0
        %2088 = vmatprep.mubr.bf16.mxu0 %v1573
        %2089 = vmatmul.mubr.bf16.gmra.mrb[0].mxu0 %v1572
        %v2090 = vpop.f32.mrb[0].mxu0
        %v2091 = vadd.f32 0.0, %v2090
        %v2092 = vpop.f32.mrb[0].mxu0
        %v2093 = vpop.f32.mrb[0].mxu0
        %v2094 = vadd.f32 0.0, %v2093
        %v2095 = vpop.f32.mrb[0].mxu0
        %2096 = vmatprep.mubr.bf16.mxu0 %v1575
        %2097 = vmatmul.mubr.bf16.gmra.mrb[0].mxu0 %v1574
        %v2098 = vpop.f32.mrb[0].mxu0
        %v2099 = vadd.f32 0.0, %v2098
        %v2100 = vpop.f32.mrb[0].mxu0
        %v2101 = vpop.f32.mrb[0].mxu0
        %v2102 = vadd.f32 0.0, %v2101
        %v2103 = vpop.f32.mrb[0].mxu0
        %2104 = vmatprep.mubr.bf16.mxu0 %v1577
        %2105 = vmatmul.mubr.bf16.gmra.mrb[0].mxu0 %v1576
        %v2106 = vpop.f32.mrb[0].mxu0
        %v2107 = vadd.f32 0.0, %v2106
        %v2108 = vpop.f32.mrb[0].mxu0
        %v2109 = vpop.f32.mrb[0].mxu0
        %v2110 = vadd.f32 0.0, %v2109
        %v2111 = vpop.f32.mrb[0].mxu0
        %2112 = vmatprep.mubr.bf16.mxu0 %v1579
        %2113 = vmatmul.mubr.bf16.gmra.mrb[0].mxu0 %v1578
        %v2114 = vpop.f32.mrb[0].mxu0
        %v2115 = vadd.f32 0.0, %v2114
        %v2116 = vpop.f32.mrb[0].mxu0
        %v2117 = vpop.f32.mrb[0].mxu0
        %v2118 = vadd.f32 0.0, %v2117
        %v2119 = vpop.f32.mrb[0].mxu0
        %2120 = vmatprep.mubr.bf16.mxu0 %v1581
        %2121 = vmatmul.mubr.bf16.gmra.mrb[0].mxu0 %v1580
        %v2122 = vpop.f32.mrb[0].mxu0
        %v2123 = vadd.f32 0.0, %v2122
        %v2124 = vpop.f32.mrb[0].mxu0
        %v2125 = vpop.f32.mrb[0].mxu0
        %v2126 = vadd.f32 0.0, %v2125
        %v2127 = vpop.f32.mrb[0].mxu0
        %2128 = vmatprep.mubr.bf16.mxu0 %v1583
        %2129 = vmatmul.mubr.bf16.gmra.mrb[0].mxu0 %v1582
        %v2130 = vpop.f32.mrb[0].mxu0
        %v2131 = vadd.f32 0.0, %v2130
        %v2132 = vpop.f32.mrb[0].mxu0
        %v2133 = vpop.f32.mrb[0].mxu0
        %v2134 = vadd.f32 0.0, %v2133
        %v2135 = vpop.f32.mrb[0].mxu0
        %2136 = vmatprep.mubr.bf16.mxu0 %v1585
        %2137 = vmatmul.mubr.bf16.gmra.mrb[0].mxu0 %v1584
        %v2138 = vpop.f32.mrb[0].mxu0
        %v2139 = vadd.f32 0.0, %v2138
        %v2140 = vpop.f32.mrb[0].mxu0
        %v2141 = vpop.f32.mrb[0].mxu0
        %v2142 = vadd.f32 0.0, %v2141
        %v2143 = vpop.f32.mrb[0].mxu0
        %2144 = vmatprep.mubr.bf16.mxu0 %v1587
        %2145 = vmatmul.mubr.bf16.gmra.mrb[0].mxu0 %v1586
        %v2146 = vpop.f32.mrb[0].mxu0
        %v2147 = vadd.f32 0.0, %v2146
        %v2148 = vpop.f32.mrb[0].mxu0
        %v2149 = vpop.f32.mrb[0].mxu0
        %v2150 = vadd.f32 0.0, %v2149
        %v2151 = vpop.f32.mrb[0].mxu0
        %2152 = vmatprep.mubr.bf16.mxu0 %v1589
        %2153 = vmatmul.mubr.bf16.gmra.mrb[0].mxu0 %v1588
        %v2154 = vpop.f32.mrb[0].mxu0
        %v2155 = vadd.f32 0.0, %v2154
        %v2156 = vpop.f32.mrb[0].mxu0
        %v2157 = vpop.f32.mrb[0].mxu0
        %v2158 = vadd.f32 0.0, %v2157
        %v2159 = vpop.f32.mrb[0].mxu0
        %2160 = vmatprep.mubr.bf16.mxu0 %v1591
        %2161 = vmatmul.mubr.bf16.gmra.mrb[0].mxu0 %v1590
        %v2162 = vpop.f32.mrb[0].mxu0
        %v2163 = vadd.f32 0.0, %v2162
        %v2164 = vpop.f32.mrb[0].mxu0
        %v2165 = vpop.f32.mrb[0].mxu0
        %v2166 = vadd.f32 0.0, %v2165
        %v2167 = vpop.f32.mrb[0].mxu0
        %2168 = vmatprep.mubr.bf16.mxu0 %v1593
        %2169 = vmatmul.mubr.bf16.gmra.mrb[0].mxu0 %v1592
        %v2170 = vpop.f32.mrb[0].mxu0
        %v2171 = vadd.f32 0.0, %v2170
        %v2172 = vpop.f32.mrb[0].mxu0
        %v2173 = vpop.f32.mrb[0].mxu0
        %v2174 = vadd.f32 0.0, %v2173
        %v2175 = vpop.f32.mrb[0].mxu0
        %2176 = vmatprep.mubr.bf16.mxu0 %v1595
        %2177 = vmatmul.mubr.bf16.gmra.mrb[0].mxu0 %v1594
        %v2178 = vpop.f32.mrb[0].mxu0
        %v2179 = vadd.f32 0.0, %v2178
        %v2180 = vpop.f32.mrb[0].mxu0
        %v2181 = vpop.f32.mrb[0].mxu0
        %v2182 = vadd.f32 0.0, %v2181
        %v2183 = vpop.f32.mrb[0].mxu0
        %2184 = vmatprep.mubr.bf16.mxu0 %v1597
        %2185 = vmatmul.mubr.bf16.gmra.mrb[0].mxu0 %v1596
        %v2186 = vpop.f32.mrb[0].mxu0
        %v2187 = vadd.f32 0.0, %v2186
        %v2188 = vpop.f32.mrb[0].mxu0
        %v2189 = vpop.f32.mrb[0].mxu0
        %v2190 = vadd.f32 0.0, %v2189
        %v2191 = vpop.f32.mrb[0].mxu0
        %2192 = vmatprep.mubr.bf16.mxu0 %v1599
        %2193 = vmatmul.mubr.bf16.gmra.mrb[0].mxu0 %v1598
        %v2194 = vpop.f32.mrb[0].mxu0
        %v2195 = vadd.f32 0.0, %v2194
        %v2196 = vpop.f32.mrb[0].mxu0
        %v2197 = vpop.f32.mrb[0].mxu0
        %v2198 = vadd.f32 0.0, %v2197
        %v2199 = vpop.f32.mrb[0].mxu0
        %2200 = vmatprep.mubr.bf16.mxu0 %v1601
        %2201 = vmatmul.mubr.bf16.gmra.mrb[0].mxu0 %v1600
        %v2202 = vpop.f32.mrb[0].mxu0
        %v2203 = vadd.f32 0.0, %v2202
        %v2204 = vpop.f32.mrb[0].mxu0
        %v2205 = vpop.f32.mrb[0].mxu0
        %v2206 = vadd.f32 0.0, %v2205
        %v2207 = vpop.f32.mrb[0].mxu0
        %2208 = vmatprep.mubr.bf16.mxu0 %v1603
        %2209 = vmatmul.mubr.bf16.gmra.mrb[0].mxu0 %v1602
        %v2210 = vpop.f32.mrb[0].mxu0
        %v2211 = vadd.f32 0.0, %v2210
        %v2212 = vpop.f32.mrb[0].mxu0
        %v2213 = vpop.f32.mrb[0].mxu0
        %v2214 = vadd.f32 0.0, %v2213
        %v2215 = vpop.f32.mrb[0].mxu0
        %2216 = vmatprep.mubr.bf16.mxu0 %v1605
        %2217 = vmatmul.mubr.bf16.gmra.mrb[0].mxu0 %v1604
        %v2218 = vpop.f32.mrb[0].mxu0
        %v2219 = vadd.f32 0.0, %v2218
        %v2220 = vpop.f32.mrb[0].mxu0
        %v2221 = vpop.f32.mrb[0].mxu0
        %v2222 = vadd.f32 0.0, %v2221
        %v2223 = vpop.f32.mrb[0].mxu0
        %2224 = vmatprep.mubr.bf16.mxu0 %v1607
        %2225 = vmatmul.mubr.bf16.gmra.mrb[0].mxu0 %v1606
        %v2226 = vpop.f32.mrb[0].mxu0
        %v2227 = vadd.f32 0.0, %v2226
        %v2228 = vpop.f32.mrb[0].mxu0
        %v2229 = vpop.f32.mrb[0].mxu0
        %v2230 = vadd.f32 0.0, %v2229
        %v2231 = vpop.f32.mrb[0].mxu0
        %2232 = vmatprep.mubr.bf16.mxu0 %v1609
        %2233 = vmatmul.mubr.bf16.gmra.mrb[0].mxu0 %v1608
        %v2234 = vpop.f32.mrb[0].mxu0
        %v2235 = vadd.f32 0.0, %v2234
        %v2236 = vpop.f32.mrb[0].mxu0
        %v2237 = vpop.f32.mrb[0].mxu0
        %v2238 = vadd.f32 0.0, %v2237
        %v2239 = vpop.f32.mrb[0].mxu0
        %2240 = vmatprep.mubr.bf16.mxu0 %v1611
        %2241 = vmatmul.mubr.bf16.gmra.mrb[0].mxu0 %v1610
        %v2242 = vpop.f32.mrb[0].mxu0
        %v2243 = vadd.f32 0.0, %v2242
        %v2244 = vpop.f32.mrb[0].mxu0
        %v2245 = vpop.f32.mrb[0].mxu0
        %v2246 = vadd.f32 0.0, %v2245
        %v2247 = vpop.f32.mrb[0].mxu0
        %2248 = vmatprep.mubr.bf16.mxu0 %v1613
        %2249 = vmatmul.mubr.bf16.gmra.mrb[0].mxu0 %v1612
        %v2250 = vpop.f32.mrb[0].mxu0
        %v2251 = vadd.f32 0.0, %v2250
        %v2252 = vpop.f32.mrb[0].mxu0
        %v2253 = vpop.f32.mrb[0].mxu0
        %v2254 = vadd.f32 0.0, %v2253
        %v2255 = vpop.f32.mrb[0].mxu0
        %2256 = vmatprep.mubr.bf16.mxu0 %v1615
        %2257 = vmatmul.mubr.bf16.gmra.mrb[0].mxu0 %v1614
        %v2258 = vpop.f32.mrb[0].mxu0
        %v2259 = vadd.f32 0.0, %v2258
        %v2260 = vpop.f32.mrb[0].mxu0
        %v2261 = vpop.f32.mrb[0].mxu0
        %v2262 = vadd.f32 0.0, %v2261
        %v2263 = vpop.f32.mrb[0].mxu0
        %2264 = vmatprep.mubr.bf16.mxu0 %v1617
        %2265 = vmatmul.mubr.bf16.gmra.mrb[0].mxu0 %v1616
        %v2266 = vpop.f32.mrb[0].mxu0
        %v2267 = vadd.f32 0.0, %v2266
        %v2268 = vpop.f32.mrb[0].mxu0
        %v2269 = vpop.f32.mrb[0].mxu0
        %v2270 = vadd.f32 0.0, %v2269
        %v2271 = vpop.f32.mrb[0].mxu0
        %2272 = vmatprep.mubr.bf16.mxu0 %v1619
        %2273 = vmatmul.mubr.bf16.gmra.mrb[0].mxu0 %v1618
        %v2274 = vpop.f32.mrb[0].mxu0
        %v2275 = vadd.f32 0.0, %v2274
        %v2276 = vpop.f32.mrb[0].mxu0
        %v2277 = vpop.f32.mrb[0].mxu0
        %v2278 = vadd.f32 0.0, %v2277
        %v2279 = vpop.f32.mrb[0].mxu0
        %2280 = vmatprep.mubr.bf16.mxu0 %v1621
        %2281 = vmatmul.mubr.bf16.gmra.mrb[0].mxu0 %v1620
        %v2282 = vpop.f32.mrb[0].mxu0
        %v2283 = vadd.f32 0.0, %v2282
        %v2284 = vpop.f32.mrb[0].mxu0
        %v2285 = vpop.f32.mrb[0].mxu0
        %v2286 = vadd.f32 0.0, %v2285
        %v2287 = vpop.f32.mrb[0].mxu0
        %2288 = vmatprep.mubr.bf16.mxu0 %v1623
        %2289 = vmatmul.mubr.bf16.gmra.mrb[0].mxu0 %v1622
        %v2290 = vpop.f32.mrb[0].mxu0
        %v2291 = vadd.f32 0.0, %v2290
        %v2292 = vpop.f32.mrb[0].mxu0
        %v2293 = vpop.f32.mrb[0].mxu0
        %v2294 = vadd.f32 0.0, %v2293
        %v2295 = vpop.f32.mrb[0].mxu0
        %2296 = vdwg.mxu0
        %v2297 = vpack.c.bf16 %v1790, %v1787
        %v2298 = vpack.c.bf16 %v1798, %v1795
        %v2299 = vpack.c.bf16 %v1806, %v1803
        %v2300 = vpack.c.bf16 %v1814, %v1811
        %v2301 = vpack.c.bf16 %v1822, %v1819
        %v2302 = vpack.c.bf16 %v1830, %v1827
        %v2303 = vpack.c.bf16 %v1838, %v1835
        %v2304 = vpack.c.bf16 %v1846, %v1843
        %v2305 = vpack.c.bf16 %v1854, %v1851
        %v2306 = vpack.c.bf16 %v1862, %v1859
        %v2307 = vpack.c.bf16 %v1870, %v1867
        %v2308 = vpack.c.bf16 %v1878, %v1875
        %v2309 = vpack.c.bf16 %v1886, %v1883
        %v2310 = vpack.c.bf16 %v1894, %v1891
        %v2311 = vpack.c.bf16 %v1902, %v1899
        %v2312 = vpack.c.bf16 %v1910, %v1907
        %v2313 = vpack.c.bf16 %v1918, %v1915
        %v2314 = vpack.c.bf16 %v1926, %v1923
        %v2315 = vpack.c.bf16 %v1934, %v1931
        %v2316 = vpack.c.bf16 %v1942, %v1939
        %v2317 = vpack.c.bf16 %v1950, %v1947
        %v2318 = vpack.c.bf16 %v1958, %v1955
        %v2319 = vpack.c.bf16 %v1966, %v1963
        %v2320 = vpack.c.bf16 %v1974, %v1971
        %v2321 = vpack.c.bf16 %v1982, %v1979
        %v2322 = vpack.c.bf16 %v1990, %v1987
        %v2323 = vpack.c.bf16 %v1998, %v1995
        %v2324 = vpack.c.bf16 %v2006, %v2003
        %v2325 = vpack.c.bf16 %v2014, %v2011
        %v2326 = vpack.c.bf16 %v2022, %v2019
        %v2327 = vpack.c.bf16 %v2030, %v2027
        %v2328 = vpack.c.bf16 %v2038, %v2035
        %v2329 = vpack.c.bf16 %v2046, %v2043
        %v2330 = vpack.c.bf16 %v2054, %v2051
        %v2331 = vpack.c.bf16 %v2062, %v2059
        %v2332 = vpack.c.bf16 %v2070, %v2067
        %v2333 = vpack.c.bf16 %v2078, %v2075
        %v2334 = vpack.c.bf16 %v2086, %v2083
        %v2335 = vpack.c.bf16 %v2094, %v2091
        %v2336 = vpack.c.bf16 %v2102, %v2099
        %v2337 = vpack.c.bf16 %v2110, %v2107
        %v2338 = vpack.c.bf16 %v2118, %v2115
        %v2339 = vpack.c.bf16 %v2126, %v2123
        %v2340 = vpack.c.bf16 %v2134, %v2131
        %v2341 = vpack.c.bf16 %v2142, %v2139
        %v2342 = vpack.c.bf16 %v2150, %v2147
        %v2343 = vpack.c.bf16 %v2158, %v2155
        %v2344 = vpack.c.bf16 %v2166, %v2163
        %v2345 = vpack.c.bf16 %v2174, %v2171
        %v2346 = vpack.c.bf16 %v2182, %v2179
        %v2347 = vpack.c.bf16 %v2190, %v2187
        %v2348 = vpack.c.bf16 %v2198, %v2195
        %v2349 = vpack.c.bf16 %v2206, %v2203
        %v2350 = vpack.c.bf16 %v2214, %v2211
        %v2351 = vpack.c.bf16 %v2222, %v2219
        %v2352 = vpack.c.bf16 %v2230, %v2227
        %v2353 = vpack.c.bf16 %v2238, %v2235
        %v2354 = vpack.c.bf16 %v2246, %v2243
        %v2355 = vpack.c.bf16 %v2254, %v2251
        %v2356 = vpack.c.bf16 %v2262, %v2259
        %v2357 = vpack.c.bf16 %v2270, %v2267
        %v2358 = vpack.c.bf16 %v2278, %v2275
        %v2359 = vpack.c.bf16 %v2286, %v2283
        %v2360 = vpack.c.bf16 %v2294, %v2291
        %v2361 = vld [vmem:[%s4] sm:$0xf]
        %s2362 = scalar_lea.vmem %s4, 4
        %v2363 = vld [vmem:[%s2362] sm:$0xf]
        %vm2364 = vcmask 64512
        %v2366 = vsel %vm2364, %v2301, 0
        %v2369 = vsel %vm2364, %v2302, 0
        %v2372 = vsel %vm2364, %v2303, 0
        %v2375 = vsel %vm2364, %v2304, 0
        %vm2377 = vcmask 1043456
        %v2379 = vsel %vm2377, %v2363, 0
        %2381 = vmatprep.subr.bf16.mxu0 0
        %2382 = vmatpush1.bf16.msra.mxu0 %v2379
        %2383 = vmatprep.subr.bf16.mxu0 0
        %2384 = vmatpush1.bf16.msra.mxu0 0
        %2385 = vmatprep.subr.bf16.mxu0 0
        %2386 = vmatpush1.bf16.msra.mxu0 0
        %2387 = vmatprep.subr.bf16.mxu0 0
        %2388 = vmatpush1.bf16.msra.mxu0 0
        %2389 = vmatprep.subr.bf16.mxu0 0
        %2390 = vmatpush1.bf16.msra.mxu0 0
        %2391 = vmatprep.subr.bf16.mxu0 0
        %2392 = vmatpush1.bf16.msra.mxu0 0
        %2393 = vmatprep.subr.bf16.mxu0 0
        %2394 = vmatpush1.bf16.msra.mxu0 0
        %2395 = vmatprep.subr.bf16.mxu0 0
        %2396 = vmatpush1.bf16.msra.mxu0 0
        %2397 = vmatprep.subr.bf16.mxu0 0
        %2398 = vmatpush1.bf16.msra.mxu0 0
        %2399 = vmatprep.subr.bf16.mxu0 0
        %2400 = vmatpush1.bf16.msra.mxu0 0
        %2401 = vmatprep.subr.bf16.mxu0 0
        %2402 = vmatpush1.bf16.msra.mxu0 0
        %2403 = vmatprep.subr.bf16.mxu0 0
        %2404 = vmatpush1.bf16.msra.mxu0 0
        %2405 = vmatprep.subr.bf16.mxu0 0
        %2406 = vmatpush1.bf16.msra.mxu0 0
        %2407 = vmatprep.subr.bf16.mxu0 0
        %2408 = vmatpush1.bf16.msra.mxu0 0
        %2409 = vmatprep.subr.bf16.mxu0 0
        %2410 = vmatpush1.bf16.msra.mxu0 0
        %2411 = vmatprep.subr.bf16.mxu0 0
        %2412 = vmatpush1.bf16.msra.mxu0 0
        %2413 = vmatprep.mubr.bf16.mxu0 0
        %2414 = vmatmul.mubr.bf16.gmra.mrb[0].mxu0 %v2366
        %v2415 = vpop.f32.mrb[0].mxu0
        %v2416 = vadd.f32 0.0, %v2415
        %v2417 = vpop.f32.mrb[0].mxu0
        %v2418 = vpop.f32.mrb[0].mxu0
        %v2419 = vadd.f32 0.0, %v2418
        %v2420 = vpop.f32.mrb[0].mxu0
        %2421 = vmatprep.mubr.bf16.mxu0 0
        %2422 = vmatmul.mubr.bf16.gmra.mrb[0].mxu0 %v2369
        %v2423 = vpop.f32.mrb[0].mxu0
        %v2424 = vadd.f32 0.0, %v2423
        %v2425 = vpop.f32.mrb[0].mxu0
        %v2426 = vpop.f32.mrb[0].mxu0
        %v2427 = vadd.f32 0.0, %v2426
        %v2428 = vpop.f32.mrb[0].mxu0
        %2429 = vmatprep.mubr.bf16.mxu0 0
        %2430 = vmatmul.mubr.bf16.gmra.mrb[0].mxu0 %v2372
        %v2431 = vpop.f32.mrb[0].mxu0
        %v2432 = vadd.f32 0.0, %v2431
        %v2433 = vpop.f32.mrb[0].mxu0
        %v2434 = vpop.f32.mrb[0].mxu0
        %v2435 = vadd.f32 0.0, %v2434
        %v2436 = vpop.f32.mrb[0].mxu0
        %2437 = vmatprep.mubr.bf16.mxu0 0
        %2438 = vmatmul.mubr.bf16.gmra.mrb[0].mxu0 %v2375
        %v2439 = vpop.f32.mrb[0].mxu0
        %v2440 = vadd.f32 0.0, %v2439
        %v2441 = vpop.f32.mrb[0].mxu0
        %v2442 = vpop.f32.mrb[0].mxu0
        %v2443 = vadd.f32 0.0, %v2442
        %v2444 = vpop.f32.mrb[0].mxu0
        %2445 = vdwg.mxu0
        %v2447 = vsel %vm2364, %v2297, 0
        %v2450 = vsel %vm2364, %v2298, 0
        %v2453 = vsel %vm2364, %v2299, 0
        %v2456 = vsel %vm2364, %v2300, 0
        %v2459 = vsel %vm2377, %v2361, 0
        %2461 = vmatprep.subr.bf16.mxu0 0
        %2462 = vmatpush1.bf16.msra.mxu0 %v2459
        %2463 = vmatprep.subr.bf16.mxu0 0
        %2464 = vmatpush1.bf16.msra.mxu0 0
        %2465 = vmatprep.subr.bf16.mxu0 0
        %2466 = vmatpush1.bf16.msra.mxu0 0
        %2467 = vmatprep.subr.bf16.mxu0 0
        %2468 = vmatpush1.bf16.msra.mxu0 0
        %2469 = vmatprep.subr.bf16.mxu0 0
        %2470 = vmatpush1.bf16.msra.mxu0 0
        %2471 = vmatprep.subr.bf16.mxu0 0
        %2472 = vmatpush1.bf16.msra.mxu0 0
        %2473 = vmatprep.subr.bf16.mxu0 0
        %2474 = vmatpush1.bf16.msra.mxu0 0
        %2475 = vmatprep.subr.bf16.mxu0 0
        %2476 = vmatpush1.bf16.msra.mxu0 0
        %2477 = vmatprep.subr.bf16.mxu0 0
        %2478 = vmatpush1.bf16.msra.mxu0 0
        %2479 = vmatprep.subr.bf16.mxu0 0
        %2480 = vmatpush1.bf16.msra.mxu0 0
        %2481 = vmatprep.subr.bf16.mxu0 0
        %2482 = vmatpush1.bf16.msra.mxu0 0
        %2483 = vmatprep.subr.bf16.mxu0 0
        %2484 = vmatpush1.bf16.msra.mxu0 0
        %2485 = vmatprep.subr.bf16.mxu0 0
        %2486 = vmatpush1.bf16.msra.mxu0 0
        %2487 = vmatprep.subr.bf16.mxu0 0
        %2488 = vmatpush1.bf16.msra.mxu0 0
        %2489 = vmatprep.subr.bf16.mxu0 0
        %2490 = vmatpush1.bf16.msra.mxu0 0
        %2491 = vmatprep.subr.bf16.mxu0 0
        %2492 = vmatpush1.bf16.msra.mxu0 0
        %2493 = vmatprep.mubr.bf16.mxu0 0
        %2494 = vmatmul.mubr.bf16.gmra.mrb[0].mxu0 %v2447
        %v2495 = vpop.f32.mrb[0].mxu0
        %v2496 = vadd.f32 %v2416, %v2495
        %v2497 = vpop.f32.mrb[0].mxu0
        %v2498 = vpop.f32.mrb[0].mxu0
        %v2499 = vadd.f32 %v2419, %v2498
        %v2500 = vpop.f32.mrb[0].mxu0
        %2501 = vmatprep.mubr.bf16.mxu0 0
        %2502 = vmatmul.mubr.bf16.gmra.mrb[0].mxu0 %v2450
        %v2503 = vpop.f32.mrb[0].mxu0
        %v2504 = vadd.f32 %v2424, %v2503
        %v2505 = vpop.f32.mrb[0].mxu0
        %v2506 = vpop.f32.mrb[0].mxu0
        %v2507 = vadd.f32 %v2427, %v2506
        %v2508 = vpop.f32.mrb[0].mxu0
        %2509 = vmatprep.mubr.bf16.mxu0 0
        %2510 = vmatmul.mubr.bf16.gmra.mrb[0].mxu0 %v2453
        %v2511 = vpop.f32.mrb[0].mxu0
        %v2512 = vadd.f32 %v2432, %v2511
        %v2513 = vpop.f32.mrb[0].mxu0
        %v2514 = vpop.f32.mrb[0].mxu0
        %v2515 = vadd.f32 %v2435, %v2514
        %v2516 = vpop.f32.mrb[0].mxu0
        %2517 = vmatprep.mubr.bf16.mxu0 0
        %2518 = vmatmul.mubr.bf16.gmra.mrb[0].mxu0 %v2456
        %v2519 = vpop.f32.mrb[0].mxu0
        %v2520 = vadd.f32 %v2440, %v2519
        %v2521 = vpop.f32.mrb[0].mxu0
        %v2522 = vpop.f32.mrb[0].mxu0
        %v2523 = vadd.f32 %v2443, %v2522
        %v2524 = vpop.f32.mrb[0].mxu0
        %2525 = vdwg.mxu0
        %s2526 = scalar_lea.vmem %s4, 8
        %v2527 = vld [vmem:[%s2526] sm:$0xf]
        %v2529 = vsel %vm2364, %v2305, 0
        %v2532 = vsel %vm2364, %v2306, 0
        %v2535 = vsel %vm2364, %v2307, 0
        %v2538 = vsel %vm2364, %v2308, 0
        %v2541 = vsel %vm2377, %v2527, 0
        %2543 = vmatprep.subr.bf16.mxu0 0
        %2544 = vmatpush1.bf16.msra.mxu0 %v2541
        %2545 = vmatprep.subr.bf16.mxu0 0
        %2546 = vmatpush1.bf16.msra.mxu0 0
        %2547 = vmatprep.subr.bf16.mxu0 0
        %2548 = vmatpush1.bf16.msra.mxu0 0
        %2549 = vmatprep.subr.bf16.mxu0 0
        %2550 = vmatpush1.bf16.msra.mxu0 0
        %2551 = vmatprep.subr.bf16.mxu0 0
        %2552 = vmatpush1.bf16.msra.mxu0 0
        %2553 = vmatprep.subr.bf16.mxu0 0
        %2554 = vmatpush1.bf16.msra.mxu0 0
        %2555 = vmatprep.subr.bf16.mxu0 0
        %2556 = vmatpush1.bf16.msra.mxu0 0
        %2557 = vmatprep.subr.bf16.mxu0 0
        %2558 = vmatpush1.bf16.msra.mxu0 0
        %2559 = vmatprep.subr.bf16.mxu0 0
        %2560 = vmatpush1.bf16.msra.mxu0 0
        %2561 = vmatprep.subr.bf16.mxu0 0
        %2562 = vmatpush1.bf16.msra.mxu0 0
        %2563 = vmatprep.subr.bf16.mxu0 0
        %2564 = vmatpush1.bf16.msra.mxu0 0
        %2565 = vmatprep.subr.bf16.mxu0 0
        %2566 = vmatpush1.bf16.msra.mxu0 0
        %2567 = vmatprep.subr.bf16.mxu0 0
        %2568 = vmatpush1.bf16.msra.mxu0 0
        %2569 = vmatprep.subr.bf16.mxu0 0
        %2570 = vmatpush1.bf16.msra.mxu0 0
        %2571 = vmatprep.subr.bf16.mxu0 0
        %2572 = vmatpush1.bf16.msra.mxu0 0
        %2573 = vmatprep.subr.bf16.mxu0 0
        %2574 = vmatpush1.bf16.msra.mxu0 0
        %2575 = vmatprep.mubr.bf16.mxu0 0
        %2576 = vmatmul.mubr.bf16.gmra.mrb[0].mxu0 %v2529
        %v2577 = vpop.f32.mrb[0].mxu0
        %v2578 = vadd.f32 0.0, %v2577
        %v2579 = vpop.f32.mrb[0].mxu0
        %v2580 = vpop.f32.mrb[0].mxu0
        %v2581 = vadd.f32 0.0, %v2580
        %v2582 = vpop.f32.mrb[0].mxu0
        %2583 = vmatprep.mubr.bf16.mxu0 0
        %2584 = vmatmul.mubr.bf16.gmra.mrb[0].mxu0 %v2532
        %v2585 = vpop.f32.mrb[0].mxu0
        %v2586 = vadd.f32 0.0, %v2585
        %v2587 = vpop.f32.mrb[0].mxu0
        %v2588 = vpop.f32.mrb[0].mxu0
        %v2589 = vadd.f32 0.0, %v2588
        %v2590 = vpop.f32.mrb[0].mxu0
        %2591 = vmatprep.mubr.bf16.mxu0 0
        %2592 = vmatmul.mubr.bf16.gmra.mrb[0].mxu0 %v2535
        %v2593 = vpop.f32.mrb[0].mxu0
        %v2594 = vadd.f32 0.0, %v2593
        %v2595 = vpop.f32.mrb[0].mxu0
        %v2596 = vpop.f32.mrb[0].mxu0
        %v2597 = vadd.f32 0.0, %v2596
        %v2598 = vpop.f32.mrb[0].mxu0
        %2599 = vmatprep.mubr.bf16.mxu0 0
        %2600 = vmatmul.mubr.bf16.gmra.mrb[0].mxu0 %v2538
        %v2601 = vpop.f32.mrb[0].mxu0
        %v2602 = vadd.f32 0.0, %v2601
        %v2603 = vpop.f32.mrb[0].mxu0
        %v2604 = vpop.f32.mrb[0].mxu0
        %v2605 = vadd.f32 0.0, %v2604
        %v2606 = vpop.f32.mrb[0].mxu0
        %2607 = vdwg.mxu0
        %v2608 = vadd.f32 %v2496, %v2578
        %v2609 = vadd.f32 %v2499, %v2581
        %v2610 = vadd.f32 %v2504, %v2586
        %v2611 = vadd.f32 %v2507, %v2589
        %v2612 = vadd.f32 %v2512, %v2594
        %v2613 = vadd.f32 %v2515, %v2597
        %v2614 = vadd.f32 %v2520, %v2602
        %v2615 = vadd.f32 %v2523, %v2605
        %s2616 = scalar_lea.vmem %s4, 12
        %v2617 = vld [vmem:[%s2616] sm:$0xf]
        %v2619 = vsel %vm2364, %v2309, 0
        %v2622 = vsel %vm2364, %v2310, 0
        %v2625 = vsel %vm2364, %v2311, 0
        %v2628 = vsel %vm2364, %v2312, 0
        %v2631 = vsel %vm2377, %v2617, 0
        %2633 = vmatprep.subr.bf16.mxu0 0
        %2634 = vmatpush1.bf16.msra.mxu0 %v2631
        %2635 = vmatprep.subr.bf16.mxu0 0
        %2636 = vmatpush1.bf16.msra.mxu0 0
        %2637 = vmatprep.subr.bf16.mxu0 0
        %2638 = vmatpush1.bf16.msra.mxu0 0
        %2639 = vmatprep.subr.bf16.mxu0 0
        %2640 = vmatpush1.bf16.msra.mxu0 0
        %2641 = vmatprep.subr.bf16.mxu0 0
        %2642 = vmatpush1.bf16.msra.mxu0 0
        %2643 = vmatprep.subr.bf16.mxu0 0
        %2644 = vmatpush1.bf16.msra.mxu0 0
        %2645 = vmatprep.subr.bf16.mxu0 0
        %2646 = vmatpush1.bf16.msra.mxu0 0
        %2647 = vmatprep.subr.bf16.mxu0 0
        %2648 = vmatpush1.bf16.msra.mxu0 0
        %2649 = vmatprep.subr.bf16.mxu0 0
        %2650 = vmatpush1.bf16.msra.mxu0 0
        %2651 = vmatprep.subr.bf16.mxu0 0
        %2652 = vmatpush1.bf16.msra.mxu0 0
        %2653 = vmatprep.subr.bf16.mxu0 0
        %2654 = vmatpush1.bf16.msra.mxu0 0
        %2655 = vmatprep.subr.bf16.mxu0 0
        %2656 = vmatpush1.bf16.msra.mxu0 0
        %2657 = vmatprep.subr.bf16.mxu0 0
        %2658 = vmatpush1.bf16.msra.mxu0 0
        %2659 = vmatprep.subr.bf16.mxu0 0
        %2660 = vmatpush1.bf16.msra.mxu0 0
        %2661 = vmatprep.subr.bf16.mxu0 0
        %2662 = vmatpush1.bf16.msra.mxu0 0
        %2663 = vmatprep.subr.bf16.mxu0 0
        %2664 = vmatpush1.bf16.msra.mxu0 0
        %2665 = vmatprep.mubr.bf16.mxu0 0
        %2666 = vmatmul.mubr.bf16.gmra.mrb[0].mxu0 %v2619
        %v2667 = vpop.f32.mrb[0].mxu0
        %v2668 = vadd.f32 0.0, %v2667
        %v2669 = vpop.f32.mrb[0].mxu0
        %v2670 = vpop.f32.mrb[0].mxu0
        %v2671 = vadd.f32 0.0, %v2670
        %v2672 = vpop.f32.mrb[0].mxu0
        %2673 = vmatprep.mubr.bf16.mxu0 0
        %2674 = vmatmul.mubr.bf16.gmra.mrb[0].mxu0 %v2622
        %v2675 = vpop.f32.mrb[0].mxu0
        %v2676 = vadd.f32 0.0, %v2675
        %v2677 = vpop.f32.mrb[0].mxu0
        %v2678 = vpop.f32.mrb[0].mxu0
        %v2679 = vadd.f32 0.0, %v2678
        %v2680 = vpop.f32.mrb[0].mxu0
        %2681 = vmatprep.mubr.bf16.mxu0 0
        %2682 = vmatmul.mubr.bf16.gmra.mrb[0].mxu0 %v2625
        %v2683 = vpop.f32.mrb[0].mxu0
        %v2684 = vadd.f32 0.0, %v2683
        %v2685 = vpop.f32.mrb[0].mxu0
        %v2686 = vpop.f32.mrb[0].mxu0
        %v2687 = vadd.f32 0.0, %v2686
        %v2688 = vpop.f32.mrb[0].mxu0
        %2689 = vmatprep.mubr.bf16.mxu0 0
        %2690 = vmatmul.mubr.bf16.gmra.mrb[0].mxu0 %v2628
        %v2691 = vpop.f32.mrb[0].mxu0
        %v2692 = vadd.f32 0.0, %v2691
        %v2693 = vpop.f32.mrb[0].mxu0
        %v2694 = vpop.f32.mrb[0].mxu0
        %v2695 = vadd.f32 0.0, %v2694
        %v2696 = vpop.f32.mrb[0].mxu0
        %2697 = vdwg.mxu0
        %v2698 = vadd.f32 %v2608, %v2668
        %v2699 = vadd.f32 %v2609, %v2671
        %v2700 = vadd.f32 %v2610, %v2676
        %v2701 = vadd.f32 %v2611, %v2679
        %v2702 = vadd.f32 %v2612, %v2684
        %v2703 = vadd.f32 %v2613, %v2687
        %v2704 = vadd.f32 %v2614, %v2692
        %v2705 = vadd.f32 %v2615, %v2695
        %s2706 = scalar_lea.vmem %s4, 16
        %v2707 = vld [vmem:[%s2706] sm:$0xf]
        %v2709 = vsel %vm2364, %v2313, 0
        %v2712 = vsel %vm2364, %v2314, 0
        %v2715 = vsel %vm2364, %v2315, 0
        %v2718 = vsel %vm2364, %v2316, 0
        %v2721 = vsel %vm2377, %v2707, 0
        %2723 = vmatprep.subr.bf16.mxu0 0
        %2724 = vmatpush1.bf16.msra.mxu0 %v2721
        %2725 = vmatprep.subr.bf16.mxu0 0
        %2726 = vmatpush1.bf16.msra.mxu0 0
        %2727 = vmatprep.subr.bf16.mxu0 0
        %2728 = vmatpush1.bf16.msra.mxu0 0
        %2729 = vmatprep.subr.bf16.mxu0 0
        %2730 = vmatpush1.bf16.msra.mxu0 0
        %2731 = vmatprep.subr.bf16.mxu0 0
        %2732 = vmatpush1.bf16.msra.mxu0 0
        %2733 = vmatprep.subr.bf16.mxu0 0
        %2734 = vmatpush1.bf16.msra.mxu0 0
        %2735 = vmatprep.subr.bf16.mxu0 0
        %2736 = vmatpush1.bf16.msra.mxu0 0
        %2737 = vmatprep.subr.bf16.mxu0 0
        %2738 = vmatpush1.bf16.msra.mxu0 0
        %2739 = vmatprep.subr.bf16.mxu0 0
        %2740 = vmatpush1.bf16.msra.mxu0 0
        %2741 = vmatprep.subr.bf16.mxu0 0
        %2742 = vmatpush1.bf16.msra.mxu0 0
        %2743 = vmatprep.subr.bf16.mxu0 0
        %2744 = vmatpush1.bf16.msra.mxu0 0
        %2745 = vmatprep.subr.bf16.mxu0 0
        %2746 = vmatpush1.bf16.msra.mxu0 0
        %2747 = vmatprep.subr.bf16.mxu0 0
        %2748 = vmatpush1.bf16.msra.mxu0 0
        %2749 = vmatprep.subr.bf16.mxu0 0
        %2750 = vmatpush1.bf16.msra.mxu0 0
        %2751 = vmatprep.subr.bf16.mxu0 0
        %2752 = vmatpush1.bf16.msra.mxu0 0
        %2753 = vmatprep.subr.bf16.mxu0 0
        %2754 = vmatpush1.bf16.msra.mxu0 0
        %2755 = vmatprep.mubr.bf16.mxu0 0
        %2756 = vmatmul.mubr.bf16.gmra.mrb[0].mxu0 %v2709
        %v2757 = vpop.f32.mrb[0].mxu0
        %v2758 = vadd.f32 0.0, %v2757
        %v2759 = vpop.f32.mrb[0].mxu0
        %v2760 = vpop.f32.mrb[0].mxu0
        %v2761 = vadd.f32 0.0, %v2760
        %v2762 = vpop.f32.mrb[0].mxu0
        %2763 = vmatprep.mubr.bf16.mxu0 0
        %2764 = vmatmul.mubr.bf16.gmra.mrb[0].mxu0 %v2712
        %v2765 = vpop.f32.mrb[0].mxu0
        %v2766 = vadd.f32 0.0, %v2765
        %v2767 = vpop.f32.mrb[0].mxu0
        %v2768 = vpop.f32.mrb[0].mxu0
        %v2769 = vadd.f32 0.0, %v2768
        %v2770 = vpop.f32.mrb[0].mxu0
        %2771 = vmatprep.mubr.bf16.mxu0 0
        %2772 = vmatmul.mubr.bf16.gmra.mrb[0].mxu0 %v2715
        %v2773 = vpop.f32.mrb[0].mxu0
        %v2774 = vadd.f32 0.0, %v2773
        %v2775 = vpop.f32.mrb[0].mxu0
        %v2776 = vpop.f32.mrb[0].mxu0
        %v2777 = vadd.f32 0.0, %v2776
        %v2778 = vpop.f32.mrb[0].mxu0
        %2779 = vmatprep.mubr.bf16.mxu0 0
        %2780 = vmatmul.mubr.bf16.gmra.mrb[0].mxu0 %v2718
        %v2781 = vpop.f32.mrb[0].mxu0
        %v2782 = vadd.f32 0.0, %v2781
        %v2783 = vpop.f32.mrb[0].mxu0
        %v2784 = vpop.f32.mrb[0].mxu0
        %v2785 = vadd.f32 0.0, %v2784
        %v2786 = vpop.f32.mrb[0].mxu0
        %2787 = vdwg.mxu0
        %v2788 = vadd.f32 %v2698, %v2758
        %v2789 = vadd.f32 %v2699, %v2761
        %v2790 = vadd.f32 %v2700, %v2766
        %v2791 = vadd.f32 %v2701, %v2769
        %v2792 = vadd.f32 %v2702, %v2774
        %v2793 = vadd.f32 %v2703, %v2777
        %v2794 = vadd.f32 %v2704, %v2782
        %v2795 = vadd.f32 %v2705, %v2785
        %s2796 = scalar_lea.vmem %s4, 20
        %v2797 = vld [vmem:[%s2796] sm:$0xf]
        %v2799 = vsel %vm2364, %v2317, 0
        %v2802 = vsel %vm2364, %v2318, 0
        %v2805 = vsel %vm2364, %v2319, 0
        %v2808 = vsel %vm2364, %v2320, 0
        %v2811 = vsel %vm2377, %v2797, 0
        %2813 = vmatprep.subr.bf16.mxu0 0
        %2814 = vmatpush1.bf16.msra.mxu0 %v2811
        %2815 = vmatprep.subr.bf16.mxu0 0
        %2816 = vmatpush1.bf16.msra.mxu0 0
        %2817 = vmatprep.subr.bf16.mxu0 0
        %2818 = vmatpush1.bf16.msra.mxu0 0
        %2819 = vmatprep.subr.bf16.mxu0 0
        %2820 = vmatpush1.bf16.msra.mxu0 0
        %2821 = vmatprep.subr.bf16.mxu0 0
        %2822 = vmatpush1.bf16.msra.mxu0 0
        %2823 = vmatprep.subr.bf16.mxu0 0
        %2824 = vmatpush1.bf16.msra.mxu0 0
        %2825 = vmatprep.subr.bf16.mxu0 0
        %2826 = vmatpush1.bf16.msra.mxu0 0
        %2827 = vmatprep.subr.bf16.mxu0 0
        %2828 = vmatpush1.bf16.msra.mxu0 0
        %2829 = vmatprep.subr.bf16.mxu0 0
        %2830 = vmatpush1.bf16.msra.mxu0 0
        %2831 = vmatprep.subr.bf16.mxu0 0
        %2832 = vmatpush1.bf16.msra.mxu0 0
        %2833 = vmatprep.subr.bf16.mxu0 0
        %2834 = vmatpush1.bf16.msra.mxu0 0
        %2835 = vmatprep.subr.bf16.mxu0 0
        %2836 = vmatpush1.bf16.msra.mxu0 0
        %2837 = vmatprep.subr.bf16.mxu0 0
        %2838 = vmatpush1.bf16.msra.mxu0 0
        %2839 = vmatprep.subr.bf16.mxu0 0
        %2840 = vmatpush1.bf16.msra.mxu0 0
        %2841 = vmatprep.subr.bf16.mxu0 0
        %2842 = vmatpush1.bf16.msra.mxu0 0
        %2843 = vmatprep.subr.bf16.mxu0 0
        %2844 = vmatpush1.bf16.msra.mxu0 0
        %2845 = vmatprep.mubr.bf16.mxu0 0
        %2846 = vmatmul.mubr.bf16.gmra.mrb[0].mxu0 %v2799
        %v2847 = vpop.f32.mrb[0].mxu0
        %v2848 = vadd.f32 0.0, %v2847
        %v2849 = vpop.f32.mrb[0].mxu0
        %v2850 = vpop.f32.mrb[0].mxu0
        %v2851 = vadd.f32 0.0, %v2850
        %v2852 = vpop.f32.mrb[0].mxu0
        %2853 = vmatprep.mubr.bf16.mxu0 0
        %2854 = vmatmul.mubr.bf16.gmra.mrb[0].mxu0 %v2802
        %v2855 = vpop.f32.mrb[0].mxu0
        %v2856 = vadd.f32 0.0, %v2855
        %v2857 = vpop.f32.mrb[0].mxu0
        %v2858 = vpop.f32.mrb[0].mxu0
        %v2859 = vadd.f32 0.0, %v2858
        %v2860 = vpop.f32.mrb[0].mxu0
        %2861 = vmatprep.mubr.bf16.mxu0 0
        %2862 = vmatmul.mubr.bf16.gmra.mrb[0].mxu0 %v2805
        %v2863 = vpop.f32.mrb[0].mxu0
        %v2864 = vadd.f32 0.0, %v2863
        %v2865 = vpop.f32.mrb[0].mxu0
        %v2866 = vpop.f32.mrb[0].mxu0
        %v2867 = vadd.f32 0.0, %v2866
        %v2868 = vpop.f32.mrb[0].mxu0
        %2869 = vmatprep.mubr.bf16.mxu0 0
        %2870 = vmatmul.mubr.bf16.gmra.mrb[0].mxu0 %v2808
        %v2871 = vpop.f32.mrb[0].mxu0
        %v2872 = vadd.f32 0.0, %v2871
        %v2873 = vpop.f32.mrb[0].mxu0
        %v2874 = vpop.f32.mrb[0].mxu0
        %v2875 = vadd.f32 0.0, %v2874
        %v2876 = vpop.f32.mrb[0].mxu0
        %2877 = vdwg.mxu0
        %v2878 = vadd.f32 %v2788, %v2848
        %v2879 = vadd.f32 %v2789, %v2851
        %v2880 = vadd.f32 %v2790, %v2856
        %v2881 = vadd.f32 %v2791, %v2859
        %v2882 = vadd.f32 %v2792, %v2864
        %v2883 = vadd.f32 %v2793, %v2867
        %v2884 = vadd.f32 %v2794, %v2872
        %v2885 = vadd.f32 %v2795, %v2875
        %s2886 = scalar_lea.vmem %s4, 24
        %v2887 = vld [vmem:[%s2886] sm:$0xf]
        %v2889 = vsel %vm2364, %v2321, 0
        %v2892 = vsel %vm2364, %v2322, 0
        %v2895 = vsel %vm2364, %v2323, 0
        %v2898 = vsel %vm2364, %v2324, 0
        %v2901 = vsel %vm2377, %v2887, 0
        %2903 = vmatprep.subr.bf16.mxu0 0
        %2904 = vmatpush1.bf16.msra.mxu0 %v2901
        %2905 = vmatprep.subr.bf16.mxu0 0
        %2906 = vmatpush1.bf16.msra.mxu0 0
        %2907 = vmatprep.subr.bf16.mxu0 0
        %2908 = vmatpush1.bf16.msra.mxu0 0
        %2909 = vmatprep.subr.bf16.mxu0 0
        %2910 = vmatpush1.bf16.msra.mxu0 0
        %2911 = vmatprep.subr.bf16.mxu0 0
        %2912 = vmatpush1.bf16.msra.mxu0 0
        %2913 = vmatprep.subr.bf16.mxu0 0
        %2914 = vmatpush1.bf16.msra.mxu0 0
        %2915 = vmatprep.subr.bf16.mxu0 0
        %2916 = vmatpush1.bf16.msra.mxu0 0
        %2917 = vmatprep.subr.bf16.mxu0 0
        %2918 = vmatpush1.bf16.msra.mxu0 0
        %2919 = vmatprep.subr.bf16.mxu0 0
        %2920 = vmatpush1.bf16.msra.mxu0 0
        %2921 = vmatprep.subr.bf16.mxu0 0
        %2922 = vmatpush1.bf16.msra.mxu0 0
        %2923 = vmatprep.subr.bf16.mxu0 0
        %2924 = vmatpush1.bf16.msra.mxu0 0
        %2925 = vmatprep.subr.bf16.mxu0 0
        %2926 = vmatpush1.bf16.msra.mxu0 0
        %2927 = vmatprep.subr.bf16.mxu0 0
        %2928 = vmatpush1.bf16.msra.mxu0 0
        %2929 = vmatprep.subr.bf16.mxu0 0
        %2930 = vmatpush1.bf16.msra.mxu0 0
        %2931 = vmatprep.subr.bf16.mxu0 0
        %2932 = vmatpush1.bf16.msra.mxu0 0
        %2933 = vmatprep.subr.bf16.mxu0 0
        %2934 = vmatpush1.bf16.msra.mxu0 0
        %2935 = vmatprep.mubr.bf16.mxu0 0
        %2936 = vmatmul.mubr.bf16.gmra.mrb[0].mxu0 %v2889
        %v2937 = vpop.f32.mrb[0].mxu0
        %v2938 = vadd.f32 0.0, %v2937
        %v2939 = vpop.f32.mrb[0].mxu0
        %v2940 = vpop.f32.mrb[0].mxu0
        %v2941 = vadd.f32 0.0, %v2940
        %v2942 = vpop.f32.mrb[0].mxu0
        %2943 = vmatprep.mubr.bf16.mxu0 0
        %2944 = vmatmul.mubr.bf16.gmra.mrb[0].mxu0 %v2892
        %v2945 = vpop.f32.mrb[0].mxu0
        %v2946 = vadd.f32 0.0, %v2945
        %v2947 = vpop.f32.mrb[0].mxu0
        %v2948 = vpop.f32.mrb[0].mxu0
        %v2949 = vadd.f32 0.0, %v2948
        %v2950 = vpop.f32.mrb[0].mxu0
        %2951 = vmatprep.mubr.bf16.mxu0 0
        %2952 = vmatmul.mubr.bf16.gmra.mrb[0].mxu0 %v2895
        %v2953 = vpop.f32.mrb[0].mxu0
        %v2954 = vadd.f32 0.0, %v2953
        %v2955 = vpop.f32.mrb[0].mxu0
        %v2956 = vpop.f32.mrb[0].mxu0
        %v2957 = vadd.f32 0.0, %v2956
        %v2958 = vpop.f32.mrb[0].mxu0
        %2959 = vmatprep.mubr.bf16.mxu0 0
        %2960 = vmatmul.mubr.bf16.gmra.mrb[0].mxu0 %v2898
        %v2961 = vpop.f32.mrb[0].mxu0
        %v2962 = vadd.f32 0.0, %v2961
        %v2963 = vpop.f32.mrb[0].mxu0
        %v2964 = vpop.f32.mrb[0].mxu0
        %v2965 = vadd.f32 0.0, %v2964
        %v2966 = vpop.f32.mrb[0].mxu0
        %2967 = vdwg.mxu0
        %v2968 = vadd.f32 %v2878, %v2938
        %v2969 = vadd.f32 %v2879, %v2941
        %v2970 = vadd.f32 %v2880, %v2946
        %v2971 = vadd.f32 %v2881, %v2949
        %v2972 = vadd.f32 %v2882, %v2954
        %v2973 = vadd.f32 %v2883, %v2957
        %v2974 = vadd.f32 %v2884, %v2962
        %v2975 = vadd.f32 %v2885, %v2965
        %s2976 = scalar_lea.vmem %s4, 28
        %v2977 = vld [vmem:[%s2976] sm:$0xf]
        %v2979 = vsel %vm2364, %v2325, 0
        %v2982 = vsel %vm2364, %v2326, 0
        %v2985 = vsel %vm2364, %v2327, 0
        %v2988 = vsel %vm2364, %v2328, 0
        %v2991 = vsel %vm2377, %v2977, 0
        %2993 = vmatprep.subr.bf16.mxu0 0
        %2994 = vmatpush1.bf16.msra.mxu0 %v2991
        %2995 = vmatprep.subr.bf16.mxu0 0
        %2996 = vmatpush1.bf16.msra.mxu0 0
        %2997 = vmatprep.subr.bf16.mxu0 0
        %2998 = vmatpush1.bf16.msra.mxu0 0
        %2999 = vmatprep.subr.bf16.mxu0 0
        %3000 = vmatpush1.bf16.msra.mxu0 0
        %3001 = vmatprep.subr.bf16.mxu0 0
        %3002 = vmatpush1.bf16.msra.mxu0 0
        %3003 = vmatprep.subr.bf16.mxu0 0
        %3004 = vmatpush1.bf16.msra.mxu0 0
        %3005 = vmatprep.subr.bf16.mxu0 0
        %3006 = vmatpush1.bf16.msra.mxu0 0
        %3007 = vmatprep.subr.bf16.mxu0 0
        %3008 = vmatpush1.bf16.msra.mxu0 0
        %3009 = vmatprep.subr.bf16.mxu0 0
        %3010 = vmatpush1.bf16.msra.mxu0 0
        %3011 = vmatprep.subr.bf16.mxu0 0
        %3012 = vmatpush1.bf16.msra.mxu0 0
        %3013 = vmatprep.subr.bf16.mxu0 0
        %3014 = vmatpush1.bf16.msra.mxu0 0
        %3015 = vmatprep.subr.bf16.mxu0 0
        %3016 = vmatpush1.bf16.msra.mxu0 0
        %3017 = vmatprep.subr.bf16.mxu0 0
        %3018 = vmatpush1.bf16.msra.mxu0 0
        %3019 = vmatprep.subr.bf16.mxu0 0
        %3020 = vmatpush1.bf16.msra.mxu0 0
        %3021 = vmatprep.subr.bf16.mxu0 0
        %3022 = vmatpush1.bf16.msra.mxu0 0
        %3023 = vmatprep.subr.bf16.mxu0 0
        %3024 = vmatpush1.bf16.msra.mxu0 0
        %3025 = vmatprep.mubr.bf16.mxu0 0
        %3026 = vmatmul.mubr.bf16.gmra.mrb[0].mxu0 %v2979
        %v3027 = vpop.f32.mrb[0].mxu0
        %v3028 = vadd.f32 0.0, %v3027
        %v3029 = vpop.f32.mrb[0].mxu0
        %v3030 = vpop.f32.mrb[0].mxu0
        %v3031 = vadd.f32 0.0, %v3030
        %v3032 = vpop.f32.mrb[0].mxu0
        %3033 = vmatprep.mubr.bf16.mxu0 0
        %3034 = vmatmul.mubr.bf16.gmra.mrb[0].mxu0 %v2982
        %v3035 = vpop.f32.mrb[0].mxu0
        %v3036 = vadd.f32 0.0, %v3035
        %v3037 = vpop.f32.mrb[0].mxu0
        %v3038 = vpop.f32.mrb[0].mxu0
        %v3039 = vadd.f32 0.0, %v3038
        %v3040 = vpop.f32.mrb[0].mxu0
        %3041 = vmatprep.mubr.bf16.mxu0 0
        %3042 = vmatmul.mubr.bf16.gmra.mrb[0].mxu0 %v2985
        %v3043 = vpop.f32.mrb[0].mxu0
        %v3044 = vadd.f32 0.0, %v3043
        %v3045 = vpop.f32.mrb[0].mxu0
        %v3046 = vpop.f32.mrb[0].mxu0
        %v3047 = vadd.f32 0.0, %v3046
        %v3048 = vpop.f32.mrb[0].mxu0
        %3049 = vmatprep.mubr.bf16.mxu0 0
        %3050 = vmatmul.mubr.bf16.gmra.mrb[0].mxu0 %v2988
        %v3051 = vpop.f32.mrb[0].mxu0
        %v3052 = vadd.f32 0.0, %v3051
        %v3053 = vpop.f32.mrb[0].mxu0
        %v3054 = vpop.f32.mrb[0].mxu0
        %v3055 = vadd.f32 0.0, %v3054
        %v3056 = vpop.f32.mrb[0].mxu0
        %3057 = vdwg.mxu0
        %v3058 = vadd.f32 %v2968, %v3028
        %v3059 = vadd.f32 %v2969, %v3031
        %v3060 = vadd.f32 %v2970, %v3036
        %v3061 = vadd.f32 %v2971, %v3039
        %v3062 = vadd.f32 %v2972, %v3044
        %v3063 = vadd.f32 %v2973, %v3047
        %v3064 = vadd.f32 %v2974, %v3052
        %v3065 = vadd.f32 %v2975, %v3055
        %s3066 = scalar_lea.vmem %s4, 32
        %v3067 = vld [vmem:[%s3066] sm:$0xf]
        %v3069 = vsel %vm2364, %v2329, 0
        %v3072 = vsel %vm2364, %v2330, 0
        %v3075 = vsel %vm2364, %v2331, 0
        %v3078 = vsel %vm2364, %v2332, 0
        %v3081 = vsel %vm2377, %v3067, 0
        %3083 = vmatprep.subr.bf16.mxu0 0
        %3084 = vmatpush1.bf16.msra.mxu0 %v3081
        %3085 = vmatprep.subr.bf16.mxu0 0
        %3086 = vmatpush1.bf16.msra.mxu0 0
        %3087 = vmatprep.subr.bf16.mxu0 0
        %3088 = vmatpush1.bf16.msra.mxu0 0
        %3089 = vmatprep.subr.bf16.mxu0 0
        %3090 = vmatpush1.bf16.msra.mxu0 0
        %3091 = vmatprep.subr.bf16.mxu0 0
        %3092 = vmatpush1.bf16.msra.mxu0 0
        %3093 = vmatprep.subr.bf16.mxu0 0
        %3094 = vmatpush1.bf16.msra.mxu0 0
        %3095 = vmatprep.subr.bf16.mxu0 0
        %3096 = vmatpush1.bf16.msra.mxu0 0
        %3097 = vmatprep.subr.bf16.mxu0 0
        %3098 = vmatpush1.bf16.msra.mxu0 0
        %3099 = vmatprep.subr.bf16.mxu0 0
        %3100 = vmatpush1.bf16.msra.mxu0 0
        %3101 = vmatprep.subr.bf16.mxu0 0
        %3102 = vmatpush1.bf16.msra.mxu0 0
        %3103 = vmatprep.subr.bf16.mxu0 0
        %3104 = vmatpush1.bf16.msra.mxu0 0
        %3105 = vmatprep.subr.bf16.mxu0 0
        %3106 = vmatpush1.bf16.msra.mxu0 0
        %3107 = vmatprep.subr.bf16.mxu0 0
        %3108 = vmatpush1.bf16.msra.mxu0 0
        %3109 = vmatprep.subr.bf16.mxu0 0
        %3110 = vmatpush1.bf16.msra.mxu0 0
        %3111 = vmatprep.subr.bf16.mxu0 0
        %3112 = vmatpush1.bf16.msra.mxu0 0
        %3113 = vmatprep.subr.bf16.mxu0 0
        %3114 = vmatpush1.bf16.msra.mxu0 0
        %3115 = vmatprep.mubr.bf16.mxu0 0
        %3116 = vmatmul.mubr.bf16.gmra.mrb[0].mxu0 %v3069
        %v3117 = vpop.f32.mrb[0].mxu0
        %v3118 = vadd.f32 0.0, %v3117
        %v3119 = vpop.f32.mrb[0].mxu0
        %v3120 = vpop.f32.mrb[0].mxu0
        %v3121 = vadd.f32 0.0, %v3120
        %v3122 = vpop.f32.mrb[0].mxu0
        %3123 = vmatprep.mubr.bf16.mxu0 0
        %3124 = vmatmul.mubr.bf16.gmra.mrb[0].mxu0 %v3072
        %v3125 = vpop.f32.mrb[0].mxu0
        %v3126 = vadd.f32 0.0, %v3125
        %v3127 = vpop.f32.mrb[0].mxu0
        %v3128 = vpop.f32.mrb[0].mxu0
        %v3129 = vadd.f32 0.0, %v3128
        %v3130 = vpop.f32.mrb[0].mxu0
        %3131 = vmatprep.mubr.bf16.mxu0 0
        %3132 = vmatmul.mubr.bf16.gmra.mrb[0].mxu0 %v3075
        %v3133 = vpop.f32.mrb[0].mxu0
        %v3134 = vadd.f32 0.0, %v3133
        %v3135 = vpop.f32.mrb[0].mxu0
        %v3136 = vpop.f32.mrb[0].mxu0
        %v3137 = vadd.f32 0.0, %v3136
        %v3138 = vpop.f32.mrb[0].mxu0
        %3139 = vmatprep.mubr.bf16.mxu0 0
        %3140 = vmatmul.mubr.bf16.gmra.mrb[0].mxu0 %v3078
        %v3141 = vpop.f32.mrb[0].mxu0
        %v3142 = vadd.f32 0.0, %v3141
        %v3143 = vpop.f32.mrb[0].mxu0
        %v3144 = vpop.f32.mrb[0].mxu0
        %v3145 = vadd.f32 0.0, %v3144
        %v3146 = vpop.f32.mrb[0].mxu0
        %3147 = vdwg.mxu0
        %v3148 = vadd.f32 %v3058, %v3118
        %v3149 = vadd.f32 %v3059, %v3121
        %v3150 = vadd.f32 %v3060, %v3126
        %v3151 = vadd.f32 %v3061, %v3129
        %v3152 = vadd.f32 %v3062, %v3134
        %v3153 = vadd.f32 %v3063, %v3137
        %v3154 = vadd.f32 %v3064, %v3142
        %v3155 = vadd.f32 %v3065, %v3145
        %s3156 = scalar_lea.vmem %s4, 36
        %v3157 = vld [vmem:[%s3156] sm:$0xf]
        %v3159 = vsel %vm2364, %v2333, 0
        %v3162 = vsel %vm2364, %v2334, 0
        %v3165 = vsel %vm2364, %v2335, 0
        %v3168 = vsel %vm2364, %v2336, 0
        %v3171 = vsel %vm2377, %v3157, 0
        %3173 = vmatprep.subr.bf16.mxu0 0
        %3174 = vmatpush1.bf16.msra.mxu0 %v3171
        %3175 = vmatprep.subr.bf16.mxu0 0
        %3176 = vmatpush1.bf16.msra.mxu0 0
        %3177 = vmatprep.subr.bf16.mxu0 0
        %3178 = vmatpush1.bf16.msra.mxu0 0
        %3179 = vmatprep.subr.bf16.mxu0 0
        %3180 = vmatpush1.bf16.msra.mxu0 0
        %3181 = vmatprep.subr.bf16.mxu0 0
        %3182 = vmatpush1.bf16.msra.mxu0 0
        %3183 = vmatprep.subr.bf16.mxu0 0
        %3184 = vmatpush1.bf16.msra.mxu0 0
        %3185 = vmatprep.subr.bf16.mxu0 0
        %3186 = vmatpush1.bf16.msra.mxu0 0
        %3187 = vmatprep.subr.bf16.mxu0 0
        %3188 = vmatpush1.bf16.msra.mxu0 0
        %3189 = vmatprep.subr.bf16.mxu0 0
        %3190 = vmatpush1.bf16.msra.mxu0 0
        %3191 = vmatprep.subr.bf16.mxu0 0
        %3192 = vmatpush1.bf16.msra.mxu0 0
        %3193 = vmatprep.subr.bf16.mxu0 0
        %3194 = vmatpush1.bf16.msra.mxu0 0
        %3195 = vmatprep.subr.bf16.mxu0 0
        %3196 = vmatpush1.bf16.msra.mxu0 0
        %3197 = vmatprep.subr.bf16.mxu0 0
        %3198 = vmatpush1.bf16.msra.mxu0 0
        %3199 = vmatprep.subr.bf16.mxu0 0
        %3200 = vmatpush1.bf16.msra.mxu0 0
        %3201 = vmatprep.subr.bf16.mxu0 0
        %3202 = vmatpush1.bf16.msra.mxu0 0
        %3203 = vmatprep.subr.bf16.mxu0 0
        %3204 = vmatpush1.bf16.msra.mxu0 0
        %3205 = vmatprep.mubr.bf16.mxu0 0
        %3206 = vmatmul.mubr.bf16.gmra.mrb[0].mxu0 %v3159
        %v3207 = vpop.f32.mrb[0].mxu0
        %v3208 = vadd.f32 0.0, %v3207
        %v3209 = vpop.f32.mrb[0].mxu0
        %v3210 = vpop.f32.mrb[0].mxu0
        %v3211 = vadd.f32 0.0, %v3210
        %v3212 = vpop.f32.mrb[0].mxu0
        %3213 = vmatprep.mubr.bf16.mxu0 0
        %3214 = vmatmul.mubr.bf16.gmra.mrb[0].mxu0 %v3162
        %v3215 = vpop.f32.mrb[0].mxu0
        %v3216 = vadd.f32 0.0, %v3215
        %v3217 = vpop.f32.mrb[0].mxu0
        %v3218 = vpop.f32.mrb[0].mxu0
        %v3219 = vadd.f32 0.0, %v3218
        %v3220 = vpop.f32.mrb[0].mxu0
        %3221 = vmatprep.mubr.bf16.mxu0 0
        %3222 = vmatmul.mubr.bf16.gmra.mrb[0].mxu0 %v3165
        %v3223 = vpop.f32.mrb[0].mxu0
        %v3224 = vadd.f32 0.0, %v3223
        %v3225 = vpop.f32.mrb[0].mxu0
        %v3226 = vpop.f32.mrb[0].mxu0
        %v3227 = vadd.f32 0.0, %v3226
        %v3228 = vpop.f32.mrb[0].mxu0
        %3229 = vmatprep.mubr.bf16.mxu0 0
        %3230 = vmatmul.mubr.bf16.gmra.mrb[0].mxu0 %v3168
        %v3231 = vpop.f32.mrb[0].mxu0
        %v3232 = vadd.f32 0.0, %v3231
        %v3233 = vpop.f32.mrb[0].mxu0
        %v3234 = vpop.f32.mrb[0].mxu0
        %v3235 = vadd.f32 0.0, %v3234
        %v3236 = vpop.f32.mrb[0].mxu0
        %3237 = vdwg.mxu0
        %v3238 = vadd.f32 %v3148, %v3208
        %v3239 = vadd.f32 %v3149, %v3211
        %v3240 = vadd.f32 %v3150, %v3216
        %v3241 = vadd.f32 %v3151, %v3219
        %v3242 = vadd.f32 %v3152, %v3224
        %v3243 = vadd.f32 %v3153, %v3227
        %v3244 = vadd.f32 %v3154, %v3232
        %v3245 = vadd.f32 %v3155, %v3235
        %s3246 = scalar_lea.vmem %s4, 40
        %v3247 = vld [vmem:[%s3246] sm:$0xf]
        %v3249 = vsel %vm2364, %v2337, 0
        %v3252 = vsel %vm2364, %v2338, 0
        %v3255 = vsel %vm2364, %v2339, 0
        %v3258 = vsel %vm2364, %v2340, 0
        %v3261 = vsel %vm2377, %v3247, 0
        %3263 = vmatprep.subr.bf16.mxu0 0
        %3264 = vmatpush1.bf16.msra.mxu0 %v3261
        %3265 = vmatprep.subr.bf16.mxu0 0
        %3266 = vmatpush1.bf16.msra.mxu0 0
        %3267 = vmatprep.subr.bf16.mxu0 0
        %3268 = vmatpush1.bf16.msra.mxu0 0
        %3269 = vmatprep.subr.bf16.mxu0 0
        %3270 = vmatpush1.bf16.msra.mxu0 0
        %3271 = vmatprep.subr.bf16.mxu0 0
        %3272 = vmatpush1.bf16.msra.mxu0 0
        %3273 = vmatprep.subr.bf16.mxu0 0
        %3274 = vmatpush1.bf16.msra.mxu0 0
        %3275 = vmatprep.subr.bf16.mxu0 0
        %3276 = vmatpush1.bf16.msra.mxu0 0
        %3277 = vmatprep.subr.bf16.mxu0 0
        %3278 = vmatpush1.bf16.msra.mxu0 0
        %3279 = vmatprep.subr.bf16.mxu0 0
        %3280 = vmatpush1.bf16.msra.mxu0 0
        %3281 = vmatprep.subr.bf16.mxu0 0
        %3282 = vmatpush1.bf16.msra.mxu0 0
        %3283 = vmatprep.subr.bf16.mxu0 0
        %3284 = vmatpush1.bf16.msra.mxu0 0
        %3285 = vmatprep.subr.bf16.mxu0 0
        %3286 = vmatpush1.bf16.msra.mxu0 0
        %3287 = vmatprep.subr.bf16.mxu0 0
        %3288 = vmatpush1.bf16.msra.mxu0 0
        %3289 = vmatprep.subr.bf16.mxu0 0
        %3290 = vmatpush1.bf16.msra.mxu0 0
        %3291 = vmatprep.subr.bf16.mxu0 0
        %3292 = vmatpush1.bf16.msra.mxu0 0
        %3293 = vmatprep.subr.bf16.mxu0 0
        %3294 = vmatpush1.bf16.msra.mxu0 0
        %3295 = vmatprep.mubr.bf16.mxu0 0
        %3296 = vmatmul.mubr.bf16.gmra.mrb[0].mxu0 %v3249
        %v3297 = vpop.f32.mrb[0].mxu0
        %v3298 = vadd.f32 0.0, %v3297
        %v3299 = vpop.f32.mrb[0].mxu0
        %v3300 = vpop.f32.mrb[0].mxu0
        %v3301 = vadd.f32 0.0, %v3300
        %v3302 = vpop.f32.mrb[0].mxu0
        %3303 = vmatprep.mubr.bf16.mxu0 0
        %3304 = vmatmul.mubr.bf16.gmra.mrb[0].mxu0 %v3252
        %v3305 = vpop.f32.mrb[0].mxu0
        %v3306 = vadd.f32 0.0, %v3305
        %v3307 = vpop.f32.mrb[0].mxu0
        %v3308 = vpop.f32.mrb[0].mxu0
        %v3309 = vadd.f32 0.0, %v3308
        %v3310 = vpop.f32.mrb[0].mxu0
        %3311 = vmatprep.mubr.bf16.mxu0 0
        %3312 = vmatmul.mubr.bf16.gmra.mrb[0].mxu0 %v3255
        %v3313 = vpop.f32.mrb[0].mxu0
        %v3314 = vadd.f32 0.0, %v3313
        %v3315 = vpop.f32.mrb[0].mxu0
        %v3316 = vpop.f32.mrb[0].mxu0
        %v3317 = vadd.f32 0.0, %v3316
        %v3318 = vpop.f32.mrb[0].mxu0
        %3319 = vmatprep.mubr.bf16.mxu0 0
        %3320 = vmatmul.mubr.bf16.gmra.mrb[0].mxu0 %v3258
        %v3321 = vpop.f32.mrb[0].mxu0
        %v3322 = vadd.f32 0.0, %v3321
        %v3323 = vpop.f32.mrb[0].mxu0
        %v3324 = vpop.f32.mrb[0].mxu0
        %v3325 = vadd.f32 0.0, %v3324
        %v3326 = vpop.f32.mrb[0].mxu0
        %3327 = vdwg.mxu0
        %v3328 = vadd.f32 %v3238, %v3298
        %v3329 = vadd.f32 %v3239, %v3301
        %v3330 = vadd.f32 %v3240, %v3306
        %v3331 = vadd.f32 %v3241, %v3309
        %v3332 = vadd.f32 %v3242, %v3314
        %v3333 = vadd.f32 %v3243, %v3317
        %v3334 = vadd.f32 %v3244, %v3322
        %v3335 = vadd.f32 %v3245, %v3325
        %s3336 = scalar_lea.vmem %s4, 44
        %v3337 = vld [vmem:[%s3336] sm:$0xf]
        %v3339 = vsel %vm2364, %v2341, 0
        %v3342 = vsel %vm2364, %v2342, 0
        %v3345 = vsel %vm2364, %v2343, 0
        %v3348 = vsel %vm2364, %v2344, 0
        %v3351 = vsel %vm2377, %v3337, 0
        %3353 = vmatprep.subr.bf16.mxu0 0
        %3354 = vmatpush1.bf16.msra.mxu0 %v3351
        %3355 = vmatprep.subr.bf16.mxu0 0
        %3356 = vmatpush1.bf16.msra.mxu0 0
        %3357 = vmatprep.subr.bf16.mxu0 0
        %3358 = vmatpush1.bf16.msra.mxu0 0
        %3359 = vmatprep.subr.bf16.mxu0 0
        %3360 = vmatpush1.bf16.msra.mxu0 0
        %3361 = vmatprep.subr.bf16.mxu0 0
        %3362 = vmatpush1.bf16.msra.mxu0 0
        %3363 = vmatprep.subr.bf16.mxu0 0
        %3364 = vmatpush1.bf16.msra.mxu0 0
        %3365 = vmatprep.subr.bf16.mxu0 0
        %3366 = vmatpush1.bf16.msra.mxu0 0
        %3367 = vmatprep.subr.bf16.mxu0 0
        %3368 = vmatpush1.bf16.msra.mxu0 0
        %3369 = vmatprep.subr.bf16.mxu0 0
        %3370 = vmatpush1.bf16.msra.mxu0 0
        %3371 = vmatprep.subr.bf16.mxu0 0
        %3372 = vmatpush1.bf16.msra.mxu0 0
        %3373 = vmatprep.subr.bf16.mxu0 0
        %3374 = vmatpush1.bf16.msra.mxu0 0
        %3375 = vmatprep.subr.bf16.mxu0 0
        %3376 = vmatpush1.bf16.msra.mxu0 0
        %3377 = vmatprep.subr.bf16.mxu0 0
        %3378 = vmatpush1.bf16.msra.mxu0 0
        %3379 = vmatprep.subr.bf16.mxu0 0
        %3380 = vmatpush1.bf16.msra.mxu0 0
        %3381 = vmatprep.subr.bf16.mxu0 0
        %3382 = vmatpush1.bf16.msra.mxu0 0
        %3383 = vmatprep.subr.bf16.mxu0 0
        %3384 = vmatpush1.bf16.msra.mxu0 0
        %3385 = vmatprep.mubr.bf16.mxu0 0
        %3386 = vmatmul.mubr.bf16.gmra.mrb[0].mxu0 %v3339
        %v3387 = vpop.f32.mrb[0].mxu0
        %v3388 = vadd.f32 0.0, %v3387
        %v3389 = vpop.f32.mrb[0].mxu0
        %v3390 = vpop.f32.mrb[0].mxu0
        %v3391 = vadd.f32 0.0, %v3390
        %v3392 = vpop.f32.mrb[0].mxu0
        %3393 = vmatprep.mubr.bf16.mxu0 0
        %3394 = vmatmul.mubr.bf16.gmra.mrb[0].mxu0 %v3342
        %v3395 = vpop.f32.mrb[0].mxu0
        %v3396 = vadd.f32 0.0, %v3395
        %v3397 = vpop.f32.mrb[0].mxu0
        %v3398 = vpop.f32.mrb[0].mxu0
        %v3399 = vadd.f32 0.0, %v3398
        %v3400 = vpop.f32.mrb[0].mxu0
        %3401 = vmatprep.mubr.bf16.mxu0 0
        %3402 = vmatmul.mubr.bf16.gmra.mrb[0].mxu0 %v3345
        %v3403 = vpop.f32.mrb[0].mxu0
        %v3404 = vadd.f32 0.0, %v3403
        %v3405 = vpop.f32.mrb[0].mxu0
        %v3406 = vpop.f32.mrb[0].mxu0
        %v3407 = vadd.f32 0.0, %v3406
        %v3408 = vpop.f32.mrb[0].mxu0
        %3409 = vmatprep.mubr.bf16.mxu0 0
        %3410 = vmatmul.mubr.bf16.gmra.mrb[0].mxu0 %v3348
        %v3411 = vpop.f32.mrb[0].mxu0
        %v3412 = vadd.f32 0.0, %v3411
        %v3413 = vpop.f32.mrb[0].mxu0
        %v3414 = vpop.f32.mrb[0].mxu0
        %v3415 = vadd.f32 0.0, %v3414
        %v3416 = vpop.f32.mrb[0].mxu0
        %3417 = vdwg.mxu0
        %v3418 = vadd.f32 %v3328, %v3388
        %v3419 = vadd.f32 %v3329, %v3391
        %v3420 = vadd.f32 %v3330, %v3396
        %v3421 = vadd.f32 %v3331, %v3399
        %v3422 = vadd.f32 %v3332, %v3404
        %v3423 = vadd.f32 %v3333, %v3407
        %v3424 = vadd.f32 %v3334, %v3412
        %v3425 = vadd.f32 %v3335, %v3415
        %s3426 = scalar_lea.vmem %s4, 48
        %v3427 = vld [vmem:[%s3426] sm:$0xf]
        %v3429 = vsel %vm2364, %v2345, 0
        %v3432 = vsel %vm2364, %v2346, 0
        %v3435 = vsel %vm2364, %v2347, 0
        %v3438 = vsel %vm2364, %v2348, 0
        %v3441 = vsel %vm2377, %v3427, 0
        %3443 = vmatprep.subr.bf16.mxu0 0
        %3444 = vmatpush1.bf16.msra.mxu0 %v3441
        %3445 = vmatprep.subr.bf16.mxu0 0
        %3446 = vmatpush1.bf16.msra.mxu0 0
        %3447 = vmatprep.subr.bf16.mxu0 0
        %3448 = vmatpush1.bf16.msra.mxu0 0
        %3449 = vmatprep.subr.bf16.mxu0 0
        %3450 = vmatpush1.bf16.msra.mxu0 0
        %3451 = vmatprep.subr.bf16.mxu0 0
        %3452 = vmatpush1.bf16.msra.mxu0 0
        %3453 = vmatprep.subr.bf16.mxu0 0
        %3454 = vmatpush1.bf16.msra.mxu0 0
        %3455 = vmatprep.subr.bf16.mxu0 0
        %3456 = vmatpush1.bf16.msra.mxu0 0
        %3457 = vmatprep.subr.bf16.mxu0 0
        %3458 = vmatpush1.bf16.msra.mxu0 0
        %3459 = vmatprep.subr.bf16.mxu0 0
        %3460 = vmatpush1.bf16.msra.mxu0 0
        %3461 = vmatprep.subr.bf16.mxu0 0
        %3462 = vmatpush1.bf16.msra.mxu0 0
        %3463 = vmatprep.subr.bf16.mxu0 0
        %3464 = vmatpush1.bf16.msra.mxu0 0
        %3465 = vmatprep.subr.bf16.mxu0 0
        %3466 = vmatpush1.bf16.msra.mxu0 0
        %3467 = vmatprep.subr.bf16.mxu0 0
        %3468 = vmatpush1.bf16.msra.mxu0 0
        %3469 = vmatprep.subr.bf16.mxu0 0
        %3470 = vmatpush1.bf16.msra.mxu0 0
        %3471 = vmatprep.subr.bf16.mxu0 0
        %3472 = vmatpush1.bf16.msra.mxu0 0
        %3473 = vmatprep.subr.bf16.mxu0 0
        %3474 = vmatpush1.bf16.msra.mxu0 0
        %3475 = vmatprep.mubr.bf16.mxu0 0
        %3476 = vmatmul.mubr.bf16.gmra.mrb[0].mxu0 %v3429
        %v3477 = vpop.f32.mrb[0].mxu0
        %v3478 = vadd.f32 0.0, %v3477
        %v3479 = vpop.f32.mrb[0].mxu0
        %v3480 = vpop.f32.mrb[0].mxu0
        %v3481 = vadd.f32 0.0, %v3480
        %v3482 = vpop.f32.mrb[0].mxu0
        %3483 = vmatprep.mubr.bf16.mxu0 0
        %3484 = vmatmul.mubr.bf16.gmra.mrb[0].mxu0 %v3432
        %v3485 = vpop.f32.mrb[0].mxu0
        %v3486 = vadd.f32 0.0, %v3485
        %v3487 = vpop.f32.mrb[0].mxu0
        %v3488 = vpop.f32.mrb[0].mxu0
        %v3489 = vadd.f32 0.0, %v3488
        %v3490 = vpop.f32.mrb[0].mxu0
        %3491 = vmatprep.mubr.bf16.mxu0 0
        %3492 = vmatmul.mubr.bf16.gmra.mrb[0].mxu0 %v3435
        %v3493 = vpop.f32.mrb[0].mxu0
        %v3494 = vadd.f32 0.0, %v3493
        %v3495 = vpop.f32.mrb[0].mxu0
        %v3496 = vpop.f32.mrb[0].mxu0
        %v3497 = vadd.f32 0.0, %v3496
        %v3498 = vpop.f32.mrb[0].mxu0
        %3499 = vmatprep.mubr.bf16.mxu0 0
        %3500 = vmatmul.mubr.bf16.gmra.mrb[0].mxu0 %v3438
        %v3501 = vpop.f32.mrb[0].mxu0
        %v3502 = vadd.f32 0.0, %v3501
        %v3503 = vpop.f32.mrb[0].mxu0
        %v3504 = vpop.f32.mrb[0].mxu0
        %v3505 = vadd.f32 0.0, %v3504
        %v3506 = vpop.f32.mrb[0].mxu0
        %3507 = vdwg.mxu0
        %v3508 = vadd.f32 %v3418, %v3478
        %v3509 = vadd.f32 %v3419, %v3481
        %v3510 = vadd.f32 %v3420, %v3486
        %v3511 = vadd.f32 %v3421, %v3489
        %v3512 = vadd.f32 %v3422, %v3494
        %v3513 = vadd.f32 %v3423, %v3497
        %v3514 = vadd.f32 %v3424, %v3502
        %v3515 = vadd.f32 %v3425, %v3505
        %s3516 = scalar_lea.vmem %s4, 52
        %v3517 = vld [vmem:[%s3516] sm:$0xf]
        %v3519 = vsel %vm2364, %v2349, 0
        %v3522 = vsel %vm2364, %v2350, 0
        %v3525 = vsel %vm2364, %v2351, 0
        %v3528 = vsel %vm2364, %v2352, 0
        %v3531 = vsel %vm2377, %v3517, 0
        %3533 = vmatprep.subr.bf16.mxu0 0
        %3534 = vmatpush1.bf16.msra.mxu0 %v3531
        %3535 = vmatprep.subr.bf16.mxu0 0
        %3536 = vmatpush1.bf16.msra.mxu0 0
        %3537 = vmatprep.subr.bf16.mxu0 0
        %3538 = vmatpush1.bf16.msra.mxu0 0
        %3539 = vmatprep.subr.bf16.mxu0 0
        %3540 = vmatpush1.bf16.msra.mxu0 0
        %3541 = vmatprep.subr.bf16.mxu0 0
        %3542 = vmatpush1.bf16.msra.mxu0 0
        %3543 = vmatprep.subr.bf16.mxu0 0
        %3544 = vmatpush1.bf16.msra.mxu0 0
        %3545 = vmatprep.subr.bf16.mxu0 0
        %3546 = vmatpush1.bf16.msra.mxu0 0
        %3547 = vmatprep.subr.bf16.mxu0 0
        %3548 = vmatpush1.bf16.msra.mxu0 0
        %3549 = vmatprep.subr.bf16.mxu0 0
        %3550 = vmatpush1.bf16.msra.mxu0 0
        %3551 = vmatprep.subr.bf16.mxu0 0
        %3552 = vmatpush1.bf16.msra.mxu0 0
        %3553 = vmatprep.subr.bf16.mxu0 0
        %3554 = vmatpush1.bf16.msra.mxu0 0
        %3555 = vmatprep.subr.bf16.mxu0 0
        %3556 = vmatpush1.bf16.msra.mxu0 0
        %3557 = vmatprep.subr.bf16.mxu0 0
        %3558 = vmatpush1.bf16.msra.mxu0 0
        %3559 = vmatprep.subr.bf16.mxu0 0
        %3560 = vmatpush1.bf16.msra.mxu0 0
        %3561 = vmatprep.subr.bf16.mxu0 0
        %3562 = vmatpush1.bf16.msra.mxu0 0
        %3563 = vmatprep.subr.bf16.mxu0 0
        %3564 = vmatpush1.bf16.msra.mxu0 0
        %3565 = vmatprep.mubr.bf16.mxu0 0
        %3566 = vmatmul.mubr.bf16.gmra.mrb[0].mxu0 %v3519
        %v3567 = vpop.f32.mrb[0].mxu0
        %v3568 = vadd.f32 0.0, %v3567
        %v3569 = vpop.f32.mrb[0].mxu0
        %v3570 = vpop.f32.mrb[0].mxu0
        %v3571 = vadd.f32 0.0, %v3570
        %v3572 = vpop.f32.mrb[0].mxu0
        %3573 = vmatprep.mubr.bf16.mxu0 0
        %3574 = vmatmul.mubr.bf16.gmra.mrb[0].mxu0 %v3522
        %v3575 = vpop.f32.mrb[0].mxu0
        %v3576 = vadd.f32 0.0, %v3575
        %v3577 = vpop.f32.mrb[0].mxu0
        %v3578 = vpop.f32.mrb[0].mxu0
        %v3579 = vadd.f32 0.0, %v3578
        %v3580 = vpop.f32.mrb[0].mxu0
        %3581 = vmatprep.mubr.bf16.mxu0 0
        %3582 = vmatmul.mubr.bf16.gmra.mrb[0].mxu0 %v3525
        %v3583 = vpop.f32.mrb[0].mxu0
        %v3584 = vadd.f32 0.0, %v3583
        %v3585 = vpop.f32.mrb[0].mxu0
        %v3586 = vpop.f32.mrb[0].mxu0
        %v3587 = vadd.f32 0.0, %v3586
        %v3588 = vpop.f32.mrb[0].mxu0
        %3589 = vmatprep.mubr.bf16.mxu0 0
        %3590 = vmatmul.mubr.bf16.gmra.mrb[0].mxu0 %v3528
        %v3591 = vpop.f32.mrb[0].mxu0
        %v3592 = vadd.f32 0.0, %v3591
        %v3593 = vpop.f32.mrb[0].mxu0
        %v3594 = vpop.f32.mrb[0].mxu0
        %v3595 = vadd.f32 0.0, %v3594
        %v3596 = vpop.f32.mrb[0].mxu0
        %3597 = vdwg.mxu0
        %v3598 = vadd.f32 %v3508, %v3568
        %v3599 = vadd.f32 %v3509, %v3571
        %v3600 = vadd.f32 %v3510, %v3576
        %v3601 = vadd.f32 %v3511, %v3579
        %v3602 = vadd.f32 %v3512, %v3584
        %v3603 = vadd.f32 %v3513, %v3587
        %v3604 = vadd.f32 %v3514, %v3592
        %v3605 = vadd.f32 %v3515, %v3595
        %s3606 = scalar_lea.vmem %s4, 56
        %v3607 = vld [vmem:[%s3606] sm:$0xf]
        %v3609 = vsel %vm2364, %v2353, 0
        %v3612 = vsel %vm2364, %v2354, 0
        %v3615 = vsel %vm2364, %v2355, 0
        %v3618 = vsel %vm2364, %v2356, 0
        %v3621 = vsel %vm2377, %v3607, 0
        %3623 = vmatprep.subr.bf16.mxu0 0
        %3624 = vmatpush1.bf16.msra.mxu0 %v3621
        %3625 = vmatprep.subr.bf16.mxu0 0
        %3626 = vmatpush1.bf16.msra.mxu0 0
        %3627 = vmatprep.subr.bf16.mxu0 0
        %3628 = vmatpush1.bf16.msra.mxu0 0
        %3629 = vmatprep.subr.bf16.mxu0 0
        %3630 = vmatpush1.bf16.msra.mxu0 0
        %3631 = vmatprep.subr.bf16.mxu0 0
        %3632 = vmatpush1.bf16.msra.mxu0 0
        %3633 = vmatprep.subr.bf16.mxu0 0
        %3634 = vmatpush1.bf16.msra.mxu0 0
        %3635 = vmatprep.subr.bf16.mxu0 0
        %3636 = vmatpush1.bf16.msra.mxu0 0
        %3637 = vmatprep.subr.bf16.mxu0 0
        %3638 = vmatpush1.bf16.msra.mxu0 0
        %3639 = vmatprep.subr.bf16.mxu0 0
        %3640 = vmatpush1.bf16.msra.mxu0 0
        %3641 = vmatprep.subr.bf16.mxu0 0
        %3642 = vmatpush1.bf16.msra.mxu0 0
        %3643 = vmatprep.subr.bf16.mxu0 0
        %3644 = vmatpush1.bf16.msra.mxu0 0
        %3645 = vmatprep.subr.bf16.mxu0 0
        %3646 = vmatpush1.bf16.msra.mxu0 0
        %3647 = vmatprep.subr.bf16.mxu0 0
        %3648 = vmatpush1.bf16.msra.mxu0 0
        %3649 = vmatprep.subr.bf16.mxu0 0
        %3650 = vmatpush1.bf16.msra.mxu0 0
        %3651 = vmatprep.subr.bf16.mxu0 0
        %3652 = vmatpush1.bf16.msra.mxu0 0
        %3653 = vmatprep.subr.bf16.mxu0 0
        %3654 = vmatpush1.bf16.msra.mxu0 0
        %3655 = vmatprep.mubr.bf16.mxu0 0
        %3656 = vmatmul.mubr.bf16.gmra.mrb[0].mxu0 %v3609
        %v3657 = vpop.f32.mrb[0].mxu0
        %v3658 = vadd.f32 0.0, %v3657
        %v3659 = vpop.f32.mrb[0].mxu0
        %v3660 = vpop.f32.mrb[0].mxu0
        %v3661 = vadd.f32 0.0, %v3660
        %v3662 = vpop.f32.mrb[0].mxu0
        %3663 = vmatprep.mubr.bf16.mxu0 0
        %3664 = vmatmul.mubr.bf16.gmra.mrb[0].mxu0 %v3612
        %v3665 = vpop.f32.mrb[0].mxu0
        %v3666 = vadd.f32 0.0, %v3665
        %v3667 = vpop.f32.mrb[0].mxu0
        %v3668 = vpop.f32.mrb[0].mxu0
        %v3669 = vadd.f32 0.0, %v3668
        %v3670 = vpop.f32.mrb[0].mxu0
        %3671 = vmatprep.mubr.bf16.mxu0 0
        %3672 = vmatmul.mubr.bf16.gmra.mrb[0].mxu0 %v3615
        %v3673 = vpop.f32.mrb[0].mxu0
        %v3674 = vadd.f32 0.0, %v3673
        %v3675 = vpop.f32.mrb[0].mxu0
        %v3676 = vpop.f32.mrb[0].mxu0
        %v3677 = vadd.f32 0.0, %v3676
        %v3678 = vpop.f32.mrb[0].mxu0
        %3679 = vmatprep.mubr.bf16.mxu0 0
        %3680 = vmatmul.mubr.bf16.gmra.mrb[0].mxu0 %v3618
        %v3681 = vpop.f32.mrb[0].mxu0
        %v3682 = vadd.f32 0.0, %v3681
        %v3683 = vpop.f32.mrb[0].mxu0
        %v3684 = vpop.f32.mrb[0].mxu0
        %v3685 = vadd.f32 0.0, %v3684
        %v3686 = vpop.f32.mrb[0].mxu0
        %3687 = vdwg.mxu0
        %v3688 = vadd.f32 %v3598, %v3658
        %v3689 = vadd.f32 %v3599, %v3661
        %v3690 = vadd.f32 %v3600, %v3666
        %v3691 = vadd.f32 %v3601, %v3669
        %v3692 = vadd.f32 %v3602, %v3674
        %v3693 = vadd.f32 %v3603, %v3677
        %v3694 = vadd.f32 %v3604, %v3682
        %v3695 = vadd.f32 %v3605, %v3685
        %s3696 = scalar_lea.vmem %s4, 60
        %v3697 = vld [vmem:[%s3696] sm:$0xf]
        %v3699 = vsel %vm2364, %v2357, 0
        %v3702 = vsel %vm2364, %v2358, 0
        %v3705 = vsel %vm2364, %v2359, 0
        %v3708 = vsel %vm2364, %v2360, 0
        %v3711 = vsel %vm2377, %v3697, 0
        %3713 = vmatprep.subr.bf16.mxu0 0
        %3714 = vmatpush1.bf16.msra.mxu0 %v3711
        %3715 = vmatprep.subr.bf16.mxu0 0
        %3716 = vmatpush1.bf16.msra.mxu0 0
        %3717 = vmatprep.subr.bf16.mxu0 0
        %3718 = vmatpush1.bf16.msra.mxu0 0
        %3719 = vmatprep.subr.bf16.mxu0 0
        %3720 = vmatpush1.bf16.msra.mxu0 0
        %3721 = vmatprep.subr.bf16.mxu0 0
        %3722 = vmatpush1.bf16.msra.mxu0 0
        %3723 = vmatprep.subr.bf16.mxu0 0
        %3724 = vmatpush1.bf16.msra.mxu0 0
        %3725 = vmatprep.subr.bf16.mxu0 0
        %3726 = vmatpush1.bf16.msra.mxu0 0
        %3727 = vmatprep.subr.bf16.mxu0 0
        %3728 = vmatpush1.bf16.msra.mxu0 0
        %3729 = vmatprep.subr.bf16.mxu0 0
        %3730 = vmatpush1.bf16.msra.mxu0 0
        %3731 = vmatprep.subr.bf16.mxu0 0
        %3732 = vmatpush1.bf16.msra.mxu0 0
        %3733 = vmatprep.subr.bf16.mxu0 0
        %3734 = vmatpush1.bf16.msra.mxu0 0
        %3735 = vmatprep.subr.bf16.mxu0 0
        %3736 = vmatpush1.bf16.msra.mxu0 0
        %3737 = vmatprep.subr.bf16.mxu0 0
        %3738 = vmatpush1.bf16.msra.mxu0 0
        %3739 = vmatprep.subr.bf16.mxu0 0
        %3740 = vmatpush1.bf16.msra.mxu0 0
        %3741 = vmatprep.subr.bf16.mxu0 0
        %3742 = vmatpush1.bf16.msra.mxu0 0
        %3743 = vmatprep.subr.bf16.mxu0 0
        %3744 = vmatpush1.bf16.msra.mxu0 0
        %3745 = vmatprep.mubr.bf16.mxu0 0
        %3746 = vmatmul.mubr.bf16.gmra.mrb[0].mxu0 %v3699
        %v3747 = vpop.f32.mrb[0].mxu0
        %v3748 = vadd.f32 0.0, %v3747
        %v3749 = vpop.f32.mrb[0].mxu0
        %v3750 = vpop.f32.mrb[0].mxu0
        %v3751 = vadd.f32 0.0, %v3750
        %v3752 = vpop.f32.mrb[0].mxu0
        %3753 = vmatprep.mubr.bf16.mxu0 0
        %3754 = vmatmul.mubr.bf16.gmra.mrb[0].mxu0 %v3702
        %v3755 = vpop.f32.mrb[0].mxu0
        %v3756 = vadd.f32 0.0, %v3755
        %v3757 = vpop.f32.mrb[0].mxu0
        %v3758 = vpop.f32.mrb[0].mxu0
        %v3759 = vadd.f32 0.0, %v3758
        %v3760 = vpop.f32.mrb[0].mxu0
        %3761 = vmatprep.mubr.bf16.mxu0 0
        %3762 = vmatmul.mubr.bf16.gmra.mrb[0].mxu0 %v3705
        %v3763 = vpop.f32.mrb[0].mxu0
        %v3764 = vadd.f32 0.0, %v3763
        %v3765 = vpop.f32.mrb[0].mxu0
        %v3766 = vpop.f32.mrb[0].mxu0
        %v3767 = vadd.f32 0.0, %v3766
        %v3768 = vpop.f32.mrb[0].mxu0
        %3769 = vmatprep.mubr.bf16.mxu0 0
        %3770 = vmatmul.mubr.bf16.gmra.mrb[0].mxu0 %v3708
        %v3771 = vpop.f32.mrb[0].mxu0
        %v3772 = vadd.f32 0.0, %v3771
        %v3773 = vpop.f32.mrb[0].mxu0
        %v3774 = vpop.f32.mrb[0].mxu0
        %v3775 = vadd.f32 0.0, %v3774
        %v3776 = vpop.f32.mrb[0].mxu0
        %3777 = vdwg.mxu0
        %v3778 = vadd.f32 %v3688, %v3748
        %v3779 = vadd.f32 %v3689, %v3751
        %v3780 = vadd.f32 %v3690, %v3756
        %v3781 = vadd.f32 %v3691, %v3759
        %v3782 = vadd.f32 %v3692, %v3764
        %v3783 = vadd.f32 %v3693, %v3767
        %v3784 = vadd.f32 %v3694, %v3772
        %v3785 = vadd.f32 %v3695, %v3775
        %v3786 = vld [vmem:[%s5] sm:$0x1]
        %v3788 = vlaneseq
        %v3789 = vshrl.u32 %v3788, 7
        %v3790 = vsub.s32 0, %v3789
        %v3791 = vrot.slane %v3786, %v3790
        %v3793 = vadd.f32 %v3778, %v3791
        %v3794 = vadd.f32 %v3779, %v3791
        %v3795 = vadd.f32 %v3780, %v3791
        %v3796 = vadd.f32 %v3781, %v3791
        %v3797 = vadd.f32 %v3782, %v3791
        %v3798 = vadd.f32 %v3783, %v3791
        %v3799 = vadd.f32 %v3784, %v3791
        %v3800 = vadd.f32 %v3785, %v3791
        %vm3801 = vcmp.ge.f32.partialorder %v3793, 0.0
        %vm3802 = vcmp.ge.f32.partialorder %v3794, 0.0
        %vm3803 = vcmp.ge.f32.partialorder %v3795, 0.0
        %vm3804 = vcmp.ge.f32.partialorder %v3796, 0.0
        %vm3805 = vcmp.ge.f32.partialorder %v3797, 0.0
        %vm3806 = vcmp.ge.f32.partialorder %v3798, 0.0
        %vm3807 = vcmp.ge.f32.partialorder %v3799, 0.0
        %vm3808 = vcmp.ge.f32.partialorder %v3800, 0.0
        %v3809 = vmul.f32 %v3793, 0.001
        %v3810 = vmul.f32 %v3794, 0.001
        %v3811 = vmul.f32 %v3795, 0.001
        %v3812 = vmul.f32 %v3796, 0.001
        %v3813 = vmul.f32 %v3797, 0.001
        %v3814 = vmul.f32 %v3798, 0.001
        %v3815 = vmul.f32 %v3799, 0.001
        %v3816 = vmul.f32 %v3800, 0.001
        %v3817 = vsel %vm3801, %v3793, %v3809
        %v3818 = vsel %vm3802, %v3794, %v3810
        %v3819 = vsel %vm3803, %v3795, %v3811
        %v3820 = vsel %vm3804, %v3796, %v3812
        %v3821 = vsel %vm3805, %v3797, %v3813
        %v3822 = vsel %vm3806, %v3798, %v3814
        %v3823 = vsel %vm3807, %v3799, %v3815
        %v3824 = vsel %vm3808, %v3800, %v3816
        %v3825 = vpack.c.bf16 %v3818, %v3817
        %v3826 = vpack.c.bf16 %v3820, %v3819
        %v3827 = vpack.c.bf16 %v3822, %v3821
        %v3828 = vpack.c.bf16 %v3824, %v3823
        %v3829 = vld [vmem:[%s6] sm:$0xf]
        %v3830 = vld [vmem:[%s6 + $0x4] sm:$0xf]
        %v3831 = vld [vmem:[%s6 + $0x8] sm:$0xf]
        %v3832 = vld [vmem:[%s6 + $0xc] sm:$0xf]
        %v3833 = vld [vmem:[%s6 + $0x10] sm:$0xf]
        %v3834 = vld [vmem:[%s6 + $0x14] sm:$0xf]
        %v3835 = vld [vmem:[%s6 + $0x18] sm:$0xf]
        %v3836 = vld [vmem:[%s6 + $0x1c] sm:$0xf]
        %v3837 = vld [vmem:[%s6 + $0x20] sm:$0xf]
        %v3838 = vld [vmem:[%s6 + $0x24] sm:$0xf]
        %v3839 = vld [vmem:[%s6 + $0x28] sm:$0xf]
        %v3840 = vld [vmem:[%s6 + $0x2c] sm:$0xf]
        %v3841 = vld [vmem:[%s6 + $0x30] sm:$0xf]
        %v3842 = vld [vmem:[%s6 + $0x34] sm:$0xf]
        %v3843 = vld [vmem:[%s6 + $0x38] sm:$0xf]
        %v3844 = vld [vmem:[%s6 + $0x3c] sm:$0xf]
        %v3845 = vld [vmem:[%s6 + $0x40] sm:$0xf]
        %v3846 = vld [vmem:[%s6 + $0x44] sm:$0xf]
        %v3847 = vld [vmem:[%s6 + $0x48] sm:$0xf]
        %v3848 = vld [vmem:[%s6 + $0x4c] sm:$0xf]
        %v3849 = vld [vmem:[%s6 + $0x50] sm:$0xf]
        %v3850 = vld [vmem:[%s6 + $0x54] sm:$0xf]
        %v3851 = vld [vmem:[%s6 + $0x58] sm:$0xf]
        %v3852 = vld [vmem:[%s6 + $0x5c] sm:$0xf]
        %v3853 = vld [vmem:[%s6 + $0x60] sm:$0xf]
        %v3854 = vld [vmem:[%s6 + $0x64] sm:$0xf]
        %v3855 = vld [vmem:[%s6 + $0x68] sm:$0xf]
        %v3856 = vld [vmem:[%s6 + $0x6c] sm:$0xf]
        %v3857 = vld [vmem:[%s6 + $0x70] sm:$0xf]
        %v3858 = vld [vmem:[%s6 + $0x74] sm:$0xf]
        %v3859 = vld [vmem:[%s6 + $0x78] sm:$0xf]
        %v3860 = vld [vmem:[%s6 + $0x7c] sm:$0xf]
        %v3893 = vunpack.c.l.b16 %v3829
        %v3894 = vunpack.c.l.b16 %v3830
        %v3895 = vunpack.c.l.b16 %v3831
        %v3896 = vunpack.c.l.b16 %v3832
        %v3897 = vunpack.c.l.b16 %v3833
        %v3898 = vunpack.c.l.b16 %v3834
        %v3899 = vunpack.c.l.b16 %v3835
        %v3900 = vunpack.c.l.b16 %v3836
        %v3901 = vunpack.c.l.b16 %v3837
        %v3902 = vunpack.c.l.b16 %v3838
        %v3903 = vunpack.c.l.b16 %v3839
        %v3904 = vunpack.c.l.b16 %v3840
        %v3905 = vunpack.c.l.b16 %v3841
        %v3906 = vunpack.c.l.b16 %v3842
        %v3907 = vunpack.c.l.b16 %v3843
        %v3908 = vunpack.c.l.b16 %v3844
        %v3909 = vunpack.c.l.b16 %v3845
        %v3910 = vunpack.c.l.b16 %v3846
        %v3911 = vunpack.c.l.b16 %v3847
        %v3912 = vunpack.c.l.b16 %v3848
        %v3913 = vunpack.c.l.b16 %v3849
        %v3914 = vunpack.c.l.b16 %v3850
        %v3915 = vunpack.c.l.b16 %v3851
        %v3916 = vunpack.c.l.b16 %v3852
        %v3917 = vunpack.c.l.b16 %v3853
        %v3918 = vunpack.c.l.b16 %v3854
        %v3919 = vunpack.c.l.b16 %v3855
        %v3920 = vunpack.c.l.b16 %v3856
        %v3921 = vunpack.c.l.b16 %v3857
        %v3922 = vunpack.c.l.b16 %v3858
        %v3923 = vunpack.c.l.b16 %v3859
        %v3924 = vunpack.c.l.b16 %v3860
        %v3925 = vpack.c.b16 %v3894, %v3893
        %v3926 = vpack.c.b16 %v3896, %v3895
        %v3927 = vpack.c.b16 %v3898, %v3897
        %v3928 = vpack.c.b16 %v3900, %v3899
        %v3929 = vpack.c.b16 %v3902, %v3901
        %v3930 = vpack.c.b16 %v3904, %v3903
        %v3931 = vpack.c.b16 %v3906, %v3905
        %v3932 = vpack.c.b16 %v3908, %v3907
        %v3933 = vpack.c.b16 %v3910, %v3909
        %v3934 = vpack.c.b16 %v3912, %v3911
        %v3935 = vpack.c.b16 %v3914, %v3913
        %v3936 = vpack.c.b16 %v3916, %v3915
        %v3937 = vpack.c.b16 %v3918, %v3917
        %v3938 = vpack.c.b16 %v3920, %v3919
        %v3939 = vpack.c.b16 %v3922, %v3921
        %v3940 = vpack.c.b16 %v3924, %v3923
        %vm3941 = vcmask 523264
        %v3943 = vsel %vm3941, %v3925, 0
        %v3946 = vsel %vm3941, %v3926, 0
        %v3949 = vsel %vm3941, %v3927, 0
        %v3952 = vsel %vm3941, %v3928, 0
        %v3955 = vsel %vm3941, %v3929, 0
        %v3958 = vsel %vm3941, %v3930, 0
        %v3961 = vsel %vm3941, %v3931, 0
        %v3964 = vsel %vm3941, %v3932, 0
        %v3967 = vsel %vm3941, %v3933, 0
        %v3970 = vsel %vm3941, %v3934, 0
        %v3973 = vsel %vm3941, %v3935, 0
        %v3976 = vsel %vm3941, %v3936, 0
        %v3979 = vsel %vm3941, %v3937, 0
        %v3982 = vsel %vm3941, %v3938, 0
        %v3985 = vsel %vm3941, %v3939, 0
        %v3988 = vsel %vm3941, %v3940, 0
        %3990 = vmatprep.subr.bf16.mxu0 0
        %3991 = vmatpush1.bf16.msra.mxu0 %v3825
        %3992 = vmatprep.subr.bf16.mxu0 0
        %3993 = vmatpush1.bf16.msra.mxu0 %v3826
        %3994 = vmatprep.subr.bf16.mxu0 0
        %3995 = vmatpush1.bf16.msra.mxu0 %v3827
        %3996 = vmatprep.subr.bf16.mxu0 0
        %3997 = vmatpush1.bf16.msra.mxu0 %v3828
        %3998 = vmatprep.subr.bf16.mxu0 0
        %3999 = vmatpush1.bf16.msra.mxu0 0
        %4000 = vmatprep.subr.bf16.mxu0 0
        %4001 = vmatpush1.bf16.msra.mxu0 0
        %4002 = vmatprep.subr.bf16.mxu0 0
        %4003 = vmatpush1.bf16.msra.mxu0 0
        %4004 = vmatprep.subr.bf16.mxu0 0
        %4005 = vmatpush1.bf16.msra.mxu0 0
        %4006 = vmatprep.subr.bf16.mxu0 0
        %4007 = vmatpush1.bf16.msra.mxu0 0
        %4008 = vmatprep.subr.bf16.mxu0 0
        %4009 = vmatpush1.bf16.msra.mxu0 0
        %4010 = vmatprep.subr.bf16.mxu0 0
        %4011 = vmatpush1.bf16.msra.mxu0 0
        %4012 = vmatprep.subr.bf16.mxu0 0
        %4013 = vmatpush1.bf16.msra.mxu0 0
        %4014 = vmatprep.subr.bf16.mxu0 0
        %4015 = vmatpush1.bf16.msra.mxu0 0
        %4016 = vmatprep.subr.bf16.mxu0 0
        %4017 = vmatpush1.bf16.msra.mxu0 0
        %4018 = vmatprep.subr.bf16.mxu0 0
        %4019 = vmatpush1.bf16.msra.mxu0 0
        %4020 = vmatprep.subr.bf16.mxu0 0
        %4021 = vmatpush1.bf16.msra.mxu0 0
        %4022 = vmatprep.mubr.bf16.mxu0 0
        %4023 = vmatmul.mubr.bf16.gmra.mrb[0].mxu0 %v3943
        %v4024 = vpop.f32.mrb[0].mxu0
        %v4025 = vadd.f32 0.0, %v4024
        %v4026 = vpop.f32.mrb[0].mxu0
        %v4027 = vpop.f32.mrb[0].mxu0
        %v4028 = vadd.f32 0.0, %v4027
        %v4029 = vpop.f32.mrb[0].mxu0
        %4030 = vmatprep.mubr.bf16.mxu0 0
        %4031 = vmatmul.mubr.bf16.gmra.mrb[0].mxu0 %v3946
        %v4032 = vpop.f32.mrb[0].mxu0
        %v4033 = vadd.f32 0.0, %v4032
        %v4034 = vpop.f32.mrb[0].mxu0
        %v4035 = vpop.f32.mrb[0].mxu0
        %v4036 = vadd.f32 0.0, %v4035
        %v4037 = vpop.f32.mrb[0].mxu0
        %4038 = vmatprep.mubr.bf16.mxu0 0
        %4039 = vmatmul.mubr.bf16.gmra.mrb[0].mxu0 %v3949
        %v4040 = vpop.f32.mrb[0].mxu0
        %v4041 = vadd.f32 0.0, %v4040
        %v4042 = vpop.f32.mrb[0].mxu0
        %v4043 = vpop.f32.mrb[0].mxu0
        %v4044 = vadd.f32 0.0, %v4043
        %v4045 = vpop.f32.mrb[0].mxu0
        %4046 = vmatprep.mubr.bf16.mxu0 0
        %4047 = vmatmul.mubr.bf16.gmra.mrb[0].mxu0 %v3952
        %v4048 = vpop.f32.mrb[0].mxu0
        %v4049 = vadd.f32 0.0, %v4048
        %v4050 = vpop.f32.mrb[0].mxu0
        %v4051 = vpop.f32.mrb[0].mxu0
        %v4052 = vadd.f32 0.0, %v4051
        %v4053 = vpop.f32.mrb[0].mxu0
        %4054 = vmatprep.mubr.bf16.mxu0 0
        %4055 = vmatmul.mubr.bf16.gmra.mrb[0].mxu0 %v3955
        %v4056 = vpop.f32.mrb[0].mxu0
        %v4057 = vadd.f32 0.0, %v4056
        %v4058 = vpop.f32.mrb[0].mxu0
        %v4059 = vpop.f32.mrb[0].mxu0
        %v4060 = vadd.f32 0.0, %v4059
        %v4061 = vpop.f32.mrb[0].mxu0
        %4062 = vmatprep.mubr.bf16.mxu0 0
        %4063 = vmatmul.mubr.bf16.gmra.mrb[0].mxu0 %v3958
        %v4064 = vpop.f32.mrb[0].mxu0
        %v4065 = vadd.f32 0.0, %v4064
        %v4066 = vpop.f32.mrb[0].mxu0
        %v4067 = vpop.f32.mrb[0].mxu0
        %v4068 = vadd.f32 0.0, %v4067
        %v4069 = vpop.f32.mrb[0].mxu0
        %4070 = vmatprep.mubr.bf16.mxu0 0
        %4071 = vmatmul.mubr.bf16.gmra.mrb[0].mxu0 %v3961
        %v4072 = vpop.f32.mrb[0].mxu0
        %v4073 = vadd.f32 0.0, %v4072
        %v4074 = vpop.f32.mrb[0].mxu0
        %v4075 = vpop.f32.mrb[0].mxu0
        %v4076 = vadd.f32 0.0, %v4075
        %v4077 = vpop.f32.mrb[0].mxu0
        %4078 = vmatprep.mubr.bf16.mxu0 0
        %4079 = vmatmul.mubr.bf16.gmra.mrb[0].mxu0 %v3964
        %v4080 = vpop.f32.mrb[0].mxu0
        %v4081 = vadd.f32 0.0, %v4080
        %v4082 = vpop.f32.mrb[0].mxu0
        %v4083 = vpop.f32.mrb[0].mxu0
        %v4084 = vadd.f32 0.0, %v4083
        %v4085 = vpop.f32.mrb[0].mxu0
        %4086 = vmatprep.mubr.bf16.mxu0 0
        %4087 = vmatmul.mubr.bf16.gmra.mrb[0].mxu0 %v3967
        %v4088 = vpop.f32.mrb[0].mxu0
        %v4089 = vadd.f32 0.0, %v4088
        %v4090 = vpop.f32.mrb[0].mxu0
        %v4091 = vpop.f32.mrb[0].mxu0
        %v4092 = vadd.f32 0.0, %v4091
        %v4093 = vpop.f32.mrb[0].mxu0
        %4094 = vmatprep.mubr.bf16.mxu0 0
        %4095 = vmatmul.mubr.bf16.gmra.mrb[0].mxu0 %v3970
        %v4096 = vpop.f32.mrb[0].mxu0
        %v4097 = vadd.f32 0.0, %v4096
        %v4098 = vpop.f32.mrb[0].mxu0
        %v4099 = vpop.f32.mrb[0].mxu0
        %v4100 = vadd.f32 0.0, %v4099
        %v4101 = vpop.f32.mrb[0].mxu0
        %4102 = vmatprep.mubr.bf16.mxu0 0
        %4103 = vmatmul.mubr.bf16.gmra.mrb[0].mxu0 %v3973
        %v4104 = vpop.f32.mrb[0].mxu0
        %v4105 = vadd.f32 0.0, %v4104
        %v4106 = vpop.f32.mrb[0].mxu0
        %v4107 = vpop.f32.mrb[0].mxu0
        %v4108 = vadd.f32 0.0, %v4107
        %v4109 = vpop.f32.mrb[0].mxu0
        %4110 = vmatprep.mubr.bf16.mxu0 0
        %4111 = vmatmul.mubr.bf16.gmra.mrb[0].mxu0 %v3976
        %v4112 = vpop.f32.mrb[0].mxu0
        %v4113 = vadd.f32 0.0, %v4112
        %v4114 = vpop.f32.mrb[0].mxu0
        %v4115 = vpop.f32.mrb[0].mxu0
        %v4116 = vadd.f32 0.0, %v4115
        %v4117 = vpop.f32.mrb[0].mxu0
        %4118 = vmatprep.mubr.bf16.mxu0 0
        %4119 = vmatmul.mubr.bf16.gmra.mrb[0].mxu0 %v3979
        %v4120 = vpop.f32.mrb[0].mxu0
        %v4121 = vadd.f32 0.0, %v4120
        %v4122 = vpop.f32.mrb[0].mxu0
        %v4123 = vpop.f32.mrb[0].mxu0
        %v4124 = vadd.f32 0.0, %v4123
        %v4125 = vpop.f32.mrb[0].mxu0
        %4126 = vmatprep.mubr.bf16.mxu0 0
        %4127 = vmatmul.mubr.bf16.gmra.mrb[0].mxu0 %v3982
        %v4128 = vpop.f32.mrb[0].mxu0
        %v4129 = vadd.f32 0.0, %v4128
        %v4130 = vpop.f32.mrb[0].mxu0
        %v4131 = vpop.f32.mrb[0].mxu0
        %v4132 = vadd.f32 0.0, %v4131
        %v4133 = vpop.f32.mrb[0].mxu0
        %4134 = vmatprep.mubr.bf16.mxu0 0
        %4135 = vmatmul.mubr.bf16.gmra.mrb[0].mxu0 %v3985
        %v4136 = vpop.f32.mrb[0].mxu0
        %v4137 = vadd.f32 0.0, %v4136
        %v4138 = vpop.f32.mrb[0].mxu0
        %v4139 = vpop.f32.mrb[0].mxu0
        %v4140 = vadd.f32 0.0, %v4139
        %v4141 = vpop.f32.mrb[0].mxu0
        %4142 = vmatprep.mubr.bf16.mxu0 0
        %4143 = vmatmul.mubr.bf16.gmra.mrb[0].mxu0 %v3988
        %v4144 = vpop.f32.mrb[0].mxu0
        %v4145 = vadd.f32 0.0, %v4144
        %v4146 = vpop.f32.mrb[0].mxu0
        %v4147 = vpop.f32.mrb[0].mxu0
        %v4148 = vadd.f32 0.0, %v4147
        %v4149 = vpop.f32.mrb[0].mxu0
        %4150 = vdwg.mxu0
        %v4151 = vpack.c.bf16 %v4028, %v4025
        %v4152 = vpack.c.bf16 %v4036, %v4033
        %v4153 = vpack.c.bf16 %v4044, %v4041
        %v4154 = vpack.c.bf16 %v4052, %v4049
        %v4155 = vpack.c.bf16 %v4060, %v4057
        %v4156 = vpack.c.bf16 %v4068, %v4065
        %v4157 = vpack.c.bf16 %v4076, %v4073
        %v4158 = vpack.c.bf16 %v4084, %v4081
        %v4159 = vpack.c.bf16 %v4092, %v4089
        %v4160 = vpack.c.bf16 %v4100, %v4097
        %v4161 = vpack.c.bf16 %v4108, %v4105
        %v4162 = vpack.c.bf16 %v4116, %v4113
        %v4163 = vpack.c.bf16 %v4124, %v4121
        %v4164 = vpack.c.bf16 %v4132, %v4129
        %v4165 = vpack.c.bf16 %v4140, %v4137
        %v4166 = vpack.c.bf16 %v4148, %v4145
        %v4167 = vld [vmem:[%s7] sm:$0xf]
        %v4168 = vld [vmem:[%s7 + $0x4] sm:$0xf]
        %s4169 = scalar_lea.vmem %s7, 8
        %v4170 = vld [vmem:[%s4169] sm:$0xf]
        %v4171 = vld [vmem:[%s4169 + $0x4] sm:$0xf]
        %v4174 = vunpack.c.l.b16 %v4170
        %v4175 = vunpack.c.l.b16 %v4171
        %v4176 = vpack.c.b16 %v4175, %v4174
        %v4179 = vsel %vm662, %v4152, 0
        %4181 = vmatprep.subr.bf16.mxu0 0
        %4182 = vmatpush1.bf16.msra.mxu0 %v4176
        %4183 = vmatprep.subr.bf16.mxu0 0
        %4184 = vmatpush1.bf16.msra.mxu0 0
        %4185 = vmatprep.subr.bf16.mxu0 0
        %4186 = vmatpush1.bf16.msra.mxu0 0
        %4187 = vmatprep.subr.bf16.mxu0 0
        %4188 = vmatpush1.bf16.msra.mxu0 0
        %4189 = vmatprep.subr.bf16.mxu0 0
        %4190 = vmatpush1.bf16.msra.mxu0 0
        %4191 = vmatprep.subr.bf16.mxu0 0
        %4192 = vmatpush1.bf16.msra.mxu0 0
        %4193 = vmatprep.subr.bf16.mxu0 0
        %4194 = vmatpush1.bf16.msra.mxu0 0
        %4195 = vmatprep.subr.bf16.mxu0 0
        %4196 = vmatpush1.bf16.msra.mxu0 0
        %4197 = vmatprep.subr.bf16.mxu0 0
        %4198 = vmatpush1.bf16.msra.mxu0 0
        %4199 = vmatprep.subr.bf16.mxu0 0
        %4200 = vmatpush1.bf16.msra.mxu0 0
        %4201 = vmatprep.subr.bf16.mxu0 0
        %4202 = vmatpush1.bf16.msra.mxu0 0
        %4203 = vmatprep.subr.bf16.mxu0 0
        %4204 = vmatpush1.bf16.msra.mxu0 0
        %4205 = vmatprep.subr.bf16.mxu0 0
        %4206 = vmatpush1.bf16.msra.mxu0 0
        %4207 = vmatprep.subr.bf16.mxu0 0
        %4208 = vmatpush1.bf16.msra.mxu0 0
        %4209 = vmatprep.subr.bf16.mxu0 0
        %4210 = vmatpush1.bf16.msra.mxu0 0
        %4211 = vmatprep.subr.bf16.mxu0 0
        %4212 = vmatpush1.bf16.msra.mxu0 0
        %4213 = vmatprep.mubr.bf16.mxu0 0
        %4214 = vmatmul.mubr.bf16.gmra.mrb[0].mxu0 %v4179
        %v4215 = vpop.f32.mrb[0].mxu0
        %v4216 = vadd.f32 0.0, %v4215
        %v4217 = vpop.f32.mrb[0].mxu0
        %v4218 = vpop.f32.mrb[0].mxu0
        %v4219 = vadd.f32 0.0, %v4218
        %v4220 = vpop.f32.mrb[0].mxu0
        %4221 = vdwg.mxu0
        %v4224 = vunpack.c.l.b16 %v4167
        %v4225 = vunpack.c.l.b16 %v4168
        %v4226 = vpack.c.b16 %v4225, %v4224
        %v4229 = vsel %vm662, %v4151, 0
        %4231 = vmatprep.subr.bf16.mxu0 0
        %4232 = vmatpush1.bf16.msra.mxu0 %v4226
        %4233 = vmatprep.subr.bf16.mxu0 0
        %4234 = vmatpush1.bf16.msra.mxu0 0
        %4235 = vmatprep.subr.bf16.mxu0 0
        %4236 = vmatpush1.bf16.msra.mxu0 0
        %4237 = vmatprep.subr.bf16.mxu0 0
        %4238 = vmatpush1.bf16.msra.mxu0 0
        %4239 = vmatprep.subr.bf16.mxu0 0
        %4240 = vmatpush1.bf16.msra.mxu0 0
        %4241 = vmatprep.subr.bf16.mxu0 0
        %4242 = vmatpush1.bf16.msra.mxu0 0
        %4243 = vmatprep.subr.bf16.mxu0 0
        %4244 = vmatpush1.bf16.msra.mxu0 0
        %4245 = vmatprep.subr.bf16.mxu0 0
        %4246 = vmatpush1.bf16.msra.mxu0 0
        %4247 = vmatprep.subr.bf16.mxu0 0
        %4248 = vmatpush1.bf16.msra.mxu0 0
        %4249 = vmatprep.subr.bf16.mxu0 0
        %4250 = vmatpush1.bf16.msra.mxu0 0
        %4251 = vmatprep.subr.bf16.mxu0 0
        %4252 = vmatpush1.bf16.msra.mxu0 0
        %4253 = vmatprep.subr.bf16.mxu0 0
        %4254 = vmatpush1.bf16.msra.mxu0 0
        %4255 = vmatprep.subr.bf16.mxu0 0
        %4256 = vmatpush1.bf16.msra.mxu0 0
        %4257 = vmatprep.subr.bf16.mxu0 0
        %4258 = vmatpush1.bf16.msra.mxu0 0
        %4259 = vmatprep.subr.bf16.mxu0 0
        %4260 = vmatpush1.bf16.msra.mxu0 0
        %4261 = vmatprep.subr.bf16.mxu0 0
        %4262 = vmatpush1.bf16.msra.mxu0 0
        %4263 = vmatprep.mubr.bf16.mxu0 0
        %4264 = vmatmul.mubr.bf16.gmra.mrb[0].mxu0 %v4229
        %v4265 = vpop.f32.mrb[0].mxu0
        %v4266 = vadd.f32 %v4216, %v4265
        %v4267 = vpop.f32.mrb[0].mxu0
        %v4268 = vpop.f32.mrb[0].mxu0
        %v4269 = vadd.f32 %v4219, %v4268
        %v4270 = vpop.f32.mrb[0].mxu0
        %4271 = vdwg.mxu0
        %s4272 = scalar_lea.vmem %s7, 16
        %v4273 = vld [vmem:[%s4272] sm:$0xf]
        %v4274 = vld [vmem:[%s4272 + $0x4] sm:$0xf]
        %v4277 = vunpack.c.l.b16 %v4273
        %v4278 = vunpack.c.l.b16 %v4274
        %v4279 = vpack.c.b16 %v4278, %v4277
        %v4282 = vsel %vm662, %v4153, 0
        %4284 = vmatprep.subr.bf16.mxu0 0
        %4285 = vmatpush1.bf16.msra.mxu0 %v4279
        %4286 = vmatprep.subr.bf16.mxu0 0
        %4287 = vmatpush1.bf16.msra.mxu0 0
        %4288 = vmatprep.subr.bf16.mxu0 0
        %4289 = vmatpush1.bf16.msra.mxu0 0
        %4290 = vmatprep.subr.bf16.mxu0 0
        %4291 = vmatpush1.bf16.msra.mxu0 0
        %4292 = vmatprep.subr.bf16.mxu0 0
        %4293 = vmatpush1.bf16.msra.mxu0 0
        %4294 = vmatprep.subr.bf16.mxu0 0
        %4295 = vmatpush1.bf16.msra.mxu0 0
        %4296 = vmatprep.subr.bf16.mxu0 0
        %4297 = vmatpush1.bf16.msra.mxu0 0
        %4298 = vmatprep.subr.bf16.mxu0 0
        %4299 = vmatpush1.bf16.msra.mxu0 0
        %4300 = vmatprep.subr.bf16.mxu0 0
        %4301 = vmatpush1.bf16.msra.mxu0 0
        %4302 = vmatprep.subr.bf16.mxu0 0
        %4303 = vmatpush1.bf16.msra.mxu0 0
        %4304 = vmatprep.subr.bf16.mxu0 0
        %4305 = vmatpush1.bf16.msra.mxu0 0
        %4306 = vmatprep.subr.bf16.mxu0 0
        %4307 = vmatpush1.bf16.msra.mxu0 0
        %4308 = vmatprep.subr.bf16.mxu0 0
        %4309 = vmatpush1.bf16.msra.mxu0 0
        %4310 = vmatprep.subr.bf16.mxu0 0
        %4311 = vmatpush1.bf16.msra.mxu0 0
        %4312 = vmatprep.subr.bf16.mxu0 0
        %4313 = vmatpush1.bf16.msra.mxu0 0
        %4314 = vmatprep.subr.bf16.mxu0 0
        %4315 = vmatpush1.bf16.msra.mxu0 0
        %4316 = vmatprep.mubr.bf16.mxu0 0
        %4317 = vmatmul.mubr.bf16.gmra.mrb[0].mxu0 %v4282
        %v4318 = vpop.f32.mrb[0].mxu0
        %v4319 = vadd.f32 0.0, %v4318
        %v4320 = vpop.f32.mrb[0].mxu0
        %v4321 = vpop.f32.mrb[0].mxu0
        %v4322 = vadd.f32 0.0, %v4321
        %v4323 = vpop.f32.mrb[0].mxu0
        %4324 = vdwg.mxu0
        %v4325 = vadd.f32 %v4266, %v4319
        %v4326 = vadd.f32 %v4269, %v4322
        %s4327 = scalar_lea.vmem %s7, 24
        %v4328 = vld [vmem:[%s4327] sm:$0xf]
        %v4329 = vld [vmem:[%s4327 + $0x4] sm:$0xf]
        %v4332 = vunpack.c.l.b16 %v4328
        %v4333 = vunpack.c.l.b16 %v4329
        %v4334 = vpack.c.b16 %v4333, %v4332
        %v4337 = vsel %vm662, %v4154, 0
        %4339 = vmatprep.subr.bf16.mxu0 0
        %4340 = vmatpush1.bf16.msra.mxu0 %v4334
        %4341 = vmatprep.subr.bf16.mxu0 0
        %4342 = vmatpush1.bf16.msra.mxu0 0
        %4343 = vmatprep.subr.bf16.mxu0 0
        %4344 = vmatpush1.bf16.msra.mxu0 0
        %4345 = vmatprep.subr.bf16.mxu0 0
        %4346 = vmatpush1.bf16.msra.mxu0 0
        %4347 = vmatprep.subr.bf16.mxu0 0
        %4348 = vmatpush1.bf16.msra.mxu0 0
        %4349 = vmatprep.subr.bf16.mxu0 0
        %4350 = vmatpush1.bf16.msra.mxu0 0
        %4351 = vmatprep.subr.bf16.mxu0 0
        %4352 = vmatpush1.bf16.msra.mxu0 0
        %4353 = vmatprep.subr.bf16.mxu0 0
        %4354 = vmatpush1.bf16.msra.mxu0 0
        %4355 = vmatprep.subr.bf16.mxu0 0
        %4356 = vmatpush1.bf16.msra.mxu0 0
        %4357 = vmatprep.subr.bf16.mxu0 0
        %4358 = vmatpush1.bf16.msra.mxu0 0
        %4359 = vmatprep.subr.bf16.mxu0 0
        %4360 = vmatpush1.bf16.msra.mxu0 0
        %4361 = vmatprep.subr.bf16.mxu0 0
        %4362 = vmatpush1.bf16.msra.mxu0 0
        %4363 = vmatprep.subr.bf16.mxu0 0
        %4364 = vmatpush1.bf16.msra.mxu0 0
        %4365 = vmatprep.subr.bf16.mxu0 0
        %4366 = vmatpush1.bf16.msra.mxu0 0
        %4367 = vmatprep.subr.bf16.mxu0 0
        %4368 = vmatpush1.bf16.msra.mxu0 0
        %4369 = vmatprep.subr.bf16.mxu0 0
        %4370 = vmatpush1.bf16.msra.mxu0 0
        %4371 = vmatprep.mubr.bf16.mxu0 0
        %4372 = vmatmul.mubr.bf16.gmra.mrb[0].mxu0 %v4337
        %v4373 = vpop.f32.mrb[0].mxu0
        %v4374 = vadd.f32 0.0, %v4373
        %v4375 = vpop.f32.mrb[0].mxu0
        %v4376 = vpop.f32.mrb[0].mxu0
        %v4377 = vadd.f32 0.0, %v4376
        %v4378 = vpop.f32.mrb[0].mxu0
        %4379 = vdwg.mxu0
        %v4380 = vadd.f32 %v4325, %v4374
        %v4381 = vadd.f32 %v4326, %v4377
        %s4382 = scalar_lea.vmem %s7, 32
        %v4383 = vld [vmem:[%s4382] sm:$0xf]
        %v4384 = vld [vmem:[%s4382 + $0x4] sm:$0xf]
        %v4387 = vunpack.c.l.b16 %v4383
        %v4388 = vunpack.c.l.b16 %v4384
        %v4389 = vpack.c.b16 %v4388, %v4387
        %v4392 = vsel %vm662, %v4155, 0
        %4394 = vmatprep.subr.bf16.mxu0 0
        %4395 = vmatpush1.bf16.msra.mxu0 %v4389
        %4396 = vmatprep.subr.bf16.mxu0 0
        %4397 = vmatpush1.bf16.msra.mxu0 0
        %4398 = vmatprep.subr.bf16.mxu0 0
        %4399 = vmatpush1.bf16.msra.mxu0 0
        %4400 = vmatprep.subr.bf16.mxu0 0
        %4401 = vmatpush1.bf16.msra.mxu0 0
        %4402 = vmatprep.subr.bf16.mxu0 0
        %4403 = vmatpush1.bf16.msra.mxu0 0
        %4404 = vmatprep.subr.bf16.mxu0 0
        %4405 = vmatpush1.bf16.msra.mxu0 0
        %4406 = vmatprep.subr.bf16.mxu0 0
        %4407 = vmatpush1.bf16.msra.mxu0 0
        %4408 = vmatprep.subr.bf16.mxu0 0
        %4409 = vmatpush1.bf16.msra.mxu0 0
        %4410 = vmatprep.subr.bf16.mxu0 0
        %4411 = vmatpush1.bf16.msra.mxu0 0
        %4412 = vmatprep.subr.bf16.mxu0 0
        %4413 = vmatpush1.bf16.msra.mxu0 0
        %4414 = vmatprep.subr.bf16.mxu0 0
        %4415 = vmatpush1.bf16.msra.mxu0 0
        %4416 = vmatprep.subr.bf16.mxu0 0
        %4417 = vmatpush1.bf16.msra.mxu0 0
        %4418 = vmatprep.subr.bf16.mxu0 0
        %4419 = vmatpush1.bf16.msra.mxu0 0
        %4420 = vmatprep.subr.bf16.mxu0 0
        %4421 = vmatpush1.bf16.msra.mxu0 0
        %4422 = vmatprep.subr.bf16.mxu0 0
        %4423 = vmatpush1.bf16.msra.mxu0 0
        %4424 = vmatprep.subr.bf16.mxu0 0
        %4425 = vmatpush1.bf16.msra.mxu0 0
        %4426 = vmatprep.mubr.bf16.mxu0 0
        %4427 = vmatmul.mubr.bf16.gmra.mrb[0].mxu0 %v4392
        %v4428 = vpop.f32.mrb[0].mxu0
        %v4429 = vadd.f32 0.0, %v4428
        %v4430 = vpop.f32.mrb[0].mxu0
        %v4431 = vpop.f32.mrb[0].mxu0
        %v4432 = vadd.f32 0.0, %v4431
        %v4433 = vpop.f32.mrb[0].mxu0
        %4434 = vdwg.mxu0
        %v4435 = vadd.f32 %v4380, %v4429
        %v4436 = vadd.f32 %v4381, %v4432
        %s4437 = scalar_lea.vmem %s7, 40
        %v4438 = vld [vmem:[%s4437] sm:$0xf]
        %v4439 = vld [vmem:[%s4437 + $0x4] sm:$0xf]
        %v4442 = vunpack.c.l.b16 %v4438
        %v4443 = vunpack.c.l.b16 %v4439
        %v4444 = vpack.c.b16 %v4443, %v4442
        %v4447 = vsel %vm662, %v4156, 0
        %4449 = vmatprep.subr.bf16.mxu0 0
        %4450 = vmatpush1.bf16.msra.mxu0 %v4444
        %4451 = vmatprep.subr.bf16.mxu0 0
        %4452 = vmatpush1.bf16.msra.mxu0 0
        %4453 = vmatprep.subr.bf16.mxu0 0
        %4454 = vmatpush1.bf16.msra.mxu0 0
        %4455 = vmatprep.subr.bf16.mxu0 0
        %4456 = vmatpush1.bf16.msra.mxu0 0
        %4457 = vmatprep.subr.bf16.mxu0 0
        %4458 = vmatpush1.bf16.msra.mxu0 0
        %4459 = vmatprep.subr.bf16.mxu0 0
        %4460 = vmatpush1.bf16.msra.mxu0 0
        %4461 = vmatprep.subr.bf16.mxu0 0
        %4462 = vmatpush1.bf16.msra.mxu0 0
        %4463 = vmatprep.subr.bf16.mxu0 0
        %4464 = vmatpush1.bf16.msra.mxu0 0
        %4465 = vmatprep.subr.bf16.mxu0 0
        %4466 = vmatpush1.bf16.msra.mxu0 0
        %4467 = vmatprep.subr.bf16.mxu0 0
        %4468 = vmatpush1.bf16.msra.mxu0 0
        %4469 = vmatprep.subr.bf16.mxu0 0
        %4470 = vmatpush1.bf16.msra.mxu0 0
        %4471 = vmatprep.subr.bf16.mxu0 0
        %4472 = vmatpush1.bf16.msra.mxu0 0
        %4473 = vmatprep.subr.bf16.mxu0 0
        %4474 = vmatpush1.bf16.msra.mxu0 0
        %4475 = vmatprep.subr.bf16.mxu0 0
        %4476 = vmatpush1.bf16.msra.mxu0 0
        %4477 = vmatprep.subr.bf16.mxu0 0
        %4478 = vmatpush1.bf16.msra.mxu0 0
        %4479 = vmatprep.subr.bf16.mxu0 0
        %4480 = vmatpush1.bf16.msra.mxu0 0
        %4481 = vmatprep.mubr.bf16.mxu0 0
        %4482 = vmatmul.mubr.bf16.gmra.mrb[0].mxu0 %v4447
        %v4483 = vpop.f32.mrb[0].mxu0
        %v4484 = vadd.f32 0.0, %v4483
        %v4485 = vpop.f32.mrb[0].mxu0
        %v4486 = vpop.f32.mrb[0].mxu0
        %v4487 = vadd.f32 0.0, %v4486
        %v4488 = vpop.f32.mrb[0].mxu0
        %4489 = vdwg.mxu0
        %v4490 = vadd.f32 %v4435, %v4484
        %v4491 = vadd.f32 %v4436, %v4487
        %s4492 = scalar_lea.vmem %s7, 48
        %v4493 = vld [vmem:[%s4492] sm:$0xf]
        %v4494 = vld [vmem:[%s4492 + $0x4] sm:$0xf]
        %v4497 = vunpack.c.l.b16 %v4493
        %v4498 = vunpack.c.l.b16 %v4494
        %v4499 = vpack.c.b16 %v4498, %v4497
        %v4502 = vsel %vm662, %v4157, 0
        %4504 = vmatprep.subr.bf16.mxu0 0
        %4505 = vmatpush1.bf16.msra.mxu0 %v4499
        %4506 = vmatprep.subr.bf16.mxu0 0
        %4507 = vmatpush1.bf16.msra.mxu0 0
        %4508 = vmatprep.subr.bf16.mxu0 0
        %4509 = vmatpush1.bf16.msra.mxu0 0
        %4510 = vmatprep.subr.bf16.mxu0 0
        %4511 = vmatpush1.bf16.msra.mxu0 0
        %4512 = vmatprep.subr.bf16.mxu0 0
        %4513 = vmatpush1.bf16.msra.mxu0 0
        %4514 = vmatprep.subr.bf16.mxu0 0
        %4515 = vmatpush1.bf16.msra.mxu0 0
        %4516 = vmatprep.subr.bf16.mxu0 0
        %4517 = vmatpush1.bf16.msra.mxu0 0
        %4518 = vmatprep.subr.bf16.mxu0 0
        %4519 = vmatpush1.bf16.msra.mxu0 0
        %4520 = vmatprep.subr.bf16.mxu0 0
        %4521 = vmatpush1.bf16.msra.mxu0 0
        %4522 = vmatprep.subr.bf16.mxu0 0
        %4523 = vmatpush1.bf16.msra.mxu0 0
        %4524 = vmatprep.subr.bf16.mxu0 0
        %4525 = vmatpush1.bf16.msra.mxu0 0
        %4526 = vmatprep.subr.bf16.mxu0 0
        %4527 = vmatpush1.bf16.msra.mxu0 0
        %4528 = vmatprep.subr.bf16.mxu0 0
        %4529 = vmatpush1.bf16.msra.mxu0 0
        %4530 = vmatprep.subr.bf16.mxu0 0
        %4531 = vmatpush1.bf16.msra.mxu0 0
        %4532 = vmatprep.subr.bf16.mxu0 0
        %4533 = vmatpush1.bf16.msra.mxu0 0
        %4534 = vmatprep.subr.bf16.mxu0 0
        %4535 = vmatpush1.bf16.msra.mxu0 0
        %4536 = vmatprep.mubr.bf16.mxu0 0
        %4537 = vmatmul.mubr.bf16.gmra.mrb[0].mxu0 %v4502
        %v4538 = vpop.f32.mrb[0].mxu0
        %v4539 = vadd.f32 0.0, %v4538
        %v4540 = vpop.f32.mrb[0].mxu0
        %v4541 = vpop.f32.mrb[0].mxu0
        %v4542 = vadd.f32 0.0, %v4541
        %v4543 = vpop.f32.mrb[0].mxu0
        %4544 = vdwg.mxu0
        %v4545 = vadd.f32 %v4490, %v4539
        %v4546 = vadd.f32 %v4491, %v4542
        %s4547 = scalar_lea.vmem %s7, 56
        %v4548 = vld [vmem:[%s4547] sm:$0xf]
        %v4549 = vld [vmem:[%s4547 + $0x4] sm:$0xf]
        %v4552 = vunpack.c.l.b16 %v4548
        %v4553 = vunpack.c.l.b16 %v4549
        %v4554 = vpack.c.b16 %v4553, %v4552
        %v4557 = vsel %vm662, %v4158, 0
        %4559 = vmatprep.subr.bf16.mxu0 0
        %4560 = vmatpush1.bf16.msra.mxu0 %v4554
        %4561 = vmatprep.subr.bf16.mxu0 0
        %4562 = vmatpush1.bf16.msra.mxu0 0
        %4563 = vmatprep.subr.bf16.mxu0 0
        %4564 = vmatpush1.bf16.msra.mxu0 0
        %4565 = vmatprep.subr.bf16.mxu0 0
        %4566 = vmatpush1.bf16.msra.mxu0 0
        %4567 = vmatprep.subr.bf16.mxu0 0
        %4568 = vmatpush1.bf16.msra.mxu0 0
        %4569 = vmatprep.subr.bf16.mxu0 0
        %4570 = vmatpush1.bf16.msra.mxu0 0
        %4571 = vmatprep.subr.bf16.mxu0 0
        %4572 = vmatpush1.bf16.msra.mxu0 0
        %4573 = vmatprep.subr.bf16.mxu0 0
        %4574 = vmatpush1.bf16.msra.mxu0 0
        %4575 = vmatprep.subr.bf16.mxu0 0
        %4576 = vmatpush1.bf16.msra.mxu0 0
        %4577 = vmatprep.subr.bf16.mxu0 0
        %4578 = vmatpush1.bf16.msra.mxu0 0
        %4579 = vmatprep.subr.bf16.mxu0 0
        %4580 = vmatpush1.bf16.msra.mxu0 0
        %4581 = vmatprep.subr.bf16.mxu0 0
        %4582 = vmatpush1.bf16.msra.mxu0 0
        %4583 = vmatprep.subr.bf16.mxu0 0
        %4584 = vmatpush1.bf16.msra.mxu0 0
        %4585 = vmatprep.subr.bf16.mxu0 0
        %4586 = vmatpush1.bf16.msra.mxu0 0
        %4587 = vmatprep.subr.bf16.mxu0 0
        %4588 = vmatpush1.bf16.msra.mxu0 0
        %4589 = vmatprep.subr.bf16.mxu0 0
        %4590 = vmatpush1.bf16.msra.mxu0 0
        %4591 = vmatprep.mubr.bf16.mxu0 0
        %4592 = vmatmul.mubr.bf16.gmra.mrb[0].mxu0 %v4557
        %v4593 = vpop.f32.mrb[0].mxu0
        %v4594 = vadd.f32 0.0, %v4593
        %v4595 = vpop.f32.mrb[0].mxu0
        %v4596 = vpop.f32.mrb[0].mxu0
        %v4597 = vadd.f32 0.0, %v4596
        %v4598 = vpop.f32.mrb[0].mxu0
        %4599 = vdwg.mxu0
        %v4600 = vadd.f32 %v4545, %v4594
        %v4601 = vadd.f32 %v4546, %v4597
        %s4602 = scalar_lea.vmem %s7, 64
        %v4603 = vld [vmem:[%s4602] sm:$0xf]
        %v4604 = vld [vmem:[%s4602 + $0x4] sm:$0xf]
        %v4607 = vunpack.c.l.b16 %v4603
        %v4608 = vunpack.c.l.b16 %v4604
        %v4609 = vpack.c.b16 %v4608, %v4607
        %v4612 = vsel %vm662, %v4159, 0
        %4614 = vmatprep.subr.bf16.mxu0 0
        %4615 = vmatpush1.bf16.msra.mxu0 %v4609
        %4616 = vmatprep.subr.bf16.mxu0 0
        %4617 = vmatpush1.bf16.msra.mxu0 0
        %4618 = vmatprep.subr.bf16.mxu0 0
        %4619 = vmatpush1.bf16.msra.mxu0 0
        %4620 = vmatprep.subr.bf16.mxu0 0
        %4621 = vmatpush1.bf16.msra.mxu0 0
        %4622 = vmatprep.subr.bf16.mxu0 0
        %4623 = vmatpush1.bf16.msra.mxu0 0
        %4624 = vmatprep.subr.bf16.mxu0 0
        %4625 = vmatpush1.bf16.msra.mxu0 0
        %4626 = vmatprep.subr.bf16.mxu0 0
        %4627 = vmatpush1.bf16.msra.mxu0 0
        %4628 = vmatprep.subr.bf16.mxu0 0
        %4629 = vmatpush1.bf16.msra.mxu0 0
        %4630 = vmatprep.subr.bf16.mxu0 0
        %4631 = vmatpush1.bf16.msra.mxu0 0
        %4632 = vmatprep.subr.bf16.mxu0 0
        %4633 = vmatpush1.bf16.msra.mxu0 0
        %4634 = vmatprep.subr.bf16.mxu0 0
        %4635 = vmatpush1.bf16.msra.mxu0 0
        %4636 = vmatprep.subr.bf16.mxu0 0
        %4637 = vmatpush1.bf16.msra.mxu0 0
        %4638 = vmatprep.subr.bf16.mxu0 0
        %4639 = vmatpush1.bf16.msra.mxu0 0
        %4640 = vmatprep.subr.bf16.mxu0 0
        %4641 = vmatpush1.bf16.msra.mxu0 0
        %4642 = vmatprep.subr.bf16.mxu0 0
        %4643 = vmatpush1.bf16.msra.mxu0 0
        %4644 = vmatprep.subr.bf16.mxu0 0
        %4645 = vmatpush1.bf16.msra.mxu0 0
        %4646 = vmatprep.mubr.bf16.mxu0 0
        %4647 = vmatmul.mubr.bf16.gmra.mrb[0].mxu0 %v4612
        %v4648 = vpop.f32.mrb[0].mxu0
        %v4649 = vadd.f32 0.0, %v4648
        %v4650 = vpop.f32.mrb[0].mxu0
        %v4651 = vpop.f32.mrb[0].mxu0
        %v4652 = vadd.f32 0.0, %v4651
        %v4653 = vpop.f32.mrb[0].mxu0
        %4654 = vdwg.mxu0
        %v4655 = vadd.f32 %v4600, %v4649
        %v4656 = vadd.f32 %v4601, %v4652
        %s4657 = scalar_lea.vmem %s7, 72
        %v4658 = vld [vmem:[%s4657] sm:$0xf]
        %v4659 = vld [vmem:[%s4657 + $0x4] sm:$0xf]
        %v4662 = vunpack.c.l.b16 %v4658
        %v4663 = vunpack.c.l.b16 %v4659
        %v4664 = vpack.c.b16 %v4663, %v4662
        %v4667 = vsel %vm662, %v4160, 0
        %4669 = vmatprep.subr.bf16.mxu0 0
        %4670 = vmatpush1.bf16.msra.mxu0 %v4664
        %4671 = vmatprep.subr.bf16.mxu0 0
        %4672 = vmatpush1.bf16.msra.mxu0 0
        %4673 = vmatprep.subr.bf16.mxu0 0
        %4674 = vmatpush1.bf16.msra.mxu0 0
        %4675 = vmatprep.subr.bf16.mxu0 0
        %4676 = vmatpush1.bf16.msra.mxu0 0
        %4677 = vmatprep.subr.bf16.mxu0 0
        %4678 = vmatpush1.bf16.msra.mxu0 0
        %4679 = vmatprep.subr.bf16.mxu0 0
        %4680 = vmatpush1.bf16.msra.mxu0 0
        %4681 = vmatprep.subr.bf16.mxu0 0
        %4682 = vmatpush1.bf16.msra.mxu0 0
        %4683 = vmatprep.subr.bf16.mxu0 0
        %4684 = vmatpush1.bf16.msra.mxu0 0
        %4685 = vmatprep.subr.bf16.mxu0 0
        %4686 = vmatpush1.bf16.msra.mxu0 0
        %4687 = vmatprep.subr.bf16.mxu0 0
        %4688 = vmatpush1.bf16.msra.mxu0 0
        %4689 = vmatprep.subr.bf16.mxu0 0
        %4690 = vmatpush1.bf16.msra.mxu0 0
        %4691 = vmatprep.subr.bf16.mxu0 0
        %4692 = vmatpush1.bf16.msra.mxu0 0
        %4693 = vmatprep.subr.bf16.mxu0 0
        %4694 = vmatpush1.bf16.msra.mxu0 0
        %4695 = vmatprep.subr.bf16.mxu0 0
        %4696 = vmatpush1.bf16.msra.mxu0 0
        %4697 = vmatprep.subr.bf16.mxu0 0
        %4698 = vmatpush1.bf16.msra.mxu0 0
        %4699 = vmatprep.subr.bf16.mxu0 0
        %4700 = vmatpush1.bf16.msra.mxu0 0
        %4701 = vmatprep.mubr.bf16.mxu0 0
        %4702 = vmatmul.mubr.bf16.gmra.mrb[0].mxu0 %v4667
        %v4703 = vpop.f32.mrb[0].mxu0
        %v4704 = vadd.f32 0.0, %v4703
        %v4705 = vpop.f32.mrb[0].mxu0
        %v4706 = vpop.f32.mrb[0].mxu0
        %v4707 = vadd.f32 0.0, %v4706
        %v4708 = vpop.f32.mrb[0].mxu0
        %4709 = vdwg.mxu0
        %v4710 = vadd.f32 %v4655, %v4704
        %v4711 = vadd.f32 %v4656, %v4707
        %s4712 = scalar_lea.vmem %s7, 80
        %v4713 = vld [vmem:[%s4712] sm:$0xf]
        %v4714 = vld [vmem:[%s4712 + $0x4] sm:$0xf]
        %v4717 = vunpack.c.l.b16 %v4713
        %v4718 = vunpack.c.l.b16 %v4714
        %v4719 = vpack.c.b16 %v4718, %v4717
        %v4722 = vsel %vm662, %v4161, 0
        %4724 = vmatprep.subr.bf16.mxu0 0
        %4725 = vmatpush1.bf16.msra.mxu0 %v4719
        %4726 = vmatprep.subr.bf16.mxu0 0
        %4727 = vmatpush1.bf16.msra.mxu0 0
        %4728 = vmatprep.subr.bf16.mxu0 0
        %4729 = vmatpush1.bf16.msra.mxu0 0
        %4730 = vmatprep.subr.bf16.mxu0 0
        %4731 = vmatpush1.bf16.msra.mxu0 0
        %4732 = vmatprep.subr.bf16.mxu0 0
        %4733 = vmatpush1.bf16.msra.mxu0 0
        %4734 = vmatprep.subr.bf16.mxu0 0
        %4735 = vmatpush1.bf16.msra.mxu0 0
        %4736 = vmatprep.subr.bf16.mxu0 0
        %4737 = vmatpush1.bf16.msra.mxu0 0
        %4738 = vmatprep.subr.bf16.mxu0 0
        %4739 = vmatpush1.bf16.msra.mxu0 0
        %4740 = vmatprep.subr.bf16.mxu0 0
        %4741 = vmatpush1.bf16.msra.mxu0 0
        %4742 = vmatprep.subr.bf16.mxu0 0
        %4743 = vmatpush1.bf16.msra.mxu0 0
        %4744 = vmatprep.subr.bf16.mxu0 0
        %4745 = vmatpush1.bf16.msra.mxu0 0
        %4746 = vmatprep.subr.bf16.mxu0 0
        %4747 = vmatpush1.bf16.msra.mxu0 0
        %4748 = vmatprep.subr.bf16.mxu0 0
        %4749 = vmatpush1.bf16.msra.mxu0 0
        %4750 = vmatprep.subr.bf16.mxu0 0
        %4751 = vmatpush1.bf16.msra.mxu0 0
        %4752 = vmatprep.subr.bf16.mxu0 0
        %4753 = vmatpush1.bf16.msra.mxu0 0
        %4754 = vmatprep.subr.bf16.mxu0 0
        %4755 = vmatpush1.bf16.msra.mxu0 0
        %4756 = vmatprep.mubr.bf16.mxu0 0
        %4757 = vmatmul.mubr.bf16.gmra.mrb[0].mxu0 %v4722
        %v4758 = vpop.f32.mrb[0].mxu0
        %v4759 = vadd.f32 0.0, %v4758
        %v4760 = vpop.f32.mrb[0].mxu0
        %v4761 = vpop.f32.mrb[0].mxu0
        %v4762 = vadd.f32 0.0, %v4761
        %v4763 = vpop.f32.mrb[0].mxu0
        %4764 = vdwg.mxu0
        %v4765 = vadd.f32 %v4710, %v4759
        %v4766 = vadd.f32 %v4711, %v4762
        %s4767 = scalar_lea.vmem %s7, 88
        %v4768 = vld [vmem:[%s4767] sm:$0xf]
        %v4769 = vld [vmem:[%s4767 + $0x4] sm:$0xf]
        %v4772 = vunpack.c.l.b16 %v4768
        %v4773 = vunpack.c.l.b16 %v4769
        %v4774 = vpack.c.b16 %v4773, %v4772
        %v4777 = vsel %vm662, %v4162, 0
        %4779 = vmatprep.subr.bf16.mxu0 0
        %4780 = vmatpush1.bf16.msra.mxu0 %v4774
        %4781 = vmatprep.subr.bf16.mxu0 0
        %4782 = vmatpush1.bf16.msra.mxu0 0
        %4783 = vmatprep.subr.bf16.mxu0 0
        %4784 = vmatpush1.bf16.msra.mxu0 0
        %4785 = vmatprep.subr.bf16.mxu0 0
        %4786 = vmatpush1.bf16.msra.mxu0 0
        %4787 = vmatprep.subr.bf16.mxu0 0
        %4788 = vmatpush1.bf16.msra.mxu0 0
        %4789 = vmatprep.subr.bf16.mxu0 0
        %4790 = vmatpush1.bf16.msra.mxu0 0
        %4791 = vmatprep.subr.bf16.mxu0 0
        %4792 = vmatpush1.bf16.msra.mxu0 0
        %4793 = vmatprep.subr.bf16.mxu0 0
        %4794 = vmatpush1.bf16.msra.mxu0 0
        %4795 = vmatprep.subr.bf16.mxu0 0
        %4796 = vmatpush1.bf16.msra.mxu0 0
        %4797 = vmatprep.subr.bf16.mxu0 0
        %4798 = vmatpush1.bf16.msra.mxu0 0
        %4799 = vmatprep.subr.bf16.mxu0 0
        %4800 = vmatpush1.bf16.msra.mxu0 0
        %4801 = vmatprep.subr.bf16.mxu0 0
        %4802 = vmatpush1.bf16.msra.mxu0 0
        %4803 = vmatprep.subr.bf16.mxu0 0
        %4804 = vmatpush1.bf16.msra.mxu0 0
        %4805 = vmatprep.subr.bf16.mxu0 0
        %4806 = vmatpush1.bf16.msra.mxu0 0
        %4807 = vmatprep.subr.bf16.mxu0 0
        %4808 = vmatpush1.bf16.msra.mxu0 0
        %4809 = vmatprep.subr.bf16.mxu0 0
        %4810 = vmatpush1.bf16.msra.mxu0 0
        %4811 = vmatprep.mubr.bf16.mxu0 0
        %4812 = vmatmul.mubr.bf16.gmra.mrb[0].mxu0 %v4777
        %v4813 = vpop.f32.mrb[0].mxu0
        %v4814 = vadd.f32 0.0, %v4813
        %v4815 = vpop.f32.mrb[0].mxu0
        %v4816 = vpop.f32.mrb[0].mxu0
        %v4817 = vadd.f32 0.0, %v4816
        %v4818 = vpop.f32.mrb[0].mxu0
        %4819 = vdwg.mxu0
        %v4820 = vadd.f32 %v4765, %v4814
        %v4821 = vadd.f32 %v4766, %v4817
        %s4822 = scalar_lea.vmem %s7, 96
        %v4823 = vld [vmem:[%s4822] sm:$0xf]
        %v4824 = vld [vmem:[%s4822 + $0x4] sm:$0xf]
        %v4827 = vunpack.c.l.b16 %v4823
        %v4828 = vunpack.c.l.b16 %v4824
        %v4829 = vpack.c.b16 %v4828, %v4827
        %v4832 = vsel %vm662, %v4163, 0
        %4834 = vmatprep.subr.bf16.mxu0 0
        %4835 = vmatpush1.bf16.msra.mxu0 %v4829
        %4836 = vmatprep.subr.bf16.mxu0 0
        %4837 = vmatpush1.bf16.msra.mxu0 0
        %4838 = vmatprep.subr.bf16.mxu0 0
        %4839 = vmatpush1.bf16.msra.mxu0 0
        %4840 = vmatprep.subr.bf16.mxu0 0
        %4841 = vmatpush1.bf16.msra.mxu0 0
        %4842 = vmatprep.subr.bf16.mxu0 0
        %4843 = vmatpush1.bf16.msra.mxu0 0
        %4844 = vmatprep.subr.bf16.mxu0 0
        %4845 = vmatpush1.bf16.msra.mxu0 0
        %4846 = vmatprep.subr.bf16.mxu0 0
        %4847 = vmatpush1.bf16.msra.mxu0 0
        %4848 = vmatprep.subr.bf16.mxu0 0
        %4849 = vmatpush1.bf16.msra.mxu0 0
        %4850 = vmatprep.subr.bf16.mxu0 0
        %4851 = vmatpush1.bf16.msra.mxu0 0
        %4852 = vmatprep.subr.bf16.mxu0 0
        %4853 = vmatpush1.bf16.msra.mxu0 0
        %4854 = vmatprep.subr.bf16.mxu0 0
        %4855 = vmatpush1.bf16.msra.mxu0 0
        %4856 = vmatprep.subr.bf16.mxu0 0
        %4857 = vmatpush1.bf16.msra.mxu0 0
        %4858 = vmatprep.subr.bf16.mxu0 0
        %4859 = vmatpush1.bf16.msra.mxu0 0
        %4860 = vmatprep.subr.bf16.mxu0 0
        %4861 = vmatpush1.bf16.msra.mxu0 0
        %4862 = vmatprep.subr.bf16.mxu0 0
        %4863 = vmatpush1.bf16.msra.mxu0 0
        %4864 = vmatprep.subr.bf16.mxu0 0
        %4865 = vmatpush1.bf16.msra.mxu0 0
        %4866 = vmatprep.mubr.bf16.mxu0 0
        %4867 = vmatmul.mubr.bf16.gmra.mrb[0].mxu0 %v4832
        %v4868 = vpop.f32.mrb[0].mxu0
        %v4869 = vadd.f32 0.0, %v4868
        %v4870 = vpop.f32.mrb[0].mxu0
        %v4871 = vpop.f32.mrb[0].mxu0
        %v4872 = vadd.f32 0.0, %v4871
        %v4873 = vpop.f32.mrb[0].mxu0
        %4874 = vdwg.mxu0
        %v4875 = vadd.f32 %v4820, %v4869
        %v4876 = vadd.f32 %v4821, %v4872
        %s4877 = scalar_lea.vmem %s7, 104
        %v4878 = vld [vmem:[%s4877] sm:$0xf]
        %v4879 = vld [vmem:[%s4877 + $0x4] sm:$0xf]
        %v4882 = vunpack.c.l.b16 %v4878
        %v4883 = vunpack.c.l.b16 %v4879
        %v4884 = vpack.c.b16 %v4883, %v4882
        %v4887 = vsel %vm662, %v4164, 0
        %4889 = vmatprep.subr.bf16.mxu0 0
        %4890 = vmatpush1.bf16.msra.mxu0 %v4884
        %4891 = vmatprep.subr.bf16.mxu0 0
        %4892 = vmatpush1.bf16.msra.mxu0 0
        %4893 = vmatprep.subr.bf16.mxu0 0
        %4894 = vmatpush1.bf16.msra.mxu0 0
        %4895 = vmatprep.subr.bf16.mxu0 0
        %4896 = vmatpush1.bf16.msra.mxu0 0
        %4897 = vmatprep.subr.bf16.mxu0 0
        %4898 = vmatpush1.bf16.msra.mxu0 0
        %4899 = vmatprep.subr.bf16.mxu0 0
        %4900 = vmatpush1.bf16.msra.mxu0 0
        %4901 = vmatprep.subr.bf16.mxu0 0
        %4902 = vmatpush1.bf16.msra.mxu0 0
        %4903 = vmatprep.subr.bf16.mxu0 0
        %4904 = vmatpush1.bf16.msra.mxu0 0
        %4905 = vmatprep.subr.bf16.mxu0 0
        %4906 = vmatpush1.bf16.msra.mxu0 0
        %4907 = vmatprep.subr.bf16.mxu0 0
        %4908 = vmatpush1.bf16.msra.mxu0 0
        %4909 = vmatprep.subr.bf16.mxu0 0
        %4910 = vmatpush1.bf16.msra.mxu0 0
        %4911 = vmatprep.subr.bf16.mxu0 0
        %4912 = vmatpush1.bf16.msra.mxu0 0
        %4913 = vmatprep.subr.bf16.mxu0 0
        %4914 = vmatpush1.bf16.msra.mxu0 0
        %4915 = vmatprep.subr.bf16.mxu0 0
        %4916 = vmatpush1.bf16.msra.mxu0 0
        %4917 = vmatprep.subr.bf16.mxu0 0
        %4918 = vmatpush1.bf16.msra.mxu0 0
        %4919 = vmatprep.subr.bf16.mxu0 0
        %4920 = vmatpush1.bf16.msra.mxu0 0
        %4921 = vmatprep.mubr.bf16.mxu0 0
        %4922 = vmatmul.mubr.bf16.gmra.mrb[0].mxu0 %v4887
        %v4923 = vpop.f32.mrb[0].mxu0
        %v4924 = vadd.f32 0.0, %v4923
        %v4925 = vpop.f32.mrb[0].mxu0
        %v4926 = vpop.f32.mrb[0].mxu0
        %v4927 = vadd.f32 0.0, %v4926
        %v4928 = vpop.f32.mrb[0].mxu0
        %4929 = vdwg.mxu0
        %v4930 = vadd.f32 %v4875, %v4924
        %v4931 = vadd.f32 %v4876, %v4927
        %s4932 = scalar_lea.vmem %s7, 112
        %v4933 = vld [vmem:[%s4932] sm:$0xf]
        %v4934 = vld [vmem:[%s4932 + $0x4] sm:$0xf]
        %v4937 = vunpack.c.l.b16 %v4933
        %v4938 = vunpack.c.l.b16 %v4934
        %v4939 = vpack.c.b16 %v4938, %v4937
        %v4942 = vsel %vm662, %v4165, 0
        %4944 = vmatprep.subr.bf16.mxu0 0
        %4945 = vmatpush1.bf16.msra.mxu0 %v4939
        %4946 = vmatprep.subr.bf16.mxu0 0
        %4947 = vmatpush1.bf16.msra.mxu0 0
        %4948 = vmatprep.subr.bf16.mxu0 0
        %4949 = vmatpush1.bf16.msra.mxu0 0
        %4950 = vmatprep.subr.bf16.mxu0 0
        %4951 = vmatpush1.bf16.msra.mxu0 0
        %4952 = vmatprep.subr.bf16.mxu0 0
        %4953 = vmatpush1.bf16.msra.mxu0 0
        %4954 = vmatprep.subr.bf16.mxu0 0
        %4955 = vmatpush1.bf16.msra.mxu0 0
        %4956 = vmatprep.subr.bf16.mxu0 0
        %4957 = vmatpush1.bf16.msra.mxu0 0
        %4958 = vmatprep.subr.bf16.mxu0 0
        %4959 = vmatpush1.bf16.msra.mxu0 0
        %4960 = vmatprep.subr.bf16.mxu0 0
        %4961 = vmatpush1.bf16.msra.mxu0 0
        %4962 = vmatprep.subr.bf16.mxu0 0
        %4963 = vmatpush1.bf16.msra.mxu0 0
        %4964 = vmatprep.subr.bf16.mxu0 0
        %4965 = vmatpush1.bf16.msra.mxu0 0
        %4966 = vmatprep.subr.bf16.mxu0 0
        %4967 = vmatpush1.bf16.msra.mxu0 0
        %4968 = vmatprep.subr.bf16.mxu0 0
        %4969 = vmatpush1.bf16.msra.mxu0 0
        %4970 = vmatprep.subr.bf16.mxu0 0
        %4971 = vmatpush1.bf16.msra.mxu0 0
        %4972 = vmatprep.subr.bf16.mxu0 0
        %4973 = vmatpush1.bf16.msra.mxu0 0
        %4974 = vmatprep.subr.bf16.mxu0 0
        %4975 = vmatpush1.bf16.msra.mxu0 0
        %4976 = vmatprep.mubr.bf16.mxu0 0
        %4977 = vmatmul.mubr.bf16.gmra.mrb[0].mxu0 %v4942
        %v4978 = vpop.f32.mrb[0].mxu0
        %v4979 = vadd.f32 0.0, %v4978
        %v4980 = vpop.f32.mrb[0].mxu0
        %v4981 = vpop.f32.mrb[0].mxu0
        %v4982 = vadd.f32 0.0, %v4981
        %v4983 = vpop.f32.mrb[0].mxu0
        %4984 = vdwg.mxu0
        %v4985 = vadd.f32 %v4930, %v4979
        %v4986 = vadd.f32 %v4931, %v4982
        %s4987 = scalar_lea.vmem %s7, 120
        %v4988 = vld [vmem:[%s4987] sm:$0xf]
        %v4989 = vld [vmem:[%s4987 + $0x4] sm:$0xf]
        %v4992 = vunpack.c.l.b16 %v4988
        %v4993 = vunpack.c.l.b16 %v4989
        %v4994 = vpack.c.b16 %v4993, %v4992
        %v4997 = vsel %vm662, %v4166, 0
        %4999 = vmatprep.subr.bf16.mxu0 0
        %5000 = vmatpush1.bf16.msra.mxu0 %v4994
        %5001 = vmatprep.subr.bf16.mxu0 0
        %5002 = vmatpush1.bf16.msra.mxu0 0
        %5003 = vmatprep.subr.bf16.mxu0 0
        %5004 = vmatpush1.bf16.msra.mxu0 0
        %5005 = vmatprep.subr.bf16.mxu0 0
        %5006 = vmatpush1.bf16.msra.mxu0 0
        %5007 = vmatprep.subr.bf16.mxu0 0
        %5008 = vmatpush1.bf16.msra.mxu0 0
        %5009 = vmatprep.subr.bf16.mxu0 0
        %5010 = vmatpush1.bf16.msra.mxu0 0
        %5011 = vmatprep.subr.bf16.mxu0 0
        %5012 = vmatpush1.bf16.msra.mxu0 0
        %5013 = vmatprep.subr.bf16.mxu0 0
        %5014 = vmatpush1.bf16.msra.mxu0 0
        %5015 = vmatprep.subr.bf16.mxu0 0
        %5016 = vmatpush1.bf16.msra.mxu0 0
        %5017 = vmatprep.subr.bf16.mxu0 0
        %5018 = vmatpush1.bf16.msra.mxu0 0
        %5019 = vmatprep.subr.bf16.mxu0 0
        %5020 = vmatpush1.bf16.msra.mxu0 0
        %5021 = vmatprep.subr.bf16.mxu0 0
        %5022 = vmatpush1.bf16.msra.mxu0 0
        %5023 = vmatprep.subr.bf16.mxu0 0
        %5024 = vmatpush1.bf16.msra.mxu0 0
        %5025 = vmatprep.subr.bf16.mxu0 0
        %5026 = vmatpush1.bf16.msra.mxu0 0
        %5027 = vmatprep.subr.bf16.mxu0 0
        %5028 = vmatpush1.bf16.msra.mxu0 0
        %5029 = vmatprep.subr.bf16.mxu0 0
        %5030 = vmatpush1.bf16.msra.mxu0 0
        %5031 = vmatprep.mubr.bf16.mxu0 0
        %5032 = vmatmul.mubr.bf16.gmra.mrb[0].mxu0 %v4997
        %v5033 = vpop.f32.mrb[0].mxu0
        %v5034 = vadd.f32 0.0, %v5033
        %v5035 = vpop.f32.mrb[0].mxu0
        %v5036 = vpop.f32.mrb[0].mxu0
        %v5037 = vadd.f32 0.0, %v5036
        %v5038 = vpop.f32.mrb[0].mxu0
        %5039 = vdwg.mxu0
        %v5040 = vadd.f32 %v4985, %v5034
        %v5041 = vadd.f32 %v4986, %v5037
        %v5042 = vld [vmem:[%s8] sm:$0x1]
        %v5044 = vlaneseq
        %v5045 = vshrl.u32 %v5044, 7
        %v5046 = vsub.s32 0, %v5045
        %v5047 = vrot.slane %v5042, %v5046
        %v5049 = vadd.f32 %v5040, %v5047
        %v5050 = vadd.f32 %v5041, %v5047
        %vm5051 = vcmp.ge.f32.partialorder %v5049, 0.0
        %vm5052 = vcmp.ge.f32.partialorder %v5050, 0.0
        %v5053 = vmul.f32 %v5049, 0.001
        %v5054 = vmul.f32 %v5050, 0.001
        %v5055 = vsel %vm5051, %v5049, %v5053
        %v5056 = vsel %vm5052, %v5050, %v5054
        %v5057 = vpack.c.bf16 %v5056, %v5055
        %v5058 = vld [vmem:[%s9] sm:$0xf]
        %v5059 = vld [vmem:[%s9 + $0x4] sm:$0xf]
        %v5060 = vld [vmem:[%s9 + $0x8] sm:$0xf]
        %v5061 = vld [vmem:[%s9 + $0xc] sm:$0xf]
        %v5062 = vld [vmem:[%s9 + $0x10] sm:$0xf]
        %v5063 = vld [vmem:[%s9 + $0x14] sm:$0xf]
        %v5064 = vld [vmem:[%s9 + $0x18] sm:$0xf]
        %v5065 = vld [vmem:[%s9 + $0x1c] sm:$0xf]
        %v5066 = vld [vmem:[%s9 + $0x20] sm:$0xf]
        %v5067 = vld [vmem:[%s9 + $0x24] sm:$0xf]
        %v5068 = vld [vmem:[%s9 + $0x28] sm:$0xf]
        %v5069 = vld [vmem:[%s9 + $0x2c] sm:$0xf]
        %v5070 = vld [vmem:[%s9 + $0x30] sm:$0xf]
        %v5071 = vld [vmem:[%s9 + $0x34] sm:$0xf]
        %v5072 = vld [vmem:[%s9 + $0x38] sm:$0xf]
        %v5073 = vld [vmem:[%s9 + $0x3c] sm:$0xf]
        %v5074 = vld [vmem:[%s9 + $0x40] sm:$0xf]
        %v5075 = vld [vmem:[%s9 + $0x44] sm:$0xf]
        %v5094 = vunpack.c.l.b16 %v5058
        %v5095 = vunpack.c.l.b16 %v5059
        %v5096 = vunpack.c.l.b16 %v5060
        %v5097 = vunpack.c.l.b16 %v5061
        %v5098 = vunpack.c.l.b16 %v5062
        %v5099 = vunpack.c.l.b16 %v5063
        %v5100 = vunpack.c.l.b16 %v5064
        %v5101 = vunpack.c.l.b16 %v5065
        %v5102 = vunpack.c.l.b16 %v5066
        %v5103 = vunpack.c.l.b16 %v5067
        %v5104 = vunpack.c.l.b16 %v5068
        %v5105 = vunpack.c.l.b16 %v5069
        %v5106 = vunpack.c.l.b16 %v5070
        %v5107 = vunpack.c.l.b16 %v5071
        %v5108 = vunpack.c.l.b16 %v5072
        %v5109 = vunpack.c.l.b16 %v5073
        %v5110 = vunpack.c.l.b16 %v5074
        %v5111 = vunpack.c.l.b16 %v5075
        %v5112 = vpack.c.b16 %v5095, %v5094
        %v5113 = vpack.c.b16 %v5097, %v5096
        %v5114 = vpack.c.b16 %v5099, %v5098
        %v5115 = vpack.c.b16 %v5101, %v5100
        %v5116 = vpack.c.b16 %v5103, %v5102
        %v5117 = vpack.c.b16 %v5105, %v5104
        %v5118 = vpack.c.b16 %v5107, %v5106
        %v5119 = vpack.c.b16 %v5109, %v5108
        %v5120 = vpack.c.b16 %v5111, %v5110
        %v5122 = vsel %vm662, %v5112, 0
        %v5125 = vsel %vm662, %v5113, 0
        %v5128 = vsel %vm662, %v5114, 0
        %v5131 = vsel %vm662, %v5115, 0
        %v5134 = vsel %vm662, %v5116, 0
        %v5137 = vsel %vm662, %v5117, 0
        %v5140 = vsel %vm662, %v5118, 0
        %v5143 = vsel %vm662, %v5119, 0
        %v5146 = vsel %vm662, %v5120, 0
        %5148 = vmatprep.subr.bf16.mxu0 0
        %5149 = vmatpush1.bf16.msra.mxu0 %v5057
        %5150 = vmatprep.subr.bf16.mxu0 0
        %5151 = vmatpush1.bf16.msra.mxu0 0
        %5152 = vmatprep.subr.bf16.mxu0 0
        %5153 = vmatpush1.bf16.msra.mxu0 0
        %5154 = vmatprep.subr.bf16.mxu0 0
        %5155 = vmatpush1.bf16.msra.mxu0 0
        %5156 = vmatprep.subr.bf16.mxu0 0
        %5157 = vmatpush1.bf16.msra.mxu0 0
        %5158 = vmatprep.subr.bf16.mxu0 0
        %5159 = vmatpush1.bf16.msra.mxu0 0
        %5160 = vmatprep.subr.bf16.mxu0 0
        %5161 = vmatpush1.bf16.msra.mxu0 0
        %5162 = vmatprep.subr.bf16.mxu0 0
        %5163 = vmatpush1.bf16.msra.mxu0 0
        %5164 = vmatprep.subr.bf16.mxu0 0
        %5165 = vmatpush1.bf16.msra.mxu0 0
        %5166 = vmatprep.subr.bf16.mxu0 0
        %5167 = vmatpush1.bf16.msra.mxu0 0
        %5168 = vmatprep.subr.bf16.mxu0 0
        %5169 = vmatpush1.bf16.msra.mxu0 0
        %5170 = vmatprep.subr.bf16.mxu0 0
        %5171 = vmatpush1.bf16.msra.mxu0 0
        %5172 = vmatprep.subr.bf16.mxu0 0
        %5173 = vmatpush1.bf16.msra.mxu0 0
        %5174 = vmatprep.subr.bf16.mxu0 0
        %5175 = vmatpush1.bf16.msra.mxu0 0
        %5176 = vmatprep.subr.bf16.mxu0 0
        %5177 = vmatpush1.bf16.msra.mxu0 0
        %5178 = vmatprep.subr.bf16.mxu0 0
        %5179 = vmatpush1.bf16.msra.mxu0 0
        %5180 = vmatprep.mubr.bf16.mxu0 0
        %5181 = vmatmul.mubr.bf16.gmra.mrb[0].mxu0 %v5122
        %v5182 = vpop.f32.mrb[0].mxu0
        %v5183 = vadd.f32 0.0, %v5182
        %v5184 = vpop.f32.mrb[0].mxu0
        %v5185 = vpop.f32.mrb[0].mxu0
        %v5186 = vadd.f32 0.0, %v5185
        %v5187 = vpop.f32.mrb[0].mxu0
        %5188 = vmatprep.mubr.bf16.mxu0 0
        %5189 = vmatmul.mubr.bf16.gmra.mrb[0].mxu0 %v5125
        %v5190 = vpop.f32.mrb[0].mxu0
        %v5191 = vadd.f32 0.0, %v5190
        %v5192 = vpop.f32.mrb[0].mxu0
        %v5193 = vpop.f32.mrb[0].mxu0
        %v5194 = vadd.f32 0.0, %v5193
        %v5195 = vpop.f32.mrb[0].mxu0
        %5196 = vmatprep.mubr.bf16.mxu0 0
        %5197 = vmatmul.mubr.bf16.gmra.mrb[0].mxu0 %v5128
        %v5198 = vpop.f32.mrb[0].mxu0
        %v5199 = vadd.f32 0.0, %v5198
        %v5200 = vpop.f32.mrb[0].mxu0
        %v5201 = vpop.f32.mrb[0].mxu0
        %v5202 = vadd.f32 0.0, %v5201
        %v5203 = vpop.f32.mrb[0].mxu0
        %5204 = vmatprep.mubr.bf16.mxu0 0
        %5205 = vmatmul.mubr.bf16.gmra.mrb[0].mxu0 %v5131
        %v5206 = vpop.f32.mrb[0].mxu0
        %v5207 = vadd.f32 0.0, %v5206
        %v5208 = vpop.f32.mrb[0].mxu0
        %v5209 = vpop.f32.mrb[0].mxu0
        %v5210 = vadd.f32 0.0, %v5209
        %v5211 = vpop.f32.mrb[0].mxu0
        %5212 = vmatprep.mubr.bf16.mxu0 0
        %5213 = vmatmul.mubr.bf16.gmra.mrb[0].mxu0 %v5134
        %v5214 = vpop.f32.mrb[0].mxu0
        %v5215 = vadd.f32 0.0, %v5214
        %v5216 = vpop.f32.mrb[0].mxu0
        %v5217 = vpop.f32.mrb[0].mxu0
        %v5218 = vadd.f32 0.0, %v5217
        %v5219 = vpop.f32.mrb[0].mxu0
        %5220 = vmatprep.mubr.bf16.mxu0 0
        %5221 = vmatmul.mubr.bf16.gmra.mrb[0].mxu0 %v5137
        %v5222 = vpop.f32.mrb[0].mxu0
        %v5223 = vadd.f32 0.0, %v5222
        %v5224 = vpop.f32.mrb[0].mxu0
        %v5225 = vpop.f32.mrb[0].mxu0
        %v5226 = vadd.f32 0.0, %v5225
        %v5227 = vpop.f32.mrb[0].mxu0
        %5228 = vmatprep.mubr.bf16.mxu0 0
        %5229 = vmatmul.mubr.bf16.gmra.mrb[0].mxu0 %v5140
        %v5230 = vpop.f32.mrb[0].mxu0
        %v5231 = vadd.f32 0.0, %v5230
        %v5232 = vpop.f32.mrb[0].mxu0
        %v5233 = vpop.f32.mrb[0].mxu0
        %v5234 = vadd.f32 0.0, %v5233
        %v5235 = vpop.f32.mrb[0].mxu0
        %5236 = vmatprep.mubr.bf16.mxu0 0
        %5237 = vmatmul.mubr.bf16.gmra.mrb[0].mxu0 %v5143
        %v5238 = vpop.f32.mrb[0].mxu0
        %v5239 = vadd.f32 0.0, %v5238
        %v5240 = vpop.f32.mrb[0].mxu0
        %v5241 = vpop.f32.mrb[0].mxu0
        %v5242 = vadd.f32 0.0, %v5241
        %v5243 = vpop.f32.mrb[0].mxu0
        %5244 = vmatprep.mubr.bf16.mxu0 0
        %5245 = vmatmul.mubr.bf16.gmra.mrb[0].mxu0 %v5146
        %v5246 = vpop.f32.mrb[0].mxu0
        %v5247 = vadd.f32 0.0, %v5246
        %v5248 = vpop.f32.mrb[0].mxu0
        %v5249 = vpop.f32.mrb[0].mxu0
        %v5250 = vadd.f32 0.0, %v5249
        %v5251 = vpop.f32.mrb[0].mxu0
        %5252 = vdwg.mxu0
        %v5253 = vpack.c.bf16 %v5186, %v5183
        %v5254 = vpack.c.bf16 %v5194, %v5191
        %v5255 = vpack.c.bf16 %v5202, %v5199
        %v5256 = vpack.c.bf16 %v5210, %v5207
        %v5257 = vpack.c.bf16 %v5218, %v5215
        %v5258 = vpack.c.bf16 %v5226, %v5223
        %v5259 = vpack.c.bf16 %v5234, %v5231
        %v5260 = vpack.c.bf16 %v5242, %v5239
        %v5261 = vpack.c.bf16 %v5250, %v5247
        %v5262 = vld [vmem:[%s10] sm:$0xf]
        %v5263 = vld [vmem:[%s10 + $0x4] sm:$0xf]
        %v5264 = vld [vmem:[%s10 + $0x8] sm:$0xf]
        %v5265 = vld [vmem:[%s10 + $0xc] sm:$0xf]
        %s5266 = scalar_lea.vmem %s10, 16
        %v5267 = vld [vmem:[%s5266] sm:$0xf]
        %v5268 = vld [vmem:[%s5266 + $0x4] sm:$0xf]
        %v5269 = vld [vmem:[%s5266 + $0x8] sm:$0xf]
        %v5270 = vld [vmem:[%s5266 + $0xc] sm:$0xf]
        %v5275 = vunpack.c.l.b16 %v5267
        %v5276 = vunpack.c.l.b16 %v5268
        %v5277 = vunpack.c.l.b16 %v5269
        %v5278 = vunpack.c.l.b16 %v5270
        %v5279 = vpack.c.b16 %v5276, %v5275
        %v5280 = vpack.c.b16 %v5278, %v5277
        %vm5283 = vcmask 261120
        %v5285 = vsel %vm5283, %v5254, 0
        %5287 = vmatprep.subr.bf16.mxu0 0
        %5288 = vmatpush1.bf16.msra.mxu0 %v5279
        %5289 = vmatprep.subr.bf16.mxu0 0
        %5290 = vmatpush1.bf16.msra.mxu0 %v5280
        %5291 = vmatprep.subr.bf16.mxu0 0
        %5292 = vmatpush1.bf16.msra.mxu0 0
        %5293 = vmatprep.subr.bf16.mxu0 0
        %5294 = vmatpush1.bf16.msra.mxu0 0
        %5295 = vmatprep.subr.bf16.mxu0 0
        %5296 = vmatpush1.bf16.msra.mxu0 0
        %5297 = vmatprep.subr.bf16.mxu0 0
        %5298 = vmatpush1.bf16.msra.mxu0 0
        %5299 = vmatprep.subr.bf16.mxu0 0
        %5300 = vmatpush1.bf16.msra.mxu0 0
        %5301 = vmatprep.subr.bf16.mxu0 0
        %5302 = vmatpush1.bf16.msra.mxu0 0
        %5303 = vmatprep.subr.bf16.mxu0 0
        %5304 = vmatpush1.bf16.msra.mxu0 0
        %5305 = vmatprep.subr.bf16.mxu0 0
        %5306 = vmatpush1.bf16.msra.mxu0 0
        %5307 = vmatprep.subr.bf16.mxu0 0
        %5308 = vmatpush1.bf16.msra.mxu0 0
        %5309 = vmatprep.subr.bf16.mxu0 0
        %5310 = vmatpush1.bf16.msra.mxu0 0
        %5311 = vmatprep.subr.bf16.mxu0 0
        %5312 = vmatpush1.bf16.msra.mxu0 0
        %5313 = vmatprep.subr.bf16.mxu0 0
        %5314 = vmatpush1.bf16.msra.mxu0 0
        %5315 = vmatprep.subr.bf16.mxu0 0
        %5316 = vmatpush1.bf16.msra.mxu0 0
        %5317 = vmatprep.subr.bf16.mxu0 0
        %5318 = vmatpush1.bf16.msra.mxu0 0
        %5319 = vmatprep.mubr.bf16.mxu0 0
        %5320 = vmatmul.mubr.bf16.gmra.mrb[0].mxu0 %v5285
        %v5321 = vpop.f32.mrb[0].mxu0
        %v5322 = vadd.f32 0.0, %v5321
        %v5323 = vpop.f32.mrb[0].mxu0
        %v5324 = vpop.f32.mrb[0].mxu0
        %v5325 = vadd.f32 0.0, %v5324
        %v5326 = vpop.f32.mrb[0].mxu0
        %5327 = vdwg.mxu0
        %v5332 = vunpack.c.l.b16 %v5262
        %v5333 = vunpack.c.l.b16 %v5263
        %v5334 = vunpack.c.l.b16 %v5264
        %v5335 = vunpack.c.l.b16 %v5265
        %v5336 = vpack.c.b16 %v5333, %v5332
        %v5337 = vpack.c.b16 %v5335, %v5334
        %v5341 = vsel %vm5283, %v5253, 0
        %5343 = vmatprep.subr.bf16.mxu0 0
        %5344 = vmatpush1.bf16.msra.mxu0 %v5336
        %5345 = vmatprep.subr.bf16.mxu0 0
        %5346 = vmatpush1.bf16.msra.mxu0 %v5337
        %5347 = vmatprep.subr.bf16.mxu0 0
        %5348 = vmatpush1.bf16.msra.mxu0 0
        %5349 = vmatprep.subr.bf16.mxu0 0
        %5350 = vmatpush1.bf16.msra.mxu0 0
        %5351 = vmatprep.subr.bf16.mxu0 0
        %5352 = vmatpush1.bf16.msra.mxu0 0
        %5353 = vmatprep.subr.bf16.mxu0 0
        %5354 = vmatpush1.bf16.msra.mxu0 0
        %5355 = vmatprep.subr.bf16.mxu0 0
        %5356 = vmatpush1.bf16.msra.mxu0 0
        %5357 = vmatprep.subr.bf16.mxu0 0
        %5358 = vmatpush1.bf16.msra.mxu0 0
        %5359 = vmatprep.subr.bf16.mxu0 0
        %5360 = vmatpush1.bf16.msra.mxu0 0
        %5361 = vmatprep.subr.bf16.mxu0 0
        %5362 = vmatpush1.bf16.msra.mxu0 0
        %5363 = vmatprep.subr.bf16.mxu0 0
        %5364 = vmatpush1.bf16.msra.mxu0 0
        %5365 = vmatprep.subr.bf16.mxu0 0
        %5366 = vmatpush1.bf16.msra.mxu0 0
        %5367 = vmatprep.subr.bf16.mxu0 0
        %5368 = vmatpush1.bf16.msra.mxu0 0
        %5369 = vmatprep.subr.bf16.mxu0 0
        %5370 = vmatpush1.bf16.msra.mxu0 0
        %5371 = vmatprep.subr.bf16.mxu0 0
        %5372 = vmatpush1.bf16.msra.mxu0 0
        %5373 = vmatprep.subr.bf16.mxu0 0
        %5374 = vmatpush1.bf16.msra.mxu0 0
        %5375 = vmatprep.mubr.bf16.mxu0 0
        %5376 = vmatmul.mubr.bf16.gmra.mrb[0].mxu0 %v5341
        %v5377 = vpop.f32.mrb[0].mxu0
        %v5378 = vadd.f32 %v5322, %v5377
        %v5379 = vpop.f32.mrb[0].mxu0
        %v5380 = vpop.f32.mrb[0].mxu0
        %v5381 = vadd.f32 %v5325, %v5380
        %v5382 = vpop.f32.mrb[0].mxu0
        %5383 = vdwg.mxu0
        %s5384 = scalar_lea.vmem %s10, 32
        %v5385 = vld [vmem:[%s5384] sm:$0xf]
        %v5386 = vld [vmem:[%s5384 + $0x4] sm:$0xf]
        %v5387 = vld [vmem:[%s5384 + $0x8] sm:$0xf]
        %v5388 = vld [vmem:[%s5384 + $0xc] sm:$0xf]
        %v5393 = vunpack.c.l.b16 %v5385
        %v5394 = vunpack.c.l.b16 %v5386
        %v5395 = vunpack.c.l.b16 %v5387
        %v5396 = vunpack.c.l.b16 %v5388
        %v5397 = vpack.c.b16 %v5394, %v5393
        %v5398 = vpack.c.b16 %v5396, %v5395
        %v5402 = vsel %vm5283, %v5255, 0
        %5404 = vmatprep.subr.bf16.mxu0 0
        %5405 = vmatpush1.bf16.msra.mxu0 %v5397
        %5406 = vmatprep.subr.bf16.mxu0 0
        %5407 = vmatpush1.bf16.msra.mxu0 %v5398
        %5408 = vmatprep.subr.bf16.mxu0 0
        %5409 = vmatpush1.bf16.msra.mxu0 0
        %5410 = vmatprep.subr.bf16.mxu0 0
        %5411 = vmatpush1.bf16.msra.mxu0 0
        %5412 = vmatprep.subr.bf16.mxu0 0
        %5413 = vmatpush1.bf16.msra.mxu0 0
        %5414 = vmatprep.subr.bf16.mxu0 0
        %5415 = vmatpush1.bf16.msra.mxu0 0
        %5416 = vmatprep.subr.bf16.mxu0 0
        %5417 = vmatpush1.bf16.msra.mxu0 0
        %5418 = vmatprep.subr.bf16.mxu0 0
        %5419 = vmatpush1.bf16.msra.mxu0 0
        %5420 = vmatprep.subr.bf16.mxu0 0
        %5421 = vmatpush1.bf16.msra.mxu0 0
        %5422 = vmatprep.subr.bf16.mxu0 0
        %5423 = vmatpush1.bf16.msra.mxu0 0
        %5424 = vmatprep.subr.bf16.mxu0 0
        %5425 = vmatpush1.bf16.msra.mxu0 0
        %5426 = vmatprep.subr.bf16.mxu0 0
        %5427 = vmatpush1.bf16.msra.mxu0 0
        %5428 = vmatprep.subr.bf16.mxu0 0
        %5429 = vmatpush1.bf16.msra.mxu0 0
        %5430 = vmatprep.subr.bf16.mxu0 0
        %5431 = vmatpush1.bf16.msra.mxu0 0
        %5432 = vmatprep.subr.bf16.mxu0 0
        %5433 = vmatpush1.bf16.msra.mxu0 0
        %5434 = vmatprep.subr.bf16.mxu0 0
        %5435 = vmatpush1.bf16.msra.mxu0 0
        %5436 = vmatprep.mubr.bf16.mxu0 0
        %5437 = vmatmul.mubr.bf16.gmra.mrb[0].mxu0 %v5402
        %v5438 = vpop.f32.mrb[0].mxu0
        %v5439 = vadd.f32 0.0, %v5438
        %v5440 = vpop.f32.mrb[0].mxu0
        %v5441 = vpop.f32.mrb[0].mxu0
        %v5442 = vadd.f32 0.0, %v5441
        %v5443 = vpop.f32.mrb[0].mxu0
        %5444 = vdwg.mxu0
        %v5445 = vadd.f32 %v5378, %v5439
        %v5446 = vadd.f32 %v5381, %v5442
        %s5447 = scalar_lea.vmem %s10, 48
        %v5448 = vld [vmem:[%s5447] sm:$0xf]
        %v5449 = vld [vmem:[%s5447 + $0x4] sm:$0xf]
        %v5450 = vld [vmem:[%s5447 + $0x8] sm:$0xf]
        %v5451 = vld [vmem:[%s5447 + $0xc] sm:$0xf]
        %v5456 = vunpack.c.l.b16 %v5448
        %v5457 = vunpack.c.l.b16 %v5449
        %v5458 = vunpack.c.l.b16 %v5450
        %v5459 = vunpack.c.l.b16 %v5451
        %v5460 = vpack.c.b16 %v5457, %v5456
        %v5461 = vpack.c.b16 %v5459, %v5458
        %v5465 = vsel %vm5283, %v5256, 0
        %5467 = vmatprep.subr.bf16.mxu0 0
        %5468 = vmatpush1.bf16.msra.mxu0 %v5460
        %5469 = vmatprep.subr.bf16.mxu0 0
        %5470 = vmatpush1.bf16.msra.mxu0 %v5461
        %5471 = vmatprep.subr.bf16.mxu0 0
        %5472 = vmatpush1.bf16.msra.mxu0 0
        %5473 = vmatprep.subr.bf16.mxu0 0
        %5474 = vmatpush1.bf16.msra.mxu0 0
        %5475 = vmatprep.subr.bf16.mxu0 0
        %5476 = vmatpush1.bf16.msra.mxu0 0
        %5477 = vmatprep.subr.bf16.mxu0 0
        %5478 = vmatpush1.bf16.msra.mxu0 0
        %5479 = vmatprep.subr.bf16.mxu0 0
        %5480 = vmatpush1.bf16.msra.mxu0 0
        %5481 = vmatprep.subr.bf16.mxu0 0
        %5482 = vmatpush1.bf16.msra.mxu0 0
        %5483 = vmatprep.subr.bf16.mxu0 0
        %5484 = vmatpush1.bf16.msra.mxu0 0
        %5485 = vmatprep.subr.bf16.mxu0 0
        %5486 = vmatpush1.bf16.msra.mxu0 0
        %5487 = vmatprep.subr.bf16.mxu0 0
        %5488 = vmatpush1.bf16.msra.mxu0 0
        %5489 = vmatprep.subr.bf16.mxu0 0
        %5490 = vmatpush1.bf16.msra.mxu0 0
        %5491 = vmatprep.subr.bf16.mxu0 0
        %5492 = vmatpush1.bf16.msra.mxu0 0
        %5493 = vmatprep.subr.bf16.mxu0 0
        %5494 = vmatpush1.bf16.msra.mxu0 0
        %5495 = vmatprep.subr.bf16.mxu0 0
        %5496 = vmatpush1.bf16.msra.mxu0 0
        %5497 = vmatprep.subr.bf16.mxu0 0
        %5498 = vmatpush1.bf16.msra.mxu0 0
        %5499 = vmatprep.mubr.bf16.mxu0 0
        %5500 = vmatmul.mubr.bf16.gmra.mrb[0].mxu0 %v5465
        %v5501 = vpop.f32.mrb[0].mxu0
        %v5502 = vadd.f32 0.0, %v5501
        %v5503 = vpop.f32.mrb[0].mxu0
        %v5504 = vpop.f32.mrb[0].mxu0
        %v5505 = vadd.f32 0.0, %v5504
        %v5506 = vpop.f32.mrb[0].mxu0
        %5507 = vdwg.mxu0
        %v5508 = vadd.f32 %v5445, %v5502
        %v5509 = vadd.f32 %v5446, %v5505
        %s5510 = scalar_lea.vmem %s10, 64
        %v5511 = vld [vmem:[%s5510] sm:$0xf]
        %v5512 = vld [vmem:[%s5510 + $0x4] sm:$0xf]
        %v5513 = vld [vmem:[%s5510 + $0x8] sm:$0xf]
        %v5514 = vld [vmem:[%s5510 + $0xc] sm:$0xf]
        %v5519 = vunpack.c.l.b16 %v5511
        %v5520 = vunpack.c.l.b16 %v5512
        %v5521 = vunpack.c.l.b16 %v5513
        %v5522 = vunpack.c.l.b16 %v5514
        %v5523 = vpack.c.b16 %v5520, %v5519
        %v5524 = vpack.c.b16 %v5522, %v5521
        %v5528 = vsel %vm5283, %v5257, 0
        %5530 = vmatprep.subr.bf16.mxu0 0
        %5531 = vmatpush1.bf16.msra.mxu0 %v5523
        %5532 = vmatprep.subr.bf16.mxu0 0
        %5533 = vmatpush1.bf16.msra.mxu0 %v5524
        %5534 = vmatprep.subr.bf16.mxu0 0
        %5535 = vmatpush1.bf16.msra.mxu0 0
        %5536 = vmatprep.subr.bf16.mxu0 0
        %5537 = vmatpush1.bf16.msra.mxu0 0
        %5538 = vmatprep.subr.bf16.mxu0 0
        %5539 = vmatpush1.bf16.msra.mxu0 0
        %5540 = vmatprep.subr.bf16.mxu0 0
        %5541 = vmatpush1.bf16.msra.mxu0 0
        %5542 = vmatprep.subr.bf16.mxu0 0
        %5543 = vmatpush1.bf16.msra.mxu0 0
        %5544 = vmatprep.subr.bf16.mxu0 0
        %5545 = vmatpush1.bf16.msra.mxu0 0
        %5546 = vmatprep.subr.bf16.mxu0 0
        %5547 = vmatpush1.bf16.msra.mxu0 0
        %5548 = vmatprep.subr.bf16.mxu0 0
        %5549 = vmatpush1.bf16.msra.mxu0 0
        %5550 = vmatprep.subr.bf16.mxu0 0
        %5551 = vmatpush1.bf16.msra.mxu0 0
        %5552 = vmatprep.subr.bf16.mxu0 0
        %5553 = vmatpush1.bf16.msra.mxu0 0
        %5554 = vmatprep.subr.bf16.mxu0 0
        %5555 = vmatpush1.bf16.msra.mxu0 0
        %5556 = vmatprep.subr.bf16.mxu0 0
        %5557 = vmatpush1.bf16.msra.mxu0 0
        %5558 = vmatprep.subr.bf16.mxu0 0
        %5559 = vmatpush1.bf16.msra.mxu0 0
        %5560 = vmatprep.subr.bf16.mxu0 0
        %5561 = vmatpush1.bf16.msra.mxu0 0
        %5562 = vmatprep.mubr.bf16.mxu0 0
        %5563 = vmatmul.mubr.bf16.gmra.mrb[0].mxu0 %v5528
        %v5564 = vpop.f32.mrb[0].mxu0
        %v5565 = vadd.f32 0.0, %v5564
        %v5566 = vpop.f32.mrb[0].mxu0
        %v5567 = vpop.f32.mrb[0].mxu0
        %v5568 = vadd.f32 0.0, %v5567
        %v5569 = vpop.f32.mrb[0].mxu0
        %5570 = vdwg.mxu0
        %v5571 = vadd.f32 %v5508, %v5565
        %v5572 = vadd.f32 %v5509, %v5568
        %s5573 = scalar_lea.vmem %s10, 80
        %v5574 = vld [vmem:[%s5573] sm:$0xf]
        %v5575 = vld [vmem:[%s5573 + $0x4] sm:$0xf]
        %v5576 = vld [vmem:[%s5573 + $0x8] sm:$0xf]
        %v5577 = vld [vmem:[%s5573 + $0xc] sm:$0xf]
        %v5582 = vunpack.c.l.b16 %v5574
        %v5583 = vunpack.c.l.b16 %v5575
        %v5584 = vunpack.c.l.b16 %v5576
        %v5585 = vunpack.c.l.b16 %v5577
        %v5586 = vpack.c.b16 %v5583, %v5582
        %v5587 = vpack.c.b16 %v5585, %v5584
        %v5591 = vsel %vm5283, %v5258, 0
        %5593 = vmatprep.subr.bf16.mxu0 0
        %5594 = vmatpush1.bf16.msra.mxu0 %v5586
        %5595 = vmatprep.subr.bf16.mxu0 0
        %5596 = vmatpush1.bf16.msra.mxu0 %v5587
        %5597 = vmatprep.subr.bf16.mxu0 0
        %5598 = vmatpush1.bf16.msra.mxu0 0
        %5599 = vmatprep.subr.bf16.mxu0 0
        %5600 = vmatpush1.bf16.msra.mxu0 0
        %5601 = vmatprep.subr.bf16.mxu0 0
        %5602 = vmatpush1.bf16.msra.mxu0 0
        %5603 = vmatprep.subr.bf16.mxu0 0
        %5604 = vmatpush1.bf16.msra.mxu0 0
        %5605 = vmatprep.subr.bf16.mxu0 0
        %5606 = vmatpush1.bf16.msra.mxu0 0
        %5607 = vmatprep.subr.bf16.mxu0 0
        %5608 = vmatpush1.bf16.msra.mxu0 0
        %5609 = vmatprep.subr.bf16.mxu0 0
        %5610 = vmatpush1.bf16.msra.mxu0 0
        %5611 = vmatprep.subr.bf16.mxu0 0
        %5612 = vmatpush1.bf16.msra.mxu0 0
        %5613 = vmatprep.subr.bf16.mxu0 0
        %5614 = vmatpush1.bf16.msra.mxu0 0
        %5615 = vmatprep.subr.bf16.mxu0 0
        %5616 = vmatpush1.bf16.msra.mxu0 0
        %5617 = vmatprep.subr.bf16.mxu0 0
        %5618 = vmatpush1.bf16.msra.mxu0 0
        %5619 = vmatprep.subr.bf16.mxu0 0
        %5620 = vmatpush1.bf16.msra.mxu0 0
        %5621 = vmatprep.subr.bf16.mxu0 0
        %5622 = vmatpush1.bf16.msra.mxu0 0
        %5623 = vmatprep.subr.bf16.mxu0 0
        %5624 = vmatpush1.bf16.msra.mxu0 0
        %5625 = vmatprep.mubr.bf16.mxu0 0
        %5626 = vmatmul.mubr.bf16.gmra.mrb[0].mxu0 %v5591
        %v5627 = vpop.f32.mrb[0].mxu0
        %v5628 = vadd.f32 0.0, %v5627
        %v5629 = vpop.f32.mrb[0].mxu0
        %v5630 = vpop.f32.mrb[0].mxu0
        %v5631 = vadd.f32 0.0, %v5630
        %v5632 = vpop.f32.mrb[0].mxu0
        %5633 = vdwg.mxu0
        %v5634 = vadd.f32 %v5571, %v5628
        %v5635 = vadd.f32 %v5572, %v5631
        %s5636 = scalar_lea.vmem %s10, 96
        %v5637 = vld [vmem:[%s5636] sm:$0xf]
        %v5638 = vld [vmem:[%s5636 + $0x4] sm:$0xf]
        %v5639 = vld [vmem:[%s5636 + $0x8] sm:$0xf]
        %v5640 = vld [vmem:[%s5636 + $0xc] sm:$0xf]
        %v5645 = vunpack.c.l.b16 %v5637
        %v5646 = vunpack.c.l.b16 %v5638
        %v5647 = vunpack.c.l.b16 %v5639
        %v5648 = vunpack.c.l.b16 %v5640
        %v5649 = vpack.c.b16 %v5646, %v5645
        %v5650 = vpack.c.b16 %v5648, %v5647
        %v5654 = vsel %vm5283, %v5259, 0
        %5656 = vmatprep.subr.bf16.mxu0 0
        %5657 = vmatpush1.bf16.msra.mxu0 %v5649
        %5658 = vmatprep.subr.bf16.mxu0 0
        %5659 = vmatpush1.bf16.msra.mxu0 %v5650
        %5660 = vmatprep.subr.bf16.mxu0 0
        %5661 = vmatpush1.bf16.msra.mxu0 0
        %5662 = vmatprep.subr.bf16.mxu0 0
        %5663 = vmatpush1.bf16.msra.mxu0 0
        %5664 = vmatprep.subr.bf16.mxu0 0
        %5665 = vmatpush1.bf16.msra.mxu0 0
        %5666 = vmatprep.subr.bf16.mxu0 0
        %5667 = vmatpush1.bf16.msra.mxu0 0
        %5668 = vmatprep.subr.bf16.mxu0 0
        %5669 = vmatpush1.bf16.msra.mxu0 0
        %5670 = vmatprep.subr.bf16.mxu0 0
        %5671 = vmatpush1.bf16.msra.mxu0 0
        %5672 = vmatprep.subr.bf16.mxu0 0
        %5673 = vmatpush1.bf16.msra.mxu0 0
        %5674 = vmatprep.subr.bf16.mxu0 0
        %5675 = vmatpush1.bf16.msra.mxu0 0
        %5676 = vmatprep.subr.bf16.mxu0 0
        %5677 = vmatpush1.bf16.msra.mxu0 0
        %5678 = vmatprep.subr.bf16.mxu0 0
        %5679 = vmatpush1.bf16.msra.mxu0 0
        %5680 = vmatprep.subr.bf16.mxu0 0
        %5681 = vmatpush1.bf16.msra.mxu0 0
        %5682 = vmatprep.subr.bf16.mxu0 0
        %5683 = vmatpush1.bf16.msra.mxu0 0
        %5684 = vmatprep.subr.bf16.mxu0 0
        %5685 = vmatpush1.bf16.msra.mxu0 0
        %5686 = vmatprep.subr.bf16.mxu0 0
        %5687 = vmatpush1.bf16.msra.mxu0 0
        %5688 = vmatprep.mubr.bf16.mxu0 0
        %5689 = vmatmul.mubr.bf16.gmra.mrb[0].mxu0 %v5654
        %v5690 = vpop.f32.mrb[0].mxu0
        %v5691 = vadd.f32 0.0, %v5690
        %v5692 = vpop.f32.mrb[0].mxu0
        %v5693 = vpop.f32.mrb[0].mxu0
        %v5694 = vadd.f32 0.0, %v5693
        %v5695 = vpop.f32.mrb[0].mxu0
        %5696 = vdwg.mxu0
        %v5697 = vadd.f32 %v5634, %v5691
        %v5698 = vadd.f32 %v5635, %v5694
        %s5699 = scalar_lea.vmem %s10, 112
        %v5700 = vld [vmem:[%s5699] sm:$0xf]
        %v5701 = vld [vmem:[%s5699 + $0x4] sm:$0xf]
        %v5702 = vld [vmem:[%s5699 + $0x8] sm:$0xf]
        %v5703 = vld [vmem:[%s5699 + $0xc] sm:$0xf]
        %v5708 = vunpack.c.l.b16 %v5700
        %v5709 = vunpack.c.l.b16 %v5701
        %v5710 = vunpack.c.l.b16 %v5702
        %v5711 = vunpack.c.l.b16 %v5703
        %v5712 = vpack.c.b16 %v5709, %v5708
        %v5713 = vpack.c.b16 %v5711, %v5710
        %v5717 = vsel %vm5283, %v5260, 0
        %5719 = vmatprep.subr.bf16.mxu0 0
        %5720 = vmatpush1.bf16.msra.mxu0 %v5712
        %5721 = vmatprep.subr.bf16.mxu0 0
        %5722 = vmatpush1.bf16.msra.mxu0 %v5713
        %5723 = vmatprep.subr.bf16.mxu0 0
        %5724 = vmatpush1.bf16.msra.mxu0 0
        %5725 = vmatprep.subr.bf16.mxu0 0
        %5726 = vmatpush1.bf16.msra.mxu0 0
        %5727 = vmatprep.subr.bf16.mxu0 0
        %5728 = vmatpush1.bf16.msra.mxu0 0
        %5729 = vmatprep.subr.bf16.mxu0 0
        %5730 = vmatpush1.bf16.msra.mxu0 0
        %5731 = vmatprep.subr.bf16.mxu0 0
        %5732 = vmatpush1.bf16.msra.mxu0 0
        %5733 = vmatprep.subr.bf16.mxu0 0
        %5734 = vmatpush1.bf16.msra.mxu0 0
        %5735 = vmatprep.subr.bf16.mxu0 0
        %5736 = vmatpush1.bf16.msra.mxu0 0
        %5737 = vmatprep.subr.bf16.mxu0 0
        %5738 = vmatpush1.bf16.msra.mxu0 0
        %5739 = vmatprep.subr.bf16.mxu0 0
        %5740 = vmatpush1.bf16.msra.mxu0 0
        %5741 = vmatprep.subr.bf16.mxu0 0
        %5742 = vmatpush1.bf16.msra.mxu0 0
        %5743 = vmatprep.subr.bf16.mxu0 0
        %5744 = vmatpush1.bf16.msra.mxu0 0
        %5745 = vmatprep.subr.bf16.mxu0 0
        %5746 = vmatpush1.bf16.msra.mxu0 0
        %5747 = vmatprep.subr.bf16.mxu0 0
        %5748 = vmatpush1.bf16.msra.mxu0 0
        %5749 = vmatprep.subr.bf16.mxu0 0
        %5750 = vmatpush1.bf16.msra.mxu0 0
        %5751 = vmatprep.mubr.bf16.mxu0 0
        %5752 = vmatmul.mubr.bf16.gmra.mrb[0].mxu0 %v5717
        %v5753 = vpop.f32.mrb[0].mxu0
        %v5754 = vadd.f32 0.0, %v5753
        %v5755 = vpop.f32.mrb[0].mxu0
        %v5756 = vpop.f32.mrb[0].mxu0
        %v5757 = vadd.f32 0.0, %v5756
        %v5758 = vpop.f32.mrb[0].mxu0
        %5759 = vdwg.mxu0
        %v5760 = vadd.f32 %v5697, %v5754
        %v5761 = vadd.f32 %v5698, %v5757
        %s5762 = scalar_lea.vmem %s10, 128
        %v5763 = vld [vmem:[%s5762] sm:$0xf]
        %v5764 = vld [vmem:[%s5762 + $0x4] sm:$0xf]
        %v5765 = vld [vmem:[%s5762 + $0x8] sm:$0xf]
        %v5766 = vld [vmem:[%s5762 + $0xc] sm:$0xf]
        %v5771 = vunpack.c.l.b16 %v5763
        %v5772 = vunpack.c.l.b16 %v5764
        %v5773 = vunpack.c.l.b16 %v5765
        %v5774 = vunpack.c.l.b16 %v5766
        %v5775 = vpack.c.b16 %v5772, %v5771
        %v5776 = vpack.c.b16 %v5774, %v5773
        %v5780 = vsel %vm5283, %v5261, 0
        %5782 = vmatprep.subr.bf16.mxu0 0
        %5783 = vmatpush1.bf16.msra.mxu0 %v5775
        %5784 = vmatprep.subr.bf16.mxu0 0
        %5785 = vmatpush1.bf16.msra.mxu0 %v5776
        %5786 = vmatprep.subr.bf16.mxu0 0
        %5787 = vmatpush1.bf16.msra.mxu0 0
        %5788 = vmatprep.subr.bf16.mxu0 0
        %5789 = vmatpush1.bf16.msra.mxu0 0
        %5790 = vmatprep.subr.bf16.mxu0 0
        %5791 = vmatpush1.bf16.msra.mxu0 0
        %5792 = vmatprep.subr.bf16.mxu0 0
        %5793 = vmatpush1.bf16.msra.mxu0 0
        %5794 = vmatprep.subr.bf16.mxu0 0
        %5795 = vmatpush1.bf16.msra.mxu0 0
        %5796 = vmatprep.subr.bf16.mxu0 0
        %5797 = vmatpush1.bf16.msra.mxu0 0
        %5798 = vmatprep.subr.bf16.mxu0 0
        %5799 = vmatpush1.bf16.msra.mxu0 0
        %5800 = vmatprep.subr.bf16.mxu0 0
        %5801 = vmatpush1.bf16.msra.mxu0 0
        %5802 = vmatprep.subr.bf16.mxu0 0
        %5803 = vmatpush1.bf16.msra.mxu0 0
        %5804 = vmatprep.subr.bf16.mxu0 0
        %5805 = vmatpush1.bf16.msra.mxu0 0
        %5806 = vmatprep.subr.bf16.mxu0 0
        %5807 = vmatpush1.bf16.msra.mxu0 0
        %5808 = vmatprep.subr.bf16.mxu0 0
        %5809 = vmatpush1.bf16.msra.mxu0 0
        %5810 = vmatprep.subr.bf16.mxu0 0
        %5811 = vmatpush1.bf16.msra.mxu0 0
        %5812 = vmatprep.subr.bf16.mxu0 0
        %5813 = vmatpush1.bf16.msra.mxu0 0
        %5814 = vmatprep.mubr.bf16.mxu0 0
        %5815 = vmatmul.mubr.bf16.gmra.mrb[0].mxu0 %v5780
        %v5816 = vpop.f32.mrb[0].mxu0
        %v5817 = vadd.f32 0.0, %v5816
        %v5818 = vpop.f32.mrb[0].mxu0
        %v5819 = vpop.f32.mrb[0].mxu0
        %v5820 = vadd.f32 0.0, %v5819
        %v5821 = vpop.f32.mrb[0].mxu0
        %5822 = vdwg.mxu0
        %v5823 = vadd.f32 %v5760, %v5817
        %v5824 = vadd.f32 %v5761, %v5820
        %v5825 = vld [vmem:[#allocation2] sm:$0x1]
        %v5827 = vlaneseq
        %v5828 = vshrl.u32 %v5827, 7
        %v5829 = vsub.s32 0, %v5828
        %v5830 = vrot.slane %v5825, %v5829
        %v5832 = vadd.f32 %v5823, %v5830
        %v5833 = vadd.f32 %v5824, %v5830
        %vm5834 = vcmask 7168
        %5835 = vst.msk [vmem:[%s533] sm:$0xff] %vm5834, %v5832
        %5836 = vst.msk [vmem:[%s533 + $0x8] sm:$0xff] %vm5834, %v5833
        %v5837 = vld [vmem:[%s12] sm:$0xf]
        %v5838 = vld [vmem:[%s12 + $0x4] sm:$0xf]
        %v5839 = vld [vmem:[%s12 + $0x8] sm:$0xf]
        %v5840 = vld [vmem:[%s12 + $0xc] sm:$0xf]
        %v5841 = vld [vmem:[%s12 + $0x10] sm:$0xf]
        %v5842 = vld [vmem:[%s12 + $0x14] sm:$0xf]
        %v5843 = vld [vmem:[%s12 + $0x18] sm:$0xf]
        %v5844 = vld [vmem:[%s12 + $0x1c] sm:$0xf]
        %v5845 = vld [vmem:[%s12 + $0x20] sm:$0xf]
        %v5846 = vld [vmem:[%s12 + $0x24] sm:$0xf]
        %v5847 = vld [vmem:[%s12 + $0x28] sm:$0xf]
        %v5848 = vld [vmem:[%s12 + $0x2c] sm:$0xf]
        %v5849 = vld [vmem:[%s12 + $0x30] sm:$0xf]
        %v5850 = vld [vmem:[%s12 + $0x34] sm:$0xf]
        %v5851 = vld [vmem:[%s12 + $0x38] sm:$0xf]
        %v5852 = vld [vmem:[%s12 + $0x3c] sm:$0xf]
        %v5853 = vld [vmem:[%s12 + $0x40] sm:$0xf]
        %v5854 = vld [vmem:[%s12 + $0x44] sm:$0xf]
        %v5855 = vld [vmem:[%s12 + $0x48] sm:$0xf]
        %v5856 = vld [vmem:[%s12 + $0x4c] sm:$0xf]
        %v5857 = vld [vmem:[%s12 + $0x50] sm:$0xf]
        %v5858 = vld [vmem:[%s12 + $0x54] sm:$0xf]
        %v5859 = vld [vmem:[%s12 + $0x58] sm:$0xf]
        %v5860 = vld [vmem:[%s12 + $0x5c] sm:$0xf]
        %v5861 = vld [vmem:[%s12 + $0x60] sm:$0xf]
        %v5862 = vld [vmem:[%s12 + $0x64] sm:$0xf]
        %v5863 = vld [vmem:[%s12 + $0x68] sm:$0xf]
        %v5864 = vld [vmem:[%s12 + $0x6c] sm:$0xf]
        %v5865 = vld [vmem:[%s12 + $0x70] sm:$0xf]
        %v5866 = vld [vmem:[%s12 + $0x74] sm:$0xf]
        %v5867 = vld [vmem:[%s12 + $0x78] sm:$0xf]
        %v5868 = vld [vmem:[%s12 + $0x7c] sm:$0xf]
        %v5901 = vunpack.c.l.b16 %v5837
        %v5902 = vunpack.c.l.b16 %v5838
        %v5903 = vunpack.c.l.b16 %v5839
        %v5904 = vunpack.c.l.b16 %v5840
        %v5905 = vunpack.c.l.b16 %v5841
        %v5906 = vunpack.c.l.b16 %v5842
        %v5907 = vunpack.c.l.b16 %v5843
        %v5908 = vunpack.c.l.b16 %v5844
        %v5909 = vunpack.c.l.b16 %v5845
        %v5910 = vunpack.c.l.b16 %v5846
        %v5911 = vunpack.c.l.b16 %v5847
        %v5912 = vunpack.c.l.b16 %v5848
        %v5913 = vunpack.c.l.b16 %v5849
        %v5914 = vunpack.c.l.b16 %v5850
        %v5915 = vunpack.c.l.b16 %v5851
        %v5916 = vunpack.c.l.b16 %v5852
        %v5917 = vunpack.c.l.b16 %v5853
        %v5918 = vunpack.c.l.b16 %v5854
        %v5919 = vunpack.c.l.b16 %v5855
        %v5920 = vunpack.c.l.b16 %v5856
        %v5921 = vunpack.c.l.b16 %v5857
        %v5922 = vunpack.c.l.b16 %v5858
        %v5923 = vunpack.c.l.b16 %v5859
        %v5924 = vunpack.c.l.b16 %v5860
        %v5925 = vunpack.c.l.b16 %v5861
        %v5926 = vunpack.c.l.b16 %v5862
        %v5927 = vunpack.c.l.b16 %v5863
        %v5928 = vunpack.c.l.b16 %v5864
        %v5929 = vunpack.c.l.b16 %v5865
        %v5930 = vunpack.c.l.b16 %v5866
        %v5931 = vunpack.c.l.b16 %v5867
        %v5932 = vunpack.c.l.b16 %v5868
        %v5933 = vpack.c.b16 %v5902, %v5901
        %v5934 = vpack.c.b16 %v5904, %v5903
        %v5935 = vpack.c.b16 %v5906, %v5905
        %v5936 = vpack.c.b16 %v5908, %v5907
        %v5937 = vpack.c.b16 %v5910, %v5909
        %v5938 = vpack.c.b16 %v5912, %v5911
        %v5939 = vpack.c.b16 %v5914, %v5913
        %v5940 = vpack.c.b16 %v5916, %v5915
        %v5941 = vpack.c.b16 %v5918, %v5917
        %v5942 = vpack.c.b16 %v5920, %v5919
        %v5943 = vpack.c.b16 %v5922, %v5921
        %v5944 = vpack.c.b16 %v5924, %v5923
        %v5945 = vpack.c.b16 %v5926, %v5925
        %v5946 = vpack.c.b16 %v5928, %v5927
        %v5947 = vpack.c.b16 %v5930, %v5929
        %v5948 = vpack.c.b16 %v5932, %v5931
        %v5950 = vsel %vm662, %v5933, 0
        %v5953 = vsel %vm662, %v5934, 0
        %v5956 = vsel %vm662, %v5935, 0
        %v5959 = vsel %vm662, %v5936, 0
        %v5962 = vsel %vm662, %v5937, 0
        %v5965 = vsel %vm662, %v5938, 0
        %v5968 = vsel %vm662, %v5939, 0
        %v5971 = vsel %vm662, %v5940, 0
        %v5974 = vsel %vm662, %v5941, 0
        %v5977 = vsel %vm662, %v5942, 0
        %v5980 = vsel %vm662, %v5943, 0
        %v5983 = vsel %vm662, %v5944, 0
        %v5986 = vsel %vm662, %v5945, 0
        %v5989 = vsel %vm662, %v5946, 0
        %v5992 = vsel %vm662, %v5947, 0
        %v5995 = vsel %vm662, %v5948, 0
        %5997 = vmatprep.subr.bf16.mxu0 0
        %5998 = vmatpush1.bf16.msra.mxu0 %v5057
        %5999 = vmatprep.subr.bf16.mxu0 0
        %6000 = vmatpush1.bf16.msra.mxu0 0
        %6001 = vmatprep.subr.bf16.mxu0 0
        %6002 = vmatpush1.bf16.msra.mxu0 0
        %6003 = vmatprep.subr.bf16.mxu0 0
        %6004 = vmatpush1.bf16.msra.mxu0 0
        %6005 = vmatprep.subr.bf16.mxu0 0
        %6006 = vmatpush1.bf16.msra.mxu0 0
        %6007 = vmatprep.subr.bf16.mxu0 0
        %6008 = vmatpush1.bf16.msra.mxu0 0
        %6009 = vmatprep.subr.bf16.mxu0 0
        %6010 = vmatpush1.bf16.msra.mxu0 0
        %6011 = vmatprep.subr.bf16.mxu0 0
        %6012 = vmatpush1.bf16.msra.mxu0 0
        %6013 = vmatprep.subr.bf16.mxu0 0
        %6014 = vmatpush1.bf16.msra.mxu0 0
        %6015 = vmatprep.subr.bf16.mxu0 0
        %6016 = vmatpush1.bf16.msra.mxu0 0
        %6017 = vmatprep.subr.bf16.mxu0 0
        %6018 = vmatpush1.bf16.msra.mxu0 0
        %6019 = vmatprep.subr.bf16.mxu0 0
        %6020 = vmatpush1.bf16.msra.mxu0 0
        %6021 = vmatprep.subr.bf16.mxu0 0
        %6022 = vmatpush1.bf16.msra.mxu0 0
        %6023 = vmatprep.subr.bf16.mxu0 0
        %6024 = vmatpush1.bf16.msra.mxu0 0
        %6025 = vmatprep.subr.bf16.mxu0 0
        %6026 = vmatpush1.bf16.msra.mxu0 0
        %6027 = vmatprep.subr.bf16.mxu0 0
        %6028 = vmatpush1.bf16.msra.mxu0 0
        %6029 = vmatprep.mubr.bf16.mxu0 0
        %6030 = vmatmul.mubr.bf16.gmra.mrb[0].mxu0 %v5950
        %v6031 = vpop.f32.mrb[0].mxu0
        %v6032 = vadd.f32 0.0, %v6031
        %v6033 = vpop.f32.mrb[0].mxu0
        %v6034 = vpop.f32.mrb[0].mxu0
        %v6035 = vadd.f32 0.0, %v6034
        %v6036 = vpop.f32.mrb[0].mxu0
        %6037 = vmatprep.mubr.bf16.mxu0 0
        %6038 = vmatmul.mubr.bf16.gmra.mrb[0].mxu0 %v5953
        %v6039 = vpop.f32.mrb[0].mxu0
        %v6040 = vadd.f32 0.0, %v6039
        %v6041 = vpop.f32.mrb[0].mxu0
        %v6042 = vpop.f32.mrb[0].mxu0
        %v6043 = vadd.f32 0.0, %v6042
        %v6044 = vpop.f32.mrb[0].mxu0
        %6045 = vmatprep.mubr.bf16.mxu0 0
        %6046 = vmatmul.mubr.bf16.gmra.mrb[0].mxu0 %v5956
        %v6047 = vpop.f32.mrb[0].mxu0
        %v6048 = vadd.f32 0.0, %v6047
        %v6049 = vpop.f32.mrb[0].mxu0
        %v6050 = vpop.f32.mrb[0].mxu0
        %v6051 = vadd.f32 0.0, %v6050
        %v6052 = vpop.f32.mrb[0].mxu0
        %6053 = vmatprep.mubr.bf16.mxu0 0
        %6054 = vmatmul.mubr.bf16.gmra.mrb[0].mxu0 %v5959
        %v6055 = vpop.f32.mrb[0].mxu0
        %v6056 = vadd.f32 0.0, %v6055
        %v6057 = vpop.f32.mrb[0].mxu0
        %v6058 = vpop.f32.mrb[0].mxu0
        %v6059 = vadd.f32 0.0, %v6058
        %v6060 = vpop.f32.mrb[0].mxu0
        %6061 = vmatprep.mubr.bf16.mxu0 0
        %6062 = vmatmul.mubr.bf16.gmra.mrb[0].mxu0 %v5962
        %v6063 = vpop.f32.mrb[0].mxu0
        %v6064 = vadd.f32 0.0, %v6063
        %v6065 = vpop.f32.mrb[0].mxu0
        %v6066 = vpop.f32.mrb[0].mxu0
        %v6067 = vadd.f32 0.0, %v6066
        %v6068 = vpop.f32.mrb[0].mxu0
        %6069 = vmatprep.mubr.bf16.mxu0 0
        %6070 = vmatmul.mubr.bf16.gmra.mrb[0].mxu0 %v5965
        %v6071 = vpop.f32.mrb[0].mxu0
        %v6072 = vadd.f32 0.0, %v6071
        %v6073 = vpop.f32.mrb[0].mxu0
        %v6074 = vpop.f32.mrb[0].mxu0
        %v6075 = vadd.f32 0.0, %v6074
        %v6076 = vpop.f32.mrb[0].mxu0
        %6077 = vmatprep.mubr.bf16.mxu0 0
        %6078 = vmatmul.mubr.bf16.gmra.mrb[0].mxu0 %v5968
        %v6079 = vpop.f32.mrb[0].mxu0
        %v6080 = vadd.f32 0.0, %v6079
        %v6081 = vpop.f32.mrb[0].mxu0
        %v6082 = vpop.f32.mrb[0].mxu0
        %v6083 = vadd.f32 0.0, %v6082
        %v6084 = vpop.f32.mrb[0].mxu0
        %6085 = vmatprep.mubr.bf16.mxu0 0
        %6086 = vmatmul.mubr.bf16.gmra.mrb[0].mxu0 %v5971
        %v6087 = vpop.f32.mrb[0].mxu0
        %v6088 = vadd.f32 0.0, %v6087
        %v6089 = vpop.f32.mrb[0].mxu0
        %v6090 = vpop.f32.mrb[0].mxu0
        %v6091 = vadd.f32 0.0, %v6090
        %v6092 = vpop.f32.mrb[0].mxu0
        %6093 = vmatprep.mubr.bf16.mxu0 0
        %6094 = vmatmul.mubr.bf16.gmra.mrb[0].mxu0 %v5974
        %v6095 = vpop.f32.mrb[0].mxu0
        %v6096 = vadd.f32 0.0, %v6095
        %v6097 = vpop.f32.mrb[0].mxu0
        %v6098 = vpop.f32.mrb[0].mxu0
        %v6099 = vadd.f32 0.0, %v6098
        %v6100 = vpop.f32.mrb[0].mxu0
        %6101 = vmatprep.mubr.bf16.mxu0 0
        %6102 = vmatmul.mubr.bf16.gmra.mrb[0].mxu0 %v5977
        %v6103 = vpop.f32.mrb[0].mxu0
        %v6104 = vadd.f32 0.0, %v6103
        %v6105 = vpop.f32.mrb[0].mxu0
        %v6106 = vpop.f32.mrb[0].mxu0
        %v6107 = vadd.f32 0.0, %v6106
        %v6108 = vpop.f32.mrb[0].mxu0
        %6109 = vmatprep.mubr.bf16.mxu0 0
        %6110 = vmatmul.mubr.bf16.gmra.mrb[0].mxu0 %v5980
        %v6111 = vpop.f32.mrb[0].mxu0
        %v6112 = vadd.f32 0.0, %v6111
        %v6113 = vpop.f32.mrb[0].mxu0
        %v6114 = vpop.f32.mrb[0].mxu0
        %v6115 = vadd.f32 0.0, %v6114
        %v6116 = vpop.f32.mrb[0].mxu0
        %6117 = vmatprep.mubr.bf16.mxu0 0
        %6118 = vmatmul.mubr.bf16.gmra.mrb[0].mxu0 %v5983
        %v6119 = vpop.f32.mrb[0].mxu0
        %v6120 = vadd.f32 0.0, %v6119
        %v6121 = vpop.f32.mrb[0].mxu0
        %v6122 = vpop.f32.mrb[0].mxu0
        %v6123 = vadd.f32 0.0, %v6122
        %v6124 = vpop.f32.mrb[0].mxu0
        %6125 = vmatprep.mubr.bf16.mxu0 0
        %6126 = vmatmul.mubr.bf16.gmra.mrb[0].mxu0 %v5986
        %v6127 = vpop.f32.mrb[0].mxu0
        %v6128 = vadd.f32 0.0, %v6127
        %v6129 = vpop.f32.mrb[0].mxu0
        %v6130 = vpop.f32.mrb[0].mxu0
        %v6131 = vadd.f32 0.0, %v6130
        %v6132 = vpop.f32.mrb[0].mxu0
        %6133 = vmatprep.mubr.bf16.mxu0 0
        %6134 = vmatmul.mubr.bf16.gmra.mrb[0].mxu0 %v5989
        %v6135 = vpop.f32.mrb[0].mxu0
        %v6136 = vadd.f32 0.0, %v6135
        %v6137 = vpop.f32.mrb[0].mxu0
        %v6138 = vpop.f32.mrb[0].mxu0
        %v6139 = vadd.f32 0.0, %v6138
        %v6140 = vpop.f32.mrb[0].mxu0
        %6141 = vmatprep.mubr.bf16.mxu0 0
        %6142 = vmatmul.mubr.bf16.gmra.mrb[0].mxu0 %v5992
        %v6143 = vpop.f32.mrb[0].mxu0
        %v6144 = vadd.f32 0.0, %v6143
        %v6145 = vpop.f32.mrb[0].mxu0
        %v6146 = vpop.f32.mrb[0].mxu0
        %v6147 = vadd.f32 0.0, %v6146
        %v6148 = vpop.f32.mrb[0].mxu0
        %6149 = vmatprep.mubr.bf16.mxu0 0
        %6150 = vmatmul.mubr.bf16.gmra.mrb[0].mxu0 %v5995
        %v6151 = vpop.f32.mrb[0].mxu0
        %v6152 = vadd.f32 0.0, %v6151
        %v6153 = vpop.f32.mrb[0].mxu0
        %v6154 = vpop.f32.mrb[0].mxu0
        %v6155 = vadd.f32 0.0, %v6154
        %v6156 = vpop.f32.mrb[0].mxu0
        %6157 = vdwg.mxu0
        %v6158 = vpack.c.bf16 %v6035, %v6032
        %v6159 = vpack.c.bf16 %v6043, %v6040
        %v6160 = vpack.c.bf16 %v6051, %v6048
        %v6161 = vpack.c.bf16 %v6059, %v6056
        %v6162 = vpack.c.bf16 %v6067, %v6064
        %v6163 = vpack.c.bf16 %v6075, %v6072
        %v6164 = vpack.c.bf16 %v6083, %v6080
        %v6165 = vpack.c.bf16 %v6091, %v6088
        %v6166 = vpack.c.bf16 %v6099, %v6096
        %v6167 = vpack.c.bf16 %v6107, %v6104
        %v6168 = vpack.c.bf16 %v6115, %v6112
        %v6169 = vpack.c.bf16 %v6123, %v6120
        %v6170 = vpack.c.bf16 %v6131, %v6128
        %v6171 = vpack.c.bf16 %v6139, %v6136
        %v6172 = vpack.c.bf16 %v6147, %v6144
        %v6173 = vpack.c.bf16 %v6155, %v6152
        %v6174 = vld [vmem:[%s13] sm:$0xf]
        %v6175 = vld [vmem:[%s13 + $0x4] sm:$0xf]
        %v6176 = vld [vmem:[%s13 + $0x8] sm:$0xf]
        %v6177 = vld [vmem:[%s13 + $0xc] sm:$0xf]
        %s6178 = scalar_lea.vmem %s13, 16
        %v6179 = vld [vmem:[%s6178] sm:$0xf]
        %v6180 = vld [vmem:[%s6178 + $0x4] sm:$0xf]
        %v6181 = vld [vmem:[%s6178 + $0x8] sm:$0xf]
        %v6182 = vld [vmem:[%s6178 + $0xc] sm:$0xf]
        %v6187 = vunpack.c.l.b16 %v6179
        %v6188 = vunpack.c.l.b16 %v6180
        %v6189 = vunpack.c.l.b16 %v6181
        %v6190 = vunpack.c.l.b16 %v6182
        %v6191 = vpack.c.b16 %v6188, %v6187
        %v6192 = vpack.c.b16 %v6190, %v6189
        %v6196 = vsel %vm5283, %v6159, 0
        %6198 = vmatprep.subr.bf16.mxu0 0
        %6199 = vmatpush1.bf16.msra.mxu0 %v6191
        %6200 = vmatprep.subr.bf16.mxu0 0
        %6201 = vmatpush1.bf16.msra.mxu0 %v6192
        %6202 = vmatprep.subr.bf16.mxu0 0
        %6203 = vmatpush1.bf16.msra.mxu0 0
        %6204 = vmatprep.subr.bf16.mxu0 0
        %6205 = vmatpush1.bf16.msra.mxu0 0
        %6206 = vmatprep.subr.bf16.mxu0 0
        %6207 = vmatpush1.bf16.msra.mxu0 0
        %6208 = vmatprep.subr.bf16.mxu0 0
        %6209 = vmatpush1.bf16.msra.mxu0 0
        %6210 = vmatprep.subr.bf16.mxu0 0
        %6211 = vmatpush1.bf16.msra.mxu0 0
        %6212 = vmatprep.subr.bf16.mxu0 0
        %6213 = vmatpush1.bf16.msra.mxu0 0
        %6214 = vmatprep.subr.bf16.mxu0 0
        %6215 = vmatpush1.bf16.msra.mxu0 0
        %6216 = vmatprep.subr.bf16.mxu0 0
        %6217 = vmatpush1.bf16.msra.mxu0 0
        %6218 = vmatprep.subr.bf16.mxu0 0
        %6219 = vmatpush1.bf16.msra.mxu0 0
        %6220 = vmatprep.subr.bf16.mxu0 0
        %6221 = vmatpush1.bf16.msra.mxu0 0
        %6222 = vmatprep.subr.bf16.mxu0 0
        %6223 = vmatpush1.bf16.msra.mxu0 0
        %6224 = vmatprep.subr.bf16.mxu0 0
        %6225 = vmatpush1.bf16.msra.mxu0 0
        %6226 = vmatprep.subr.bf16.mxu0 0
        %6227 = vmatpush1.bf16.msra.mxu0 0
        %6228 = vmatprep.subr.bf16.mxu0 0
        %6229 = vmatpush1.bf16.msra.mxu0 0
        %6230 = vmatprep.mubr.bf16.mxu0 0
        %6231 = vmatmul.mubr.bf16.gmra.mrb[0].mxu0 %v6196
        %v6232 = vpop.f32.mrb[0].mxu0
        %v6233 = vadd.f32 0.0, %v6232
        %v6234 = vpop.f32.mrb[0].mxu0
        %v6235 = vpop.f32.mrb[0].mxu0
        %v6236 = vpop.f32.mrb[0].mxu0
        %6237 = vdwg.mxu0
        %v6242 = vunpack.c.l.b16 %v6174
        %v6243 = vunpack.c.l.b16 %v6175
        %v6244 = vunpack.c.l.b16 %v6176
        %v6245 = vunpack.c.l.b16 %v6177
        %v6246 = vpack.c.b16 %v6243, %v6242
        %v6247 = vpack.c.b16 %v6245, %v6244
        %v6251 = vsel %vm5283, %v6158, 0
        %6253 = vmatprep.subr.bf16.mxu0 0
        %6254 = vmatpush1.bf16.msra.mxu0 %v6246
        %6255 = vmatprep.subr.bf16.mxu0 0
        %6256 = vmatpush1.bf16.msra.mxu0 %v6247
        %6257 = vmatprep.subr.bf16.mxu0 0
        %6258 = vmatpush1.bf16.msra.mxu0 0
        %6259 = vmatprep.subr.bf16.mxu0 0
        %6260 = vmatpush1.bf16.msra.mxu0 0
        %6261 = vmatprep.subr.bf16.mxu0 0
        %6262 = vmatpush1.bf16.msra.mxu0 0
        %6263 = vmatprep.subr.bf16.mxu0 0
        %6264 = vmatpush1.bf16.msra.mxu0 0
        %6265 = vmatprep.subr.bf16.mxu0 0
        %6266 = vmatpush1.bf16.msra.mxu0 0
        %6267 = vmatprep.subr.bf16.mxu0 0
        %6268 = vmatpush1.bf16.msra.mxu0 0
        %6269 = vmatprep.subr.bf16.mxu0 0
        %6270 = vmatpush1.bf16.msra.mxu0 0
        %6271 = vmatprep.subr.bf16.mxu0 0
        %6272 = vmatpush1.bf16.msra.mxu0 0
        %6273 = vmatprep.subr.bf16.mxu0 0
        %6274 = vmatpush1.bf16.msra.mxu0 0
        %6275 = vmatprep.subr.bf16.mxu0 0
        %6276 = vmatpush1.bf16.msra.mxu0 0
        %6277 = vmatprep.subr.bf16.mxu0 0
        %6278 = vmatpush1.bf16.msra.mxu0 0
        %6279 = vmatprep.subr.bf16.mxu0 0
        %6280 = vmatpush1.bf16.msra.mxu0 0
        %6281 = vmatprep.subr.bf16.mxu0 0
        %6282 = vmatpush1.bf16.msra.mxu0 0
        %6283 = vmatprep.subr.bf16.mxu0 0
        %6284 = vmatpush1.bf16.msra.mxu0 0
        %6285 = vmatprep.mubr.bf16.mxu0 0
        %6286 = vmatmul.mubr.bf16.gmra.mrb[0].mxu0 %v6251
        %v6287 = vpop.f32.mrb[0].mxu0
        %v6288 = vadd.f32 %v6233, %v6287
        %v6289 = vpop.f32.mrb[0].mxu0
        %v6290 = vpop.f32.mrb[0].mxu0
        %v6291 = vpop.f32.mrb[0].mxu0
        %6292 = vdwg.mxu0
        %s6293 = scalar_lea.vmem %s13, 32
        %v6294 = vld [vmem:[%s6293] sm:$0xf]
        %v6295 = vld [vmem:[%s6293 + $0x4] sm:$0xf]
        %v6296 = vld [vmem:[%s6293 + $0x8] sm:$0xf]
        %v6297 = vld [vmem:[%s6293 + $0xc] sm:$0xf]
        %v6302 = vunpack.c.l.b16 %v6294
        %v6303 = vunpack.c.l.b16 %v6295
        %v6304 = vunpack.c.l.b16 %v6296
        %v6305 = vunpack.c.l.b16 %v6297
        %v6306 = vpack.c.b16 %v6303, %v6302
        %v6307 = vpack.c.b16 %v6305, %v6304
        %v6311 = vsel %vm5283, %v6160, 0
        %6313 = vmatprep.subr.bf16.mxu0 0
        %6314 = vmatpush1.bf16.msra.mxu0 %v6306
        %6315 = vmatprep.subr.bf16.mxu0 0
        %6316 = vmatpush1.bf16.msra.mxu0 %v6307
        %6317 = vmatprep.subr.bf16.mxu0 0
        %6318 = vmatpush1.bf16.msra.mxu0 0
        %6319 = vmatprep.subr.bf16.mxu0 0
        %6320 = vmatpush1.bf16.msra.mxu0 0
        %6321 = vmatprep.subr.bf16.mxu0 0
        %6322 = vmatpush1.bf16.msra.mxu0 0
        %6323 = vmatprep.subr.bf16.mxu0 0
        %6324 = vmatpush1.bf16.msra.mxu0 0
        %6325 = vmatprep.subr.bf16.mxu0 0
        %6326 = vmatpush1.bf16.msra.mxu0 0
        %6327 = vmatprep.subr.bf16.mxu0 0
        %6328 = vmatpush1.bf16.msra.mxu0 0
        %6329 = vmatprep.subr.bf16.mxu0 0
        %6330 = vmatpush1.bf16.msra.mxu0 0
        %6331 = vmatprep.subr.bf16.mxu0 0
        %6332 = vmatpush1.bf16.msra.mxu0 0
        %6333 = vmatprep.subr.bf16.mxu0 0
        %6334 = vmatpush1.bf16.msra.mxu0 0
        %6335 = vmatprep.subr.bf16.mxu0 0
        %6336 = vmatpush1.bf16.msra.mxu0 0
        %6337 = vmatprep.subr.bf16.mxu0 0
        %6338 = vmatpush1.bf16.msra.mxu0 0
        %6339 = vmatprep.subr.bf16.mxu0 0
        %6340 = vmatpush1.bf16.msra.mxu0 0
        %6341 = vmatprep.subr.bf16.mxu0 0
        %6342 = vmatpush1.bf16.msra.mxu0 0
        %6343 = vmatprep.subr.bf16.mxu0 0
        %6344 = vmatpush1.bf16.msra.mxu0 0
        %6345 = vmatprep.mubr.bf16.mxu0 0
        %6346 = vmatmul.mubr.bf16.gmra.mrb[0].mxu0 %v6311
        %v6347 = vpop.f32.mrb[0].mxu0
        %v6348 = vadd.f32 0.0, %v6347
        %v6349 = vpop.f32.mrb[0].mxu0
        %v6350 = vpop.f32.mrb[0].mxu0
        %v6351 = vpop.f32.mrb[0].mxu0
        %6352 = vdwg.mxu0
        %v6353 = vadd.f32 %v6288, %v6348
        %s6354 = scalar_lea.vmem %s13, 48
        %v6355 = vld [vmem:[%s6354] sm:$0xf]
        %v6356 = vld [vmem:[%s6354 + $0x4] sm:$0xf]
        %v6357 = vld [vmem:[%s6354 + $0x8] sm:$0xf]
        %v6358 = vld [vmem:[%s6354 + $0xc] sm:$0xf]
        %v6363 = vunpack.c.l.b16 %v6355
        %v6364 = vunpack.c.l.b16 %v6356
        %v6365 = vunpack.c.l.b16 %v6357
        %v6366 = vunpack.c.l.b16 %v6358
        %v6367 = vpack.c.b16 %v6364, %v6363
        %v6368 = vpack.c.b16 %v6366, %v6365
        %v6372 = vsel %vm5283, %v6161, 0
        %6374 = vmatprep.subr.bf16.mxu0 0
        %6375 = vmatpush1.bf16.msra.mxu0 %v6367
        %6376 = vmatprep.subr.bf16.mxu0 0
        %6377 = vmatpush1.bf16.msra.mxu0 %v6368
        %6378 = vmatprep.subr.bf16.mxu0 0
        %6379 = vmatpush1.bf16.msra.mxu0 0
        %6380 = vmatprep.subr.bf16.mxu0 0
        %6381 = vmatpush1.bf16.msra.mxu0 0
        %6382 = vmatprep.subr.bf16.mxu0 0
        %6383 = vmatpush1.bf16.msra.mxu0 0
        %6384 = vmatprep.subr.bf16.mxu0 0
        %6385 = vmatpush1.bf16.msra.mxu0 0
        %6386 = vmatprep.subr.bf16.mxu0 0
        %6387 = vmatpush1.bf16.msra.mxu0 0
        %6388 = vmatprep.subr.bf16.mxu0 0
        %6389 = vmatpush1.bf16.msra.mxu0 0
        %6390 = vmatprep.subr.bf16.mxu0 0
        %6391 = vmatpush1.bf16.msra.mxu0 0
        %6392 = vmatprep.subr.bf16.mxu0 0
        %6393 = vmatpush1.bf16.msra.mxu0 0
        %6394 = vmatprep.subr.bf16.mxu0 0
        %6395 = vmatpush1.bf16.msra.mxu0 0
        %6396 = vmatprep.subr.bf16.mxu0 0
        %6397 = vmatpush1.bf16.msra.mxu0 0
        %6398 = vmatprep.subr.bf16.mxu0 0
        %6399 = vmatpush1.bf16.msra.mxu0 0
        %6400 = vmatprep.subr.bf16.mxu0 0
        %6401 = vmatpush1.bf16.msra.mxu0 0
        %6402 = vmatprep.subr.bf16.mxu0 0
        %6403 = vmatpush1.bf16.msra.mxu0 0
        %6404 = vmatprep.subr.bf16.mxu0 0
        %6405 = vmatpush1.bf16.msra.mxu0 0
        %6406 = vmatprep.mubr.bf16.mxu0 0
        %6407 = vmatmul.mubr.bf16.gmra.mrb[0].mxu0 %v6372
        %v6408 = vpop.f32.mrb[0].mxu0
        %v6409 = vadd.f32 0.0, %v6408
        %v6410 = vpop.f32.mrb[0].mxu0
        %v6411 = vpop.f32.mrb[0].mxu0
        %v6412 = vpop.f32.mrb[0].mxu0
        %6413 = vdwg.mxu0
        %v6414 = vadd.f32 %v6353, %v6409
        %s6415 = scalar_lea.vmem %s13, 64
        %v6416 = vld [vmem:[%s6415] sm:$0xf]
        %v6417 = vld [vmem:[%s6415 + $0x4] sm:$0xf]
        %v6418 = vld [vmem:[%s6415 + $0x8] sm:$0xf]
        %v6419 = vld [vmem:[%s6415 + $0xc] sm:$0xf]
        %v6424 = vunpack.c.l.b16 %v6416
        %v6425 = vunpack.c.l.b16 %v6417
        %v6426 = vunpack.c.l.b16 %v6418
        %v6427 = vunpack.c.l.b16 %v6419
        %v6428 = vpack.c.b16 %v6425, %v6424
        %v6429 = vpack.c.b16 %v6427, %v6426
        %v6433 = vsel %vm5283, %v6162, 0
        %6435 = vmatprep.subr.bf16.mxu0 0
        %6436 = vmatpush1.bf16.msra.mxu0 %v6428
        %6437 = vmatprep.subr.bf16.mxu0 0
        %6438 = vmatpush1.bf16.msra.mxu0 %v6429
        %6439 = vmatprep.subr.bf16.mxu0 0
        %6440 = vmatpush1.bf16.msra.mxu0 0
        %6441 = vmatprep.subr.bf16.mxu0 0
        %6442 = vmatpush1.bf16.msra.mxu0 0
        %6443 = vmatprep.subr.bf16.mxu0 0
        %6444 = vmatpush1.bf16.msra.mxu0 0
        %6445 = vmatprep.subr.bf16.mxu0 0
        %6446 = vmatpush1.bf16.msra.mxu0 0
        %6447 = vmatprep.subr.bf16.mxu0 0
        %6448 = vmatpush1.bf16.msra.mxu0 0
        %6449 = vmatprep.subr.bf16.mxu0 0
        %6450 = vmatpush1.bf16.msra.mxu0 0
        %6451 = vmatprep.subr.bf16.mxu0 0
        %6452 = vmatpush1.bf16.msra.mxu0 0
        %6453 = vmatprep.subr.bf16.mxu0 0
        %6454 = vmatpush1.bf16.msra.mxu0 0
        %6455 = vmatprep.subr.bf16.mxu0 0
        %6456 = vmatpush1.bf16.msra.mxu0 0
        %6457 = vmatprep.subr.bf16.mxu0 0
        %6458 = vmatpush1.bf16.msra.mxu0 0
        %6459 = vmatprep.subr.bf16.mxu0 0
        %6460 = vmatpush1.bf16.msra.mxu0 0
        %6461 = vmatprep.subr.bf16.mxu0 0
        %6462 = vmatpush1.bf16.msra.mxu0 0
        %6463 = vmatprep.subr.bf16.mxu0 0
        %6464 = vmatpush1.bf16.msra.mxu0 0
        %6465 = vmatprep.subr.bf16.mxu0 0
        %6466 = vmatpush1.bf16.msra.mxu0 0
        %6467 = vmatprep.mubr.bf16.mxu0 0
        %6468 = vmatmul.mubr.bf16.gmra.mrb[0].mxu0 %v6433
        %v6469 = vpop.f32.mrb[0].mxu0
        %v6470 = vadd.f32 0.0, %v6469
        %v6471 = vpop.f32.mrb[0].mxu0
        %v6472 = vpop.f32.mrb[0].mxu0
        %v6473 = vpop.f32.mrb[0].mxu0
        %6474 = vdwg.mxu0
        %v6475 = vadd.f32 %v6414, %v6470
        %s6476 = scalar_lea.vmem %s13, 80
        %v6477 = vld [vmem:[%s6476] sm:$0xf]
        %v6478 = vld [vmem:[%s6476 + $0x4] sm:$0xf]
        %v6479 = vld [vmem:[%s6476 + $0x8] sm:$0xf]
        %v6480 = vld [vmem:[%s6476 + $0xc] sm:$0xf]
        %v6485 = vunpack.c.l.b16 %v6477
        %v6486 = vunpack.c.l.b16 %v6478
        %v6487 = vunpack.c.l.b16 %v6479
        %v6488 = vunpack.c.l.b16 %v6480
        %v6489 = vpack.c.b16 %v6486, %v6485
        %v6490 = vpack.c.b16 %v6488, %v6487
        %v6494 = vsel %vm5283, %v6163, 0
        %6496 = vmatprep.subr.bf16.mxu0 0
        %6497 = vmatpush1.bf16.msra.mxu0 %v6489
        %6498 = vmatprep.subr.bf16.mxu0 0
        %6499 = vmatpush1.bf16.msra.mxu0 %v6490
        %6500 = vmatprep.subr.bf16.mxu0 0
        %6501 = vmatpush1.bf16.msra.mxu0 0
        %6502 = vmatprep.subr.bf16.mxu0 0
        %6503 = vmatpush1.bf16.msra.mxu0 0
        %6504 = vmatprep.subr.bf16.mxu0 0
        %6505 = vmatpush1.bf16.msra.mxu0 0
        %6506 = vmatprep.subr.bf16.mxu0 0
        %6507 = vmatpush1.bf16.msra.mxu0 0
        %6508 = vmatprep.subr.bf16.mxu0 0
        %6509 = vmatpush1.bf16.msra.mxu0 0
        %6510 = vmatprep.subr.bf16.mxu0 0
        %6511 = vmatpush1.bf16.msra.mxu0 0
        %6512 = vmatprep.subr.bf16.mxu0 0
        %6513 = vmatpush1.bf16.msra.mxu0 0
        %6514 = vmatprep.subr.bf16.mxu0 0
        %6515 = vmatpush1.bf16.msra.mxu0 0
        %6516 = vmatprep.subr.bf16.mxu0 0
        %6517 = vmatpush1.bf16.msra.mxu0 0
        %6518 = vmatprep.subr.bf16.mxu0 0
        %6519 = vmatpush1.bf16.msra.mxu0 0
        %6520 = vmatprep.subr.bf16.mxu0 0
        %6521 = vmatpush1.bf16.msra.mxu0 0
        %6522 = vmatprep.subr.bf16.mxu0 0
        %6523 = vmatpush1.bf16.msra.mxu0 0
        %6524 = vmatprep.subr.bf16.mxu0 0
        %6525 = vmatpush1.bf16.msra.mxu0 0
        %6526 = vmatprep.subr.bf16.mxu0 0
        %6527 = vmatpush1.bf16.msra.mxu0 0
        %6528 = vmatprep.mubr.bf16.mxu0 0
        %6529 = vmatmul.mubr.bf16.gmra.mrb[0].mxu0 %v6494
        %v6530 = vpop.f32.mrb[0].mxu0
        %v6531 = vadd.f32 0.0, %v6530
        %v6532 = vpop.f32.mrb[0].mxu0
        %v6533 = vpop.f32.mrb[0].mxu0
        %v6534 = vpop.f32.mrb[0].mxu0
        %6535 = vdwg.mxu0
        %v6536 = vadd.f32 %v6475, %v6531
        %s6537 = scalar_lea.vmem %s13, 96
        %v6538 = vld [vmem:[%s6537] sm:$0xf]
        %v6539 = vld [vmem:[%s6537 + $0x4] sm:$0xf]
        %v6540 = vld [vmem:[%s6537 + $0x8] sm:$0xf]
        %v6541 = vld [vmem:[%s6537 + $0xc] sm:$0xf]
        %v6546 = vunpack.c.l.b16 %v6538
        %v6547 = vunpack.c.l.b16 %v6539
        %v6548 = vunpack.c.l.b16 %v6540
        %v6549 = vunpack.c.l.b16 %v6541
        %v6550 = vpack.c.b16 %v6547, %v6546
        %v6551 = vpack.c.b16 %v6549, %v6548
        %v6555 = vsel %vm5283, %v6164, 0
        %6557 = vmatprep.subr.bf16.mxu0 0
        %6558 = vmatpush1.bf16.msra.mxu0 %v6550
        %6559 = vmatprep.subr.bf16.mxu0 0
        %6560 = vmatpush1.bf16.msra.mxu0 %v6551
        %6561 = vmatprep.subr.bf16.mxu0 0
        %6562 = vmatpush1.bf16.msra.mxu0 0
        %6563 = vmatprep.subr.bf16.mxu0 0
        %6564 = vmatpush1.bf16.msra.mxu0 0
        %6565 = vmatprep.subr.bf16.mxu0 0
        %6566 = vmatpush1.bf16.msra.mxu0 0
        %6567 = vmatprep.subr.bf16.mxu0 0
        %6568 = vmatpush1.bf16.msra.mxu0 0
        %6569 = vmatprep.subr.bf16.mxu0 0
        %6570 = vmatpush1.bf16.msra.mxu0 0
        %6571 = vmatprep.subr.bf16.mxu0 0
        %6572 = vmatpush1.bf16.msra.mxu0 0
        %6573 = vmatprep.subr.bf16.mxu0 0
        %6574 = vmatpush1.bf16.msra.mxu0 0
        %6575 = vmatprep.subr.bf16.mxu0 0
        %6576 = vmatpush1.bf16.msra.mxu0 0
        %6577 = vmatprep.subr.bf16.mxu0 0
        %6578 = vmatpush1.bf16.msra.mxu0 0
        %6579 = vmatprep.subr.bf16.mxu0 0
        %6580 = vmatpush1.bf16.msra.mxu0 0
        %6581 = vmatprep.subr.bf16.mxu0 0
        %6582 = vmatpush1.bf16.msra.mxu0 0
        %6583 = vmatprep.subr.bf16.mxu0 0
        %6584 = vmatpush1.bf16.msra.mxu0 0
        %6585 = vmatprep.subr.bf16.mxu0 0
        %6586 = vmatpush1.bf16.msra.mxu0 0
        %6587 = vmatprep.subr.bf16.mxu0 0
        %6588 = vmatpush1.bf16.msra.mxu0 0
        %6589 = vmatprep.mubr.bf16.mxu0 0
        %6590 = vmatmul.mubr.bf16.gmra.mrb[0].mxu0 %v6555
        %v6591 = vpop.f32.mrb[0].mxu0
        %v6592 = vadd.f32 0.0, %v6591
        %v6593 = vpop.f32.mrb[0].mxu0
        %v6594 = vpop.f32.mrb[0].mxu0
        %v6595 = vpop.f32.mrb[0].mxu0
        %6596 = vdwg.mxu0
        %v6597 = vadd.f32 %v6536, %v6592
        %s6598 = scalar_lea.vmem %s13, 112
        %v6599 = vld [vmem:[%s6598] sm:$0xf]
        %v6600 = vld [vmem:[%s6598 + $0x4] sm:$0xf]
        %v6601 = vld [vmem:[%s6598 + $0x8] sm:$0xf]
        %v6602 = vld [vmem:[%s6598 + $0xc] sm:$0xf]
        %v6607 = vunpack.c.l.b16 %v6599
        %v6608 = vunpack.c.l.b16 %v6600
        %v6609 = vunpack.c.l.b16 %v6601
        %v6610 = vunpack.c.l.b16 %v6602
        %v6611 = vpack.c.b16 %v6608, %v6607
        %v6612 = vpack.c.b16 %v6610, %v6609
        %v6616 = vsel %vm5283, %v6165, 0
        %6618 = vmatprep.subr.bf16.mxu0 0
        %6619 = vmatpush1.bf16.msra.mxu0 %v6611
        %6620 = vmatprep.subr.bf16.mxu0 0
        %6621 = vmatpush1.bf16.msra.mxu0 %v6612
        %6622 = vmatprep.subr.bf16.mxu0 0
        %6623 = vmatpush1.bf16.msra.mxu0 0
        %6624 = vmatprep.subr.bf16.mxu0 0
        %6625 = vmatpush1.bf16.msra.mxu0 0
        %6626 = vmatprep.subr.bf16.mxu0 0
        %6627 = vmatpush1.bf16.msra.mxu0 0
        %6628 = vmatprep.subr.bf16.mxu0 0
        %6629 = vmatpush1.bf16.msra.mxu0 0
        %6630 = vmatprep.subr.bf16.mxu0 0
        %6631 = vmatpush1.bf16.msra.mxu0 0
        %6632 = vmatprep.subr.bf16.mxu0 0
        %6633 = vmatpush1.bf16.msra.mxu0 0
        %6634 = vmatprep.subr.bf16.mxu0 0
        %6635 = vmatpush1.bf16.msra.mxu0 0
        %6636 = vmatprep.subr.bf16.mxu0 0
        %6637 = vmatpush1.bf16.msra.mxu0 0
        %6638 = vmatprep.subr.bf16.mxu0 0
        %6639 = vmatpush1.bf16.msra.mxu0 0
        %6640 = vmatprep.subr.bf16.mxu0 0
        %6641 = vmatpush1.bf16.msra.mxu0 0
        %6642 = vmatprep.subr.bf16.mxu0 0
        %6643 = vmatpush1.bf16.msra.mxu0 0
        %6644 = vmatprep.subr.bf16.mxu0 0
        %6645 = vmatpush1.bf16.msra.mxu0 0
        %6646 = vmatprep.subr.bf16.mxu0 0
        %6647 = vmatpush1.bf16.msra.mxu0 0
        %6648 = vmatprep.subr.bf16.mxu0 0
        %6649 = vmatpush1.bf16.msra.mxu0 0
        %6650 = vmatprep.mubr.bf16.mxu0 0
        %6651 = vmatmul.mubr.bf16.gmra.mrb[0].mxu0 %v6616
        %v6652 = vpop.f32.mrb[0].mxu0
        %v6653 = vadd.f32 0.0, %v6652
        %v6654 = vpop.f32.mrb[0].mxu0
        %v6655 = vpop.f32.mrb[0].mxu0
        %v6656 = vpop.f32.mrb[0].mxu0
        %6657 = vdwg.mxu0
        %v6658 = vadd.f32 %v6597, %v6653
        %s6659 = scalar_lea.vmem %s13, 128
        %v6660 = vld [vmem:[%s6659] sm:$0xf]
        %v6661 = vld [vmem:[%s6659 + $0x4] sm:$0xf]
        %v6662 = vld [vmem:[%s6659 + $0x8] sm:$0xf]
        %v6663 = vld [vmem:[%s6659 + $0xc] sm:$0xf]
        %v6668 = vunpack.c.l.b16 %v6660
        %v6669 = vunpack.c.l.b16 %v6661
        %v6670 = vunpack.c.l.b16 %v6662
        %v6671 = vunpack.c.l.b16 %v6663
        %v6672 = vpack.c.b16 %v6669, %v6668
        %v6673 = vpack.c.b16 %v6671, %v6670
        %v6677 = vsel %vm5283, %v6166, 0
        %6679 = vmatprep.subr.bf16.mxu0 0
        %6680 = vmatpush1.bf16.msra.mxu0 %v6672
        %6681 = vmatprep.subr.bf16.mxu0 0
        %6682 = vmatpush1.bf16.msra.mxu0 %v6673
        %6683 = vmatprep.subr.bf16.mxu0 0
        %6684 = vmatpush1.bf16.msra.mxu0 0
        %6685 = vmatprep.subr.bf16.mxu0 0
        %6686 = vmatpush1.bf16.msra.mxu0 0
        %6687 = vmatprep.subr.bf16.mxu0 0
        %6688 = vmatpush1.bf16.msra.mxu0 0
        %6689 = vmatprep.subr.bf16.mxu0 0
        %6690 = vmatpush1.bf16.msra.mxu0 0
        %6691 = vmatprep.subr.bf16.mxu0 0
        %6692 = vmatpush1.bf16.msra.mxu0 0
        %6693 = vmatprep.subr.bf16.mxu0 0
        %6694 = vmatpush1.bf16.msra.mxu0 0
        %6695 = vmatprep.subr.bf16.mxu0 0
        %6696 = vmatpush1.bf16.msra.mxu0 0
        %6697 = vmatprep.subr.bf16.mxu0 0
        %6698 = vmatpush1.bf16.msra.mxu0 0
        %6699 = vmatprep.subr.bf16.mxu0 0
        %6700 = vmatpush1.bf16.msra.mxu0 0
        %6701 = vmatprep.subr.bf16.mxu0 0
        %6702 = vmatpush1.bf16.msra.mxu0 0
        %6703 = vmatprep.subr.bf16.mxu0 0
        %6704 = vmatpush1.bf16.msra.mxu0 0
        %6705 = vmatprep.subr.bf16.mxu0 0
        %6706 = vmatpush1.bf16.msra.mxu0 0
        %6707 = vmatprep.subr.bf16.mxu0 0
        %6708 = vmatpush1.bf16.msra.mxu0 0
        %6709 = vmatprep.subr.bf16.mxu0 0
        %6710 = vmatpush1.bf16.msra.mxu0 0
        %6711 = vmatprep.mubr.bf16.mxu0 0
        %6712 = vmatmul.mubr.bf16.gmra.mrb[0].mxu0 %v6677
        %v6713 = vpop.f32.mrb[0].mxu0
        %v6714 = vadd.f32 0.0, %v6713
        %v6715 = vpop.f32.mrb[0].mxu0
        %v6716 = vpop.f32.mrb[0].mxu0
        %v6717 = vpop.f32.mrb[0].mxu0
        %6718 = vdwg.mxu0
        %v6719 = vadd.f32 %v6658, %v6714
        %s6720 = scalar_lea.vmem %s13, 144
        %v6721 = vld [vmem:[%s6720] sm:$0xf]
        %v6722 = vld [vmem:[%s6720 + $0x4] sm:$0xf]
        %v6723 = vld [vmem:[%s6720 + $0x8] sm:$0xf]
        %v6724 = vld [vmem:[%s6720 + $0xc] sm:$0xf]
        %v6729 = vunpack.c.l.b16 %v6721
        %v6730 = vunpack.c.l.b16 %v6722
        %v6731 = vunpack.c.l.b16 %v6723
        %v6732 = vunpack.c.l.b16 %v6724
        %v6733 = vpack.c.b16 %v6730, %v6729
        %v6734 = vpack.c.b16 %v6732, %v6731
        %v6738 = vsel %vm5283, %v6167, 0
        %6740 = vmatprep.subr.bf16.mxu0 0
        %6741 = vmatpush1.bf16.msra.mxu0 %v6733
        %6742 = vmatprep.subr.bf16.mxu0 0
        %6743 = vmatpush1.bf16.msra.mxu0 %v6734
        %6744 = vmatprep.subr.bf16.mxu0 0
        %6745 = vmatpush1.bf16.msra.mxu0 0
        %6746 = vmatprep.subr.bf16.mxu0 0
        %6747 = vmatpush1.bf16.msra.mxu0 0
        %6748 = vmatprep.subr.bf16.mxu0 0
        %6749 = vmatpush1.bf16.msra.mxu0 0
        %6750 = vmatprep.subr.bf16.mxu0 0
        %6751 = vmatpush1.bf16.msra.mxu0 0
        %6752 = vmatprep.subr.bf16.mxu0 0
        %6753 = vmatpush1.bf16.msra.mxu0 0
        %6754 = vmatprep.subr.bf16.mxu0 0
        %6755 = vmatpush1.bf16.msra.mxu0 0
        %6756 = vmatprep.subr.bf16.mxu0 0
        %6757 = vmatpush1.bf16.msra.mxu0 0
        %6758 = vmatprep.subr.bf16.mxu0 0
        %6759 = vmatpush1.bf16.msra.mxu0 0
        %6760 = vmatprep.subr.bf16.mxu0 0
        %6761 = vmatpush1.bf16.msra.mxu0 0
        %6762 = vmatprep.subr.bf16.mxu0 0
        %6763 = vmatpush1.bf16.msra.mxu0 0
        %6764 = vmatprep.subr.bf16.mxu0 0
        %6765 = vmatpush1.bf16.msra.mxu0 0
        %6766 = vmatprep.subr.bf16.mxu0 0
        %6767 = vmatpush1.bf16.msra.mxu0 0
        %6768 = vmatprep.subr.bf16.mxu0 0
        %6769 = vmatpush1.bf16.msra.mxu0 0
        %6770 = vmatprep.subr.bf16.mxu0 0
        %6771 = vmatpush1.bf16.msra.mxu0 0
        %6772 = vmatprep.mubr.bf16.mxu0 0
        %6773 = vmatmul.mubr.bf16.gmra.mrb[0].mxu0 %v6738
        %v6774 = vpop.f32.mrb[0].mxu0
        %v6775 = vadd.f32 0.0, %v6774
        %v6776 = vpop.f32.mrb[0].mxu0
        %v6777 = vpop.f32.mrb[0].mxu0
        %v6778 = vpop.f32.mrb[0].mxu0
        %6779 = vdwg.mxu0
        %v6780 = vadd.f32 %v6719, %v6775
        %s6781 = scalar_lea.vmem %s13, 160
        %v6782 = vld [vmem:[%s6781] sm:$0xf]
        %v6783 = vld [vmem:[%s6781 + $0x4] sm:$0xf]
        %v6784 = vld [vmem:[%s6781 + $0x8] sm:$0xf]
        %v6785 = vld [vmem:[%s6781 + $0xc] sm:$0xf]
        %v6790 = vunpack.c.l.b16 %v6782
        %v6791 = vunpack.c.l.b16 %v6783
        %v6792 = vunpack.c.l.b16 %v6784
        %v6793 = vunpack.c.l.b16 %v6785
        %v6794 = vpack.c.b16 %v6791, %v6790
        %v6795 = vpack.c.b16 %v6793, %v6792
        %v6799 = vsel %vm5283, %v6168, 0
        %6801 = vmatprep.subr.bf16.mxu0 0
        %6802 = vmatpush1.bf16.msra.mxu0 %v6794
        %6803 = vmatprep.subr.bf16.mxu0 0
        %6804 = vmatpush1.bf16.msra.mxu0 %v6795
        %6805 = vmatprep.subr.bf16.mxu0 0
        %6806 = vmatpush1.bf16.msra.mxu0 0
        %6807 = vmatprep.subr.bf16.mxu0 0
        %6808 = vmatpush1.bf16.msra.mxu0 0
        %6809 = vmatprep.subr.bf16.mxu0 0
        %6810 = vmatpush1.bf16.msra.mxu0 0
        %6811 = vmatprep.subr.bf16.mxu0 0
        %6812 = vmatpush1.bf16.msra.mxu0 0
        %6813 = vmatprep.subr.bf16.mxu0 0
        %6814 = vmatpush1.bf16.msra.mxu0 0
        %6815 = vmatprep.subr.bf16.mxu0 0
        %6816 = vmatpush1.bf16.msra.mxu0 0
        %6817 = vmatprep.subr.bf16.mxu0 0
        %6818 = vmatpush1.bf16.msra.mxu0 0
        %6819 = vmatprep.subr.bf16.mxu0 0
        %6820 = vmatpush1.bf16.msra.mxu0 0
        %6821 = vmatprep.subr.bf16.mxu0 0
        %6822 = vmatpush1.bf16.msra.mxu0 0
        %6823 = vmatprep.subr.bf16.mxu0 0
        %6824 = vmatpush1.bf16.msra.mxu0 0
        %6825 = vmatprep.subr.bf16.mxu0 0
        %6826 = vmatpush1.bf16.msra.mxu0 0
        %6827 = vmatprep.subr.bf16.mxu0 0
        %6828 = vmatpush1.bf16.msra.mxu0 0
        %6829 = vmatprep.subr.bf16.mxu0 0
        %6830 = vmatpush1.bf16.msra.mxu0 0
        %6831 = vmatprep.subr.bf16.mxu0 0
        %6832 = vmatpush1.bf16.msra.mxu0 0
        %6833 = vmatprep.mubr.bf16.mxu0 0
        %6834 = vmatmul.mubr.bf16.gmra.mrb[0].mxu0 %v6799
        %v6835 = vpop.f32.mrb[0].mxu0
        %v6836 = vadd.f32 0.0, %v6835
        %v6837 = vpop.f32.mrb[0].mxu0
        %v6838 = vpop.f32.mrb[0].mxu0
        %v6839 = vpop.f32.mrb[0].mxu0
        %6840 = vdwg.mxu0
        %v6841 = vadd.f32 %v6780, %v6836
        %s6842 = scalar_lea.vmem %s13, 176
        %v6843 = vld [vmem:[%s6842] sm:$0xf]
        %v6844 = vld [vmem:[%s6842 + $0x4] sm:$0xf]
        %v6845 = vld [vmem:[%s6842 + $0x8] sm:$0xf]
        %v6846 = vld [vmem:[%s6842 + $0xc] sm:$0xf]
        %v6851 = vunpack.c.l.b16 %v6843
        %v6852 = vunpack.c.l.b16 %v6844
        %v6853 = vunpack.c.l.b16 %v6845
        %v6854 = vunpack.c.l.b16 %v6846
        %v6855 = vpack.c.b16 %v6852, %v6851
        %v6856 = vpack.c.b16 %v6854, %v6853
        %v6860 = vsel %vm5283, %v6169, 0
        %6862 = vmatprep.subr.bf16.mxu0 0
        %6863 = vmatpush1.bf16.msra.mxu0 %v6855
        %6864 = vmatprep.subr.bf16.mxu0 0
        %6865 = vmatpush1.bf16.msra.mxu0 %v6856
        %6866 = vmatprep.subr.bf16.mxu0 0
        %6867 = vmatpush1.bf16.msra.mxu0 0
        %6868 = vmatprep.subr.bf16.mxu0 0
        %6869 = vmatpush1.bf16.msra.mxu0 0
        %6870 = vmatprep.subr.bf16.mxu0 0
        %6871 = vmatpush1.bf16.msra.mxu0 0
        %6872 = vmatprep.subr.bf16.mxu0 0
        %6873 = vmatpush1.bf16.msra.mxu0 0
        %6874 = vmatprep.subr.bf16.mxu0 0
        %6875 = vmatpush1.bf16.msra.mxu0 0
        %6876 = vmatprep.subr.bf16.mxu0 0
        %6877 = vmatpush1.bf16.msra.mxu0 0
        %6878 = vmatprep.subr.bf16.mxu0 0
        %6879 = vmatpush1.bf16.msra.mxu0 0
        %6880 = vmatprep.subr.bf16.mxu0 0
        %6881 = vmatpush1.bf16.msra.mxu0 0
        %6882 = vmatprep.subr.bf16.mxu0 0
        %6883 = vmatpush1.bf16.msra.mxu0 0
        %6884 = vmatprep.subr.bf16.mxu0 0
        %6885 = vmatpush1.bf16.msra.mxu0 0
        %6886 = vmatprep.subr.bf16.mxu0 0
        %6887 = vmatpush1.bf16.msra.mxu0 0
        %6888 = vmatprep.subr.bf16.mxu0 0
        %6889 = vmatpush1.bf16.msra.mxu0 0
        %6890 = vmatprep.subr.bf16.mxu0 0
        %6891 = vmatpush1.bf16.msra.mxu0 0
        %6892 = vmatprep.subr.bf16.mxu0 0
        %6893 = vmatpush1.bf16.msra.mxu0 0
        %6894 = vmatprep.mubr.bf16.mxu0 0
        %6895 = vmatmul.mubr.bf16.gmra.mrb[0].mxu0 %v6860
        %v6896 = vpop.f32.mrb[0].mxu0
        %v6897 = vadd.f32 0.0, %v6896
        %v6898 = vpop.f32.mrb[0].mxu0
        %v6899 = vpop.f32.mrb[0].mxu0
        %v6900 = vpop.f32.mrb[0].mxu0
        %6901 = vdwg.mxu0
        %v6902 = vadd.f32 %v6841, %v6897
        %s6903 = scalar_lea.vmem %s13, 192
        %v6904 = vld [vmem:[%s6903] sm:$0xf]
        %v6905 = vld [vmem:[%s6903 + $0x4] sm:$0xf]
        %v6906 = vld [vmem:[%s6903 + $0x8] sm:$0xf]
        %v6907 = vld [vmem:[%s6903 + $0xc] sm:$0xf]
        %v6912 = vunpack.c.l.b16 %v6904
        %v6913 = vunpack.c.l.b16 %v6905
        %v6914 = vunpack.c.l.b16 %v6906
        %v6915 = vunpack.c.l.b16 %v6907
        %v6916 = vpack.c.b16 %v6913, %v6912
        %v6917 = vpack.c.b16 %v6915, %v6914
        %v6921 = vsel %vm5283, %v6170, 0
        %6923 = vmatprep.subr.bf16.mxu0 0
        %6924 = vmatpush1.bf16.msra.mxu0 %v6916
        %6925 = vmatprep.subr.bf16.mxu0 0
        %6926 = vmatpush1.bf16.msra.mxu0 %v6917
        %6927 = vmatprep.subr.bf16.mxu0 0
        %6928 = vmatpush1.bf16.msra.mxu0 0
        %6929 = vmatprep.subr.bf16.mxu0 0
        %6930 = vmatpush1.bf16.msra.mxu0 0
        %6931 = vmatprep.subr.bf16.mxu0 0
        %6932 = vmatpush1.bf16.msra.mxu0 0
        %6933 = vmatprep.subr.bf16.mxu0 0
        %6934 = vmatpush1.bf16.msra.mxu0 0
        %6935 = vmatprep.subr.bf16.mxu0 0
        %6936 = vmatpush1.bf16.msra.mxu0 0
        %6937 = vmatprep.subr.bf16.mxu0 0
        %6938 = vmatpush1.bf16.msra.mxu0 0
        %6939 = vmatprep.subr.bf16.mxu0 0
        %6940 = vmatpush1.bf16.msra.mxu0 0
        %6941 = vmatprep.subr.bf16.mxu0 0
        %6942 = vmatpush1.bf16.msra.mxu0 0
        %6943 = vmatprep.subr.bf16.mxu0 0
        %6944 = vmatpush1.bf16.msra.mxu0 0
        %6945 = vmatprep.subr.bf16.mxu0 0
        %6946 = vmatpush1.bf16.msra.mxu0 0
        %6947 = vmatprep.subr.bf16.mxu0 0
        %6948 = vmatpush1.bf16.msra.mxu0 0
        %6949 = vmatprep.subr.bf16.mxu0 0
        %6950 = vmatpush1.bf16.msra.mxu0 0
        %6951 = vmatprep.subr.bf16.mxu0 0
        %6952 = vmatpush1.bf16.msra.mxu0 0
        %6953 = vmatprep.subr.bf16.mxu0 0
        %6954 = vmatpush1.bf16.msra.mxu0 0
        %6955 = vmatprep.mubr.bf16.mxu0 0
        %6956 = vmatmul.mubr.bf16.gmra.mrb[0].mxu0 %v6921
        %v6957 = vpop.f32.mrb[0].mxu0
        %v6958 = vadd.f32 0.0, %v6957
        %v6959 = vpop.f32.mrb[0].mxu0
        %v6960 = vpop.f32.mrb[0].mxu0
        %v6961 = vpop.f32.mrb[0].mxu0
        %6962 = vdwg.mxu0
        %v6963 = vadd.f32 %v6902, %v6958
        %s6964 = scalar_lea.vmem %s13, 208
        %v6965 = vld [vmem:[%s6964] sm:$0xf]
        %v6966 = vld [vmem:[%s6964 + $0x4] sm:$0xf]
        %v6967 = vld [vmem:[%s6964 + $0x8] sm:$0xf]
        %v6968 = vld [vmem:[%s6964 + $0xc] sm:$0xf]
        %v6973 = vunpack.c.l.b16 %v6965
        %v6974 = vunpack.c.l.b16 %v6966
        %v6975 = vunpack.c.l.b16 %v6967
        %v6976 = vunpack.c.l.b16 %v6968
        %v6977 = vpack.c.b16 %v6974, %v6973
        %v6978 = vpack.c.b16 %v6976, %v6975
        %v6982 = vsel %vm5283, %v6171, 0
        %6984 = vmatprep.subr.bf16.mxu0 0
        %6985 = vmatpush1.bf16.msra.mxu0 %v6977
        %6986 = vmatprep.subr.bf16.mxu0 0
        %6987 = vmatpush1.bf16.msra.mxu0 %v6978
        %6988 = vmatprep.subr.bf16.mxu0 0
        %6989 = vmatpush1.bf16.msra.mxu0 0
        %6990 = vmatprep.subr.bf16.mxu0 0
        %6991 = vmatpush1.bf16.msra.mxu0 0
        %6992 = vmatprep.subr.bf16.mxu0 0
        %6993 = vmatpush1.bf16.msra.mxu0 0
        %6994 = vmatprep.subr.bf16.mxu0 0
        %6995 = vmatpush1.bf16.msra.mxu0 0
        %6996 = vmatprep.subr.bf16.mxu0 0
        %6997 = vmatpush1.bf16.msra.mxu0 0
        %6998 = vmatprep.subr.bf16.mxu0 0
        %6999 = vmatpush1.bf16.msra.mxu0 0
        %7000 = vmatprep.subr.bf16.mxu0 0
        %7001 = vmatpush1.bf16.msra.mxu0 0
        %7002 = vmatprep.subr.bf16.mxu0 0
        %7003 = vmatpush1.bf16.msra.mxu0 0
        %7004 = vmatprep.subr.bf16.mxu0 0
        %7005 = vmatpush1.bf16.msra.mxu0 0
        %7006 = vmatprep.subr.bf16.mxu0 0
        %7007 = vmatpush1.bf16.msra.mxu0 0
        %7008 = vmatprep.subr.bf16.mxu0 0
        %7009 = vmatpush1.bf16.msra.mxu0 0
        %7010 = vmatprep.subr.bf16.mxu0 0
        %7011 = vmatpush1.bf16.msra.mxu0 0
        %7012 = vmatprep.subr.bf16.mxu0 0
        %7013 = vmatpush1.bf16.msra.mxu0 0
        %7014 = vmatprep.subr.bf16.mxu0 0
        %7015 = vmatpush1.bf16.msra.mxu0 0
        %7016 = vmatprep.mubr.bf16.mxu0 0
        %7017 = vmatmul.mubr.bf16.gmra.mrb[0].mxu0 %v6982
        %v7018 = vpop.f32.mrb[0].mxu0
        %v7019 = vadd.f32 0.0, %v7018
        %v7020 = vpop.f32.mrb[0].mxu0
        %v7021 = vpop.f32.mrb[0].mxu0
        %v7022 = vpop.f32.mrb[0].mxu0
        %7023 = vdwg.mxu0
        %v7024 = vadd.f32 %v6963, %v7019
        %s7025 = scalar_lea.vmem %s13, 224
        %v7026 = vld [vmem:[%s7025] sm:$0xf]
        %v7027 = vld [vmem:[%s7025 + $0x4] sm:$0xf]
        %v7028 = vld [vmem:[%s7025 + $0x8] sm:$0xf]
        %v7029 = vld [vmem:[%s7025 + $0xc] sm:$0xf]
        %v7034 = vunpack.c.l.b16 %v7026
        %v7035 = vunpack.c.l.b16 %v7027
        %v7036 = vunpack.c.l.b16 %v7028
        %v7037 = vunpack.c.l.b16 %v7029
        %v7038 = vpack.c.b16 %v7035, %v7034
        %v7039 = vpack.c.b16 %v7037, %v7036
        %v7043 = vsel %vm5283, %v6172, 0
        %7045 = vmatprep.subr.bf16.mxu0 0
        %7046 = vmatpush1.bf16.msra.mxu0 %v7038
        %7047 = vmatprep.subr.bf16.mxu0 0
        %7048 = vmatpush1.bf16.msra.mxu0 %v7039
        %7049 = vmatprep.subr.bf16.mxu0 0
        %7050 = vmatpush1.bf16.msra.mxu0 0
        %7051 = vmatprep.subr.bf16.mxu0 0
        %7052 = vmatpush1.bf16.msra.mxu0 0
        %7053 = vmatprep.subr.bf16.mxu0 0
        %7054 = vmatpush1.bf16.msra.mxu0 0
        %7055 = vmatprep.subr.bf16.mxu0 0
        %7056 = vmatpush1.bf16.msra.mxu0 0
        %7057 = vmatprep.subr.bf16.mxu0 0
        %7058 = vmatpush1.bf16.msra.mxu0 0
        %7059 = vmatprep.subr.bf16.mxu0 0
        %7060 = vmatpush1.bf16.msra.mxu0 0
        %7061 = vmatprep.subr.bf16.mxu0 0
        %7062 = vmatpush1.bf16.msra.mxu0 0
        %7063 = vmatprep.subr.bf16.mxu0 0
        %7064 = vmatpush1.bf16.msra.mxu0 0
        %7065 = vmatprep.subr.bf16.mxu0 0
        %7066 = vmatpush1.bf16.msra.mxu0 0
        %7067 = vmatprep.subr.bf16.mxu0 0
        %7068 = vmatpush1.bf16.msra.mxu0 0
        %7069 = vmatprep.subr.bf16.mxu0 0
        %7070 = vmatpush1.bf16.msra.mxu0 0
        %7071 = vmatprep.subr.bf16.mxu0 0
        %7072 = vmatpush1.bf16.msra.mxu0 0
        %7073 = vmatprep.subr.bf16.mxu0 0
        %7074 = vmatpush1.bf16.msra.mxu0 0
        %7075 = vmatprep.subr.bf16.mxu0 0
        %7076 = vmatpush1.bf16.msra.mxu0 0
        %7077 = vmatprep.mubr.bf16.mxu0 0
        %7078 = vmatmul.mubr.bf16.gmra.mrb[0].mxu0 %v7043
        %v7079 = vpop.f32.mrb[0].mxu0
        %v7080 = vadd.f32 0.0, %v7079
        %v7081 = vpop.f32.mrb[0].mxu0
        %v7082 = vpop.f32.mrb[0].mxu0
        %v7083 = vpop.f32.mrb[0].mxu0
        %7084 = vdwg.mxu0
        %v7085 = vadd.f32 %v7024, %v7080
        %s7086 = scalar_lea.vmem %s13, 240
        %v7087 = vld [vmem:[%s7086] sm:$0xf]
        %v7088 = vld [vmem:[%s7086 + $0x4] sm:$0xf]
        %v7089 = vld [vmem:[%s7086 + $0x8] sm:$0xf]
        %v7090 = vld [vmem:[%s7086 + $0xc] sm:$0xf]
        %v7095 = vunpack.c.l.b16 %v7087
        %v7096 = vunpack.c.l.b16 %v7088
        %v7097 = vunpack.c.l.b16 %v7089
        %v7098 = vunpack.c.l.b16 %v7090
        %v7099 = vpack.c.b16 %v7096, %v7095
        %v7100 = vpack.c.b16 %v7098, %v7097
        %v7104 = vsel %vm5283, %v6173, 0
        %7106 = vmatprep.subr.bf16.mxu0 0
        %7107 = vmatpush1.bf16.msra.mxu0 %v7099
        %7108 = vmatprep.subr.bf16.mxu0 0
        %7109 = vmatpush1.bf16.msra.mxu0 %v7100
        %7110 = vmatprep.subr.bf16.mxu0 0
        %7111 = vmatpush1.bf16.msra.mxu0 0
        %7112 = vmatprep.subr.bf16.mxu0 0
        %7113 = vmatpush1.bf16.msra.mxu0 0
        %7114 = vmatprep.subr.bf16.mxu0 0
        %7115 = vmatpush1.bf16.msra.mxu0 0
        %7116 = vmatprep.subr.bf16.mxu0 0
        %7117 = vmatpush1.bf16.msra.mxu0 0
        %7118 = vmatprep.subr.bf16.mxu0 0
        %7119 = vmatpush1.bf16.msra.mxu0 0
        %7120 = vmatprep.subr.bf16.mxu0 0
        %7121 = vmatpush1.bf16.msra.mxu0 0
        %7122 = vmatprep.subr.bf16.mxu0 0
        %7123 = vmatpush1.bf16.msra.mxu0 0
        %7124 = vmatprep.subr.bf16.mxu0 0
        %7125 = vmatpush1.bf16.msra.mxu0 0
        %7126 = vmatprep.subr.bf16.mxu0 0
        %7127 = vmatpush1.bf16.msra.mxu0 0
        %7128 = vmatprep.subr.bf16.mxu0 0
        %7129 = vmatpush1.bf16.msra.mxu0 0
        %7130 = vmatprep.subr.bf16.mxu0 0
        %7131 = vmatpush1.bf16.msra.mxu0 0
        %7132 = vmatprep.subr.bf16.mxu0 0
        %7133 = vmatpush1.bf16.msra.mxu0 0
        %7134 = vmatprep.subr.bf16.mxu0 0
        %7135 = vmatpush1.bf16.msra.mxu0 0
        %7136 = vmatprep.subr.bf16.mxu0 0
        %7137 = vmatpush1.bf16.msra.mxu0 0
        %7138 = vmatprep.mubr.bf16.mxu0 0
        %7139 = vmatmul.mubr.bf16.gmra.mrb[0].mxu0 %v7104
        %v7140 = vpop.f32.mrb[0].mxu0
        %v7141 = vadd.f32 0.0, %v7140
        %v7142 = vpop.f32.mrb[0].mxu0
        %v7143 = vpop.f32.mrb[0].mxu0
        %v7144 = vpop.f32.mrb[0].mxu0
        %7145 = vdwg.mxu0
        %v7146 = vadd.f32 %v7085, %v7141
        %v7147 = vld [vmem:[%s14] sm:$0x1]
        %v7149 = vlaneseq
        %v7150 = vshrl.u32 %v7149, 7
        %v7151 = vsub.s32 0, %v7150
        %v7152 = vrot.slane %v7147, %v7151
        %v7154 = vadd.f32 %v7146, %v7152
        %vm7155 = vcmask 24576
        %7156 = vst.msk [vmem:[%s523] sm:$0x1] %vm7155, %v7154
        %p7157 = scmp.lt.s32.totalorder %s33, 1
        %s7158 = scalar_select %p7157, %s33, 1
        %s7159 = smul.addr %s7158, 2
        %s7160 = smul.addr %s7159, 8
        %s7161 = scalar_lea.vmem %s15, %s7160
        %s7162 = sand.u32 %s387, 1
        %s7163 = scalar_lea.sflag [#allocation4], %s7162
        %s7164 = sand.u32 %s387, 1
        %s7165 = scalar_lea.vmem [#allocation3], %s7164
        // Predicated region
        $region81: #{forward.1} parent=79 // pred_check
          %p7166 = pneg %p371
        $region82: #{forward.1} parent=79 // pred_check_branch
          %7168 = sbr.rel (%p7166) target = $region84
        $region83: #{forward.1} parent=79 // pred_region
          _
        $region84: #{forward.1} parent=79 // pred_fallthru
          _
        // Predicated region
        $region85: #{forward.1} parent=79 // pred_check
          %p7169 = pneg %p397
        $region86: #{forward.1} parent=79 // pred_check_branch
          %7171 = sbr.rel (%p7169) target = $region88
        $region87: #{forward.1} parent=79 // pred_region
          %s7173 = ssub.s32 16, 16
          %7174 = vsyncadd %s7163, %s7173
          %s7175 = smul.addr %s33, 16
          %s7176 = scalar_lea.hbm %s16, %s7175
          %s7178 = sshll.u32 %s7165, 4
          %s7179 = int_to_ptr.vmem [resolvable:$true] %s7178
          %7181 = dma.vmem_to_hbm [thread:$0]  %s7179, 16, %s7176, %s7163
        $region88: #{forward.1} parent=79 // pred_fallthru
          _
      $region80: #{forward.1} parent=5 // pred_fallthru
        _
      %p7182 = scmp.le.s32.totalorder 2, %s28
      // Predicated region
      $region89: #{forward.1} parent=5 // pred_check
        %p7183 = pneg %p7182
      $region90: #{forward.1} parent=5 // pred_check_branch
        %7185 = sbr.rel (%p7183) target = $region92
      $region91: #{forward.1} parent=5 // pred_region
        %s7186 = ssub.s32 %s28, 2
        // Predicated region
        $region93: #{forward.1} parent=91 // pred_check
          %p7187 = pneg %p377
        $region94: #{forward.1} parent=91 // pred_check_branch
          %7189 = sbr.rel (%p7187) target = $region96
        $region95: #{forward.1} parent=91 // pred_region
          %p7190 = scmp.lt.s32.totalorder %s34, 1
          %s7191 = scalar_select %p7190, %s34, 1
          %s7192 = smul.addr %s7191, 2
          %s7193 = smul.addr %s7192, 8
          %s7194 = scalar_lea.vmem %s15, %s7193
        $region96: #{forward.1} parent=91 // pred_fallthru
          _
        // Predicated region
        $region97: #{forward.1} parent=91 // pred_check
          %p7195 = pneg %p403
        $region98: #{forward.1} parent=91 // pred_check_branch
          %7197 = sbr.rel (%p7195) target = $region100
        $region99: #{forward.1} parent=91 // pred_region
          %s7198 = sand.u32 %s388, 1
          %s7199 = scalar_lea.sflag [#allocation4], %s7198
          %s7200 = sand.u32 %s388, 1
          %s7201 = scalar_lea.vmem [#allocation3], %s7200
          %7202 = dma.done %s7199, 16
        $region100: #{forward.1} parent=91 // pred_fallthru
          _
      $region92: #{forward.1} parent=5 // pred_fallthru
        _
    $region6: #{forward.1} parent=1 // loop_footer
      %s32 = sadd.s32 1, %s28
    $region7: #{forward.1} parent=1 // loop_footer_branch
      %27 = sbr.rel target = $region3
    $region8: #{forward.1} parent=1 // loop_exit
      _
    %7203 = vsyncpa [#allocation4], 1
    %s7204 = scalar_lea.sflag [#allocation4], 1
    %7205 = vsyncpa %s7204, 1

</llo_original>
